<compile_context>
chip_gen: v7x
topology: tpu7x:2x2x1
jax: 0.10.0
libtpu: 0.0.40
codegen_flags: <defaults>
</compile_context>

<pallas_src>
import numpy as np

import jax
import jax.numpy as jnp
from jax.experimental import pallas as pl
from jax.experimental.pallas import tpu as pltpu


# ------------------------------ fused kernel -------------------------------- #

def _make_cnn_kernel(tb):
    """Fused forward kernel for a batch tile of `tb` images.

    Activation layouts (row order is m-major, image-within-tile minor):
      x1  : [7*tb, 168]  row (m, t) = input rows 4m-1..4m+4 of image t, 28 cols
                         each, lane = d*28 + w (border rows are zeros).
      h1e : [8*tb, 448]  rows [0,7tb)  = conv1 pooled rows 2m   (lane = ow*32+c),
                         rows [7tb,8tb) = zeros (vertical pad, row 14).
      h1o : [8*tb, 448]  rows [0,tb)   = zeros (vertical pad, row -1),
                         rows [tb,8tb) = conv1 pooled rows 2m+1.
      h2  : [7*tb, 448]  conv2 pooled rows m (lane = ow*64 + c).
    """
    R = 7 * tb

    def kernel(x1_ref, w1_ref, b1_ref, w2_ref, b2_ref,
               wf1_ref, bf1_ref, wf2_ref, bf2_ref,
               o_ref, h1e_ref, h1o_ref, h2_ref):
        # ---- conv1: one wide matmul per output-row parity computes all four
        # (vertical ph, horizontal pw) pool partners; pooling = lane-block maxes,
        # bias hoisted out of the max (exact), relu last.
        x1 = x1_ref[...]                                   # [R, 168] bf16
        b1 = b1_ref[...]                                   # [1, 448] f32

        def conv1_half(parity):
            y = jnp.dot(x1, w1_ref[parity],
                        preferred_element_type=jnp.float32)      # [R, 1792]
            y = jnp.maximum(y[:, :896], y[:, 896:])              # vertical 2x pool
            y = jnp.maximum(y[:, :448], y[:, 448:])              # horizontal 2x pool
            return jnp.maximum(y + b1, 0.0).astype(jnp.bfloat16)

        pad = jnp.zeros((tb, 448), jnp.bfloat16)
        h1e_ref[0:R, :] = conv1_half(0)            # even conv1 output rows (2m)
        h1e_ref[R:R + tb, :] = pad                 # bottom zero pad (row 14)
        h1o_ref[0:tb, :] = pad                     # top zero pad    (row -1)
        h1o_ref[tb:tb + R, :] = conv1_half(1)      # odd conv1 output rows (2m+1)

        # ---- conv2: every 3x3 vertical tap gather is a contiguous slice of the
        # zero-padded scratches; weight-stationary kh loop reuses each tap matrix
        # for both vertical-pool partners (6 matmuls total).
        rows = (h1o_ref[0:R, :],                   # h1 row 2m-1 (zero for m == 0)
                h1e_ref[0:R, :],                   # h1 row 2m
                h1o_ref[tb:tb + R, :],             # h1 row 2m+1
                h1e_ref[tb:tb + R, :])             # h1 row 2m+2 (zero for m == 6)
        acc0 = acc1 = None
        for kh in range(3):
            w_kh = w2_ref[kh]                      # [448, 896]
            a0 = jnp.dot(rows[kh], w_kh, preferred_element_type=jnp.float32)
            a1 = jnp.dot(rows[kh + 1], w_kh, preferred_element_type=jnp.float32)
            acc0 = a0 if acc0 is None else acc0 + a0
            acc1 = a1 if acc1 is None else acc1 + a1
        y2 = jnp.maximum(acc0, acc1)                               # vertical pool
        y2 = jnp.maximum(y2[:, :448], y2[:, 448:])                 # horizontal pool
        h2_ref[...] = jnp.maximum(y2 + b2_ref[...], 0.0).astype(jnp.bfloat16)

        # ---- fc head: the NCHW flatten is folded into fc1's row layout, so each
        # image-row block of h2 contracts against its own [448, 128] slab.
        acc = jnp.zeros((tb, 128), jnp.float32)
        for m in range(7):                         # contiguous m-major row blocks
            acc = acc + jnp.dot(h2_ref[m * tb:(m + 1) * tb, :], wf1_ref[m],
                                preferred_element_type=jnp.float32)
        h = jnp.maximum(acc + bf1_ref[...], 0.0).astype(jnp.bfloat16)
        y = jnp.dot(h, wf2_ref[...], preferred_element_type=jnp.float32)
        o_ref[...] = y + bf2_ref[...]              # fc2 lanes zero-padded 10 -> 128

    return kernel


# ------------------------------ tiling helpers ------------------------------ #

def _round_up(x, m):
    return ((x + m - 1) // m) * m


def _choose_tiling(batch, max_tb):
    """Pick (tile, n_tiles, padded_batch).  Tiles are multiples of 8 and there are
    >= 2 grid steps whenever batch >= 16 (so a v7x megacore can split the
    'parallel' axis); non-dividing batches are zero-padded (no quadratic fallback)."""
    if batch >= 16:
        tb = min(max_tb, _round_up(pl.cdiv(batch, 2), 8))
        n_tiles = pl.cdiv(batch, tb)
    else:
        tb, n_tiles = batch, 1
    return tb, n_tiles, tb * n_tiles


# ------------------------- one-time parameter prep -------------------------- #

def _build_conv1_packed(w_oihw, b_vec):
    """Conv1 (Cin=1) lane-packed weights: [2 parity, 168, 1792].

    LHS lane layout (packed input row for pooled-output row m):
      lane = d*28 + w  ->  input pixel (row 4m + d - 1, col w), d in [0,6).
    Column layout: ph*896 + pw*448 + ow*32 + cout (ph/pw = vertical/horizontal
    pool partners, ow in [0,14)).  Vertical zero padding is carried by the packed
    input's zero rows; horizontal padding by omitted weight blocks."""
    w = np.asarray(w_oihw, np.float32)           # [32, 1, 3, 3]
    b = np.asarray(b_vec, np.float32)
    W = np.zeros((2, 6, 28, 2, 2, 14, 32), np.float32)
    for par in range(2):
        for ph in range(2):
            for kh in range(3):
                d = 2 * par + ph + kh            # packed row offset (in-row 4m+d-1)
                for pw in range(2):
                    for kw in range(3):
                        for ow in range(14):
                            w_in = 2 * ow + pw + kw - 1
                            if 0 <= w_in < 28:
                                W[par, d, w_in, ph, pw, ow, :] = w[:, 0, kh, kw]
    bias = np.tile(b, 14)[None, :]               # [1, 448], lane = ow*32 + cout
    return (jnp.asarray(W.reshape(2, 168, 1792), jnp.bfloat16),
            jnp.asarray(bias, jnp.float32))


def _build_conv2_folded(w_oihw, b_vec):
    """Conv2 folded tap weights: [3 kh, 448, 896].

    Row layout (= h1 lane layout): w_in*32 + cin, w_in in [0,14).
    Column layout: pw*448 + ow*64 + cout, ow in [0,7)."""
    w = np.asarray(w_oihw, np.float32)           # [64, 32, 3, 3]
    b = np.asarray(b_vec, np.float32)
    W = np.zeros((3, 14, 32, 2, 7, 64), np.float32)
    for kh in range(3):
        for kw in range(3):
            blk = w[:, :, kh, kw].T              # [cin=32, cout=64]
            for pw in range(2):
                for ow in range(7):
                    w_in = 2 * ow + pw + kw - 1
                    if 0 <= w_in < 14:
                        W[kh, w_in, :, pw, ow, :] = blk
    bias = np.tile(b, 7)[None, :]                # [1, 448], lane = ow*64 + cout
    return (jnp.asarray(W.reshape(3, 448, 896), jnp.bfloat16),
            jnp.asarray(bias, jnp.float32))


def init_params(key):
    """PyTorch-layout parameters (same shapes as the nn.Module)."""
    ks = jax.random.split(key, 8)
    s = 0.05
    return {
        "conv1_w": s * jax.random.normal(ks[0], (32, 1, 3, 3), jnp.float32),
        "conv1_b": s * jax.random.normal(ks[1], (32,), jnp.float32),
        "conv2_w": s * jax.random.normal(ks[2], (64, 32, 3, 3), jnp.float32),
        "conv2_b": s * jax.random.normal(ks[3], (64,), jnp.float32),
        "fc1_w":   s * jax.random.normal(ks[4], (128, 64 * 7 * 7), jnp.float32),
        "fc1_b":   s * jax.random.normal(ks[5], (128,), jnp.float32),
        "fc2_w":   s * jax.random.normal(ks[6], (10, 128), jnp.float32),
        "fc2_b":   s * jax.random.normal(ks[7], (10,), jnp.float32),
    }


def prepare_params(p):
    """One-time re-layout of PyTorch params into kernel-ready matrices."""
    c1_w, c1_b = _build_conv1_packed(p["conv1_w"], p["conv1_b"])
    c2_w, c2_b = _build_conv2_folded(p["conv2_w"], p["conv2_b"])
    # fc1: fold PyTorch's NCHW flatten (f = c*49 + oh*7 + ow) into the weight,
    # grouped by oh so the kernel contracts one contiguous h2 row-block per oh.
    w1 = np.asarray(p["fc1_w"], np.float32)                         # [128, 3136]
    wf1 = (w1.T.reshape(64, 7, 7, 128)         # [c, oh, ow, out]
               .transpose(1, 2, 0, 3)          # [oh, ow, c, out]
               .reshape(7, 448, 128))
    bf1 = np.asarray(p["fc1_b"], np.float32)[None, :]
    # fc2: transpose and zero-pad the 10 output columns to a lane-dense 128.
    w2 = np.asarray(p["fc2_w"], np.float32)                         # [10, 128]
    wf2 = np.zeros((128, 128), np.float32)
    wf2[:, :10] = w2.T
    bf2 = np.zeros((1, 128), np.float32)
    bf2[0, :10] = np.asarray(p["fc2_b"], np.float32)
    return {
        "c1_w": c1_w, "c1_b": c1_b, "c2_w": c2_w, "c2_b": c2_b,
        "fc1_w": jnp.asarray(wf1, jnp.bfloat16), "fc1_b": jnp.asarray(bf1, jnp.float32),
        "fc2_w": jnp.asarray(wf2, jnp.bfloat16), "fc2_b": jnp.asarray(bf2, jnp.float32),
    }


# ---------------------------------- model ----------------------------------- #

def cnn_forward(kp, x_nchw, *, max_tb=64):
    """x_nchw: [B, 1, 28, 28] -> logits [B, 10] f32 (matches PyTorch CNN.forward)."""
    B = x_nchw.shape[0]
    tb, n_tiles, Bp = _choose_tiling(B, max_tb)
    R = 7 * tb

    # Pack conv1's input in XLA (tiny tensor): for every pooled-output row m,
    # lane-concatenate the 6 input rows 4m-1 .. 4m+4 (zero border rows), ordered
    # (tile, m, image-within-tile) so every kernel access is a contiguous block.
    x = x_nchw.astype(jnp.bfloat16).reshape(B, 28, 28)
    if Bp != B:
        x = jnp.concatenate([x, jnp.zeros((Bp - B, 28, 28), x.dtype)], axis=0)
    xp = jnp.pad(x, ((0, 0), (1, 1), (0, 0)))                        # [Bp, 30, 28]
    wins = jnp.stack([xp[:, 4 * m:4 * m + 6, :] for m in range(7)], axis=1)
    x1 = (wins.reshape(n_tiles, tb, 7, 168)
              .transpose(0, 2, 1, 3)
              .reshape(n_tiles * R, 168))

    out = pl.pallas_call(
        _make_cnn_kernel(tb),
        out_shape=jax.ShapeDtypeStruct((Bp, 128), jnp.float32),
        grid=(n_tiles,),
        in_specs=[
            pl.BlockSpec((R, 168), lambda i: (i, 0)),                # per-tile input
            pl.BlockSpec((2, 168, 1792), lambda i: (0, 0, 0)),       # grid-invariant
            pl.BlockSpec((1, 448), lambda i: (0, 0)),                # weights/biases
            pl.BlockSpec((3, 448, 896), lambda i: (0, 0, 0)),
            pl.BlockSpec((1, 448), lambda i: (0, 0)),
            pl.BlockSpec((7, 448, 128), lambda i: (0, 0, 0)),
            pl.BlockSpec((1, 128), lambda i: (0, 0)),
            pl.BlockSpec((128, 128), lambda i: (0, 0)),
            pl.BlockSpec((1, 128), lambda i: (0, 0)),
        ],
        out_specs=pl.BlockSpec((tb, 128), lambda i: (i, 0)),
        scratch_shapes=[
            pltpu.VMEM((R + tb, 448), jnp.bfloat16),   # h1 even rows + bottom pad
            pltpu.VMEM((R + tb, 448), jnp.bfloat16),   # h1 odd rows  + top pad
            pltpu.VMEM((R, 448), jnp.bfloat16),        # h2
        ],
        compiler_params=pltpu.CompilerParams(
            dimension_semantics=("parallel",),         # batch tiles -> v7x dual TC
            vmem_limit_bytes=48 * 1024 * 1024,
        ),
    )(x1, kp["c1_w"], kp["c1_b"], kp["c2_w"], kp["c2_b"],
      kp["fc1_w"], kp["fc1_b"], kp["fc2_w"], kp["fc2_b"])
    return out[:B, :10]


def reference_forward(p, x_nchw):
    """Pure-XLA f32 reference matching the PyTorch module."""
    x = x_nchw.astype(jnp.float32)

    def conv(h, w, b):
        y = jax.lax.conv_general_dilated(
            h, w, (1, 1), ((1, 1), (1, 1)),
            dimension_numbers=("NCHW", "OIHW", "NCHW"))
        return y + b.reshape(1, -1, 1, 1)

    def pool_relu(y):
        m = jax.lax.reduce_window(y, -jnp.inf, jax.lax.max,
                                  (1, 1, 2, 2), (1, 1, 2, 2), "VALID")
        return jnp.maximum(m, 0.0)

    h = pool_relu(conv(x, p["conv1_w"], p["conv1_b"]))
    h = pool_relu(conv(h, p["conv2_w"], p["conv2_b"]))
    flat = h.reshape(x.shape[0], -1)
    h = jnp.maximum(flat @ p["fc1_w"].T + p["fc1_b"], 0.0)
    return h @ p["fc2_w"].T + p["fc2_b"]


if __name__ == "__main__":
    key = jax.random.PRNGKey(0)
    pkey, xkey = jax.random.split(key)
    params = init_params(pkey)
    kparams = prepare_params(params)
    # MNIST-shaped input (B=2, C=1, 28x28) — required by fc1's 64*7*7 input size.
    x = jax.random.normal(xkey, (2, 1, 28, 28), jnp.float32)

    fwd = jax.jit(cnn_forward)
    logits = fwd(kparams, x)
    jax.block_until_ready(logits)
    assert logits.shape == (2, 10) and logits.dtype == jnp.float32

    ref = reference_forward(params, x)
    np.testing.assert_allclose(np.asarray(logits), np.asarray(ref),
                               atol=3e-2, rtol=3e-2)
    print("KERNEL_OK")
</pallas_src>

<mosaic_0001>
module attributes {stable_mosaic.version = 11 : i64} {
  func.func @kernel(%arg0: i32, %arg1: memref<14x168xbf16, #tpu.memory_space<vmem>>, %arg2: memref<2x168x1792xbf16, #tpu.memory_space<vmem>>, %arg3: memref<1x448xf32, #tpu.memory_space<vmem>>, %arg4: memref<3x448x896xbf16, #tpu.memory_space<vmem>>, %arg5: memref<1x448xf32, #tpu.memory_space<vmem>>, %arg6: memref<7x448x128xbf16, #tpu.memory_space<vmem>>, %arg7: memref<1x128xf32, #tpu.memory_space<vmem>>, %arg8: memref<128x128xbf16, #tpu.memory_space<vmem>>, %arg9: memref<1x128xf32, #tpu.memory_space<vmem>>, %arg10: memref<2x128xf32, #tpu.memory_space<vmem>>, %arg11: memref<16x448xbf16, #tpu.memory_space<vmem>>, %arg12: memref<16x448xbf16, #tpu.memory_space<vmem>>, %arg13: memref<14x448xbf16, #tpu.memory_space<vmem>>) attributes {dimension_semantics = [#tpu.dimension_semantics<parallel>], iteration_bounds = array<i64: 1>, scalar_prefetch = 0 : i64, scratch_operands = 3 : i64, tpu.core_type = #tpu.core_type<tc>, window_params = [{transform_indices = @transform_0, window_bounds = array<i64: 14, 168>}, {pipeline_mode = #tpu.pipeline_mode<synchronous>, transform_indices = @transform_1, window_bounds = array<i64: 2, 168, 1792>}, {pipeline_mode = #tpu.pipeline_mode<synchronous>, transform_indices = @transform_2, window_bounds = array<i64: 1, 448>}, {pipeline_mode = #tpu.pipeline_mode<synchronous>, transform_indices = @transform_3, window_bounds = array<i64: 3, 448, 896>}, {pipeline_mode = #tpu.pipeline_mode<synchronous>, transform_indices = @transform_4, window_bounds = array<i64: 1, 448>}, {pipeline_mode = #tpu.pipeline_mode<synchronous>, transform_indices = @transform_5, window_bounds = array<i64: 7, 448, 128>}, {pipeline_mode = #tpu.pipeline_mode<synchronous>, transform_indices = @transform_6, window_bounds = array<i64: 1, 128>}, {pipeline_mode = #tpu.pipeline_mode<synchronous>, transform_indices = @transform_7, window_bounds = array<i64: 128, 128>}, {pipeline_mode = #tpu.pipeline_mode<synchronous>, transform_indices = @transform_8, window_bounds = array<i64: 1, 128>}, {transform_indices = @transform_9, window_bounds = array<i64: 2, 128>}]} {
    %c0 = arith.constant 0 : index
    %c0_0 = arith.constant 0 : index
    %0 = vector.load %arg1[%c0, %c0_0] : memref<14x168xbf16, #tpu.memory_space<vmem>>, vector<14x168xbf16>
    %c0_1 = arith.constant 0 : index
    %c0_2 = arith.constant 0 : index
    %1 = vector.load %arg3[%c0_1, %c0_2] : memref<1x448xf32, #tpu.memory_space<vmem>>, vector<1x448xf32>
    %cst = arith.constant 0.000000e+00 : bf16
    %2 = vector.broadcast %cst : bf16 to vector<2x448xbf16>
    %c0_3 = arith.constant 0 : index
    %c0_4 = arith.constant 0 : index
    %c0_5 = arith.constant 0 : index
    %3 = vector.load %arg2[%c0_3, %c0_4, %c0_5] : memref<2x168x1792xbf16, #tpu.memory_space<vmem>>, vector<1x168x1792xbf16>
    %4 = vector.shape_cast %3 : vector<1x168x1792xbf16> to vector<168x1792xbf16>
    %cst_6 = arith.constant dense<0.000000e+00> : vector<14x1792xf32>
    %5 = tpu.matmul %0, %4, %cst_6 {dimension_numbers = #tpu.dot_dimension_numbers<[1], [0], [0], [1], [0, 0, 1, 1], [], []>} : vector<14x168xbf16>, vector<168x1792xbf16>, vector<14x1792xf32> -> vector<14x1792xf32>
    %6 = vector.extract_strided_slice %5 {offsets = [0, 0], sizes = [14, 896], strides = [1, 1]} : vector<14x1792xf32> to vector<14x896xf32>
    %7 = vector.extract_strided_slice %5 {offsets = [0, 896], sizes = [14, 896], strides = [1, 1]} : vector<14x1792xf32> to vector<14x896xf32>
    %8 = arith.maximumf %6, %7 : vector<14x896xf32>
    %9 = vector.extract_strided_slice %8 {offsets = [0, 0], sizes = [14, 448], strides = [1, 1]} : vector<14x896xf32> to vector<14x448xf32>
    %10 = vector.extract_strided_slice %8 {offsets = [0, 448], sizes = [14, 448], strides = [1, 1]} : vector<14x896xf32> to vector<14x448xf32>
    %11 = arith.maximumf %9, %10 : vector<14x448xf32>
    %12 = vector.broadcast %1 : vector<1x448xf32> to vector<14x448xf32>
    %13 = arith.addf %11, %12 : vector<14x448xf32>
    %cst_7 = arith.constant 0.000000e+00 : f32
    %14 = vector.broadcast %cst_7 : f32 to vector<14x448xf32>
    %15 = arith.maximumf %13, %14 : vector<14x448xf32>
    %16 = arith.truncf %15 : vector<14x448xf32> to vector<14x448xbf16>
    %c0_8 = arith.constant 0 : index
    %c0_9 = arith.constant 0 : index
    %17 = vector.load %arg11[%c0_8, %c0_9] : memref<16x448xbf16, #tpu.memory_space<vmem>>, vector<14x448xbf16>
    tpu.vector_store %arg11[%c0_8, %c0_9], %16 {strides = array<i32>} : memref<16x448xbf16, #tpu.memory_space<vmem>>, vector<14x448xbf16>,
    %c14 = arith.constant 14 : index
    %c0_10 = arith.constant 0 : index
    %18 = vector.load %arg11[%c14, %c0_10] : memref<16x448xbf16, #tpu.memory_space<vmem>>, vector<2x448xbf16>
    tpu.vector_store %arg11[%c14, %c0_10], %2 {strides = array<i32>} : memref<16x448xbf16, #tpu.memory_space<vmem>>, vector<2x448xbf16>,
    %c0_11 = arith.constant 0 : index
    %c0_12 = arith.constant 0 : index
    %19 = vector.load %arg12[%c0_11, %c0_12] : memref<16x448xbf16, #tpu.memory_space<vmem>>, vector<2x448xbf16>
    tpu.vector_store %arg12[%c0_11, %c0_12], %2 {strides = array<i32>} : memref<16x448xbf16, #tpu.memory_space<vmem>>, vector<2x448xbf16>,
    %c1 = arith.constant 1 : index
    %c0_13 = arith.constant 0 : index
    %c0_14 = arith.constant 0 : index
    %20 = vector.load %arg2[%c1, %c0_13, %c0_14] : memref<2x168x1792xbf16, #tpu.memory_space<vmem>>, vector<1x168x1792xbf16>
    %21 = vector.shape_cast %20 : vector<1x168x1792xbf16> to vector<168x1792xbf16>
    %cst_15 = arith.constant dense<0.000000e+00> : vector<14x1792xf32>
    %22 = tpu.matmul %0, %21, %cst_15 {dimension_numbers = #tpu.dot_dimension_numbers<[1], [0], [0], [1], [0, 0, 1, 1], [], []>} : vector<14x168xbf16>, vector<168x1792xbf16>, vector<14x1792xf32> -> vector<14x1792xf32>
    %23 = vector.extract_strided_slice %22 {offsets = [0, 0], sizes = [14, 896], strides = [1, 1]} : vector<14x1792xf32> to vector<14x896xf32>
    %24 = vector.extract_strided_slice %22 {offsets = [0, 896], sizes = [14, 896], strides = [1, 1]} : vector<14x1792xf32> to vector<14x896xf32>
    %25 = arith.maximumf %23, %24 : vector<14x896xf32>
    %26 = vector.extract_strided_slice %25 {offsets = [0, 0], sizes = [14, 448], strides = [1, 1]} : vector<14x896xf32> to vector<14x448xf32>
    %27 = vector.extract_strided_slice %25 {offsets = [0, 448], sizes = [14, 448], strides = [1, 1]} : vector<14x896xf32> to vector<14x448xf32>
    %28 = arith.maximumf %26, %27 : vector<14x448xf32>
    %29 = vector.broadcast %1 : vector<1x448xf32> to vector<14x448xf32>
    %30 = arith.addf %28, %29 : vector<14x448xf32>
    %cst_16 = arith.constant 0.000000e+00 : f32
    %31 = vector.broadcast %cst_16 : f32 to vector<14x448xf32>
    %32 = arith.maximumf %30, %31 : vector<14x448xf32>
    %33 = arith.truncf %32 : vector<14x448xf32> to vector<14x448xbf16>
    %c2 = arith.constant 2 : index
    %c0_17 = arith.constant 0 : index
    %34 = vector.load %arg12[%c2, %c0_17] : memref<16x448xbf16, #tpu.memory_space<vmem>>, vector<14x448xbf16>
    tpu.vector_store %arg12[%c2, %c0_17], %33 {strides = array<i32>} : memref<16x448xbf16, #tpu.memory_space<vmem>>, vector<14x448xbf16>,
    %c0_18 = arith.constant 0 : index
    %c0_19 = arith.constant 0 : index
    %35 = vector.load %arg12[%c0_18, %c0_19] : memref<16x448xbf16, #tpu.memory_space<vmem>>, vector<14x448xbf16>
    %c0_20 = arith.constant 0 : index
    %c0_21 = arith.constant 0 : index
    %36 = vector.load %arg11[%c0_20, %c0_21] : memref<16x448xbf16, #tpu.memory_space<vmem>>, vector<14x448xbf16>
    %c2_22 = arith.constant 2 : index
    %c0_23 = arith.constant 0 : index
    %37 = vector.load %arg12[%c2_22, %c0_23] : memref<16x448xbf16, #tpu.memory_space<vmem>>, vector<14x448xbf16>
    %c2_24 = arith.constant 2 : index
    %c0_25 = arith.constant 0 : index
    %38 = vector.load %arg11[%c2_24, %c0_25] : memref<16x448xbf16, #tpu.memory_space<vmem>>, vector<14x448xbf16>
    %c0_26 = arith.constant 0 : index
    %c0_27 = arith.constant 0 : index
    %c0_28 = arith.constant 0 : index
    %39 = vector.load %arg4[%c0_26, %c0_27, %c0_28] : memref<3x448x896xbf16, #tpu.memory_space<vmem>>, vector<1x448x896xbf16>
    %40 = vector.shape_cast %39 : vector<1x448x896xbf16> to vector<448x896xbf16>
    %cst_29 = arith.constant dense<0.000000e+00> : vector<14x896xf32>
    %41 = tpu.matmul %35, %40, %cst_29 {dimension_numbers = #tpu.dot_dimension_numbers<[1], [0], [0], [1], [0, 0, 1, 1], [], []>} : vector<14x448xbf16>, vector<448x896xbf16>, vector<14x896xf32> -> vector<14x896xf32>
    %cst_30 = arith.constant dense<0.000000e+00> : vector<14x896xf32>
    %42 = tpu.matmul %36, %40, %cst_30 {dimension_numbers = #tpu.dot_dimension_numbers<[1], [0], [0], [1], [0, 0, 1, 1], [], []>} : vector<14x448xbf16>, vector<448x896xbf16>, vector<14x896xf32> -> vector<14x896xf32>
    %c1_31 = arith.constant 1 : index
    %c0_32 = arith.constant 0 : index
    %c0_33 = arith.constant 0 : index
    %43 = vector.load %arg4[%c1_31, %c0_32, %c0_33] : memref<3x448x896xbf16, #tpu.memory_space<vmem>>, vector<1x448x896xbf16>
    %44 = vector.shape_cast %43 : vector<1x448x896xbf16> to vector<448x896xbf16>
    %cst_34 = arith.constant dense<0.000000e+00> : vector<14x896xf32>
    %45 = tpu.matmul %36, %44, %cst_34 {dimension_numbers = #tpu.dot_dimension_numbers<[1], [0], [0], [1], [0, 0, 1, 1], [], []>} : vector<14x448xbf16>, vector<448x896xbf16>, vector<14x896xf32> -> vector<14x896xf32>
    %cst_35 = arith.constant dense<0.000000e+00> : vector<14x896xf32>
    %46 = tpu.matmul %37, %44, %cst_35 {dimension_numbers = #tpu.dot_dimension_numbers<[1], [0], [0], [1], [0, 0, 1, 1], [], []>} : vector<14x448xbf16>, vector<448x896xbf16>, vector<14x896xf32> -> vector<14x896xf32>
    %47 = arith.addf %41, %45 : vector<14x896xf32>
    %48 = arith.addf %42, %46 : vector<14x896xf32>
    %c2_36 = arith.constant 2 : index
    %c0_37 = arith.constant 0 : index
    %c0_38 = arith.constant 0 : index
    %49 = vector.load %arg4[%c2_36, %c0_37, %c0_38] : memref<3x448x896xbf16, #tpu.memory_space<vmem>>, vector<1x448x896xbf16>
    %50 = vector.shape_cast %49 : vector<1x448x896xbf16> to vector<448x896xbf16>
    %cst_39 = arith.constant dense<0.000000e+00> : vector<14x896xf32>
    %51 = tpu.matmul %37, %50, %cst_39 {dimension_numbers = #tpu.dot_dimension_numbers<[1], [0], [0], [1], [0, 0, 1, 1], [], []>} : vector<14x448xbf16>, vector<448x896xbf16>, vector<14x896xf32> -> vector<14x896xf32>
    %cst_40 = arith.constant dense<0.000000e+00> : vector<14x896xf32>
    %52 = tpu.matmul %38, %50, %cst_40 {dimension_numbers = #tpu.dot_dimension_numbers<[1], [0], [0], [1], [0, 0, 1, 1], [], []>} : vector<14x448xbf16>, vector<448x896xbf16>, vector<14x896xf32> -> vector<14x896xf32>
    %53 = arith.addf %47, %51 : vector<14x896xf32>
    %54 = arith.addf %48, %52 : vector<14x896xf32>
    %55 = arith.maximumf %53, %54 : vector<14x896xf32>
    %56 = vector.extract_strided_slice %55 {offsets = [0, 0], sizes = [14, 448], strides = [1, 1]} : vector<14x896xf32> to vector<14x448xf32>
    %57 = vector.extract_strided_slice %55 {offsets = [0, 448], sizes = [14, 448], strides = [1, 1]} : vector<14x896xf32> to vector<14x448xf32>
    %58 = arith.maximumf %56, %57 : vector<14x448xf32>
    %c0_41 = arith.constant 0 : index
    %c0_42 = arith.constant 0 : index
    %59 = vector.load %arg5[%c0_41, %c0_42] : memref<1x448xf32, #tpu.memory_space<vmem>>, vector<1x448xf32>
    %60 = vector.broadcast %59 : vector<1x448xf32> to vector<14x448xf32>
    %61 = arith.addf %58, %60 : vector<14x448xf32>
    %cst_43 = arith.constant 0.000000e+00 : f32
    %62 = vector.broadcast %cst_43 : f32 to vector<14x448xf32>
    %63 = arith.maximumf %61, %62 : vector<14x448xf32>
    %64 = arith.truncf %63 : vector<14x448xf32> to vector<14x448xbf16>
    %c0_44 = arith.constant 0 : index
    %c0_45 = arith.constant 0 : index
    %65 = vector.load %arg13[%c0_44, %c0_45] : memref<14x448xbf16, #tpu.memory_space<vmem>>, vector<14x448xbf16>
    tpu.vector_store %arg13[%c0_44, %c0_45], %64 {strides = array<i32>} : memref<14x448xbf16, #tpu.memory_space<vmem>>, vector<14x448xbf16>,
    %cst_46 = arith.constant 0.000000e+00 : f32
    %66 = vector.broadcast %cst_46 : f32 to vector<2x128xf32>
    %c0_47 = arith.constant 0 : index
    %c0_48 = arith.constant 0 : index
    %67 = vector.load %arg13[%c0_47, %c0_48] : memref<14x448xbf16, #tpu.memory_space<vmem>>, vector<2x448xbf16>
    %c0_49 = arith.constant 0 : index
    %c0_50 = arith.constant 0 : index
    %c0_51 = arith.constant 0 : index
    %68 = vector.load %arg6[%c0_49, %c0_50, %c0_51] : memref<7x448x128xbf16, #tpu.memory_space<vmem>>, vector<1x448x128xbf16>
    %69 = vector.shape_cast %68 : vector<1x448x128xbf16> to vector<448x128xbf16>
    %cst_52 = arith.constant dense<0.000000e+00> : vector<2x128xf32>
    %70 = tpu.matmul %67, %69, %cst_52 {dimension_numbers = #tpu.dot_dimension_numbers<[1], [0], [0], [1], [0, 0, 1, 1], [], []>} : vector<2x448xbf16>, vector<448x128xbf16>, vector<2x128xf32> -> vector<2x128xf32>
    %71 = arith.addf %66, %70 : vector<2x128xf32>
    %c2_53 = arith.constant 2 : index
    %c0_54 = arith.constant 0 : index
    %72 = vector.load %arg13[%c2_53, %c0_54] : memref<14x448xbf16, #tpu.memory_space<vmem>>, vector<2x448xbf16>
    %c1_55 = arith.constant 1 : index
    %c0_56 = arith.constant 0 : index
    %c0_57 = arith.constant 0 : index
    %73 = vector.load %arg6[%c1_55, %c0_56, %c0_57] : memref<7x448x128xbf16, #tpu.memory_space<vmem>>, vector<1x448x128xbf16>
    %74 = vector.shape_cast %73 : vector<1x448x128xbf16> to vector<448x128xbf16>
    %cst_58 = arith.constant dense<0.000000e+00> : vector<2x128xf32>
    %75 = tpu.matmul %72, %74, %cst_58 {dimension_numbers = #tpu.dot_dimension_numbers<[1], [0], [0], [1], [0, 0, 1, 1], [], []>} : vector<2x448xbf16>, vector<448x128xbf16>, vector<2x128xf32> -> vector<2x128xf32>
    %76 = arith.addf %71, %75 : vector<2x128xf32>
    %c4 = arith.constant 4 : index
    %c0_59 = arith.constant 0 : index
    %77 = vector.load %arg13[%c4, %c0_59] : memref<14x448xbf16, #tpu.memory_space<vmem>>, vector<2x448xbf16>
    %c2_60 = arith.constant 2 : index
    %c0_61 = arith.constant 0 : index
    %c0_62 = arith.constant 0 : index
    %78 = vector.load %arg6[%c2_60, %c0_61, %c0_62] : memref<7x448x128xbf16, #tpu.memory_space<vmem>>, vector<1x448x128xbf16>
    %79 = vector.shape_cast %78 : vector<1x448x128xbf16> to vector<448x128xbf16>
    %cst_63 = arith.constant dense<0.000000e+00> : vector<2x128xf32>
    %80 = tpu.matmul %77, %79, %cst_63 {dimension_numbers = #tpu.dot_dimension_numbers<[1], [0], [0], [1], [0, 0, 1, 1], [], []>} : vector<2x448xbf16>, vector<448x128xbf16>, vector<2x128xf32> -> vector<2x128xf32>
    %81 = arith.addf %76, %80 : vector<2x128xf32>
    %c6 = arith.constant 6 : index
    %c0_64 = arith.constant 0 : index
    %82 = vector.load %arg13[%c6, %c0_64] : memref<14x448xbf16, #tpu.memory_space<vmem>>, vector<2x448xbf16>
    %c3 = arith.constant 3 : index
    %c0_65 = arith.constant 0 : index
    %c0_66 = arith.constant 0 : index
    %83 = vector.load %arg6[%c3, %c0_65, %c0_66] : memref<7x448x128xbf16, #tpu.memory_space<vmem>>, vector<1x448x128xbf16>
    %84 = vector.shape_cast %83 : vector<1x448x128xbf16> to vector<448x128xbf16>
    %cst_67 = arith.constant dense<0.000000e+00> : vector<2x128xf32>
    %85 = tpu.matmul %82, %84, %cst_67 {dimension_numbers = #tpu.dot_dimension_numbers<[1], [0], [0], [1], [0, 0, 1, 1], [], []>} : vector<2x448xbf16>, vector<448x128xbf16>, vector<2x128xf32> -> vector<2x128xf32>
    %86 = arith.addf %81, %85 : vector<2x128xf32>
    %c8 = arith.constant 8 : index
    %c0_68 = arith.constant 0 : index
    %87 = vector.load %arg13[%c8, %c0_68] : memref<14x448xbf16, #tpu.memory_space<vmem>>, vector<2x448xbf16>
    %c4_69 = arith.constant 4 : index
    %c0_70 = arith.constant 0 : index
    %c0_71 = arith.constant 0 : index
    %88 = vector.load %arg6[%c4_69, %c0_70, %c0_71] : memref<7x448x128xbf16, #tpu.memory_space<vmem>>, vector<1x448x128xbf16>
    %89 = vector.shape_cast %88 : vector<1x448x128xbf16> to vector<448x128xbf16>
    %cst_72 = arith.constant dense<0.000000e+00> : vector<2x128xf32>
    %90 = tpu.matmul %87, %89, %cst_72 {dimension_numbers = #tpu.dot_dimension_numbers<[1], [0], [0], [1], [0, 0, 1, 1], [], []>} : vector<2x448xbf16>, vector<448x128xbf16>, vector<2x128xf32> -> vector<2x128xf32>
    %91 = arith.addf %86, %90 : vector<2x128xf32>
    %c10 = arith.constant 10 : index
    %c0_73 = arith.constant 0 : index
    %92 = vector.load %arg13[%c10, %c0_73] : memref<14x448xbf16, #tpu.memory_space<vmem>>, vector<2x448xbf16>
    %c5 = arith.constant 5 : index
    %c0_74 = arith.constant 0 : index
    %c0_75 = arith.constant 0 : index
    %93 = vector.load %arg6[%c5, %c0_74, %c0_75] : memref<7x448x128xbf16, #tpu.memory_space<vmem>>, vector<1x448x128xbf16>
    %94 = vector.shape_cast %93 : vector<1x448x128xbf16> to vector<448x128xbf16>
    %cst_76 = arith.constant dense<0.000000e+00> : vector<2x128xf32>
    %95 = tpu.matmul %92, %94, %cst_76 {dimension_numbers = #tpu.dot_dimension_numbers<[1], [0], [0], [1], [0, 0, 1, 1], [], []>} : vector<2x448xbf16>, vector<448x128xbf16>, vector<2x128xf32> -> vector<2x128xf32>
    %96 = arith.addf %91, %95 : vector<2x128xf32>
    %c12 = arith.constant 12 : index
    %c0_77 = arith.constant 0 : index
    %97 = vector.load %arg13[%c12, %c0_77] : memref<14x448xbf16, #tpu.memory_space<vmem>>, vector<2x448xbf16>
    %c6_78 = arith.constant 6 : index
    %c0_79 = arith.constant 0 : index
    %c0_80 = arith.constant 0 : index
    %98 = vector.load %arg6[%c6_78, %c0_79, %c0_80] : memref<7x448x128xbf16, #tpu.memory_space<vmem>>, vector<1x448x128xbf16>
    %99 = vector.shape_cast %98 : vector<1x448x128xbf16> to vector<448x128xbf16>
    %cst_81 = arith.constant dense<0.000000e+00> : vector<2x128xf32>
    %100 = tpu.matmul %97, %99, %cst_81 {dimension_numbers = #tpu.dot_dimension_numbers<[1], [0], [0], [1], [0, 0, 1, 1], [], []>} : vector<2x448xbf16>, vector<448x128xbf16>, vector<2x128xf32> -> vector<2x128xf32>
    %101 = arith.addf %96, %100 : vector<2x128xf32>
    %c0_82 = arith.constant 0 : index
    %c0_83 = arith.constant 0 : index
    %102 = vector.load %arg7[%c0_82, %c0_83] : memref<1x128xf32, #tpu.memory_space<vmem>>, vector<1x128xf32>
    %103 = vector.broadcast %102 : vector<1x128xf32> to vector<2x128xf32>
    %104 = arith.addf %101, %103 : vector<2x128xf32>
    %cst_84 = arith.constant 0.000000e+00 : f32
    %105 = vector.broadcast %cst_84 : f32 to vector<2x128xf32>
    %106 = arith.maximumf %104, %105 : vector<2x128xf32>
    %107 = arith.truncf %106 : vector<2x128xf32> to vector<2x128xbf16>
    %c0_85 = arith.constant 0 : index
    %c0_86 = arith.constant 0 : index
    %108 = vector.load %arg8[%c0_85, %c0_86] : memref<128x128xbf16, #tpu.memory_space<vmem>>, vector<128x128xbf16>
    %cst_87 = arith.constant dense<0.000000e+00> : vector<2x128xf32>
    %109 = tpu.matmul %107, %108, %cst_87 {dimension_numbers = #tpu.dot_dimension_numbers<[1], [0], [0], [1], [0, 0, 1, 1], [], []>} : vector<2x128xbf16>, vector<128x128xbf16>, vector<2x128xf32> -> vector<2x128xf32>
    %c0_88 = arith.constant 0 : index
    %c0_89 = arith.constant 0 : index
    %110 = vector.load %arg9[%c0_88, %c0_89] : memref<1x128xf32, #tpu.memory_space<vmem>>, vector<1x128xf32>
    %111 = vector.broadcast %110 : vector<1x128xf32> to vector<2x128xf32>
    %112 = arith.addf %109, %111 : vector<2x128xf32>
    %c0_90 = arith.constant 0 : index
    %c0_91 = arith.constant 0 : index
    %113 = vector.load %arg10[%c0_90, %c0_91] : memref<2x128xf32, #tpu.memory_space<vmem>>, vector<2x128xf32>
    tpu.vector_store %arg10[%c0_90, %c0_91], %112 {strides = array<i32>} : memref<2x128xf32, #tpu.memory_space<vmem>>, vector<2x128xf32>,
    return
  }
  func.func @transform_0(%arg0: i32) -> (i32, i32) {
    %c0_i32 = arith.constant 0 : i32
    %c0_i32_0 = arith.constant 0 : i32
    return %arg0, %c0_i32 : i32, i32
  }
  func.func @transform_1(%arg0: i32) -> (i32, i32, i32) {
    %c0_i32 = arith.constant 0 : i32
    %c0_i32_0 = arith.constant 0 : i32
    %c0_i32_1 = arith.constant 0 : i32
    %c0_i32_2 = arith.constant 0 : i32
    return %c0_i32, %c0_i32_0, %c0_i32_1 : i32, i32, i32
  }
  func.func @transform_2(%arg0: i32) -> (i32, i32) {
    %c0_i32 = arith.constant 0 : i32
    %c0_i32_0 = arith.constant 0 : i32
    %c0_i32_1 = arith.constant 0 : i32
    return %c0_i32, %c0_i32_0 : i32, i32
  }
  func.func @transform_3(%arg0: i32) -> (i32, i32, i32) {
    %c0_i32 = arith.constant 0 : i32
    %c0_i32_0 = arith.constant 0 : i32
    %c0_i32_1 = arith.constant 0 : i32
    %c0_i32_2 = arith.constant 0 : i32
    return %c0_i32, %c0_i32_0, %c0_i32_1 : i32, i32, i32
  }
  func.func @transform_4(%arg0: i32) -> (i32, i32) {
    %c0_i32 = arith.constant 0 : i32
    %c0_i32_0 = arith.constant 0 : i32
    %c0_i32_1 = arith.constant 0 : i32
    return %c0_i32, %c0_i32_0 : i32, i32
  }
  func.func @transform_5(%arg0: i32) -> (i32, i32, i32) {
    %c0_i32 = arith.constant 0 : i32
    %c0_i32_0 = arith.constant 0 : i32
    %c0_i32_1 = arith.constant 0 : i32
    %c0_i32_2 = arith.constant 0 : i32
    return %c0_i32, %c0_i32_0, %c0_i32_1 : i32, i32, i32
  }
  func.func @transform_6(%arg0: i32) -> (i32, i32) {
    %c0_i32 = arith.constant 0 : i32
    %c0_i32_0 = arith.constant 0 : i32
    %c0_i32_1 = arith.constant 0 : i32
    return %c0_i32, %c0_i32_0 : i32, i32
  }
  func.func @transform_7(%arg0: i32) -> (i32, i32) {
    %c0_i32 = arith.constant 0 : i32
    %c0_i32_0 = arith.constant 0 : i32
    %c0_i32_1 = arith.constant 0 : i32
    return %c0_i32, %c0_i32_0 : i32, i32
  }
  func.func @transform_8(%arg0: i32) -> (i32, i32) {
    %c0_i32 = arith.constant 0 : i32
    %c0_i32_0 = arith.constant 0 : i32
    %c0_i32_1 = arith.constant 0 : i32
    return %c0_i32, %c0_i32_0 : i32, i32
  }
  func.func @transform_9(%arg0: i32) -> (i32, i32) {
    %c0_i32 = arith.constant 0 : i32
    %c0_i32_0 = arith.constant 0 : i32
    return %arg0, %c0_i32 : i32, i32
  }
}

</mosaic_0001>

<llo_original>
// kernel: cnn_forward.1
$region0: #{cnn_forward.1}
  #allocation0 [shape = 'u32[]', space=smem, size = 0x4, offset = 0x4, fixed_abs, tag = 'smem constant byte address 0x4 - core index']
  #allocation1 [shape = 'u32[144,128]{1,0:T(1,128)}', space=vmem, size = 0x12000, scoped, tag = 'internal scratch']
  #allocation2 [shape = 'bf16[16,448]{1,0:T(16,128)(2,1)}', space=vmem, size = 0x4000, scoped, tag = 'scratch operand']
  #allocation3 [shape = 'bf16[16,448]{1,0:T(16,128)(2,1)}', space=vmem, size = 0x4000, scoped, tag = 'scratch operand']
  #allocation4 [shape = 'bf16[14,448]{1,0:T(8,128)(2,1)}', space=vmem, size = 0x4000, scoped, tag = 'scratch operand']
  %s0 = inlined_call_operand.vmem [shape: bf16[14,168], index: 0, kind: input, shape index: {}]
  %s1 = inlined_call_operand.hbm [shape: bf16[2,168,1792], index: 1, kind: input, shape index: {}]
  %s2 = inlined_call_operand.hbm [shape: f32[1,448], index: 2, kind: input, shape index: {}]
  %s3 = inlined_call_operand.hbm [shape: bf16[3,448,896], index: 3, kind: input, shape index: {}]
  %s4 = inlined_call_operand.hbm [shape: f32[1,448], index: 4, kind: input, shape index: {}]
  %s5 = inlined_call_operand.hbm [shape: bf16[7,448,128], index: 5, kind: input, shape index: {}]
  %s6 = inlined_call_operand.hbm [shape: f32[1,128], index: 6, kind: input, shape index: {}]
  %s7 = inlined_call_operand.hbm [shape: bf16[128,128], index: 7, kind: input, shape index: {}]
  %s8 = inlined_call_operand.hbm [shape: f32[1,128], index: 8, kind: input, shape index: {}]
  %s9 = inlined_call_operand.hbm [shape: f32[2,128], index: 9, kind: output, shape index: {}]
  %s10 = sld [smem:[#allocation0]]
  $region78: #{cnn_forward.1} parent=0
    _
  %s12 = ssub.s32 1, %s10
  %s13 = scalar_select 0, %s12, %s10
  $region1: #{cnn_forward.1} parent=0
    #allocation5 [shape = 'u8[1204224]{0}', space=vmem, size = 0x126000, scoped, tag = 'input window, operand 1, single buffered']
    #allocation6 [shape = 's32[1]{0}', space=sflag, size = 0x4, scoped, tag = 'scoped memory for cnn_forward.1']
    #allocation7 [shape = 's32[1]{0}', space=sflag, size = 0x4, scoped, tag = 'scoped memory for cnn_forward.1']
    #allocation8 [shape = 'u8[2048]{0}', space=vmem, size = 0x800, scoped, tag = 'input window, operand 2, single buffered']
    #allocation9 [shape = 's32[1]{0}', space=sflag, size = 0x4, scoped, tag = 'scoped memory for cnn_forward.1']
    #allocation10 [shape = 'u8[2408448]{0}', space=vmem, size = 0x24c000, scoped, tag = 'input window, operand 3, single buffered']
    #allocation11 [shape = 'u8[2048]{0}', space=vmem, size = 0x800, scoped, tag = 'input window, operand 4, single buffered']
    #allocation12 [shape = 's32[1]{0}', space=sflag, size = 0x4, scoped, tag = 'scoped memory for cnn_forward.1']
    #allocation13 [shape = 'u8[802816]{0}', space=vmem, size = 0xc4000, scoped, tag = 'input window, operand 5, single buffered']
    #allocation14 [shape = 'u8[512]{0}', space=vmem, size = 0x400, scoped, tag = 'input window, operand 6, single buffered']
    #allocation15 [shape = 's32[1]{0}', space=sflag, size = 0x4, scoped, tag = 'scoped memory for cnn_forward.1']
    #allocation16 [shape = 'u8[32768]{0}', space=vmem, size = 0x8000, scoped, tag = 'input window, operand 7, single buffered']
    #allocation17 [shape = 'u8[512]{0}', space=vmem, size = 0x400, scoped, tag = 'input window, operand 8, single buffered']
    #allocation18 [shape = 's32[1]{0}', space=sflag, size = 0x4, scoped, tag = 'scoped memory for cnn_forward.1']
    #allocation19 [shape = 'u8[1024]{0}', space=vmem, size = 0x400, scoped, tag = 'output window, operand 0, single buffered']
    %14 = vsyncpa [#allocation6], 0
    %15 = vsyncpa [#allocation9], 0
    %16 = vsyncpa [#allocation12], 0
    %17 = vsyncpa [#allocation15], 0
    %18 = vsyncpa [#allocation18], 0
    %19 = vsyncpa [#allocation7], 0
    // Predicated region
    $region2: #{cnn_forward.1} parent=1 // pred_check
      _
    $region3: #{cnn_forward.1} parent=1 // pred_check_branch
      %21 = sbr.rel (0) target = $region5
    $region4: #{cnn_forward.1} parent=1 // pred_region
      _
    $region5: #{cnn_forward.1} parent=1 // pred_fallthru
      _
    // Predicated region
    $region6: #{cnn_forward.1} parent=1 // pred_check
      _
    $region7: #{cnn_forward.1} parent=1 // pred_check_branch
      %23 = sbr.rel (0) target = $region9
    $region8: #{cnn_forward.1} parent=1 // pred_region
      %s25 = ssub.s32 37632, 37632
      %26 = vsyncadd [#allocation6], %s25
      %s27 = sshll.u32 [#allocation5], 4
      %s28 = int_to_ptr.vmem [resolvable:$true] %s27
      %33 = dma.hbm_to_vmem [thread:$0]  %s1, 37632, %s28, [#allocation6], 896, 896, 56
    $region9: #{cnn_forward.1} parent=1 // pred_fallthru
      _
    // Predicated region
    $region10: #{cnn_forward.1} parent=1 // pred_check
      _
    $region11: #{cnn_forward.1} parent=1 // pred_check_branch
      %35 = sbr.rel (0) target = $region13
    $region12: #{cnn_forward.1} parent=1 // pred_region
      %s37 = ssub.s32 64, 64
      %38 = vsyncadd [#allocation9], %s37
      %s40 = sshll.u32 [#allocation8], 4
      %s41 = int_to_ptr.vmem [resolvable:$true] %s40
      %43 = dma.hbm_to_vmem [thread:$0]  %s2, 64, %s41, [#allocation9]
    $region13: #{cnn_forward.1} parent=1 // pred_fallthru
      _
    // Predicated region
    $region14: #{cnn_forward.1} parent=1 // pred_check
      _
    $region15: #{cnn_forward.1} parent=1 // pred_check_branch
      %45 = sbr.rel (0) target = $region17
    $region16: #{cnn_forward.1} parent=1 // pred_region
      %s47 = ssub.s32 75264, 75264
      %48 = vsyncadd [#allocation9], %s47
      %s49 = sshll.u32 [#allocation10], 4
      %s50 = int_to_ptr.vmem [resolvable:$true] %s49
      %55 = dma.hbm_to_vmem [thread:$0]  %s3, 75264, %s50, [#allocation9], 448, 448, 28
    $region17: #{cnn_forward.1} parent=1 // pred_fallthru
      _
    // Predicated region
    $region18: #{cnn_forward.1} parent=1 // pred_check
      _
    $region19: #{cnn_forward.1} parent=1 // pred_check_branch
      %57 = sbr.rel (0) target = $region21
    $region20: #{cnn_forward.1} parent=1 // pred_region
      %s59 = ssub.s32 64, 64
      %60 = vsyncadd [#allocation12], %s59
      %s62 = sshll.u32 [#allocation11], 4
      %s63 = int_to_ptr.vmem [resolvable:$true] %s62
      %65 = dma.hbm_to_vmem [thread:$0]  %s4, 64, %s63, [#allocation12]
    $region21: #{cnn_forward.1} parent=1 // pred_fallthru
      _
    // Predicated region
    $region22: #{cnn_forward.1} parent=1 // pred_check
      _
    $region23: #{cnn_forward.1} parent=1 // pred_check_branch
      %67 = sbr.rel (0) target = $region25
    $region24: #{cnn_forward.1} parent=1 // pred_region
      %s69 = ssub.s32 25088, 25088
      %70 = vsyncadd [#allocation12], %s69
      %s71 = sshll.u32 [#allocation13], 4
      %s72 = int_to_ptr.vmem [resolvable:$true] %s71
      %77 = dma.hbm_to_vmem [thread:$0]  %s5, 25088, %s72, [#allocation12], 64, 64, 4
    $region25: #{cnn_forward.1} parent=1 // pred_fallthru
      _
    // Predicated region
    $region26: #{cnn_forward.1} parent=1 // pred_check
      _
    $region27: #{cnn_forward.1} parent=1 // pred_check_branch
      %79 = sbr.rel (0) target = $region29
    $region28: #{cnn_forward.1} parent=1 // pred_region
      %s81 = ssub.s32 16, 16
      %82 = vsyncadd [#allocation15], %s81
      %s84 = sshll.u32 [#allocation14], 4
      %s85 = int_to_ptr.vmem [resolvable:$true] %s84
      %87 = dma.hbm_to_vmem [thread:$0]  %s6, 16, %s85, [#allocation15]
    $region29: #{cnn_forward.1} parent=1 // pred_fallthru
      _
    // Predicated region
    $region30: #{cnn_forward.1} parent=1 // pred_check
      _
    $region31: #{cnn_forward.1} parent=1 // pred_check_branch
      %89 = sbr.rel (0) target = $region33
    $region32: #{cnn_forward.1} parent=1 // pred_region
      %s91 = ssub.s32 1024, 1024
      %92 = vsyncadd [#allocation15], %s91
      %s93 = sshll.u32 [#allocation16], 4
      %s94 = int_to_ptr.vmem [resolvable:$true] %s93
      %99 = dma.hbm_to_vmem [thread:$0]  %s7, 1024, %s94, [#allocation15], 64, 64, 4
    $region33: #{cnn_forward.1} parent=1 // pred_fallthru
      _
    // Predicated region
    $region34: #{cnn_forward.1} parent=1 // pred_check
      _
    $region35: #{cnn_forward.1} parent=1 // pred_check_branch
      %101 = sbr.rel (0) target = $region37
    $region36: #{cnn_forward.1} parent=1 // pred_region
      %s103 = ssub.s32 16, 16
      %104 = vsyncadd [#allocation18], %s103
      %s106 = sshll.u32 [#allocation17], 4
      %s107 = int_to_ptr.vmem [resolvable:$true] %s106
      %109 = dma.hbm_to_vmem [thread:$0]  %s8, 16, %s107, [#allocation18]
    $region37: #{cnn_forward.1} parent=1 // pred_fallthru
      _
    // Predicated region
    $region38: #{cnn_forward.1} parent=1 // pred_check
      _
    $region39: #{cnn_forward.1} parent=1 // pred_check_branch
      %111 = sbr.rel (0) target = $region41
    $region40: #{cnn_forward.1} parent=1 // pred_region
      %112 = dma.done [#allocation6], 37632
    $region41: #{cnn_forward.1} parent=1 // pred_fallthru
      _
    // Predicated region
    $region42: #{cnn_forward.1} parent=1 // pred_check
      _
    $region43: #{cnn_forward.1} parent=1 // pred_check_branch
      %114 = sbr.rel (0) target = $region45
    $region44: #{cnn_forward.1} parent=1 // pred_region
      %115 = dma.done [#allocation9], 64
    $region45: #{cnn_forward.1} parent=1 // pred_fallthru
      _
    // Predicated region
    $region46: #{cnn_forward.1} parent=1 // pred_check
      _
    $region47: #{cnn_forward.1} parent=1 // pred_check_branch
      %117 = sbr.rel (0) target = $region49
    $region48: #{cnn_forward.1} parent=1 // pred_region
      %118 = dma.done [#allocation9], 75264
    $region49: #{cnn_forward.1} parent=1 // pred_fallthru
      _
    // Predicated region
    $region50: #{cnn_forward.1} parent=1 // pred_check
      _
    $region51: #{cnn_forward.1} parent=1 // pred_check_branch
      %120 = sbr.rel (0) target = $region53
    $region52: #{cnn_forward.1} parent=1 // pred_region
      %121 = dma.done [#allocation12], 64
    $region53: #{cnn_forward.1} parent=1 // pred_fallthru
      _
    // Predicated region
    $region54: #{cnn_forward.1} parent=1 // pred_check
      _
    $region55: #{cnn_forward.1} parent=1 // pred_check_branch
      %123 = sbr.rel (0) target = $region57
    $region56: #{cnn_forward.1} parent=1 // pred_region
      %124 = dma.done [#allocation12], 25088
    $region57: #{cnn_forward.1} parent=1 // pred_fallthru
      _
    // Predicated region
    $region58: #{cnn_forward.1} parent=1 // pred_check
      _
    $region59: #{cnn_forward.1} parent=1 // pred_check_branch
      %126 = sbr.rel (0) target = $region61
    $region60: #{cnn_forward.1} parent=1 // pred_region
      %127 = dma.done [#allocation15], 16
    $region61: #{cnn_forward.1} parent=1 // pred_fallthru
      _
    // Predicated region
    $region62: #{cnn_forward.1} parent=1 // pred_check
      _
    $region63: #{cnn_forward.1} parent=1 // pred_check_branch
      %129 = sbr.rel (0) target = $region65
    $region64: #{cnn_forward.1} parent=1 // pred_region
      %130 = dma.done [#allocation15], 1024
    $region65: #{cnn_forward.1} parent=1 // pred_fallthru
      _
    // Predicated region
    $region66: #{cnn_forward.1} parent=1 // pred_check
      _
    $region67: #{cnn_forward.1} parent=1 // pred_check_branch
      %132 = sbr.rel (0) target = $region69
    $region68: #{cnn_forward.1} parent=1 // pred_region
      %133 = dma.done [#allocation18], 16
    $region69: #{cnn_forward.1} parent=1 // pred_fallthru
      _
    %v135 = vld [vmem:[%s0] sm:$0xff]
    %v136 = vld [vmem:[%s0 + $0x8] sm:$0x77]
    %v137 = vld [vmem:[#allocation8] sm:$0xf]
    %v138 = vld [vmem:[#allocation5] sm:$0xff]
    %v139 = vld [vmem:[#allocation5 + $0x8] sm:$0xff]
    %v140 = vld [vmem:[#allocation5 + $0x10] sm:$0xff]
    %v141 = vld [vmem:[#allocation5 + $0x18] sm:$0xff]
    %v142 = vld [vmem:[#allocation5 + $0x20] sm:$0xff]
    %v143 = vld [vmem:[#allocation5 + $0x28] sm:$0xff]
    %v144 = vld [vmem:[#allocation5 + $0x30] sm:$0xff]
    %v145 = vld [vmem:[#allocation5 + $0x38] sm:$0xff]
    %v146 = vld [vmem:[#allocation5 + $0x40] sm:$0xff]
    %v147 = vld [vmem:[#allocation5 + $0x48] sm:$0xff]
    %v148 = vld [vmem:[#allocation5 + $0x50] sm:$0xff]
    %v149 = vld [vmem:[#allocation5 + $0x58] sm:$0xff]
    %v150 = vld [vmem:[#allocation5 + $0x60] sm:$0xff]
    %v151 = vld [vmem:[#allocation5 + $0x68] sm:$0xff]
    %v152 = vld [vmem:[#allocation5 + $0x70] sm:$0xff]
    %v153 = vld [vmem:[#allocation5 + $0x78] sm:$0xff]
    %v154 = vld [vmem:[#allocation5 + $0x80] sm:$0xff]
    %v155 = vld [vmem:[#allocation5 + $0x88] sm:$0xff]
    %v156 = vld [vmem:[#allocation5 + $0x90] sm:$0xff]
    %v157 = vld [vmem:[#allocation5 + $0x98] sm:$0xff]
    %v158 = vld [vmem:[#allocation5 + $0xa0] sm:$0xff]
    %v159 = vld [vmem:[#allocation5 + $0xa8] sm:$0xff]
    %v160 = vld [vmem:[#allocation5 + $0xb0] sm:$0xff]
    %v161 = vld [vmem:[#allocation5 + $0xb8] sm:$0xff]
    %v162 = vld [vmem:[#allocation5 + $0xc0] sm:$0xff]
    %v163 = vld [vmem:[#allocation5 + $0xc8] sm:$0xff]
    %v164 = vld [vmem:[#allocation5 + $0xd0] sm:$0xff]
    %v165 = vld [vmem:[#allocation5 + $0xd8] sm:$0xff]
    %v166 = vld [vmem:[#allocation5 + $0xe0] sm:$0xff]
    %v167 = vld [vmem:[#allocation5 + $0xe8] sm:$0xff]
    %v168 = vld [vmem:[#allocation5 + $0xf0] sm:$0xff]
    %v169 = vld [vmem:[#allocation5 + $0xf8] sm:$0xff]
    %v170 = vld [vmem:[#allocation5 + $0x100] sm:$0xff]
    %v171 = vld [vmem:[#allocation5 + $0x108] sm:$0xff]
    %v172 = vld [vmem:[#allocation5 + $0x110] sm:$0xff]
    %v173 = vld [vmem:[#allocation5 + $0x118] sm:$0xff]
    %v174 = vld [vmem:[#allocation5 + $0x120] sm:$0xff]
    %v175 = vld [vmem:[#allocation5 + $0x128] sm:$0xff]
    %v176 = vld [vmem:[#allocation5 + $0x130] sm:$0xff]
    %v177 = vld [vmem:[#allocation5 + $0x138] sm:$0xff]
    %v178 = vld [vmem:[#allocation5 + $0x140] sm:$0xff]
    %v179 = vld [vmem:[#allocation5 + $0x148] sm:$0xff]
    %v180 = vld [vmem:[#allocation5 + $0x150] sm:$0xff]
    %v181 = vld [vmem:[#allocation5 + $0x158] sm:$0xff]
    %v182 = vld [vmem:[#allocation5 + $0x160] sm:$0xff]
    %v183 = vld [vmem:[#allocation5 + $0x168] sm:$0xff]
    %v184 = vld [vmem:[#allocation5 + $0x170] sm:$0xff]
    %v185 = vld [vmem:[#allocation5 + $0x178] sm:$0xff]
    %v186 = vld [vmem:[#allocation5 + $0x180] sm:$0xff]
    %v187 = vld [vmem:[#allocation5 + $0x188] sm:$0xff]
    %v188 = vld [vmem:[#allocation5 + $0x190] sm:$0xff]
    %v189 = vld [vmem:[#allocation5 + $0x198] sm:$0xff]
    %v190 = vld [vmem:[#allocation5 + $0x1a0] sm:$0xff]
    %v191 = vld [vmem:[#allocation5 + $0x1a8] sm:$0xff]
    %v192 = vld [vmem:[#allocation5 + $0x1b0] sm:$0xff]
    %v193 = vld [vmem:[#allocation5 + $0x1b8] sm:$0xff]
    %v194 = vld [vmem:[#allocation5 + $0x1c0] sm:$0xff]
    %v195 = vld [vmem:[#allocation5 + $0x1c8] sm:$0xff]
    %v196 = vld [vmem:[#allocation5 + $0x1d0] sm:$0xff]
    %v197 = vld [vmem:[#allocation5 + $0x1d8] sm:$0xff]
    %v198 = vld [vmem:[#allocation5 + $0x1e0] sm:$0xff]
    %v199 = vld [vmem:[#allocation5 + $0x1e8] sm:$0xff]
    %v200 = vld [vmem:[#allocation5 + $0x1f0] sm:$0xff]
    %v201 = vld [vmem:[#allocation5 + $0x1f8] sm:$0xff]
    %v202 = vld [vmem:[#allocation5 + $0x200] sm:$0xff]
    %v203 = vld [vmem:[#allocation5 + $0x208] sm:$0xff]
    %v204 = vld [vmem:[#allocation5 + $0x210] sm:$0xff]
    %v205 = vld [vmem:[#allocation5 + $0x218] sm:$0xff]
    %v206 = vld [vmem:[#allocation5 + $0x220] sm:$0xff]
    %v207 = vld [vmem:[#allocation5 + $0x228] sm:$0xff]
    %v208 = vld [vmem:[#allocation5 + $0x230] sm:$0xff]
    %v209 = vld [vmem:[#allocation5 + $0x238] sm:$0xff]
    %v210 = vld [vmem:[#allocation5 + $0x240] sm:$0xff]
    %v211 = vld [vmem:[#allocation5 + $0x248] sm:$0xff]
    %v212 = vld [vmem:[#allocation5 + $0x250] sm:$0xff]
    %v213 = vld [vmem:[#allocation5 + $0x258] sm:$0xff]
    %v214 = vld [vmem:[#allocation5 + $0x260] sm:$0xff]
    %v215 = vld [vmem:[#allocation5 + $0x268] sm:$0xff]
    %v216 = vld [vmem:[#allocation5 + $0x270] sm:$0xff]
    %v217 = vld [vmem:[#allocation5 + $0x278] sm:$0xff]
    %v218 = vld [vmem:[#allocation5 + $0x280] sm:$0xff]
    %v219 = vld [vmem:[#allocation5 + $0x288] sm:$0xff]
    %v220 = vld [vmem:[#allocation5 + $0x290] sm:$0xff]
    %v221 = vld [vmem:[#allocation5 + $0x298] sm:$0xff]
    %v222 = vld [vmem:[#allocation5 + $0x2a0] sm:$0xff]
    %v223 = vld [vmem:[#allocation5 + $0x2a8] sm:$0xff]
    %v224 = vld [vmem:[#allocation5 + $0x2b0] sm:$0xff]
    %v225 = vld [vmem:[#allocation5 + $0x2b8] sm:$0xff]
    %v226 = vld [vmem:[#allocation5 + $0x2c0] sm:$0xff]
    %v227 = vld [vmem:[#allocation5 + $0x2c8] sm:$0xff]
    %v228 = vld [vmem:[#allocation5 + $0x2d0] sm:$0xff]
    %v229 = vld [vmem:[#allocation5 + $0x2d8] sm:$0xff]
    %v230 = vld [vmem:[#allocation5 + $0x2e0] sm:$0xff]
    %v231 = vld [vmem:[#allocation5 + $0x2e8] sm:$0xff]
    %v232 = vld [vmem:[#allocation5 + $0x2f0] sm:$0xff]
    %v233 = vld [vmem:[#allocation5 + $0x2f8] sm:$0xff]
    %v234 = vld [vmem:[#allocation5 + $0x300] sm:$0xff]
    %v235 = vld [vmem:[#allocation5 + $0x308] sm:$0xff]
    %v236 = vld [vmem:[#allocation5 + $0x310] sm:$0xff]
    %v237 = vld [vmem:[#allocation5 + $0x318] sm:$0xff]
    %v238 = vld [vmem:[#allocation5 + $0x320] sm:$0xff]
    %v239 = vld [vmem:[#allocation5 + $0x328] sm:$0xff]
    %v240 = vld [vmem:[#allocation5 + $0x330] sm:$0xff]
    %v241 = vld [vmem:[#allocation5 + $0x338] sm:$0xff]
    %v242 = vld [vmem:[#allocation5 + $0x340] sm:$0xff]
    %v243 = vld [vmem:[#allocation5 + $0x348] sm:$0xff]
    %v244 = vld [vmem:[#allocation5 + $0x350] sm:$0xff]
    %v245 = vld [vmem:[#allocation5 + $0x358] sm:$0xff]
    %v246 = vld [vmem:[#allocation5 + $0x360] sm:$0xff]
    %v247 = vld [vmem:[#allocation5 + $0x368] sm:$0xff]
    %v248 = vld [vmem:[#allocation5 + $0x370] sm:$0xff]
    %v249 = vld [vmem:[#allocation5 + $0x378] sm:$0xff]
    %v250 = vld [vmem:[#allocation5 + $0x380] sm:$0xff]
    %v251 = vld [vmem:[#allocation5 + $0x388] sm:$0xff]
    %v252 = vld [vmem:[#allocation5 + $0x390] sm:$0xff]
    %v253 = vld [vmem:[#allocation5 + $0x398] sm:$0xff]
    %v254 = vld [vmem:[#allocation5 + $0x3a0] sm:$0xff]
    %v255 = vld [vmem:[#allocation5 + $0x3a8] sm:$0xff]
    %v256 = vld [vmem:[#allocation5 + $0x3b0] sm:$0xff]
    %v257 = vld [vmem:[#allocation5 + $0x3b8] sm:$0xff]
    %v258 = vld [vmem:[#allocation5 + $0x3c0] sm:$0xff]
    %v259 = vld [vmem:[#allocation5 + $0x3c8] sm:$0xff]
    %v260 = vld [vmem:[#allocation5 + $0x3d0] sm:$0xff]
    %v261 = vld [vmem:[#allocation5 + $0x3d8] sm:$0xff]
    %v262 = vld [vmem:[#allocation5 + $0x3e0] sm:$0xff]
    %v263 = vld [vmem:[#allocation5 + $0x3e8] sm:$0xff]
    %v264 = vld [vmem:[#allocation5 + $0x3f0] sm:$0xff]
    %v265 = vld [vmem:[#allocation5 + $0x3f8] sm:$0xff]
    %v266 = vld [vmem:[#allocation5 + $0x400] sm:$0xff]
    %v267 = vld [vmem:[#allocation5 + $0x408] sm:$0xff]
    %v268 = vld [vmem:[#allocation5 + $0x410] sm:$0xff]
    %v269 = vld [vmem:[#allocation5 + $0x418] sm:$0xff]
    %v270 = vld [vmem:[#allocation5 + $0x420] sm:$0xff]
    %v271 = vld [vmem:[#allocation5 + $0x428] sm:$0xff]
    %v272 = vld [vmem:[#allocation5 + $0x430] sm:$0xff]
    %v273 = vld [vmem:[#allocation5 + $0x438] sm:$0xff]
    %v274 = vld [vmem:[#allocation5 + $0x440] sm:$0xff]
    %v275 = vld [vmem:[#allocation5 + $0x448] sm:$0xff]
    %v276 = vld [vmem:[#allocation5 + $0x450] sm:$0xff]
    %v277 = vld [vmem:[#allocation5 + $0x458] sm:$0xff]
    %v278 = vld [vmem:[#allocation5 + $0x460] sm:$0xff]
    %v279 = vld [vmem:[#allocation5 + $0x468] sm:$0xff]
    %v280 = vld [vmem:[#allocation5 + $0x470] sm:$0xff]
    %v281 = vld [vmem:[#allocation5 + $0x478] sm:$0xff]
    %v282 = vld [vmem:[#allocation5 + $0x480] sm:$0xff]
    %v283 = vld [vmem:[#allocation5 + $0x488] sm:$0xff]
    %v284 = vld [vmem:[#allocation5 + $0x490] sm:$0xff]
    %v287 = vunpack.c.l.b16 %v135
    %v288 = vunpack.c.h.b16 %v135
    %v289 = vunpack.c.l.b16 %v136
    %v290 = vunpack.c.h.b16 %v136
    %v291 = vpack.c.b16 %v289, %v287
    %v292 = vpack.c.b16 %v290, %v288
    %v441 = vunpack.c.l.b16 %v138
    %v442 = vunpack.c.h.b16 %v138
    %v443 = vunpack.c.l.b16 %v139
    %v444 = vunpack.c.h.b16 %v139
    %v445 = vunpack.c.l.b16 %v140
    %v446 = vunpack.c.h.b16 %v140
    %v447 = vunpack.c.l.b16 %v141
    %v448 = vunpack.c.h.b16 %v141
    %v449 = vunpack.c.l.b16 %v142
    %v450 = vunpack.c.h.b16 %v142
    %v451 = vunpack.c.l.b16 %v143
    %v452 = vunpack.c.h.b16 %v143
    %v453 = vunpack.c.l.b16 %v144
    %v454 = vunpack.c.h.b16 %v144
    %v455 = vunpack.c.l.b16 %v145
    %v456 = vunpack.c.h.b16 %v145
    %v457 = vunpack.c.l.b16 %v146
    %v458 = vunpack.c.h.b16 %v146
    %v459 = vunpack.c.l.b16 %v147
    %v460 = vunpack.c.h.b16 %v147
    %v461 = vunpack.c.l.b16 %v148
    %v462 = vunpack.c.h.b16 %v148
    %v463 = vunpack.c.l.b16 %v149
    %v464 = vunpack.c.h.b16 %v149
    %v465 = vunpack.c.l.b16 %v150
    %v466 = vunpack.c.h.b16 %v150
    %v467 = vunpack.c.l.b16 %v151
    %v468 = vunpack.c.h.b16 %v151
    %v469 = vunpack.c.l.b16 %v152
    %v470 = vunpack.c.h.b16 %v152
    %v471 = vunpack.c.l.b16 %v153
    %v472 = vunpack.c.h.b16 %v153
    %v473 = vunpack.c.l.b16 %v154
    %v474 = vunpack.c.h.b16 %v154
    %v475 = vunpack.c.l.b16 %v155
    %v476 = vunpack.c.h.b16 %v155
    %v477 = vunpack.c.l.b16 %v156
    %v478 = vunpack.c.h.b16 %v156
    %v479 = vunpack.c.l.b16 %v157
    %v480 = vunpack.c.h.b16 %v157
    %v481 = vunpack.c.l.b16 %v158
    %v482 = vunpack.c.h.b16 %v158
    %v483 = vunpack.c.l.b16 %v159
    %v484 = vunpack.c.h.b16 %v159
    %v485 = vunpack.c.l.b16 %v160
    %v486 = vunpack.c.h.b16 %v160
    %v487 = vunpack.c.l.b16 %v161
    %v488 = vunpack.c.h.b16 %v161
    %v489 = vunpack.c.l.b16 %v162
    %v490 = vunpack.c.h.b16 %v162
    %v491 = vunpack.c.l.b16 %v163
    %v492 = vunpack.c.h.b16 %v163
    %v493 = vunpack.c.l.b16 %v164
    %v494 = vunpack.c.h.b16 %v164
    %v495 = vunpack.c.l.b16 %v165
    %v496 = vunpack.c.h.b16 %v165
    %v497 = vunpack.c.l.b16 %v166
    %v498 = vunpack.c.h.b16 %v166
    %v499 = vunpack.c.l.b16 %v167
    %v500 = vunpack.c.h.b16 %v167
    %v501 = vunpack.c.l.b16 %v168
    %v502 = vunpack.c.h.b16 %v168
    %v503 = vunpack.c.l.b16 %v169
    %v504 = vunpack.c.h.b16 %v169
    %v505 = vunpack.c.l.b16 %v170
    %v506 = vunpack.c.h.b16 %v170
    %v507 = vunpack.c.l.b16 %v171
    %v508 = vunpack.c.h.b16 %v171
    %v509 = vunpack.c.l.b16 %v172
    %v510 = vunpack.c.h.b16 %v172
    %v511 = vunpack.c.l.b16 %v173
    %v512 = vunpack.c.h.b16 %v173
    %v513 = vunpack.c.l.b16 %v174
    %v514 = vunpack.c.h.b16 %v174
    %v515 = vunpack.c.l.b16 %v175
    %v516 = vunpack.c.h.b16 %v175
    %v517 = vunpack.c.l.b16 %v176
    %v518 = vunpack.c.h.b16 %v176
    %v519 = vunpack.c.l.b16 %v177
    %v520 = vunpack.c.h.b16 %v177
    %v521 = vunpack.c.l.b16 %v178
    %v522 = vunpack.c.h.b16 %v178
    %v523 = vunpack.c.l.b16 %v179
    %v524 = vunpack.c.h.b16 %v179
    %v525 = vunpack.c.l.b16 %v180
    %v526 = vunpack.c.h.b16 %v180
    %v527 = vunpack.c.l.b16 %v181
    %v528 = vunpack.c.h.b16 %v181
    %v529 = vunpack.c.l.b16 %v182
    %v530 = vunpack.c.h.b16 %v182
    %v531 = vunpack.c.l.b16 %v183
    %v532 = vunpack.c.h.b16 %v183
    %v533 = vunpack.c.l.b16 %v184
    %v534 = vunpack.c.h.b16 %v184
    %v535 = vunpack.c.l.b16 %v185
    %v536 = vunpack.c.h.b16 %v185
    %v537 = vunpack.c.l.b16 %v186
    %v538 = vunpack.c.h.b16 %v186
    %v539 = vunpack.c.l.b16 %v187
    %v540 = vunpack.c.h.b16 %v187
    %v541 = vunpack.c.l.b16 %v188
    %v542 = vunpack.c.h.b16 %v188
    %v543 = vunpack.c.l.b16 %v189
    %v544 = vunpack.c.h.b16 %v189
    %v545 = vunpack.c.l.b16 %v190
    %v546 = vunpack.c.h.b16 %v190
    %v547 = vunpack.c.l.b16 %v191
    %v548 = vunpack.c.h.b16 %v191
    %v549 = vunpack.c.l.b16 %v192
    %v550 = vunpack.c.h.b16 %v192
    %v551 = vunpack.c.l.b16 %v193
    %v552 = vunpack.c.h.b16 %v193
    %v553 = vunpack.c.l.b16 %v194
    %v554 = vunpack.c.h.b16 %v194
    %v555 = vunpack.c.l.b16 %v195
    %v556 = vunpack.c.h.b16 %v195
    %v557 = vunpack.c.l.b16 %v196
    %v558 = vunpack.c.h.b16 %v196
    %v559 = vunpack.c.l.b16 %v197
    %v560 = vunpack.c.h.b16 %v197
    %v561 = vunpack.c.l.b16 %v198
    %v562 = vunpack.c.h.b16 %v198
    %v563 = vunpack.c.l.b16 %v199
    %v564 = vunpack.c.h.b16 %v199
    %v565 = vunpack.c.l.b16 %v200
    %v566 = vunpack.c.h.b16 %v200
    %v567 = vunpack.c.l.b16 %v201
    %v568 = vunpack.c.h.b16 %v201
    %v569 = vunpack.c.l.b16 %v202
    %v570 = vunpack.c.h.b16 %v202
    %v571 = vunpack.c.l.b16 %v203
    %v572 = vunpack.c.h.b16 %v203
    %v573 = vunpack.c.l.b16 %v204
    %v574 = vunpack.c.h.b16 %v204
    %v575 = vunpack.c.l.b16 %v205
    %v576 = vunpack.c.h.b16 %v205
    %v577 = vunpack.c.l.b16 %v206
    %v578 = vunpack.c.h.b16 %v206
    %v579 = vunpack.c.l.b16 %v207
    %v580 = vunpack.c.h.b16 %v207
    %v581 = vunpack.c.l.b16 %v208
    %v582 = vunpack.c.h.b16 %v208
    %v583 = vunpack.c.l.b16 %v209
    %v584 = vunpack.c.h.b16 %v209
    %v585 = vunpack.c.l.b16 %v210
    %v586 = vunpack.c.h.b16 %v210
    %v587 = vunpack.c.l.b16 %v211
    %v588 = vunpack.c.h.b16 %v211
    %v589 = vunpack.c.l.b16 %v212
    %v590 = vunpack.c.h.b16 %v212
    %v591 = vunpack.c.l.b16 %v213
    %v592 = vunpack.c.h.b16 %v213
    %v593 = vunpack.c.l.b16 %v214
    %v594 = vunpack.c.h.b16 %v214
    %v595 = vunpack.c.l.b16 %v215
    %v596 = vunpack.c.h.b16 %v215
    %v597 = vunpack.c.l.b16 %v216
    %v598 = vunpack.c.h.b16 %v216
    %v599 = vunpack.c.l.b16 %v217
    %v600 = vunpack.c.h.b16 %v217
    %v601 = vunpack.c.l.b16 %v218
    %v602 = vunpack.c.h.b16 %v218
    %v603 = vunpack.c.l.b16 %v219
    %v604 = vunpack.c.h.b16 %v219
    %v605 = vunpack.c.l.b16 %v220
    %v606 = vunpack.c.h.b16 %v220
    %v607 = vunpack.c.l.b16 %v221
    %v608 = vunpack.c.h.b16 %v221
    %v609 = vunpack.c.l.b16 %v222
    %v610 = vunpack.c.h.b16 %v222
    %v611 = vunpack.c.l.b16 %v223
    %v612 = vunpack.c.h.b16 %v223
    %v613 = vunpack.c.l.b16 %v224
    %v614 = vunpack.c.h.b16 %v224
    %v615 = vunpack.c.l.b16 %v225
    %v616 = vunpack.c.h.b16 %v225
    %v617 = vunpack.c.l.b16 %v226
    %v618 = vunpack.c.h.b16 %v226
    %v619 = vunpack.c.l.b16 %v227
    %v620 = vunpack.c.h.b16 %v227
    %v621 = vunpack.c.l.b16 %v228
    %v622 = vunpack.c.h.b16 %v228
    %v623 = vunpack.c.l.b16 %v229
    %v624 = vunpack.c.h.b16 %v229
    %v625 = vunpack.c.l.b16 %v230
    %v626 = vunpack.c.h.b16 %v230
    %v627 = vunpack.c.l.b16 %v231
    %v628 = vunpack.c.h.b16 %v231
    %v629 = vunpack.c.l.b16 %v232
    %v630 = vunpack.c.h.b16 %v232
    %v631 = vunpack.c.l.b16 %v233
    %v632 = vunpack.c.h.b16 %v233
    %v633 = vunpack.c.l.b16 %v234
    %v634 = vunpack.c.h.b16 %v234
    %v635 = vunpack.c.l.b16 %v235
    %v636 = vunpack.c.h.b16 %v235
    %v637 = vunpack.c.l.b16 %v236
    %v638 = vunpack.c.h.b16 %v236
    %v639 = vunpack.c.l.b16 %v237
    %v640 = vunpack.c.h.b16 %v237
    %v641 = vunpack.c.l.b16 %v238
    %v642 = vunpack.c.h.b16 %v238
    %v643 = vunpack.c.l.b16 %v239
    %v644 = vunpack.c.h.b16 %v239
    %v645 = vunpack.c.l.b16 %v240
    %v646 = vunpack.c.h.b16 %v240
    %v647 = vunpack.c.l.b16 %v241
    %v648 = vunpack.c.h.b16 %v241
    %v649 = vunpack.c.l.b16 %v242
    %v650 = vunpack.c.h.b16 %v242
    %v651 = vunpack.c.l.b16 %v243
    %v652 = vunpack.c.h.b16 %v243
    %v653 = vunpack.c.l.b16 %v244
    %v654 = vunpack.c.h.b16 %v244
    %v655 = vunpack.c.l.b16 %v245
    %v656 = vunpack.c.h.b16 %v245
    %v657 = vunpack.c.l.b16 %v246
    %v658 = vunpack.c.h.b16 %v246
    %v659 = vunpack.c.l.b16 %v247
    %v660 = vunpack.c.h.b16 %v247
    %v661 = vunpack.c.l.b16 %v248
    %v662 = vunpack.c.h.b16 %v248
    %v663 = vunpack.c.l.b16 %v249
    %v664 = vunpack.c.h.b16 %v249
    %v665 = vunpack.c.l.b16 %v250
    %v666 = vunpack.c.h.b16 %v250
    %v667 = vunpack.c.l.b16 %v251
    %v668 = vunpack.c.h.b16 %v251
    %v669 = vunpack.c.l.b16 %v252
    %v670 = vunpack.c.h.b16 %v252
    %v671 = vunpack.c.l.b16 %v253
    %v672 = vunpack.c.h.b16 %v253
    %v673 = vunpack.c.l.b16 %v254
    %v674 = vunpack.c.h.b16 %v254
    %v675 = vunpack.c.l.b16 %v255
    %v676 = vunpack.c.h.b16 %v255
    %v677 = vunpack.c.l.b16 %v256
    %v678 = vunpack.c.h.b16 %v256
    %v679 = vunpack.c.l.b16 %v257
    %v680 = vunpack.c.h.b16 %v257
    %v681 = vunpack.c.l.b16 %v258
    %v682 = vunpack.c.h.b16 %v258
    %v683 = vunpack.c.l.b16 %v259
    %v684 = vunpack.c.h.b16 %v259
    %v685 = vunpack.c.l.b16 %v260
    %v686 = vunpack.c.h.b16 %v260
    %v687 = vunpack.c.l.b16 %v261
    %v688 = vunpack.c.h.b16 %v261
    %v689 = vunpack.c.l.b16 %v262
    %v690 = vunpack.c.h.b16 %v262
    %v691 = vunpack.c.l.b16 %v263
    %v692 = vunpack.c.h.b16 %v263
    %v693 = vunpack.c.l.b16 %v264
    %v694 = vunpack.c.h.b16 %v264
    %v695 = vunpack.c.l.b16 %v265
    %v696 = vunpack.c.h.b16 %v265
    %v697 = vunpack.c.l.b16 %v266
    %v698 = vunpack.c.h.b16 %v266
    %v699 = vunpack.c.l.b16 %v267
    %v700 = vunpack.c.h.b16 %v267
    %v701 = vunpack.c.l.b16 %v268
    %v702 = vunpack.c.h.b16 %v268
    %v703 = vunpack.c.l.b16 %v269
    %v704 = vunpack.c.h.b16 %v269
    %v705 = vunpack.c.l.b16 %v270
    %v706 = vunpack.c.h.b16 %v270
    %v707 = vunpack.c.l.b16 %v271
    %v708 = vunpack.c.h.b16 %v271
    %v709 = vunpack.c.l.b16 %v272
    %v710 = vunpack.c.h.b16 %v272
    %v711 = vunpack.c.l.b16 %v273
    %v712 = vunpack.c.h.b16 %v273
    %v713 = vunpack.c.l.b16 %v274
    %v714 = vunpack.c.h.b16 %v274
    %v715 = vunpack.c.l.b16 %v275
    %v716 = vunpack.c.h.b16 %v275
    %v717 = vunpack.c.l.b16 %v276
    %v718 = vunpack.c.h.b16 %v276
    %v719 = vunpack.c.l.b16 %v277
    %v720 = vunpack.c.h.b16 %v277
    %v721 = vunpack.c.l.b16 %v278
    %v722 = vunpack.c.h.b16 %v278
    %v723 = vunpack.c.l.b16 %v279
    %v724 = vunpack.c.h.b16 %v279
    %v725 = vunpack.c.l.b16 %v280
    %v726 = vunpack.c.h.b16 %v280
    %v727 = vunpack.c.l.b16 %v281
    %v728 = vunpack.c.h.b16 %v281
    %v729 = vunpack.c.l.b16 %v282
    %v730 = vunpack.c.h.b16 %v282
    %v731 = vunpack.c.l.b16 %v283
    %v732 = vunpack.c.h.b16 %v283
    %v733 = vunpack.c.l.b16 %v284
    %v734 = vunpack.c.h.b16 %v284
    %v735 = vpack.c.b16 %v455, %v441
    %v736 = vpack.c.b16 %v456, %v442
    %v737 = vpack.c.b16 %v457, %v443
    %v738 = vpack.c.b16 %v458, %v444
    %v739 = vpack.c.b16 %v459, %v445
    %v740 = vpack.c.b16 %v460, %v446
    %v741 = vpack.c.b16 %v461, %v447
    %v742 = vpack.c.b16 %v462, %v448
    %v743 = vpack.c.b16 %v463, %v449
    %v744 = vpack.c.b16 %v464, %v450
    %v745 = vpack.c.b16 %v465, %v451
    %v746 = vpack.c.b16 %v466, %v452
    %v747 = vpack.c.b16 %v467, %v453
    %v748 = vpack.c.b16 %v468, %v454
    %v749 = vpack.c.b16 %v483, %v469
    %v750 = vpack.c.b16 %v484, %v470
    %v751 = vpack.c.b16 %v485, %v471
    %v752 = vpack.c.b16 %v486, %v472
    %v753 = vpack.c.b16 %v487, %v473
    %v754 = vpack.c.b16 %v488, %v474
    %v755 = vpack.c.b16 %v489, %v475
    %v756 = vpack.c.b16 %v490, %v476
    %v757 = vpack.c.b16 %v491, %v477
    %v758 = vpack.c.b16 %v492, %v478
    %v759 = vpack.c.b16 %v493, %v479
    %v760 = vpack.c.b16 %v494, %v480
    %v761 = vpack.c.b16 %v495, %v481
    %v762 = vpack.c.b16 %v496, %v482
    %v763 = vpack.c.b16 %v511, %v497
    %v764 = vpack.c.b16 %v512, %v498
    %v765 = vpack.c.b16 %v513, %v499
    %v766 = vpack.c.b16 %v514, %v500
    %v767 = vpack.c.b16 %v515, %v501
    %v768 = vpack.c.b16 %v516, %v502
    %v769 = vpack.c.b16 %v517, %v503
    %v770 = vpack.c.b16 %v518, %v504
    %v771 = vpack.c.b16 %v519, %v505
    %v772 = vpack.c.b16 %v520, %v506
    %v773 = vpack.c.b16 %v521, %v507
    %v774 = vpack.c.b16 %v522, %v508
    %v775 = vpack.c.b16 %v523, %v509
    %v776 = vpack.c.b16 %v524, %v510
    %v777 = vpack.c.b16 %v539, %v525
    %v778 = vpack.c.b16 %v540, %v526
    %v779 = vpack.c.b16 %v541, %v527
    %v780 = vpack.c.b16 %v542, %v528
    %v781 = vpack.c.b16 %v543, %v529
    %v782 = vpack.c.b16 %v544, %v530
    %v783 = vpack.c.b16 %v545, %v531
    %v784 = vpack.c.b16 %v546, %v532
    %v785 = vpack.c.b16 %v547, %v533
    %v786 = vpack.c.b16 %v548, %v534
    %v787 = vpack.c.b16 %v549, %v535
    %v788 = vpack.c.b16 %v550, %v536
    %v789 = vpack.c.b16 %v551, %v537
    %v790 = vpack.c.b16 %v552, %v538
    %v791 = vpack.c.b16 %v567, %v553
    %v792 = vpack.c.b16 %v568, %v554
    %v793 = vpack.c.b16 %v569, %v555
    %v794 = vpack.c.b16 %v570, %v556
    %v795 = vpack.c.b16 %v571, %v557
    %v796 = vpack.c.b16 %v572, %v558
    %v797 = vpack.c.b16 %v573, %v559
    %v798 = vpack.c.b16 %v574, %v560
    %v799 = vpack.c.b16 %v575, %v561
    %v800 = vpack.c.b16 %v576, %v562
    %v801 = vpack.c.b16 %v577, %v563
    %v802 = vpack.c.b16 %v578, %v564
    %v803 = vpack.c.b16 %v579, %v565
    %v804 = vpack.c.b16 %v580, %v566
    %v805 = vpack.c.b16 %v595, %v581
    %v806 = vpack.c.b16 %v596, %v582
    %v807 = vpack.c.b16 %v597, %v583
    %v808 = vpack.c.b16 %v598, %v584
    %v809 = vpack.c.b16 %v599, %v585
    %v810 = vpack.c.b16 %v600, %v586
    %v811 = vpack.c.b16 %v601, %v587
    %v812 = vpack.c.b16 %v602, %v588
    %v813 = vpack.c.b16 %v603, %v589
    %v814 = vpack.c.b16 %v604, %v590
    %v815 = vpack.c.b16 %v605, %v591
    %v816 = vpack.c.b16 %v606, %v592
    %v817 = vpack.c.b16 %v607, %v593
    %v818 = vpack.c.b16 %v608, %v594
    %v819 = vpack.c.b16 %v623, %v609
    %v820 = vpack.c.b16 %v624, %v610
    %v821 = vpack.c.b16 %v625, %v611
    %v822 = vpack.c.b16 %v626, %v612
    %v823 = vpack.c.b16 %v627, %v613
    %v824 = vpack.c.b16 %v628, %v614
    %v825 = vpack.c.b16 %v629, %v615
    %v826 = vpack.c.b16 %v630, %v616
    %v827 = vpack.c.b16 %v631, %v617
    %v828 = vpack.c.b16 %v632, %v618
    %v829 = vpack.c.b16 %v633, %v619
    %v830 = vpack.c.b16 %v634, %v620
    %v831 = vpack.c.b16 %v635, %v621
    %v832 = vpack.c.b16 %v636, %v622
    %v833 = vpack.c.b16 %v651, %v637
    %v834 = vpack.c.b16 %v652, %v638
    %v835 = vpack.c.b16 %v653, %v639
    %v836 = vpack.c.b16 %v654, %v640
    %v837 = vpack.c.b16 %v655, %v641
    %v838 = vpack.c.b16 %v656, %v642
    %v839 = vpack.c.b16 %v657, %v643
    %v840 = vpack.c.b16 %v658, %v644
    %v841 = vpack.c.b16 %v659, %v645
    %v842 = vpack.c.b16 %v660, %v646
    %v843 = vpack.c.b16 %v661, %v647
    %v844 = vpack.c.b16 %v662, %v648
    %v845 = vpack.c.b16 %v663, %v649
    %v846 = vpack.c.b16 %v664, %v650
    %v847 = vpack.c.b16 %v679, %v665
    %v848 = vpack.c.b16 %v680, %v666
    %v849 = vpack.c.b16 %v681, %v667
    %v850 = vpack.c.b16 %v682, %v668
    %v851 = vpack.c.b16 %v683, %v669
    %v852 = vpack.c.b16 %v684, %v670
    %v853 = vpack.c.b16 %v685, %v671
    %v854 = vpack.c.b16 %v686, %v672
    %v855 = vpack.c.b16 %v687, %v673
    %v856 = vpack.c.b16 %v688, %v674
    %v857 = vpack.c.b16 %v689, %v675
    %v858 = vpack.c.b16 %v690, %v676
    %v859 = vpack.c.b16 %v691, %v677
    %v860 = vpack.c.b16 %v692, %v678
    %v861 = vpack.c.b16 %v707, %v693
    %v862 = vpack.c.b16 %v708, %v694
    %v863 = vpack.c.b16 %v709, %v695
    %v864 = vpack.c.b16 %v710, %v696
    %v865 = vpack.c.b16 %v711, %v697
    %v866 = vpack.c.b16 %v712, %v698
    %v867 = vpack.c.b16 %v713, %v699
    %v868 = vpack.c.b16 %v714, %v700
    %v869 = vpack.c.b16 %v715, %v701
    %v870 = vpack.c.b16 %v716, %v702
    %v871 = vpack.c.b16 %v717, %v703
    %v872 = vpack.c.b16 %v718, %v704
    %v873 = vpack.c.b16 %v719, %v705
    %v874 = vpack.c.b16 %v720, %v706
    %v875 = vpack.c.b16 %v721, %v721
    %v876 = vpack.c.b16 %v722, %v722
    %v877 = vpack.c.b16 %v723, %v723
    %v878 = vpack.c.b16 %v724, %v724
    %v879 = vpack.c.b16 %v725, %v725
    %v880 = vpack.c.b16 %v726, %v726
    %v881 = vpack.c.b16 %v727, %v727
    %v882 = vpack.c.b16 %v728, %v728
    %v883 = vpack.c.b16 %v729, %v729
    %v884 = vpack.c.b16 %v730, %v730
    %v885 = vpack.c.b16 %v731, %v731
    %v886 = vpack.c.b16 %v732, %v732
    %v887 = vpack.c.b16 %v733, %v733
    %v888 = vpack.c.b16 %v734, %v734
    %vm1029 = vcmask 326656
    %v1031 = vsel %vm1029, %v292, 0
    %vm1033 = vcmask 1043456
    %v1035 = vsel %vm1033, %v875, 0
    %v1038 = vsel %vm1033, %v876, 0
    %v1041 = vsel %vm1033, %v877, 0
    %v1044 = vsel %vm1033, %v878, 0
    %v1047 = vsel %vm1033, %v879, 0
    %v1050 = vsel %vm1033, %v880, 0
    %v1053 = vsel %vm1033, %v881, 0
    %v1056 = vsel %vm1033, %v882, 0
    %v1059 = vsel %vm1033, %v883, 0
    %v1062 = vsel %vm1033, %v884, 0
    %v1065 = vsel %vm1033, %v885, 0
    %v1068 = vsel %vm1033, %v886, 0
    %v1071 = vsel %vm1033, %v887, 0
    %v1074 = vsel %vm1033, %v888, 0
    %1076 = vmatprep.subr.bf16.mxu0 %v736
    %1077 = vmatpush1.bf16.msra.mxu0 %v735
    %1078 = vmatprep.subr.bf16.mxu0 %v750
    %1079 = vmatpush1.bf16.msra.mxu0 %v749
    %1080 = vmatprep.subr.bf16.mxu0 %v764
    %1081 = vmatpush1.bf16.msra.mxu0 %v763
    %1082 = vmatprep.subr.bf16.mxu0 %v778
    %1083 = vmatpush1.bf16.msra.mxu0 %v777
    %1084 = vmatprep.subr.bf16.mxu0 %v792
    %1085 = vmatpush1.bf16.msra.mxu0 %v791
    %1086 = vmatprep.subr.bf16.mxu0 %v806
    %1087 = vmatpush1.bf16.msra.mxu0 %v805
    %1088 = vmatprep.subr.bf16.mxu0 %v820
    %1089 = vmatpush1.bf16.msra.mxu0 %v819
    %1090 = vmatprep.subr.bf16.mxu0 %v834
    %1091 = vmatpush1.bf16.msra.mxu0 %v833
    %1092 = vmatprep.subr.bf16.mxu0 %v848
    %1093 = vmatpush1.bf16.msra.mxu0 %v847
    %1094 = vmatprep.subr.bf16.mxu0 %v862
    %1095 = vmatpush1.bf16.msra.mxu0 %v861
    %1096 = vmatprep.subr.bf16.mxu0 %v1038
    %1097 = vmatpush1.bf16.msra.mxu0 %v1035
    %1098 = vmatprep.subr.bf16.mxu0 0
    %1099 = vmatpush1.bf16.msra.mxu0 0
    %1100 = vmatprep.subr.bf16.mxu0 0
    %1101 = vmatpush1.bf16.msra.mxu0 0
    %1102 = vmatprep.subr.bf16.mxu0 0
    %1103 = vmatpush1.bf16.msra.mxu0 0
    %1104 = vmatprep.subr.bf16.mxu0 0
    %1105 = vmatpush1.bf16.msra.mxu0 0
    %1106 = vmatprep.subr.bf16.mxu0 0
    %1107 = vmatpush1.bf16.msra.mxu0 0
    %1108 = vmatprep.mubr.bf16.mxu0 %v1031
    %1109 = vmatmul.mubr.bf16.gmra.mrb[0].mxu0 %v291
    %v1110 = vpop.f32.mrb[0].mxu0
    %v1111 = vadd.f32 0.0, %v1110
    %v1112 = vpop.f32.mrb[0].mxu0
    %v1113 = vadd.f32 0.0, %v1112
    %v1114 = vpop.f32.mrb[0].mxu0
    %v1115 = vadd.f32 0.0, %v1114
    %v1116 = vpop.f32.mrb[0].mxu0
    %v1117 = vadd.f32 0.0, %v1116
    %1118 = vdwg.mxu0
    %1119 = vmatprep.subr.bf16.mxu0 %v738
    %1120 = vmatpush1.bf16.msra.mxu0 %v737
    %1121 = vmatprep.subr.bf16.mxu0 %v752
    %1122 = vmatpush1.bf16.msra.mxu0 %v751
    %1123 = vmatprep.subr.bf16.mxu0 %v766
    %1124 = vmatpush1.bf16.msra.mxu0 %v765
    %1125 = vmatprep.subr.bf16.mxu0 %v780
    %1126 = vmatpush1.bf16.msra.mxu0 %v779
    %1127 = vmatprep.subr.bf16.mxu0 %v794
    %1128 = vmatpush1.bf16.msra.mxu0 %v793
    %1129 = vmatprep.subr.bf16.mxu0 %v808
    %1130 = vmatpush1.bf16.msra.mxu0 %v807
    %1131 = vmatprep.subr.bf16.mxu0 %v822
    %1132 = vmatpush1.bf16.msra.mxu0 %v821
    %1133 = vmatprep.subr.bf16.mxu0 %v836
    %1134 = vmatpush1.bf16.msra.mxu0 %v835
    %1135 = vmatprep.subr.bf16.mxu0 %v850
    %1136 = vmatpush1.bf16.msra.mxu0 %v849
    %1137 = vmatprep.subr.bf16.mxu0 %v864
    %1138 = vmatpush1.bf16.msra.mxu0 %v863
    %1139 = vmatprep.subr.bf16.mxu0 %v1044
    %1140 = vmatpush1.bf16.msra.mxu0 %v1041
    %1141 = vmatprep.subr.bf16.mxu0 0
    %1142 = vmatpush1.bf16.msra.mxu0 0
    %1143 = vmatprep.subr.bf16.mxu0 0
    %1144 = vmatpush1.bf16.msra.mxu0 0
    %1145 = vmatprep.subr.bf16.mxu0 0
    %1146 = vmatpush1.bf16.msra.mxu0 0
    %1147 = vmatprep.subr.bf16.mxu0 0
    %1148 = vmatpush1.bf16.msra.mxu0 0
    %1149 = vmatprep.subr.bf16.mxu0 0
    %1150 = vmatpush1.bf16.msra.mxu0 0
    %1151 = vmatprep.mubr.bf16.mxu0 %v1031
    %1152 = vmatmul.mubr.bf16.gmra.mrb[0].mxu0 %v291
    %v1153 = vpop.f32.mrb[0].mxu0
    %v1154 = vadd.f32 0.0, %v1153
    %v1155 = vpop.f32.mrb[0].mxu0
    %v1156 = vadd.f32 0.0, %v1155
    %v1157 = vpop.f32.mrb[0].mxu0
    %v1158 = vadd.f32 0.0, %v1157
    %v1159 = vpop.f32.mrb[0].mxu0
    %v1160 = vadd.f32 0.0, %v1159
    %1161 = vdwg.mxu0
    %1162 = vmatprep.subr.bf16.mxu0 %v740
    %1163 = vmatpush1.bf16.msra.mxu0 %v739
    %1164 = vmatprep.subr.bf16.mxu0 %v754
    %1165 = vmatpush1.bf16.msra.mxu0 %v753
    %1166 = vmatprep.subr.bf16.mxu0 %v768
    %1167 = vmatpush1.bf16.msra.mxu0 %v767
    %1168 = vmatprep.subr.bf16.mxu0 %v782
    %1169 = vmatpush1.bf16.msra.mxu0 %v781
    %1170 = vmatprep.subr.bf16.mxu0 %v796
    %1171 = vmatpush1.bf16.msra.mxu0 %v795
    %1172 = vmatprep.subr.bf16.mxu0 %v810
    %1173 = vmatpush1.bf16.msra.mxu0 %v809
    %1174 = vmatprep.subr.bf16.mxu0 %v824
    %1175 = vmatpush1.bf16.msra.mxu0 %v823
    %1176 = vmatprep.subr.bf16.mxu0 %v838
    %1177 = vmatpush1.bf16.msra.mxu0 %v837
    %1178 = vmatprep.subr.bf16.mxu0 %v852
    %1179 = vmatpush1.bf16.msra.mxu0 %v851
    %1180 = vmatprep.subr.bf16.mxu0 %v866
    %1181 = vmatpush1.bf16.msra.mxu0 %v865
    %1182 = vmatprep.subr.bf16.mxu0 %v1050
    %1183 = vmatpush1.bf16.msra.mxu0 %v1047
    %1184 = vmatprep.subr.bf16.mxu0 0
    %1185 = vmatpush1.bf16.msra.mxu0 0
    %1186 = vmatprep.subr.bf16.mxu0 0
    %1187 = vmatpush1.bf16.msra.mxu0 0
    %1188 = vmatprep.subr.bf16.mxu0 0
    %1189 = vmatpush1.bf16.msra.mxu0 0
    %1190 = vmatprep.subr.bf16.mxu0 0
    %1191 = vmatpush1.bf16.msra.mxu0 0
    %1192 = vmatprep.subr.bf16.mxu0 0
    %1193 = vmatpush1.bf16.msra.mxu0 0
    %1194 = vmatprep.mubr.bf16.mxu0 %v1031
    %1195 = vmatmul.mubr.bf16.gmra.mrb[0].mxu0 %v291
    %v1196 = vpop.f32.mrb[0].mxu0
    %v1197 = vadd.f32 0.0, %v1196
    %v1198 = vpop.f32.mrb[0].mxu0
    %v1199 = vadd.f32 0.0, %v1198
    %v1200 = vpop.f32.mrb[0].mxu0
    %v1201 = vadd.f32 0.0, %v1200
    %v1202 = vpop.f32.mrb[0].mxu0
    %v1203 = vadd.f32 0.0, %v1202
    %1204 = vdwg.mxu0
    %1205 = vmatprep.subr.bf16.mxu0 %v742
    %1206 = vmatpush1.bf16.msra.mxu0 %v741
    %1207 = vmatprep.subr.bf16.mxu0 %v756
    %1208 = vmatpush1.bf16.msra.mxu0 %v755
    %1209 = vmatprep.subr.bf16.mxu0 %v770
    %1210 = vmatpush1.bf16.msra.mxu0 %v769
    %1211 = vmatprep.subr.bf16.mxu0 %v784
    %1212 = vmatpush1.bf16.msra.mxu0 %v783
    %1213 = vmatprep.subr.bf16.mxu0 %v798
    %1214 = vmatpush1.bf16.msra.mxu0 %v797
    %1215 = vmatprep.subr.bf16.mxu0 %v812
    %1216 = vmatpush1.bf16.msra.mxu0 %v811
    %1217 = vmatprep.subr.bf16.mxu0 %v826
    %1218 = vmatpush1.bf16.msra.mxu0 %v825
    %1219 = vmatprep.subr.bf16.mxu0 %v840
    %1220 = vmatpush1.bf16.msra.mxu0 %v839
    %1221 = vmatprep.subr.bf16.mxu0 %v854
    %1222 = vmatpush1.bf16.msra.mxu0 %v853
    %1223 = vmatprep.subr.bf16.mxu0 %v868
    %1224 = vmatpush1.bf16.msra.mxu0 %v867
    %1225 = vmatprep.subr.bf16.mxu0 %v1056
    %1226 = vmatpush1.bf16.msra.mxu0 %v1053
    %1227 = vmatprep.subr.bf16.mxu0 0
    %1228 = vmatpush1.bf16.msra.mxu0 0
    %1229 = vmatprep.subr.bf16.mxu0 0
    %1230 = vmatpush1.bf16.msra.mxu0 0
    %1231 = vmatprep.subr.bf16.mxu0 0
    %1232 = vmatpush1.bf16.msra.mxu0 0
    %1233 = vmatprep.subr.bf16.mxu0 0
    %1234 = vmatpush1.bf16.msra.mxu0 0
    %1235 = vmatprep.subr.bf16.mxu0 0
    %1236 = vmatpush1.bf16.msra.mxu0 0
    %1237 = vmatprep.mubr.bf16.mxu0 %v1031
    %1238 = vmatmul.mubr.bf16.gmra.mrb[0].mxu0 %v291
    %v1239 = vpop.f32.mrb[0].mxu0
    %v1240 = vadd.f32 0.0, %v1239
    %v1241 = vpop.f32.mrb[0].mxu0
    %v1242 = vadd.f32 0.0, %v1241
    %v1243 = vpop.f32.mrb[0].mxu0
    %v1244 = vadd.f32 0.0, %v1243
    %v1245 = vpop.f32.mrb[0].mxu0
    %v1246 = vadd.f32 0.0, %v1245
    %1247 = vdwg.mxu0
    %1248 = vmatprep.subr.bf16.mxu0 %v744
    %1249 = vmatpush1.bf16.msra.mxu0 %v743
    %1250 = vmatprep.subr.bf16.mxu0 %v758
    %1251 = vmatpush1.bf16.msra.mxu0 %v757
    %1252 = vmatprep.subr.bf16.mxu0 %v772
    %1253 = vmatpush1.bf16.msra.mxu0 %v771
    %1254 = vmatprep.subr.bf16.mxu0 %v786
    %1255 = vmatpush1.bf16.msra.mxu0 %v785
    %1256 = vmatprep.subr.bf16.mxu0 %v800
    %1257 = vmatpush1.bf16.msra.mxu0 %v799
    %1258 = vmatprep.subr.bf16.mxu0 %v814
    %1259 = vmatpush1.bf16.msra.mxu0 %v813
    %1260 = vmatprep.subr.bf16.mxu0 %v828
    %1261 = vmatpush1.bf16.msra.mxu0 %v827
    %1262 = vmatprep.subr.bf16.mxu0 %v842
    %1263 = vmatpush1.bf16.msra.mxu0 %v841
    %1264 = vmatprep.subr.bf16.mxu0 %v856
    %1265 = vmatpush1.bf16.msra.mxu0 %v855
    %1266 = vmatprep.subr.bf16.mxu0 %v870
    %1267 = vmatpush1.bf16.msra.mxu0 %v869
    %1268 = vmatprep.subr.bf16.mxu0 %v1062
    %1269 = vmatpush1.bf16.msra.mxu0 %v1059
    %1270 = vmatprep.subr.bf16.mxu0 0
    %1271 = vmatpush1.bf16.msra.mxu0 0
    %1272 = vmatprep.subr.bf16.mxu0 0
    %1273 = vmatpush1.bf16.msra.mxu0 0
    %1274 = vmatprep.subr.bf16.mxu0 0
    %1275 = vmatpush1.bf16.msra.mxu0 0
    %1276 = vmatprep.subr.bf16.mxu0 0
    %1277 = vmatpush1.bf16.msra.mxu0 0
    %1278 = vmatprep.subr.bf16.mxu0 0
    %1279 = vmatpush1.bf16.msra.mxu0 0
    %1280 = vmatprep.mubr.bf16.mxu0 %v1031
    %1281 = vmatmul.mubr.bf16.gmra.mrb[0].mxu0 %v291
    %v1282 = vpop.f32.mrb[0].mxu0
    %v1283 = vadd.f32 0.0, %v1282
    %v1284 = vpop.f32.mrb[0].mxu0
    %v1285 = vadd.f32 0.0, %v1284
    %v1286 = vpop.f32.mrb[0].mxu0
    %v1287 = vadd.f32 0.0, %v1286
    %v1288 = vpop.f32.mrb[0].mxu0
    %v1289 = vadd.f32 0.0, %v1288
    %1290 = vdwg.mxu0
    %1291 = vmatprep.subr.bf16.mxu0 %v746
    %1292 = vmatpush1.bf16.msra.mxu0 %v745
    %1293 = vmatprep.subr.bf16.mxu0 %v760
    %1294 = vmatpush1.bf16.msra.mxu0 %v759
    %1295 = vmatprep.subr.bf16.mxu0 %v774
    %1296 = vmatpush1.bf16.msra.mxu0 %v773
    %1297 = vmatprep.subr.bf16.mxu0 %v788
    %1298 = vmatpush1.bf16.msra.mxu0 %v787
    %1299 = vmatprep.subr.bf16.mxu0 %v802
    %1300 = vmatpush1.bf16.msra.mxu0 %v801
    %1301 = vmatprep.subr.bf16.mxu0 %v816
    %1302 = vmatpush1.bf16.msra.mxu0 %v815
    %1303 = vmatprep.subr.bf16.mxu0 %v830
    %1304 = vmatpush1.bf16.msra.mxu0 %v829
    %1305 = vmatprep.subr.bf16.mxu0 %v844
    %1306 = vmatpush1.bf16.msra.mxu0 %v843
    %1307 = vmatprep.subr.bf16.mxu0 %v858
    %1308 = vmatpush1.bf16.msra.mxu0 %v857
    %1309 = vmatprep.subr.bf16.mxu0 %v872
    %1310 = vmatpush1.bf16.msra.mxu0 %v871
    %1311 = vmatprep.subr.bf16.mxu0 %v1068
    %1312 = vmatpush1.bf16.msra.mxu0 %v1065
    %1313 = vmatprep.subr.bf16.mxu0 0
    %1314 = vmatpush1.bf16.msra.mxu0 0
    %1315 = vmatprep.subr.bf16.mxu0 0
    %1316 = vmatpush1.bf16.msra.mxu0 0
    %1317 = vmatprep.subr.bf16.mxu0 0
    %1318 = vmatpush1.bf16.msra.mxu0 0
    %1319 = vmatprep.subr.bf16.mxu0 0
    %1320 = vmatpush1.bf16.msra.mxu0 0
    %1321 = vmatprep.subr.bf16.mxu0 0
    %1322 = vmatpush1.bf16.msra.mxu0 0
    %1323 = vmatprep.mubr.bf16.mxu0 %v1031
    %1324 = vmatmul.mubr.bf16.gmra.mrb[0].mxu0 %v291
    %v1325 = vpop.f32.mrb[0].mxu0
    %v1326 = vadd.f32 0.0, %v1325
    %v1327 = vpop.f32.mrb[0].mxu0
    %v1328 = vadd.f32 0.0, %v1327
    %v1329 = vpop.f32.mrb[0].mxu0
    %v1330 = vadd.f32 0.0, %v1329
    %v1331 = vpop.f32.mrb[0].mxu0
    %v1332 = vadd.f32 0.0, %v1331
    %1333 = vdwg.mxu0
    %1334 = vmatprep.subr.bf16.mxu0 %v748
    %1335 = vmatpush1.bf16.msra.mxu0 %v747
    %1336 = vmatprep.subr.bf16.mxu0 %v762
    %1337 = vmatpush1.bf16.msra.mxu0 %v761
    %1338 = vmatprep.subr.bf16.mxu0 %v776
    %1339 = vmatpush1.bf16.msra.mxu0 %v775
    %1340 = vmatprep.subr.bf16.mxu0 %v790
    %1341 = vmatpush1.bf16.msra.mxu0 %v789
    %1342 = vmatprep.subr.bf16.mxu0 %v804
    %1343 = vmatpush1.bf16.msra.mxu0 %v803
    %1344 = vmatprep.subr.bf16.mxu0 %v818
    %1345 = vmatpush1.bf16.msra.mxu0 %v817
    %1346 = vmatprep.subr.bf16.mxu0 %v832
    %1347 = vmatpush1.bf16.msra.mxu0 %v831
    %1348 = vmatprep.subr.bf16.mxu0 %v846
    %1349 = vmatpush1.bf16.msra.mxu0 %v845
    %1350 = vmatprep.subr.bf16.mxu0 %v860
    %1351 = vmatpush1.bf16.msra.mxu0 %v859
    %1352 = vmatprep.subr.bf16.mxu0 %v874
    %1353 = vmatpush1.bf16.msra.mxu0 %v873
    %1354 = vmatprep.subr.bf16.mxu0 %v1074
    %1355 = vmatpush1.bf16.msra.mxu0 %v1071
    %1356 = vmatprep.subr.bf16.mxu0 0
    %1357 = vmatpush1.bf16.msra.mxu0 0
    %1358 = vmatprep.subr.bf16.mxu0 0
    %1359 = vmatpush1.bf16.msra.mxu0 0
    %1360 = vmatprep.subr.bf16.mxu0 0
    %1361 = vmatpush1.bf16.msra.mxu0 0
    %1362 = vmatprep.subr.bf16.mxu0 0
    %1363 = vmatpush1.bf16.msra.mxu0 0
    %1364 = vmatprep.subr.bf16.mxu0 0
    %1365 = vmatpush1.bf16.msra.mxu0 0
    %1366 = vmatprep.mubr.bf16.mxu0 %v1031
    %1367 = vmatmul.mubr.bf16.gmra.mrb[0].mxu0 %v291
    %v1368 = vpop.f32.mrb[0].mxu0
    %v1369 = vadd.f32 0.0, %v1368
    %v1370 = vpop.f32.mrb[0].mxu0
    %v1371 = vadd.f32 0.0, %v1370
    %v1372 = vpop.f32.mrb[0].mxu0
    %v1373 = vadd.f32 0.0, %v1372
    %v1374 = vpop.f32.mrb[0].mxu0
    %v1375 = vadd.f32 0.0, %v1374
    %1376 = vdwg.mxu0
    %v1377 = vmax.f32 %v1111, %v1242
    %v1378 = vmax.f32 %v1113, %v1283
    %v1379 = vmax.f32 %v1154, %v1285
    %v1380 = vmax.f32 %v1156, %v1326
    %v1381 = vmax.f32 %v1197, %v1328
    %v1382 = vmax.f32 %v1199, %v1369
    %v1383 = vmax.f32 %v1240, %v1371
    %v1384 = vmax.f32 %v1115, %v1246
    %v1385 = vmax.f32 %v1117, %v1287
    %v1386 = vmax.f32 %v1158, %v1289
    %v1387 = vmax.f32 %v1160, %v1330
    %v1388 = vmax.f32 %v1201, %v1332
    %v1389 = vmax.f32 %v1203, %v1373
    %v1390 = vmax.f32 %v1244, %v1375
    %1399 = vrot.lane.b32.xlu0 %v1380, 64
    %v1400 = vpop.permute.xlu0 %1399
    %1401 = vrot.lane.b32.xlu0 %v1381, 64
    %v1402 = vpop.permute.xlu0 %1401
    %1403 = vrot.lane.b32.xlu0 %v1382, 64
    %v1404 = vpop.permute.xlu0 %1403
    %1405 = vrot.lane.b32.xlu0 %v1383, 64
    %v1406 = vpop.permute.xlu0 %1405
    %1407 = vrot.lane.b32.xlu0 %v1387, 64
    %v1408 = vpop.permute.xlu0 %1407
    %1409 = vrot.lane.b32.xlu0 %v1388, 64
    %v1410 = vpop.permute.xlu0 %1409
    %1411 = vrot.lane.b32.xlu0 %v1389, 64
    %v1412 = vpop.permute.xlu0 %1411
    %1413 = vrot.lane.b32.xlu0 %v1390, 64
    %v1414 = vpop.permute.xlu0 %1413
    %vm1415 = vcmask 523264
    %v1416 = vsel %vm1415, %v1400, %v1402
    %v1417 = vsel %vm1415, %v1402, %v1404
    %v1418 = vsel %vm1415, %v1404, %v1406
    %v1419 = vsel %vm1415, %v1408, %v1410
    %v1420 = vsel %vm1415, %v1410, %v1412
    %v1421 = vsel %vm1415, %v1412, %v1414
    %v1430 = vmax.f32 %v1377, %v1416
    %v1431 = vmax.f32 %v1378, %v1417
    %v1432 = vmax.f32 %v1379, %v1418
    %v1433 = vmax.f32 %v1380, %v1406
    %v1434 = vmax.f32 %v1384, %v1419
    %v1435 = vmax.f32 %v1385, %v1420
    %v1436 = vmax.f32 %v1386, %v1421
    %v1437 = vmax.f32 %v1387, %v1414
    %v1439 = vlaneseq
    %v1440 = vshrl.u32 %v1439, 7
    %v1441 = vsub.s32 0, %v1440
    %v1442 = vrot.slane %v137, %v1441
    %v1443 = vlaneseq
    %v1444 = vshrl.u32 %v1443, 7
    %v1445 = vsub.s32 1, %v1444
    %v1446 = vrot.slane %v137, %v1445
    %v1447 = vlaneseq
    %v1448 = vshrl.u32 %v1447, 7
    %v1449 = vsub.s32 2, %v1448
    %v1450 = vrot.slane %v137, %v1449
    %v1451 = vlaneseq
    %v1452 = vshrl.u32 %v1451, 7
    %v1453 = vsub.s32 3, %v1452
    %v1454 = vrot.slane %v137, %v1453
    %v1459 = vadd.f32 %v1430, %v1442
    %v1460 = vadd.f32 %v1431, %v1446
    %v1461 = vadd.f32 %v1432, %v1450
    %v1462 = vadd.f32 %v1433, %v1454
    %v1463 = vadd.f32 %v1434, %v1442
    %v1464 = vadd.f32 %v1435, %v1446
    %v1465 = vadd.f32 %v1436, %v1450
    %v1466 = vadd.f32 %v1437, %v1454
    %v1467 = vmax.f32 %v1459, 0.0
    %v1468 = vmax.f32 %v1460, 0.0
    %v1469 = vmax.f32 %v1461, 0.0
    %v1470 = vmax.f32 %v1462, 0.0
    %v1471 = vmax.f32 %v1463, 0.0
    %v1472 = vmax.f32 %v1464, 0.0
    %v1473 = vmax.f32 %v1465, 0.0
    %v1474 = vmax.f32 %v1466, 0.0
    %v1475 = vpack.c.bf16 %v1471, %v1467
    %v1476 = vpack.c.bf16 %v1472, %v1468
    %v1477 = vpack.c.bf16 %v1473, %v1469
    %v1478 = vpack.c.bf16 %v1474, %v1470
    %1479 = vst [vmem:[#allocation2] sm:$0x7f] %v1475
    %1480 = vst [vmem:[#allocation2 + $0x8] sm:$0x7f] %v1476
    %1481 = vst [vmem:[#allocation2 + $0x10] sm:$0x7f] %v1477
    %vm1482 = vcmask 522240
    %1483 = vst.msk [vmem:[#allocation2 + $0x18] sm:$0x7f] %vm1482, %v1478
    %1484 = vst [vmem:[#allocation2] sm:$0x80] 0
    %1485 = vst [vmem:[#allocation2 + $0x8] sm:$0x80] 0
    %1486 = vst [vmem:[#allocation2 + $0x10] sm:$0x80] 0
    %vm1487 = vcmask 523271
    %1488 = vst.msk [vmem:[#allocation2 + $0x18] sm:$0x80] %vm1487, 0
    %1489 = vst [vmem:[#allocation3] sm:$0x1] 0
    %1490 = vst [vmem:[#allocation3 + $0x8] sm:$0x1] 0
    %1491 = vst [vmem:[#allocation3 + $0x10] sm:$0x1] 0
    %vm1492 = vcmask 516096
    %1493 = vst.msk [vmem:[#allocation3 + $0x18] sm:$0x1] %vm1492, 0
    %s1494 = scalar_lea.vmem [#allocation5], 1176
    %v1495 = vld [vmem:[%s1494] sm:$0xff]
    %v1496 = vld [vmem:[%s1494 + $0x8] sm:$0xff]
    %v1497 = vld [vmem:[%s1494 + $0x10] sm:$0xff]
    %v1498 = vld [vmem:[%s1494 + $0x18] sm:$0xff]
    %v1499 = vld [vmem:[%s1494 + $0x20] sm:$0xff]
    %v1500 = vld [vmem:[%s1494 + $0x28] sm:$0xff]
    %v1501 = vld [vmem:[%s1494 + $0x30] sm:$0xff]
    %v1502 = vld [vmem:[%s1494 + $0x38] sm:$0xff]
    %v1503 = vld [vmem:[%s1494 + $0x40] sm:$0xff]
    %v1504 = vld [vmem:[%s1494 + $0x48] sm:$0xff]
    %v1505 = vld [vmem:[%s1494 + $0x50] sm:$0xff]
    %v1506 = vld [vmem:[%s1494 + $0x58] sm:$0xff]
    %v1507 = vld [vmem:[%s1494 + $0x60] sm:$0xff]
    %v1508 = vld [vmem:[%s1494 + $0x68] sm:$0xff]
    %v1509 = vld [vmem:[%s1494 + $0x70] sm:$0xff]
    %v1510 = vld [vmem:[%s1494 + $0x78] sm:$0xff]
    %v1511 = vld [vmem:[%s1494 + $0x80] sm:$0xff]
    %v1512 = vld [vmem:[%s1494 + $0x88] sm:$0xff]
    %v1513 = vld [vmem:[%s1494 + $0x90] sm:$0xff]
    %v1514 = vld [vmem:[%s1494 + $0x98] sm:$0xff]
    %v1515 = vld [vmem:[%s1494 + $0xa0] sm:$0xff]
    %v1516 = vld [vmem:[%s1494 + $0xa8] sm:$0xff]
    %v1517 = vld [vmem:[%s1494 + $0xb0] sm:$0xff]
    %v1518 = vld [vmem:[%s1494 + $0xb8] sm:$0xff]
    %v1519 = vld [vmem:[%s1494 + $0xc0] sm:$0xff]
    %v1520 = vld [vmem:[%s1494 + $0xc8] sm:$0xff]
    %v1521 = vld [vmem:[%s1494 + $0xd0] sm:$0xff]
    %v1522 = vld [vmem:[%s1494 + $0xd8] sm:$0xff]
    %v1523 = vld [vmem:[%s1494 + $0xe0] sm:$0xff]
    %v1524 = vld [vmem:[%s1494 + $0xe8] sm:$0xff]
    %v1525 = vld [vmem:[%s1494 + $0xf0] sm:$0xff]
    %v1526 = vld [vmem:[%s1494 + $0xf8] sm:$0xff]
    %v1527 = vld [vmem:[%s1494 + $0x100] sm:$0xff]
    %v1528 = vld [vmem:[%s1494 + $0x108] sm:$0xff]
    %v1529 = vld [vmem:[%s1494 + $0x110] sm:$0xff]
    %v1530 = vld [vmem:[%s1494 + $0x118] sm:$0xff]
    %v1531 = vld [vmem:[%s1494 + $0x120] sm:$0xff]
    %v1532 = vld [vmem:[%s1494 + $0x128] sm:$0xff]
    %v1533 = vld [vmem:[%s1494 + $0x130] sm:$0xff]
    %v1534 = vld [vmem:[%s1494 + $0x138] sm:$0xff]
    %v1535 = vld [vmem:[%s1494 + $0x140] sm:$0xff]
    %v1536 = vld [vmem:[%s1494 + $0x148] sm:$0xff]
    %v1537 = vld [vmem:[%s1494 + $0x150] sm:$0xff]
    %v1538 = vld [vmem:[%s1494 + $0x158] sm:$0xff]
    %v1539 = vld [vmem:[%s1494 + $0x160] sm:$0xff]
    %v1540 = vld [vmem:[%s1494 + $0x168] sm:$0xff]
    %v1541 = vld [vmem:[%s1494 + $0x170] sm:$0xff]
    %v1542 = vld [vmem:[%s1494 + $0x178] sm:$0xff]
    %v1543 = vld [vmem:[%s1494 + $0x180] sm:$0xff]
    %v1544 = vld [vmem:[%s1494 + $0x188] sm:$0xff]
    %v1545 = vld [vmem:[%s1494 + $0x190] sm:$0xff]
    %v1546 = vld [vmem:[%s1494 + $0x198] sm:$0xff]
    %v1547 = vld [vmem:[%s1494 + $0x1a0] sm:$0xff]
    %v1548 = vld [vmem:[%s1494 + $0x1a8] sm:$0xff]
    %v1549 = vld [vmem:[%s1494 + $0x1b0] sm:$0xff]
    %v1550 = vld [vmem:[%s1494 + $0x1b8] sm:$0xff]
    %v1551 = vld [vmem:[%s1494 + $0x1c0] sm:$0xff]
    %v1552 = vld [vmem:[%s1494 + $0x1c8] sm:$0xff]
    %v1553 = vld [vmem:[%s1494 + $0x1d0] sm:$0xff]
    %v1554 = vld [vmem:[%s1494 + $0x1d8] sm:$0xff]
    %v1555 = vld [vmem:[%s1494 + $0x1e0] sm:$0xff]
    %v1556 = vld [vmem:[%s1494 + $0x1e8] sm:$0xff]
    %v1557 = vld [vmem:[%s1494 + $0x1f0] sm:$0xff]
    %v1558 = vld [vmem:[%s1494 + $0x1f8] sm:$0xff]
    %v1559 = vld [vmem:[%s1494 + $0x200] sm:$0xff]
    %v1560 = vld [vmem:[%s1494 + $0x208] sm:$0xff]
    %v1561 = vld [vmem:[%s1494 + $0x210] sm:$0xff]
    %v1562 = vld [vmem:[%s1494 + $0x218] sm:$0xff]
    %v1563 = vld [vmem:[%s1494 + $0x220] sm:$0xff]
    %v1564 = vld [vmem:[%s1494 + $0x228] sm:$0xff]
    %v1565 = vld [vmem:[%s1494 + $0x230] sm:$0xff]
    %v1566 = vld [vmem:[%s1494 + $0x238] sm:$0xff]
    %v1567 = vld [vmem:[%s1494 + $0x240] sm:$0xff]
    %v1568 = vld [vmem:[%s1494 + $0x248] sm:$0xff]
    %v1569 = vld [vmem:[%s1494 + $0x250] sm:$0xff]
    %v1570 = vld [vmem:[%s1494 + $0x258] sm:$0xff]
    %v1571 = vld [vmem:[%s1494 + $0x260] sm:$0xff]
    %v1572 = vld [vmem:[%s1494 + $0x268] sm:$0xff]
    %v1573 = vld [vmem:[%s1494 + $0x270] sm:$0xff]
    %v1574 = vld [vmem:[%s1494 + $0x278] sm:$0xff]
    %v1575 = vld [vmem:[%s1494 + $0x280] sm:$0xff]
    %v1576 = vld [vmem:[%s1494 + $0x288] sm:$0xff]
    %v1577 = vld [vmem:[%s1494 + $0x290] sm:$0xff]
    %v1578 = vld [vmem:[%s1494 + $0x298] sm:$0xff]
    %v1579 = vld [vmem:[%s1494 + $0x2a0] sm:$0xff]
    %v1580 = vld [vmem:[%s1494 + $0x2a8] sm:$0xff]
    %v1581 = vld [vmem:[%s1494 + $0x2b0] sm:$0xff]
    %v1582 = vld [vmem:[%s1494 + $0x2b8] sm:$0xff]
    %v1583 = vld [vmem:[%s1494 + $0x2c0] sm:$0xff]
    %v1584 = vld [vmem:[%s1494 + $0x2c8] sm:$0xff]
    %v1585 = vld [vmem:[%s1494 + $0x2d0] sm:$0xff]
    %v1586 = vld [vmem:[%s1494 + $0x2d8] sm:$0xff]
    %v1587 = vld [vmem:[%s1494 + $0x2e0] sm:$0xff]
    %v1588 = vld [vmem:[%s1494 + $0x2e8] sm:$0xff]
    %v1589 = vld [vmem:[%s1494 + $0x2f0] sm:$0xff]
    %v1590 = vld [vmem:[%s1494 + $0x2f8] sm:$0xff]
    %v1591 = vld [vmem:[%s1494 + $0x300] sm:$0xff]
    %v1592 = vld [vmem:[%s1494 + $0x308] sm:$0xff]
    %v1593 = vld [vmem:[%s1494 + $0x310] sm:$0xff]
    %v1594 = vld [vmem:[%s1494 + $0x318] sm:$0xff]
    %v1595 = vld [vmem:[%s1494 + $0x320] sm:$0xff]
    %v1596 = vld [vmem:[%s1494 + $0x328] sm:$0xff]
    %v1597 = vld [vmem:[%s1494 + $0x330] sm:$0xff]
    %v1598 = vld [vmem:[%s1494 + $0x338] sm:$0xff]
    %v1599 = vld [vmem:[%s1494 + $0x340] sm:$0xff]
    %v1600 = vld [vmem:[%s1494 + $0x348] sm:$0xff]
    %v1601 = vld [vmem:[%s1494 + $0x350] sm:$0xff]
    %v1602 = vld [vmem:[%s1494 + $0x358] sm:$0xff]
    %v1603 = vld [vmem:[%s1494 + $0x360] sm:$0xff]
    %v1604 = vld [vmem:[%s1494 + $0x368] sm:$0xff]
    %v1605 = vld [vmem:[%s1494 + $0x370] sm:$0xff]
    %v1606 = vld [vmem:[%s1494 + $0x378] sm:$0xff]
    %v1607 = vld [vmem:[%s1494 + $0x380] sm:$0xff]
    %v1608 = vld [vmem:[%s1494 + $0x388] sm:$0xff]
    %v1609 = vld [vmem:[%s1494 + $0x390] sm:$0xff]
    %v1610 = vld [vmem:[%s1494 + $0x398] sm:$0xff]
    %v1611 = vld [vmem:[%s1494 + $0x3a0] sm:$0xff]
    %v1612 = vld [vmem:[%s1494 + $0x3a8] sm:$0xff]
    %v1613 = vld [vmem:[%s1494 + $0x3b0] sm:$0xff]
    %v1614 = vld [vmem:[%s1494 + $0x3b8] sm:$0xff]
    %v1615 = vld [vmem:[%s1494 + $0x3c0] sm:$0xff]
    %v1616 = vld [vmem:[%s1494 + $0x3c8] sm:$0xff]
    %v1617 = vld [vmem:[%s1494 + $0x3d0] sm:$0xff]
    %v1618 = vld [vmem:[%s1494 + $0x3d8] sm:$0xff]
    %v1619 = vld [vmem:[%s1494 + $0x3e0] sm:$0xff]
    %v1620 = vld [vmem:[%s1494 + $0x3e8] sm:$0xff]
    %v1621 = vld [vmem:[%s1494 + $0x3f0] sm:$0xff]
    %v1622 = vld [vmem:[%s1494 + $0x3f8] sm:$0xff]
    %v1623 = vld [vmem:[%s1494 + $0x400] sm:$0xff]
    %v1624 = vld [vmem:[%s1494 + $0x408] sm:$0xff]
    %v1625 = vld [vmem:[%s1494 + $0x410] sm:$0xff]
    %v1626 = vld [vmem:[%s1494 + $0x418] sm:$0xff]
    %v1627 = vld [vmem:[%s1494 + $0x420] sm:$0xff]
    %v1628 = vld [vmem:[%s1494 + $0x428] sm:$0xff]
    %v1629 = vld [vmem:[%s1494 + $0x430] sm:$0xff]
    %v1630 = vld [vmem:[%s1494 + $0x438] sm:$0xff]
    %v1631 = vld [vmem:[%s1494 + $0x440] sm:$0xff]
    %v1632 = vld [vmem:[%s1494 + $0x448] sm:$0xff]
    %v1633 = vld [vmem:[%s1494 + $0x450] sm:$0xff]
    %v1634 = vld [vmem:[%s1494 + $0x458] sm:$0xff]
    %v1635 = vld [vmem:[%s1494 + $0x460] sm:$0xff]
    %v1636 = vld [vmem:[%s1494 + $0x468] sm:$0xff]
    %v1637 = vld [vmem:[%s1494 + $0x470] sm:$0xff]
    %v1638 = vld [vmem:[%s1494 + $0x478] sm:$0xff]
    %v1639 = vld [vmem:[%s1494 + $0x480] sm:$0xff]
    %v1640 = vld [vmem:[%s1494 + $0x488] sm:$0xff]
    %v1641 = vld [vmem:[%s1494 + $0x490] sm:$0xff]
    %v1789 = vunpack.c.l.b16 %v1495
    %v1790 = vunpack.c.h.b16 %v1495
    %v1791 = vunpack.c.l.b16 %v1496
    %v1792 = vunpack.c.h.b16 %v1496
    %v1793 = vunpack.c.l.b16 %v1497
    %v1794 = vunpack.c.h.b16 %v1497
    %v1795 = vunpack.c.l.b16 %v1498
    %v1796 = vunpack.c.h.b16 %v1498
    %v1797 = vunpack.c.l.b16 %v1499
    %v1798 = vunpack.c.h.b16 %v1499
    %v1799 = vunpack.c.l.b16 %v1500
    %v1800 = vunpack.c.h.b16 %v1500
    %v1801 = vunpack.c.l.b16 %v1501
    %v1802 = vunpack.c.h.b16 %v1501
    %v1803 = vunpack.c.l.b16 %v1502
    %v1804 = vunpack.c.h.b16 %v1502
    %v1805 = vunpack.c.l.b16 %v1503
    %v1806 = vunpack.c.h.b16 %v1503
    %v1807 = vunpack.c.l.b16 %v1504
    %v1808 = vunpack.c.h.b16 %v1504
    %v1809 = vunpack.c.l.b16 %v1505
    %v1810 = vunpack.c.h.b16 %v1505
    %v1811 = vunpack.c.l.b16 %v1506
    %v1812 = vunpack.c.h.b16 %v1506
    %v1813 = vunpack.c.l.b16 %v1507
    %v1814 = vunpack.c.h.b16 %v1507
    %v1815 = vunpack.c.l.b16 %v1508
    %v1816 = vunpack.c.h.b16 %v1508
    %v1817 = vunpack.c.l.b16 %v1509
    %v1818 = vunpack.c.h.b16 %v1509
    %v1819 = vunpack.c.l.b16 %v1510
    %v1820 = vunpack.c.h.b16 %v1510
    %v1821 = vunpack.c.l.b16 %v1511
    %v1822 = vunpack.c.h.b16 %v1511
    %v1823 = vunpack.c.l.b16 %v1512
    %v1824 = vunpack.c.h.b16 %v1512
    %v1825 = vunpack.c.l.b16 %v1513
    %v1826 = vunpack.c.h.b16 %v1513
    %v1827 = vunpack.c.l.b16 %v1514
    %v1828 = vunpack.c.h.b16 %v1514
    %v1829 = vunpack.c.l.b16 %v1515
    %v1830 = vunpack.c.h.b16 %v1515
    %v1831 = vunpack.c.l.b16 %v1516
    %v1832 = vunpack.c.h.b16 %v1516
    %v1833 = vunpack.c.l.b16 %v1517
    %v1834 = vunpack.c.h.b16 %v1517
    %v1835 = vunpack.c.l.b16 %v1518
    %v1836 = vunpack.c.h.b16 %v1518
    %v1837 = vunpack.c.l.b16 %v1519
    %v1838 = vunpack.c.h.b16 %v1519
    %v1839 = vunpack.c.l.b16 %v1520
    %v1840 = vunpack.c.h.b16 %v1520
    %v1841 = vunpack.c.l.b16 %v1521
    %v1842 = vunpack.c.h.b16 %v1521
    %v1843 = vunpack.c.l.b16 %v1522
    %v1844 = vunpack.c.h.b16 %v1522
    %v1845 = vunpack.c.l.b16 %v1523
    %v1846 = vunpack.c.h.b16 %v1523
    %v1847 = vunpack.c.l.b16 %v1524
    %v1848 = vunpack.c.h.b16 %v1524
    %v1849 = vunpack.c.l.b16 %v1525
    %v1850 = vunpack.c.h.b16 %v1525
    %v1851 = vunpack.c.l.b16 %v1526
    %v1852 = vunpack.c.h.b16 %v1526
    %v1853 = vunpack.c.l.b16 %v1527
    %v1854 = vunpack.c.h.b16 %v1527
    %v1855 = vunpack.c.l.b16 %v1528
    %v1856 = vunpack.c.h.b16 %v1528
    %v1857 = vunpack.c.l.b16 %v1529
    %v1858 = vunpack.c.h.b16 %v1529
    %v1859 = vunpack.c.l.b16 %v1530
    %v1860 = vunpack.c.h.b16 %v1530
    %v1861 = vunpack.c.l.b16 %v1531
    %v1862 = vunpack.c.h.b16 %v1531
    %v1863 = vunpack.c.l.b16 %v1532
    %v1864 = vunpack.c.h.b16 %v1532
    %v1865 = vunpack.c.l.b16 %v1533
    %v1866 = vunpack.c.h.b16 %v1533
    %v1867 = vunpack.c.l.b16 %v1534
    %v1868 = vunpack.c.h.b16 %v1534
    %v1869 = vunpack.c.l.b16 %v1535
    %v1870 = vunpack.c.h.b16 %v1535
    %v1871 = vunpack.c.l.b16 %v1536
    %v1872 = vunpack.c.h.b16 %v1536
    %v1873 = vunpack.c.l.b16 %v1537
    %v1874 = vunpack.c.h.b16 %v1537
    %v1875 = vunpack.c.l.b16 %v1538
    %v1876 = vunpack.c.h.b16 %v1538
    %v1877 = vunpack.c.l.b16 %v1539
    %v1878 = vunpack.c.h.b16 %v1539
    %v1879 = vunpack.c.l.b16 %v1540
    %v1880 = vunpack.c.h.b16 %v1540
    %v1881 = vunpack.c.l.b16 %v1541
    %v1882 = vunpack.c.h.b16 %v1541
    %v1883 = vunpack.c.l.b16 %v1542
    %v1884 = vunpack.c.h.b16 %v1542
    %v1885 = vunpack.c.l.b16 %v1543
    %v1886 = vunpack.c.h.b16 %v1543
    %v1887 = vunpack.c.l.b16 %v1544
    %v1888 = vunpack.c.h.b16 %v1544
    %v1889 = vunpack.c.l.b16 %v1545
    %v1890 = vunpack.c.h.b16 %v1545
    %v1891 = vunpack.c.l.b16 %v1546
    %v1892 = vunpack.c.h.b16 %v1546
    %v1893 = vunpack.c.l.b16 %v1547
    %v1894 = vunpack.c.h.b16 %v1547
    %v1895 = vunpack.c.l.b16 %v1548
    %v1896 = vunpack.c.h.b16 %v1548
    %v1897 = vunpack.c.l.b16 %v1549
    %v1898 = vunpack.c.h.b16 %v1549
    %v1899 = vunpack.c.l.b16 %v1550
    %v1900 = vunpack.c.h.b16 %v1550
    %v1901 = vunpack.c.l.b16 %v1551
    %v1902 = vunpack.c.h.b16 %v1551
    %v1903 = vunpack.c.l.b16 %v1552
    %v1904 = vunpack.c.h.b16 %v1552
    %v1905 = vunpack.c.l.b16 %v1553
    %v1906 = vunpack.c.h.b16 %v1553
    %v1907 = vunpack.c.l.b16 %v1554
    %v1908 = vunpack.c.h.b16 %v1554
    %v1909 = vunpack.c.l.b16 %v1555
    %v1910 = vunpack.c.h.b16 %v1555
    %v1911 = vunpack.c.l.b16 %v1556
    %v1912 = vunpack.c.h.b16 %v1556
    %v1913 = vunpack.c.l.b16 %v1557
    %v1914 = vunpack.c.h.b16 %v1557
    %v1915 = vunpack.c.l.b16 %v1558
    %v1916 = vunpack.c.h.b16 %v1558
    %v1917 = vunpack.c.l.b16 %v1559
    %v1918 = vunpack.c.h.b16 %v1559
    %v1919 = vunpack.c.l.b16 %v1560
    %v1920 = vunpack.c.h.b16 %v1560
    %v1921 = vunpack.c.l.b16 %v1561
    %v1922 = vunpack.c.h.b16 %v1561
    %v1923 = vunpack.c.l.b16 %v1562
    %v1924 = vunpack.c.h.b16 %v1562
    %v1925 = vunpack.c.l.b16 %v1563
    %v1926 = vunpack.c.h.b16 %v1563
    %v1927 = vunpack.c.l.b16 %v1564
    %v1928 = vunpack.c.h.b16 %v1564
    %v1929 = vunpack.c.l.b16 %v1565
    %v1930 = vunpack.c.h.b16 %v1565
    %v1931 = vunpack.c.l.b16 %v1566
    %v1932 = vunpack.c.h.b16 %v1566
    %v1933 = vunpack.c.l.b16 %v1567
    %v1934 = vunpack.c.h.b16 %v1567
    %v1935 = vunpack.c.l.b16 %v1568
    %v1936 = vunpack.c.h.b16 %v1568
    %v1937 = vunpack.c.l.b16 %v1569
    %v1938 = vunpack.c.h.b16 %v1569
    %v1939 = vunpack.c.l.b16 %v1570
    %v1940 = vunpack.c.h.b16 %v1570
    %v1941 = vunpack.c.l.b16 %v1571
    %v1942 = vunpack.c.h.b16 %v1571
    %v1943 = vunpack.c.l.b16 %v1572
    %v1944 = vunpack.c.h.b16 %v1572
    %v1945 = vunpack.c.l.b16 %v1573
    %v1946 = vunpack.c.h.b16 %v1573
    %v1947 = vunpack.c.l.b16 %v1574
    %v1948 = vunpack.c.h.b16 %v1574
    %v1949 = vunpack.c.l.b16 %v1575
    %v1950 = vunpack.c.h.b16 %v1575
    %v1951 = vunpack.c.l.b16 %v1576
    %v1952 = vunpack.c.h.b16 %v1576
    %v1953 = vunpack.c.l.b16 %v1577
    %v1954 = vunpack.c.h.b16 %v1577
    %v1955 = vunpack.c.l.b16 %v1578
    %v1956 = vunpack.c.h.b16 %v1578
    %v1957 = vunpack.c.l.b16 %v1579
    %v1958 = vunpack.c.h.b16 %v1579
    %v1959 = vunpack.c.l.b16 %v1580
    %v1960 = vunpack.c.h.b16 %v1580
    %v1961 = vunpack.c.l.b16 %v1581
    %v1962 = vunpack.c.h.b16 %v1581
    %v1963 = vunpack.c.l.b16 %v1582
    %v1964 = vunpack.c.h.b16 %v1582
    %v1965 = vunpack.c.l.b16 %v1583
    %v1966 = vunpack.c.h.b16 %v1583
    %v1967 = vunpack.c.l.b16 %v1584
    %v1968 = vunpack.c.h.b16 %v1584
    %v1969 = vunpack.c.l.b16 %v1585
    %v1970 = vunpack.c.h.b16 %v1585
    %v1971 = vunpack.c.l.b16 %v1586
    %v1972 = vunpack.c.h.b16 %v1586
    %v1973 = vunpack.c.l.b16 %v1587
    %v1974 = vunpack.c.h.b16 %v1587
    %v1975 = vunpack.c.l.b16 %v1588
    %v1976 = vunpack.c.h.b16 %v1588
    %v1977 = vunpack.c.l.b16 %v1589
    %v1978 = vunpack.c.h.b16 %v1589
    %v1979 = vunpack.c.l.b16 %v1590
    %v1980 = vunpack.c.h.b16 %v1590
    %v1981 = vunpack.c.l.b16 %v1591
    %v1982 = vunpack.c.h.b16 %v1591
    %v1983 = vunpack.c.l.b16 %v1592
    %v1984 = vunpack.c.h.b16 %v1592
    %v1985 = vunpack.c.l.b16 %v1593
    %v1986 = vunpack.c.h.b16 %v1593
    %v1987 = vunpack.c.l.b16 %v1594
    %v1988 = vunpack.c.h.b16 %v1594
    %v1989 = vunpack.c.l.b16 %v1595
    %v1990 = vunpack.c.h.b16 %v1595
    %v1991 = vunpack.c.l.b16 %v1596
    %v1992 = vunpack.c.h.b16 %v1596
    %v1993 = vunpack.c.l.b16 %v1597
    %v1994 = vunpack.c.h.b16 %v1597
    %v1995 = vunpack.c.l.b16 %v1598
    %v1996 = vunpack.c.h.b16 %v1598
    %v1997 = vunpack.c.l.b16 %v1599
    %v1998 = vunpack.c.h.b16 %v1599
    %v1999 = vunpack.c.l.b16 %v1600
    %v2000 = vunpack.c.h.b16 %v1600
    %v2001 = vunpack.c.l.b16 %v1601
    %v2002 = vunpack.c.h.b16 %v1601
    %v2003 = vunpack.c.l.b16 %v1602
    %v2004 = vunpack.c.h.b16 %v1602
    %v2005 = vunpack.c.l.b16 %v1603
    %v2006 = vunpack.c.h.b16 %v1603
    %v2007 = vunpack.c.l.b16 %v1604
    %v2008 = vunpack.c.h.b16 %v1604
    %v2009 = vunpack.c.l.b16 %v1605
    %v2010 = vunpack.c.h.b16 %v1605
    %v2011 = vunpack.c.l.b16 %v1606
    %v2012 = vunpack.c.h.b16 %v1606
    %v2013 = vunpack.c.l.b16 %v1607
    %v2014 = vunpack.c.h.b16 %v1607
    %v2015 = vunpack.c.l.b16 %v1608
    %v2016 = vunpack.c.h.b16 %v1608
    %v2017 = vunpack.c.l.b16 %v1609
    %v2018 = vunpack.c.h.b16 %v1609
    %v2019 = vunpack.c.l.b16 %v1610
    %v2020 = vunpack.c.h.b16 %v1610
    %v2021 = vunpack.c.l.b16 %v1611
    %v2022 = vunpack.c.h.b16 %v1611
    %v2023 = vunpack.c.l.b16 %v1612
    %v2024 = vunpack.c.h.b16 %v1612
    %v2025 = vunpack.c.l.b16 %v1613
    %v2026 = vunpack.c.h.b16 %v1613
    %v2027 = vunpack.c.l.b16 %v1614
    %v2028 = vunpack.c.h.b16 %v1614
    %v2029 = vunpack.c.l.b16 %v1615
    %v2030 = vunpack.c.h.b16 %v1615
    %v2031 = vunpack.c.l.b16 %v1616
    %v2032 = vunpack.c.h.b16 %v1616
    %v2033 = vunpack.c.l.b16 %v1617
    %v2034 = vunpack.c.h.b16 %v1617
    %v2035 = vunpack.c.l.b16 %v1618
    %v2036 = vunpack.c.h.b16 %v1618
    %v2037 = vunpack.c.l.b16 %v1619
    %v2038 = vunpack.c.h.b16 %v1619
    %v2039 = vunpack.c.l.b16 %v1620
    %v2040 = vunpack.c.h.b16 %v1620
    %v2041 = vunpack.c.l.b16 %v1621
    %v2042 = vunpack.c.h.b16 %v1621
    %v2043 = vunpack.c.l.b16 %v1622
    %v2044 = vunpack.c.h.b16 %v1622
    %v2045 = vunpack.c.l.b16 %v1623
    %v2046 = vunpack.c.h.b16 %v1623
    %v2047 = vunpack.c.l.b16 %v1624
    %v2048 = vunpack.c.h.b16 %v1624
    %v2049 = vunpack.c.l.b16 %v1625
    %v2050 = vunpack.c.h.b16 %v1625
    %v2051 = vunpack.c.l.b16 %v1626
    %v2052 = vunpack.c.h.b16 %v1626
    %v2053 = vunpack.c.l.b16 %v1627
    %v2054 = vunpack.c.h.b16 %v1627
    %v2055 = vunpack.c.l.b16 %v1628
    %v2056 = vunpack.c.h.b16 %v1628
    %v2057 = vunpack.c.l.b16 %v1629
    %v2058 = vunpack.c.h.b16 %v1629
    %v2059 = vunpack.c.l.b16 %v1630
    %v2060 = vunpack.c.h.b16 %v1630
    %v2061 = vunpack.c.l.b16 %v1631
    %v2062 = vunpack.c.h.b16 %v1631
    %v2063 = vunpack.c.l.b16 %v1632
    %v2064 = vunpack.c.h.b16 %v1632
    %v2065 = vunpack.c.l.b16 %v1633
    %v2066 = vunpack.c.h.b16 %v1633
    %v2067 = vunpack.c.l.b16 %v1634
    %v2068 = vunpack.c.h.b16 %v1634
    %v2069 = vunpack.c.l.b16 %v1635
    %v2070 = vunpack.c.h.b16 %v1635
    %v2071 = vunpack.c.l.b16 %v1636
    %v2072 = vunpack.c.h.b16 %v1636
    %v2073 = vunpack.c.l.b16 %v1637
    %v2074 = vunpack.c.h.b16 %v1637
    %v2075 = vunpack.c.l.b16 %v1638
    %v2076 = vunpack.c.h.b16 %v1638
    %v2077 = vunpack.c.l.b16 %v1639
    %v2078 = vunpack.c.h.b16 %v1639
    %v2079 = vunpack.c.l.b16 %v1640
    %v2080 = vunpack.c.h.b16 %v1640
    %v2081 = vunpack.c.l.b16 %v1641
    %v2082 = vunpack.c.h.b16 %v1641
    %v2083 = vpack.c.b16 %v1803, %v1789
    %v2084 = vpack.c.b16 %v1804, %v1790
    %v2085 = vpack.c.b16 %v1805, %v1791
    %v2086 = vpack.c.b16 %v1806, %v1792
    %v2087 = vpack.c.b16 %v1807, %v1793
    %v2088 = vpack.c.b16 %v1808, %v1794
    %v2089 = vpack.c.b16 %v1809, %v1795
    %v2090 = vpack.c.b16 %v1810, %v1796
    %v2091 = vpack.c.b16 %v1811, %v1797
    %v2092 = vpack.c.b16 %v1812, %v1798
    %v2093 = vpack.c.b16 %v1813, %v1799
    %v2094 = vpack.c.b16 %v1814, %v1800
    %v2095 = vpack.c.b16 %v1815, %v1801
    %v2096 = vpack.c.b16 %v1816, %v1802
    %v2097 = vpack.c.b16 %v1831, %v1817
    %v2098 = vpack.c.b16 %v1832, %v1818
    %v2099 = vpack.c.b16 %v1833, %v1819
    %v2100 = vpack.c.b16 %v1834, %v1820
    %v2101 = vpack.c.b16 %v1835, %v1821
    %v2102 = vpack.c.b16 %v1836, %v1822
    %v2103 = vpack.c.b16 %v1837, %v1823
    %v2104 = vpack.c.b16 %v1838, %v1824
    %v2105 = vpack.c.b16 %v1839, %v1825
    %v2106 = vpack.c.b16 %v1840, %v1826
    %v2107 = vpack.c.b16 %v1841, %v1827
    %v2108 = vpack.c.b16 %v1842, %v1828
    %v2109 = vpack.c.b16 %v1843, %v1829
    %v2110 = vpack.c.b16 %v1844, %v1830
    %v2111 = vpack.c.b16 %v1859, %v1845
    %v2112 = vpack.c.b16 %v1860, %v1846
    %v2113 = vpack.c.b16 %v1861, %v1847
    %v2114 = vpack.c.b16 %v1862, %v1848
    %v2115 = vpack.c.b16 %v1863, %v1849
    %v2116 = vpack.c.b16 %v1864, %v1850
    %v2117 = vpack.c.b16 %v1865, %v1851
    %v2118 = vpack.c.b16 %v1866, %v1852
    %v2119 = vpack.c.b16 %v1867, %v1853
    %v2120 = vpack.c.b16 %v1868, %v1854
    %v2121 = vpack.c.b16 %v1869, %v1855
    %v2122 = vpack.c.b16 %v1870, %v1856
    %v2123 = vpack.c.b16 %v1871, %v1857
    %v2124 = vpack.c.b16 %v1872, %v1858
    %v2125 = vpack.c.b16 %v1887, %v1873
    %v2126 = vpack.c.b16 %v1888, %v1874
    %v2127 = vpack.c.b16 %v1889, %v1875
    %v2128 = vpack.c.b16 %v1890, %v1876
    %v2129 = vpack.c.b16 %v1891, %v1877
    %v2130 = vpack.c.b16 %v1892, %v1878
    %v2131 = vpack.c.b16 %v1893, %v1879
    %v2132 = vpack.c.b16 %v1894, %v1880
    %v2133 = vpack.c.b16 %v1895, %v1881
    %v2134 = vpack.c.b16 %v1896, %v1882
    %v2135 = vpack.c.b16 %v1897, %v1883
    %v2136 = vpack.c.b16 %v1898, %v1884
    %v2137 = vpack.c.b16 %v1899, %v1885
    %v2138 = vpack.c.b16 %v1900, %v1886
    %v2139 = vpack.c.b16 %v1915, %v1901
    %v2140 = vpack.c.b16 %v1916, %v1902
    %v2141 = vpack.c.b16 %v1917, %v1903
    %v2142 = vpack.c.b16 %v1918, %v1904
    %v2143 = vpack.c.b16 %v1919, %v1905
    %v2144 = vpack.c.b16 %v1920, %v1906
    %v2145 = vpack.c.b16 %v1921, %v1907
    %v2146 = vpack.c.b16 %v1922, %v1908
    %v2147 = vpack.c.b16 %v1923, %v1909
    %v2148 = vpack.c.b16 %v1924, %v1910
    %v2149 = vpack.c.b16 %v1925, %v1911
    %v2150 = vpack.c.b16 %v1926, %v1912
    %v2151 = vpack.c.b16 %v1927, %v1913
    %v2152 = vpack.c.b16 %v1928, %v1914
    %v2153 = vpack.c.b16 %v1943, %v1929
    %v2154 = vpack.c.b16 %v1944, %v1930
    %v2155 = vpack.c.b16 %v1945, %v1931
    %v2156 = vpack.c.b16 %v1946, %v1932
    %v2157 = vpack.c.b16 %v1947, %v1933
    %v2158 = vpack.c.b16 %v1948, %v1934
    %v2159 = vpack.c.b16 %v1949, %v1935
    %v2160 = vpack.c.b16 %v1950, %v1936
    %v2161 = vpack.c.b16 %v1951, %v1937
    %v2162 = vpack.c.b16 %v1952, %v1938
    %v2163 = vpack.c.b16 %v1953, %v1939
    %v2164 = vpack.c.b16 %v1954, %v1940
    %v2165 = vpack.c.b16 %v1955, %v1941
    %v2166 = vpack.c.b16 %v1956, %v1942
    %v2167 = vpack.c.b16 %v1971, %v1957
    %v2168 = vpack.c.b16 %v1972, %v1958
    %v2169 = vpack.c.b16 %v1973, %v1959
    %v2170 = vpack.c.b16 %v1974, %v1960
    %v2171 = vpack.c.b16 %v1975, %v1961
    %v2172 = vpack.c.b16 %v1976, %v1962
    %v2173 = vpack.c.b16 %v1977, %v1963
    %v2174 = vpack.c.b16 %v1978, %v1964
    %v2175 = vpack.c.b16 %v1979, %v1965
    %v2176 = vpack.c.b16 %v1980, %v1966
    %v2177 = vpack.c.b16 %v1981, %v1967
    %v2178 = vpack.c.b16 %v1982, %v1968
    %v2179 = vpack.c.b16 %v1983, %v1969
    %v2180 = vpack.c.b16 %v1984, %v1970
    %v2181 = vpack.c.b16 %v1999, %v1985
    %v2182 = vpack.c.b16 %v2000, %v1986
    %v2183 = vpack.c.b16 %v2001, %v1987
    %v2184 = vpack.c.b16 %v2002, %v1988
    %v2185 = vpack.c.b16 %v2003, %v1989
    %v2186 = vpack.c.b16 %v2004, %v1990
    %v2187 = vpack.c.b16 %v2005, %v1991
    %v2188 = vpack.c.b16 %v2006, %v1992
    %v2189 = vpack.c.b16 %v2007, %v1993
    %v2190 = vpack.c.b16 %v2008, %v1994
    %v2191 = vpack.c.b16 %v2009, %v1995
    %v2192 = vpack.c.b16 %v2010, %v1996
    %v2193 = vpack.c.b16 %v2011, %v1997
    %v2194 = vpack.c.b16 %v2012, %v1998
    %v2195 = vpack.c.b16 %v2027, %v2013
    %v2196 = vpack.c.b16 %v2028, %v2014
    %v2197 = vpack.c.b16 %v2029, %v2015
    %v2198 = vpack.c.b16 %v2030, %v2016
    %v2199 = vpack.c.b16 %v2031, %v2017
    %v2200 = vpack.c.b16 %v2032, %v2018
    %v2201 = vpack.c.b16 %v2033, %v2019
    %v2202 = vpack.c.b16 %v2034, %v2020
    %v2203 = vpack.c.b16 %v2035, %v2021
    %v2204 = vpack.c.b16 %v2036, %v2022
    %v2205 = vpack.c.b16 %v2037, %v2023
    %v2206 = vpack.c.b16 %v2038, %v2024
    %v2207 = vpack.c.b16 %v2039, %v2025
    %v2208 = vpack.c.b16 %v2040, %v2026
    %v2209 = vpack.c.b16 %v2055, %v2041
    %v2210 = vpack.c.b16 %v2056, %v2042
    %v2211 = vpack.c.b16 %v2057, %v2043
    %v2212 = vpack.c.b16 %v2058, %v2044
    %v2213 = vpack.c.b16 %v2059, %v2045
    %v2214 = vpack.c.b16 %v2060, %v2046
    %v2215 = vpack.c.b16 %v2061, %v2047
    %v2216 = vpack.c.b16 %v2062, %v2048
    %v2217 = vpack.c.b16 %v2063, %v2049
    %v2218 = vpack.c.b16 %v2064, %v2050
    %v2219 = vpack.c.b16 %v2065, %v2051
    %v2220 = vpack.c.b16 %v2066, %v2052
    %v2221 = vpack.c.b16 %v2067, %v2053
    %v2222 = vpack.c.b16 %v2068, %v2054
    %v2223 = vpack.c.b16 %v2069, %v2069
    %v2224 = vpack.c.b16 %v2070, %v2070
    %v2225 = vpack.c.b16 %v2071, %v2071
    %v2226 = vpack.c.b16 %v2072, %v2072
    %v2227 = vpack.c.b16 %v2073, %v2073
    %v2228 = vpack.c.b16 %v2074, %v2074
    %v2229 = vpack.c.b16 %v2075, %v2075
    %v2230 = vpack.c.b16 %v2076, %v2076
    %v2231 = vpack.c.b16 %v2077, %v2077
    %v2232 = vpack.c.b16 %v2078, %v2078
    %v2233 = vpack.c.b16 %v2079, %v2079
    %v2234 = vpack.c.b16 %v2080, %v2080
    %v2235 = vpack.c.b16 %v2081, %v2081
    %v2236 = vpack.c.b16 %v2082, %v2082
    %v2378 = vsel %vm1033, %v2223, 0
    %v2381 = vsel %vm1033, %v2224, 0
    %v2384 = vsel %vm1033, %v2225, 0
    %v2387 = vsel %vm1033, %v2226, 0
    %v2390 = vsel %vm1033, %v2227, 0
    %v2393 = vsel %vm1033, %v2228, 0
    %v2396 = vsel %vm1033, %v2229, 0
    %v2399 = vsel %vm1033, %v2230, 0
    %v2402 = vsel %vm1033, %v2231, 0
    %v2405 = vsel %vm1033, %v2232, 0
    %v2408 = vsel %vm1033, %v2233, 0
    %v2411 = vsel %vm1033, %v2234, 0
    %v2414 = vsel %vm1033, %v2235, 0
    %v2417 = vsel %vm1033, %v2236, 0
    %2419 = vmatprep.subr.bf16.mxu0 %v2084
    %2420 = vmatpush1.bf16.msra.mxu0 %v2083
    %2421 = vmatprep.subr.bf16.mxu0 %v2098
    %2422 = vmatpush1.bf16.msra.mxu0 %v2097
    %2423 = vmatprep.subr.bf16.mxu0 %v2112
    %2424 = vmatpush1.bf16.msra.mxu0 %v2111
    %2425 = vmatprep.subr.bf16.mxu0 %v2126
    %2426 = vmatpush1.bf16.msra.mxu0 %v2125
    %2427 = vmatprep.subr.bf16.mxu0 %v2140
    %2428 = vmatpush1.bf16.msra.mxu0 %v2139
    %2429 = vmatprep.subr.bf16.mxu0 %v2154
    %2430 = vmatpush1.bf16.msra.mxu0 %v2153
    %2431 = vmatprep.subr.bf16.mxu0 %v2168
    %2432 = vmatpush1.bf16.msra.mxu0 %v2167
    %2433 = vmatprep.subr.bf16.mxu0 %v2182
    %2434 = vmatpush1.bf16.msra.mxu0 %v2181
    %2435 = vmatprep.subr.bf16.mxu0 %v2196
    %2436 = vmatpush1.bf16.msra.mxu0 %v2195
    %2437 = vmatprep.subr.bf16.mxu0 %v2210
    %2438 = vmatpush1.bf16.msra.mxu0 %v2209
    %2439 = vmatprep.subr.bf16.mxu0 %v2381
    %2440 = vmatpush1.bf16.msra.mxu0 %v2378
    %2441 = vmatprep.subr.bf16.mxu0 0
    %2442 = vmatpush1.bf16.msra.mxu0 0
    %2443 = vmatprep.subr.bf16.mxu0 0
    %2444 = vmatpush1.bf16.msra.mxu0 0
    %2445 = vmatprep.subr.bf16.mxu0 0
    %2446 = vmatpush1.bf16.msra.mxu0 0
    %2447 = vmatprep.subr.bf16.mxu0 0
    %2448 = vmatpush1.bf16.msra.mxu0 0
    %2449 = vmatprep.subr.bf16.mxu0 0
    %2450 = vmatpush1.bf16.msra.mxu0 0
    %2451 = vmatprep.mubr.bf16.mxu0 %v1031
    %2452 = vmatmul.mubr.bf16.gmra.mrb[0].mxu0 %v291
    %v2453 = vpop.f32.mrb[0].mxu0
    %v2454 = vadd.f32 0.0, %v2453
    %v2455 = vpop.f32.mrb[0].mxu0
    %v2456 = vadd.f32 0.0, %v2455
    %v2457 = vpop.f32.mrb[0].mxu0
    %v2458 = vadd.f32 0.0, %v2457
    %v2459 = vpop.f32.mrb[0].mxu0
    %v2460 = vadd.f32 0.0, %v2459
    %2461 = vdwg.mxu0
    %2462 = vmatprep.subr.bf16.mxu0 %v2086
    %2463 = vmatpush1.bf16.msra.mxu0 %v2085
    %2464 = vmatprep.subr.bf16.mxu0 %v2100
    %2465 = vmatpush1.bf16.msra.mxu0 %v2099
    %2466 = vmatprep.subr.bf16.mxu0 %v2114
    %2467 = vmatpush1.bf16.msra.mxu0 %v2113
    %2468 = vmatprep.subr.bf16.mxu0 %v2128
    %2469 = vmatpush1.bf16.msra.mxu0 %v2127
    %2470 = vmatprep.subr.bf16.mxu0 %v2142
    %2471 = vmatpush1.bf16.msra.mxu0 %v2141
    %2472 = vmatprep.subr.bf16.mxu0 %v2156
    %2473 = vmatpush1.bf16.msra.mxu0 %v2155
    %2474 = vmatprep.subr.bf16.mxu0 %v2170
    %2475 = vmatpush1.bf16.msra.mxu0 %v2169
    %2476 = vmatprep.subr.bf16.mxu0 %v2184
    %2477 = vmatpush1.bf16.msra.mxu0 %v2183
    %2478 = vmatprep.subr.bf16.mxu0 %v2198
    %2479 = vmatpush1.bf16.msra.mxu0 %v2197
    %2480 = vmatprep.subr.bf16.mxu0 %v2212
    %2481 = vmatpush1.bf16.msra.mxu0 %v2211
    %2482 = vmatprep.subr.bf16.mxu0 %v2387
    %2483 = vmatpush1.bf16.msra.mxu0 %v2384
    %2484 = vmatprep.subr.bf16.mxu0 0
    %2485 = vmatpush1.bf16.msra.mxu0 0
    %2486 = vmatprep.subr.bf16.mxu0 0
    %2487 = vmatpush1.bf16.msra.mxu0 0
    %2488 = vmatprep.subr.bf16.mxu0 0
    %2489 = vmatpush1.bf16.msra.mxu0 0
    %2490 = vmatprep.subr.bf16.mxu0 0
    %2491 = vmatpush1.bf16.msra.mxu0 0
    %2492 = vmatprep.subr.bf16.mxu0 0
    %2493 = vmatpush1.bf16.msra.mxu0 0
    %2494 = vmatprep.mubr.bf16.mxu0 %v1031
    %2495 = vmatmul.mubr.bf16.gmra.mrb[0].mxu0 %v291
    %v2496 = vpop.f32.mrb[0].mxu0
    %v2497 = vadd.f32 0.0, %v2496
    %v2498 = vpop.f32.mrb[0].mxu0
    %v2499 = vadd.f32 0.0, %v2498
    %v2500 = vpop.f32.mrb[0].mxu0
    %v2501 = vadd.f32 0.0, %v2500
    %v2502 = vpop.f32.mrb[0].mxu0
    %v2503 = vadd.f32 0.0, %v2502
    %2504 = vdwg.mxu0
    %2505 = vmatprep.subr.bf16.mxu0 %v2088
    %2506 = vmatpush1.bf16.msra.mxu0 %v2087
    %2507 = vmatprep.subr.bf16.mxu0 %v2102
    %2508 = vmatpush1.bf16.msra.mxu0 %v2101
    %2509 = vmatprep.subr.bf16.mxu0 %v2116
    %2510 = vmatpush1.bf16.msra.mxu0 %v2115
    %2511 = vmatprep.subr.bf16.mxu0 %v2130
    %2512 = vmatpush1.bf16.msra.mxu0 %v2129
    %2513 = vmatprep.subr.bf16.mxu0 %v2144
    %2514 = vmatpush1.bf16.msra.mxu0 %v2143
    %2515 = vmatprep.subr.bf16.mxu0 %v2158
    %2516 = vmatpush1.bf16.msra.mxu0 %v2157
    %2517 = vmatprep.subr.bf16.mxu0 %v2172
    %2518 = vmatpush1.bf16.msra.mxu0 %v2171
    %2519 = vmatprep.subr.bf16.mxu0 %v2186
    %2520 = vmatpush1.bf16.msra.mxu0 %v2185
    %2521 = vmatprep.subr.bf16.mxu0 %v2200
    %2522 = vmatpush1.bf16.msra.mxu0 %v2199
    %2523 = vmatprep.subr.bf16.mxu0 %v2214
    %2524 = vmatpush1.bf16.msra.mxu0 %v2213
    %2525 = vmatprep.subr.bf16.mxu0 %v2393
    %2526 = vmatpush1.bf16.msra.mxu0 %v2390
    %2527 = vmatprep.subr.bf16.mxu0 0
    %2528 = vmatpush1.bf16.msra.mxu0 0
    %2529 = vmatprep.subr.bf16.mxu0 0
    %2530 = vmatpush1.bf16.msra.mxu0 0
    %2531 = vmatprep.subr.bf16.mxu0 0
    %2532 = vmatpush1.bf16.msra.mxu0 0
    %2533 = vmatprep.subr.bf16.mxu0 0
    %2534 = vmatpush1.bf16.msra.mxu0 0
    %2535 = vmatprep.subr.bf16.mxu0 0
    %2536 = vmatpush1.bf16.msra.mxu0 0
    %2537 = vmatprep.mubr.bf16.mxu0 %v1031
    %2538 = vmatmul.mubr.bf16.gmra.mrb[0].mxu0 %v291
    %v2539 = vpop.f32.mrb[0].mxu0
    %v2540 = vadd.f32 0.0, %v2539
    %v2541 = vpop.f32.mrb[0].mxu0
    %v2542 = vadd.f32 0.0, %v2541
    %v2543 = vpop.f32.mrb[0].mxu0
    %v2544 = vadd.f32 0.0, %v2543
    %v2545 = vpop.f32.mrb[0].mxu0
    %v2546 = vadd.f32 0.0, %v2545
    %2547 = vdwg.mxu0
    %2548 = vmatprep.subr.bf16.mxu0 %v2090
    %2549 = vmatpush1.bf16.msra.mxu0 %v2089
    %2550 = vmatprep.subr.bf16.mxu0 %v2104
    %2551 = vmatpush1.bf16.msra.mxu0 %v2103
    %2552 = vmatprep.subr.bf16.mxu0 %v2118
    %2553 = vmatpush1.bf16.msra.mxu0 %v2117
    %2554 = vmatprep.subr.bf16.mxu0 %v2132
    %2555 = vmatpush1.bf16.msra.mxu0 %v2131
    %2556 = vmatprep.subr.bf16.mxu0 %v2146
    %2557 = vmatpush1.bf16.msra.mxu0 %v2145
    %2558 = vmatprep.subr.bf16.mxu0 %v2160
    %2559 = vmatpush1.bf16.msra.mxu0 %v2159
    %2560 = vmatprep.subr.bf16.mxu0 %v2174
    %2561 = vmatpush1.bf16.msra.mxu0 %v2173
    %2562 = vmatprep.subr.bf16.mxu0 %v2188
    %2563 = vmatpush1.bf16.msra.mxu0 %v2187
    %2564 = vmatprep.subr.bf16.mxu0 %v2202
    %2565 = vmatpush1.bf16.msra.mxu0 %v2201
    %2566 = vmatprep.subr.bf16.mxu0 %v2216
    %2567 = vmatpush1.bf16.msra.mxu0 %v2215
    %2568 = vmatprep.subr.bf16.mxu0 %v2399
    %2569 = vmatpush1.bf16.msra.mxu0 %v2396
    %2570 = vmatprep.subr.bf16.mxu0 0
    %2571 = vmatpush1.bf16.msra.mxu0 0
    %2572 = vmatprep.subr.bf16.mxu0 0
    %2573 = vmatpush1.bf16.msra.mxu0 0
    %2574 = vmatprep.subr.bf16.mxu0 0
    %2575 = vmatpush1.bf16.msra.mxu0 0
    %2576 = vmatprep.subr.bf16.mxu0 0
    %2577 = vmatpush1.bf16.msra.mxu0 0
    %2578 = vmatprep.subr.bf16.mxu0 0
    %2579 = vmatpush1.bf16.msra.mxu0 0
    %2580 = vmatprep.mubr.bf16.mxu0 %v1031
    %2581 = vmatmul.mubr.bf16.gmra.mrb[0].mxu0 %v291
    %v2582 = vpop.f32.mrb[0].mxu0
    %v2583 = vadd.f32 0.0, %v2582
    %v2584 = vpop.f32.mrb[0].mxu0
    %v2585 = vadd.f32 0.0, %v2584
    %v2586 = vpop.f32.mrb[0].mxu0
    %v2587 = vadd.f32 0.0, %v2586
    %v2588 = vpop.f32.mrb[0].mxu0
    %v2589 = vadd.f32 0.0, %v2588
    %2590 = vdwg.mxu0
    %2591 = vmatprep.subr.bf16.mxu0 %v2092
    %2592 = vmatpush1.bf16.msra.mxu0 %v2091
    %2593 = vmatprep.subr.bf16.mxu0 %v2106
    %2594 = vmatpush1.bf16.msra.mxu0 %v2105
    %2595 = vmatprep.subr.bf16.mxu0 %v2120
    %2596 = vmatpush1.bf16.msra.mxu0 %v2119
    %2597 = vmatprep.subr.bf16.mxu0 %v2134
    %2598 = vmatpush1.bf16.msra.mxu0 %v2133
    %2599 = vmatprep.subr.bf16.mxu0 %v2148
    %2600 = vmatpush1.bf16.msra.mxu0 %v2147
    %2601 = vmatprep.subr.bf16.mxu0 %v2162
    %2602 = vmatpush1.bf16.msra.mxu0 %v2161
    %2603 = vmatprep.subr.bf16.mxu0 %v2176
    %2604 = vmatpush1.bf16.msra.mxu0 %v2175
    %2605 = vmatprep.subr.bf16.mxu0 %v2190
    %2606 = vmatpush1.bf16.msra.mxu0 %v2189
    %2607 = vmatprep.subr.bf16.mxu0 %v2204
    %2608 = vmatpush1.bf16.msra.mxu0 %v2203
    %2609 = vmatprep.subr.bf16.mxu0 %v2218
    %2610 = vmatpush1.bf16.msra.mxu0 %v2217
    %2611 = vmatprep.subr.bf16.mxu0 %v2405
    %2612 = vmatpush1.bf16.msra.mxu0 %v2402
    %2613 = vmatprep.subr.bf16.mxu0 0
    %2614 = vmatpush1.bf16.msra.mxu0 0
    %2615 = vmatprep.subr.bf16.mxu0 0
    %2616 = vmatpush1.bf16.msra.mxu0 0
    %2617 = vmatprep.subr.bf16.mxu0 0
    %2618 = vmatpush1.bf16.msra.mxu0 0
    %2619 = vmatprep.subr.bf16.mxu0 0
    %2620 = vmatpush1.bf16.msra.mxu0 0
    %2621 = vmatprep.subr.bf16.mxu0 0
    %2622 = vmatpush1.bf16.msra.mxu0 0
    %2623 = vmatprep.mubr.bf16.mxu0 %v1031
    %2624 = vmatmul.mubr.bf16.gmra.mrb[0].mxu0 %v291
    %v2625 = vpop.f32.mrb[0].mxu0
    %v2626 = vadd.f32 0.0, %v2625
    %v2627 = vpop.f32.mrb[0].mxu0
    %v2628 = vadd.f32 0.0, %v2627
    %v2629 = vpop.f32.mrb[0].mxu0
    %v2630 = vadd.f32 0.0, %v2629
    %v2631 = vpop.f32.mrb[0].mxu0
    %v2632 = vadd.f32 0.0, %v2631
    %2633 = vdwg.mxu0
    %2634 = vmatprep.subr.bf16.mxu0 %v2094
    %2635 = vmatpush1.bf16.msra.mxu0 %v2093
    %2636 = vmatprep.subr.bf16.mxu0 %v2108
    %2637 = vmatpush1.bf16.msra.mxu0 %v2107
    %2638 = vmatprep.subr.bf16.mxu0 %v2122
    %2639 = vmatpush1.bf16.msra.mxu0 %v2121
    %2640 = vmatprep.subr.bf16.mxu0 %v2136
    %2641 = vmatpush1.bf16.msra.mxu0 %v2135
    %2642 = vmatprep.subr.bf16.mxu0 %v2150
    %2643 = vmatpush1.bf16.msra.mxu0 %v2149
    %2644 = vmatprep.subr.bf16.mxu0 %v2164
    %2645 = vmatpush1.bf16.msra.mxu0 %v2163
    %2646 = vmatprep.subr.bf16.mxu0 %v2178
    %2647 = vmatpush1.bf16.msra.mxu0 %v2177
    %2648 = vmatprep.subr.bf16.mxu0 %v2192
    %2649 = vmatpush1.bf16.msra.mxu0 %v2191
    %2650 = vmatprep.subr.bf16.mxu0 %v2206
    %2651 = vmatpush1.bf16.msra.mxu0 %v2205
    %2652 = vmatprep.subr.bf16.mxu0 %v2220
    %2653 = vmatpush1.bf16.msra.mxu0 %v2219
    %2654 = vmatprep.subr.bf16.mxu0 %v2411
    %2655 = vmatpush1.bf16.msra.mxu0 %v2408
    %2656 = vmatprep.subr.bf16.mxu0 0
    %2657 = vmatpush1.bf16.msra.mxu0 0
    %2658 = vmatprep.subr.bf16.mxu0 0
    %2659 = vmatpush1.bf16.msra.mxu0 0
    %2660 = vmatprep.subr.bf16.mxu0 0
    %2661 = vmatpush1.bf16.msra.mxu0 0
    %2662 = vmatprep.subr.bf16.mxu0 0
    %2663 = vmatpush1.bf16.msra.mxu0 0
    %2664 = vmatprep.subr.bf16.mxu0 0
    %2665 = vmatpush1.bf16.msra.mxu0 0
    %2666 = vmatprep.mubr.bf16.mxu0 %v1031
    %2667 = vmatmul.mubr.bf16.gmra.mrb[0].mxu0 %v291
    %v2668 = vpop.f32.mrb[0].mxu0
    %v2669 = vadd.f32 0.0, %v2668
    %v2670 = vpop.f32.mrb[0].mxu0
    %v2671 = vadd.f32 0.0, %v2670
    %v2672 = vpop.f32.mrb[0].mxu0
    %v2673 = vadd.f32 0.0, %v2672
    %v2674 = vpop.f32.mrb[0].mxu0
    %v2675 = vadd.f32 0.0, %v2674
    %2676 = vdwg.mxu0
    %2677 = vmatprep.subr.bf16.mxu0 %v2096
    %2678 = vmatpush1.bf16.msra.mxu0 %v2095
    %2679 = vmatprep.subr.bf16.mxu0 %v2110
    %2680 = vmatpush1.bf16.msra.mxu0 %v2109
    %2681 = vmatprep.subr.bf16.mxu0 %v2124
    %2682 = vmatpush1.bf16.msra.mxu0 %v2123
    %2683 = vmatprep.subr.bf16.mxu0 %v2138
    %2684 = vmatpush1.bf16.msra.mxu0 %v2137
    %2685 = vmatprep.subr.bf16.mxu0 %v2152
    %2686 = vmatpush1.bf16.msra.mxu0 %v2151
    %2687 = vmatprep.subr.bf16.mxu0 %v2166
    %2688 = vmatpush1.bf16.msra.mxu0 %v2165
    %2689 = vmatprep.subr.bf16.mxu0 %v2180
    %2690 = vmatpush1.bf16.msra.mxu0 %v2179
    %2691 = vmatprep.subr.bf16.mxu0 %v2194
    %2692 = vmatpush1.bf16.msra.mxu0 %v2193
    %2693 = vmatprep.subr.bf16.mxu0 %v2208
    %2694 = vmatpush1.bf16.msra.mxu0 %v2207
    %2695 = vmatprep.subr.bf16.mxu0 %v2222
    %2696 = vmatpush1.bf16.msra.mxu0 %v2221
    %2697 = vmatprep.subr.bf16.mxu0 %v2417
    %2698 = vmatpush1.bf16.msra.mxu0 %v2414
    %2699 = vmatprep.subr.bf16.mxu0 0
    %2700 = vmatpush1.bf16.msra.mxu0 0
    %2701 = vmatprep.subr.bf16.mxu0 0
    %2702 = vmatpush1.bf16.msra.mxu0 0
    %2703 = vmatprep.subr.bf16.mxu0 0
    %2704 = vmatpush1.bf16.msra.mxu0 0
    %2705 = vmatprep.subr.bf16.mxu0 0
    %2706 = vmatpush1.bf16.msra.mxu0 0
    %2707 = vmatprep.subr.bf16.mxu0 0
    %2708 = vmatpush1.bf16.msra.mxu0 0
    %2709 = vmatprep.mubr.bf16.mxu0 %v1031
    %2710 = vmatmul.mubr.bf16.gmra.mrb[0].mxu0 %v291
    %v2711 = vpop.f32.mrb[0].mxu0
    %v2712 = vadd.f32 0.0, %v2711
    %v2713 = vpop.f32.mrb[0].mxu0
    %v2714 = vadd.f32 0.0, %v2713
    %v2715 = vpop.f32.mrb[0].mxu0
    %v2716 = vadd.f32 0.0, %v2715
    %v2717 = vpop.f32.mrb[0].mxu0
    %v2718 = vadd.f32 0.0, %v2717
    %2719 = vdwg.mxu0
    %v2720 = vmax.f32 %v2454, %v2585
    %v2721 = vmax.f32 %v2456, %v2626
    %v2722 = vmax.f32 %v2497, %v2628
    %v2723 = vmax.f32 %v2499, %v2669
    %v2724 = vmax.f32 %v2540, %v2671
    %v2725 = vmax.f32 %v2542, %v2712
    %v2726 = vmax.f32 %v2583, %v2714
    %v2727 = vmax.f32 %v2458, %v2589
    %v2728 = vmax.f32 %v2460, %v2630
    %v2729 = vmax.f32 %v2501, %v2632
    %v2730 = vmax.f32 %v2503, %v2673
    %v2731 = vmax.f32 %v2544, %v2675
    %v2732 = vmax.f32 %v2546, %v2716
    %v2733 = vmax.f32 %v2587, %v2718
    %2742 = vrot.lane.b32.xlu0 %v2723, 64
    %v2743 = vpop.permute.xlu0 %2742
    %2744 = vrot.lane.b32.xlu0 %v2724, 64
    %v2745 = vpop.permute.xlu0 %2744
    %2746 = vrot.lane.b32.xlu0 %v2725, 64
    %v2747 = vpop.permute.xlu0 %2746
    %2748 = vrot.lane.b32.xlu0 %v2726, 64
    %v2749 = vpop.permute.xlu0 %2748
    %2750 = vrot.lane.b32.xlu0 %v2730, 64
    %v2751 = vpop.permute.xlu0 %2750
    %2752 = vrot.lane.b32.xlu0 %v2731, 64
    %v2753 = vpop.permute.xlu0 %2752
    %2754 = vrot.lane.b32.xlu0 %v2732, 64
    %v2755 = vpop.permute.xlu0 %2754
    %2756 = vrot.lane.b32.xlu0 %v2733, 64
    %v2757 = vpop.permute.xlu0 %2756
    %v2758 = vsel %vm1415, %v2743, %v2745
    %v2759 = vsel %vm1415, %v2745, %v2747
    %v2760 = vsel %vm1415, %v2747, %v2749
    %v2761 = vsel %vm1415, %v2751, %v2753
    %v2762 = vsel %vm1415, %v2753, %v2755
    %v2763 = vsel %vm1415, %v2755, %v2757
    %v2772 = vmax.f32 %v2720, %v2758
    %v2773 = vmax.f32 %v2721, %v2759
    %v2774 = vmax.f32 %v2722, %v2760
    %v2775 = vmax.f32 %v2723, %v2749
    %v2776 = vmax.f32 %v2727, %v2761
    %v2777 = vmax.f32 %v2728, %v2762
    %v2778 = vmax.f32 %v2729, %v2763
    %v2779 = vmax.f32 %v2730, %v2757
    %v2780 = vadd.f32 %v2772, %v1442
    %v2781 = vadd.f32 %v2773, %v1446
    %v2782 = vadd.f32 %v2774, %v1450
    %v2783 = vadd.f32 %v2775, %v1454
    %v2784 = vadd.f32 %v2776, %v1442
    %v2785 = vadd.f32 %v2777, %v1446
    %v2786 = vadd.f32 %v2778, %v1450
    %v2787 = vadd.f32 %v2779, %v1454
    %v2788 = vmax.f32 %v2780, 0.0
    %v2789 = vmax.f32 %v2781, 0.0
    %v2790 = vmax.f32 %v2782, 0.0
    %v2791 = vmax.f32 %v2783, 0.0
    %v2792 = vmax.f32 %v2784, 0.0
    %v2793 = vmax.f32 %v2785, 0.0
    %v2794 = vmax.f32 %v2786, 0.0
    %v2795 = vmax.f32 %v2787, 0.0
    %v2796 = vpack.c.bf16 %v2792, %v2788
    %v2797 = vpack.c.bf16 %v2793, %v2789
    %v2798 = vpack.c.bf16 %v2794, %v2790
    %v2799 = vpack.c.bf16 %v2795, %v2791
    %v2804 = vrot.slane %v2796, 7
    %v2805 = vrot.slane %v2797, 7
    %v2806 = vrot.slane %v2798, 7
    %v2807 = vrot.slane %v2799, 7
    %2812 = vst [vmem:[#allocation3] sm:$0xfe] %v2804
    %2813 = vst [vmem:[#allocation3 + $0x8] sm:$0xfe] %v2805
    %2814 = vst [vmem:[#allocation3 + $0x10] sm:$0xfe] %v2806
    %vm2815 = vcmask 523265
    %2816 = vst.msk [vmem:[#allocation3 + $0x18] sm:$0xfe] %vm2815, %v2807
    %v2817 = vld [vmem:[#allocation3] sm:$0x7f]
    %v2818 = vld [vmem:[#allocation3 + $0x8] sm:$0x7f]
    %v2819 = vld [vmem:[#allocation3 + $0x10] sm:$0x7f]
    %v2820 = vld [vmem:[#allocation3 + $0x18] sm:$0x7f]
    %v2821 = vld [vmem:[#allocation2] sm:$0x7f]
    %v2822 = vld [vmem:[#allocation2 + $0x8] sm:$0x7f]
    %v2823 = vld [vmem:[#allocation2 + $0x10] sm:$0x7f]
    %v2824 = vld [vmem:[#allocation2 + $0x18] sm:$0x7f]
    %v2825 = vld [vmem:[#allocation3] sm:$0xfe]
    %v2826 = vld [vmem:[#allocation3 + $0x8] sm:$0xfe]
    %v2827 = vld [vmem:[#allocation3 + $0x10] sm:$0xfe]
    %v2828 = vld [vmem:[#allocation3 + $0x18] sm:$0xfe]
    %v2829 = vld [vmem:[#allocation2] sm:$0xfe]
    %v2830 = vld [vmem:[#allocation2 + $0x8] sm:$0xfe]
    %v2831 = vld [vmem:[#allocation2 + $0x10] sm:$0xfe]
    %v2832 = vld [vmem:[#allocation2 + $0x18] sm:$0xfe]
    %v2833 = vld [vmem:[#allocation10] sm:$0xff]
    %v2834 = vld [vmem:[#allocation10 + $0x8] sm:$0xff]
    %v2835 = vld [vmem:[#allocation10 + $0x10] sm:$0xff]
    %v2836 = vld [vmem:[#allocation10 + $0x18] sm:$0xf]
    %v2837 = vld [vmem:[#allocation10 + $0x1c] sm:$0xff]
    %v2838 = vld [vmem:[#allocation10 + $0x24] sm:$0xff]
    %v2839 = vld [vmem:[#allocation10 + $0x2c] sm:$0xff]
    %v2840 = vld [vmem:[#allocation10 + $0x34] sm:$0xf]
    %v2841 = vld [vmem:[#allocation10 + $0x38] sm:$0xff]
    %v2842 = vld [vmem:[#allocation10 + $0x40] sm:$0xff]
    %v2843 = vld [vmem:[#allocation10 + $0x48] sm:$0xff]
    %v2844 = vld [vmem:[#allocation10 + $0x50] sm:$0xf]
    %v2845 = vld [vmem:[#allocation10 + $0x54] sm:$0xff]
    %v2846 = vld [vmem:[#allocation10 + $0x5c] sm:$0xff]
    %v2847 = vld [vmem:[#allocation10 + $0x64] sm:$0xff]
    %v2848 = vld [vmem:[#allocation10 + $0x6c] sm:$0xf]
    %v2849 = vld [vmem:[#allocation10 + $0x70] sm:$0xff]
    %v2850 = vld [vmem:[#allocation10 + $0x78] sm:$0xff]
    %v2851 = vld [vmem:[#allocation10 + $0x80] sm:$0xff]
    %v2852 = vld [vmem:[#allocation10 + $0x88] sm:$0xf]
    %v2853 = vld [vmem:[#allocation10 + $0x8c] sm:$0xff]
    %v2854 = vld [vmem:[#allocation10 + $0x94] sm:$0xff]
    %v2855 = vld [vmem:[#allocation10 + $0x9c] sm:$0xff]
    %v2856 = vld [vmem:[#allocation10 + $0xa4] sm:$0xf]
    %v2857 = vld [vmem:[#allocation10 + $0xa8] sm:$0xff]
    %v2858 = vld [vmem:[#allocation10 + $0xb0] sm:$0xff]
    %v2859 = vld [vmem:[#allocation10 + $0xb8] sm:$0xff]
    %v2860 = vld [vmem:[#allocation10 + $0xc0] sm:$0xf]
    %v2861 = vld [vmem:[#allocation10 + $0xc4] sm:$0xff]
    %v2862 = vld [vmem:[#allocation10 + $0xcc] sm:$0xff]
    %v2863 = vld [vmem:[#allocation10 + $0xd4] sm:$0xff]
    %v2864 = vld [vmem:[#allocation10 + $0xdc] sm:$0xf]
    %v2865 = vld [vmem:[#allocation10 + $0xe0] sm:$0xff]
    %v2866 = vld [vmem:[#allocation10 + $0xe8] sm:$0xff]
    %v2867 = vld [vmem:[#allocation10 + $0xf0] sm:$0xff]
    %v2868 = vld [vmem:[#allocation10 + $0xf8] sm:$0xf]
    %v2869 = vld [vmem:[#allocation10 + $0xfc] sm:$0xff]
    %v2870 = vld [vmem:[#allocation10 + $0x104] sm:$0xff]
    %v2871 = vld [vmem:[#allocation10 + $0x10c] sm:$0xff]
    %v2872 = vld [vmem:[#allocation10 + $0x114] sm:$0xf]
    %v2873 = vld [vmem:[#allocation10 + $0x118] sm:$0xff]
    %v2874 = vld [vmem:[#allocation10 + $0x120] sm:$0xff]
    %v2875 = vld [vmem:[#allocation10 + $0x128] sm:$0xff]
    %v2876 = vld [vmem:[#allocation10 + $0x130] sm:$0xf]
    %v2877 = vld [vmem:[#allocation10 + $0x134] sm:$0xff]
    %v2878 = vld [vmem:[#allocation10 + $0x13c] sm:$0xff]
    %v2879 = vld [vmem:[#allocation10 + $0x144] sm:$0xff]
    %v2880 = vld [vmem:[#allocation10 + $0x14c] sm:$0xf]
    %v2881 = vld [vmem:[#allocation10 + $0x150] sm:$0xff]
    %v2882 = vld [vmem:[#allocation10 + $0x158] sm:$0xff]
    %v2883 = vld [vmem:[#allocation10 + $0x160] sm:$0xff]
    %v2884 = vld [vmem:[#allocation10 + $0x168] sm:$0xf]
    %v2885 = vld [vmem:[#allocation10 + $0x16c] sm:$0xff]
    %v2886 = vld [vmem:[#allocation10 + $0x174] sm:$0xff]
    %v2887 = vld [vmem:[#allocation10 + $0x17c] sm:$0xff]
    %v2888 = vld [vmem:[#allocation10 + $0x184] sm:$0xf]
    %v2889 = vld [vmem:[#allocation10 + $0x188] sm:$0xff]
    %v2890 = vld [vmem:[#allocation10 + $0x190] sm:$0xff]
    %v2891 = vld [vmem:[#allocation10 + $0x198] sm:$0xff]
    %v2892 = vld [vmem:[#allocation10 + $0x1a0] sm:$0xf]
    %v2893 = vld [vmem:[#allocation10 + $0x1a4] sm:$0xff]
    %v2894 = vld [vmem:[#allocation10 + $0x1ac] sm:$0xff]
    %v2895 = vld [vmem:[#allocation10 + $0x1b4] sm:$0xff]
    %v2896 = vld [vmem:[#allocation10 + $0x1bc] sm:$0xf]
    %v2897 = vld [vmem:[#allocation10 + $0x1c0] sm:$0xff]
    %v2898 = vld [vmem:[#allocation10 + $0x1c8] sm:$0xff]
    %v2899 = vld [vmem:[#allocation10 + $0x1d0] sm:$0xff]
    %v2900 = vld [vmem:[#allocation10 + $0x1d8] sm:$0xf]
    %v2901 = vld [vmem:[#allocation10 + $0x1dc] sm:$0xff]
    %v2902 = vld [vmem:[#allocation10 + $0x1e4] sm:$0xff]
    %v2903 = vld [vmem:[#allocation10 + $0x1ec] sm:$0xff]
    %v2904 = vld [vmem:[#allocation10 + $0x1f4] sm:$0xf]
    %v2905 = vld [vmem:[#allocation10 + $0x1f8] sm:$0xff]
    %v2906 = vld [vmem:[#allocation10 + $0x200] sm:$0xff]
    %v2907 = vld [vmem:[#allocation10 + $0x208] sm:$0xff]
    %v2908 = vld [vmem:[#allocation10 + $0x210] sm:$0xf]
    %v2909 = vld [vmem:[#allocation10 + $0x214] sm:$0xff]
    %v2910 = vld [vmem:[#allocation10 + $0x21c] sm:$0xff]
    %v2911 = vld [vmem:[#allocation10 + $0x224] sm:$0xff]
    %v2912 = vld [vmem:[#allocation10 + $0x22c] sm:$0xf]
    %v2913 = vld [vmem:[#allocation10 + $0x230] sm:$0xff]
    %v2914 = vld [vmem:[#allocation10 + $0x238] sm:$0xff]
    %v2915 = vld [vmem:[#allocation10 + $0x240] sm:$0xff]
    %v2916 = vld [vmem:[#allocation10 + $0x248] sm:$0xf]
    %v2917 = vld [vmem:[#allocation10 + $0x24c] sm:$0xff]
    %v2918 = vld [vmem:[#allocation10 + $0x254] sm:$0xff]
    %v2919 = vld [vmem:[#allocation10 + $0x25c] sm:$0xff]
    %v2920 = vld [vmem:[#allocation10 + $0x264] sm:$0xf]
    %v2921 = vld [vmem:[#allocation10 + $0x268] sm:$0xff]
    %v2922 = vld [vmem:[#allocation10 + $0x270] sm:$0xff]
    %v2923 = vld [vmem:[#allocation10 + $0x278] sm:$0xff]
    %v2924 = vld [vmem:[#allocation10 + $0x280] sm:$0xf]
    %v2925 = vld [vmem:[#allocation10 + $0x284] sm:$0xff]
    %v2926 = vld [vmem:[#allocation10 + $0x28c] sm:$0xff]
    %v2927 = vld [vmem:[#allocation10 + $0x294] sm:$0xff]
    %v2928 = vld [vmem:[#allocation10 + $0x29c] sm:$0xf]
    %v2929 = vld [vmem:[#allocation10 + $0x2a0] sm:$0xff]
    %v2930 = vld [vmem:[#allocation10 + $0x2a8] sm:$0xff]
    %v2931 = vld [vmem:[#allocation10 + $0x2b0] sm:$0xff]
    %v2932 = vld [vmem:[#allocation10 + $0x2b8] sm:$0xf]
    %v2933 = vld [vmem:[#allocation10 + $0x2bc] sm:$0xff]
    %v2934 = vld [vmem:[#allocation10 + $0x2c4] sm:$0xff]
    %v2935 = vld [vmem:[#allocation10 + $0x2cc] sm:$0xff]
    %v2936 = vld [vmem:[#allocation10 + $0x2d4] sm:$0xf]
    %v2937 = vld [vmem:[#allocation10 + $0x2d8] sm:$0xff]
    %v2938 = vld [vmem:[#allocation10 + $0x2e0] sm:$0xff]
    %v2939 = vld [vmem:[#allocation10 + $0x2e8] sm:$0xff]
    %v2940 = vld [vmem:[#allocation10 + $0x2f0] sm:$0xf]
    %v2941 = vld [vmem:[#allocation10 + $0x2f4] sm:$0xff]
    %v2942 = vld [vmem:[#allocation10 + $0x2fc] sm:$0xff]
    %v2943 = vld [vmem:[#allocation10 + $0x304] sm:$0xff]
    %v2944 = vld [vmem:[#allocation10 + $0x30c] sm:$0xf]
    %v2945 = vld [vmem:[#allocation10 + $0x310] sm:$0xff]
    %v2946 = vld [vmem:[#allocation10 + $0x318] sm:$0xff]
    %v2947 = vld [vmem:[#allocation10 + $0x320] sm:$0xff]
    %v2948 = vld [vmem:[#allocation10 + $0x328] sm:$0xf]
    %v2949 = vld [vmem:[#allocation10 + $0x32c] sm:$0xff]
    %v2950 = vld [vmem:[#allocation10 + $0x334] sm:$0xff]
    %v2951 = vld [vmem:[#allocation10 + $0x33c] sm:$0xff]
    %v2952 = vld [vmem:[#allocation10 + $0x344] sm:$0xf]
    %v2953 = vld [vmem:[#allocation10 + $0x348] sm:$0xff]
    %v2954 = vld [vmem:[#allocation10 + $0x350] sm:$0xff]
    %v2955 = vld [vmem:[#allocation10 + $0x358] sm:$0xff]
    %v2956 = vld [vmem:[#allocation10 + $0x360] sm:$0xf]
    %v2957 = vld [vmem:[#allocation10 + $0x364] sm:$0xff]
    %v2958 = vld [vmem:[#allocation10 + $0x36c] sm:$0xff]
    %v2959 = vld [vmem:[#allocation10 + $0x374] sm:$0xff]
    %v2960 = vld [vmem:[#allocation10 + $0x37c] sm:$0xf]
    %v2961 = vld [vmem:[#allocation10 + $0x380] sm:$0xff]
    %v2962 = vld [vmem:[#allocation10 + $0x388] sm:$0xff]
    %v2963 = vld [vmem:[#allocation10 + $0x390] sm:$0xff]
    %v2964 = vld [vmem:[#allocation10 + $0x398] sm:$0xf]
    %v2965 = vld [vmem:[#allocation10 + $0x39c] sm:$0xff]
    %v2966 = vld [vmem:[#allocation10 + $0x3a4] sm:$0xff]
    %v2967 = vld [vmem:[#allocation10 + $0x3ac] sm:$0xff]
    %v2968 = vld [vmem:[#allocation10 + $0x3b4] sm:$0xf]
    %v2969 = vld [vmem:[#allocation10 + $0x3b8] sm:$0xff]
    %v2970 = vld [vmem:[#allocation10 + $0x3c0] sm:$0xff]
    %v2971 = vld [vmem:[#allocation10 + $0x3c8] sm:$0xff]
    %v2972 = vld [vmem:[#allocation10 + $0x3d0] sm:$0xf]
    %v2973 = vld [vmem:[#allocation10 + $0x3d4] sm:$0xff]
    %v2974 = vld [vmem:[#allocation10 + $0x3dc] sm:$0xff]
    %v2975 = vld [vmem:[#allocation10 + $0x3e4] sm:$0xff]
    %v2976 = vld [vmem:[#allocation10 + $0x3ec] sm:$0xf]
    %v2977 = vld [vmem:[#allocation10 + $0x3f0] sm:$0xff]
    %v2978 = vld [vmem:[#allocation10 + $0x3f8] sm:$0xff]
    %v2979 = vld [vmem:[#allocation10 + $0x400] sm:$0xff]
    %v2980 = vld [vmem:[#allocation10 + $0x408] sm:$0xf]
    %v2981 = vld [vmem:[#allocation10 + $0x40c] sm:$0xff]
    %v2982 = vld [vmem:[#allocation10 + $0x414] sm:$0xff]
    %v2983 = vld [vmem:[#allocation10 + $0x41c] sm:$0xff]
    %v2984 = vld [vmem:[#allocation10 + $0x424] sm:$0xf]
    %v2985 = vld [vmem:[#allocation10 + $0x428] sm:$0xff]
    %v2986 = vld [vmem:[#allocation10 + $0x430] sm:$0xff]
    %v2987 = vld [vmem:[#allocation10 + $0x438] sm:$0xff]
    %v2988 = vld [vmem:[#allocation10 + $0x440] sm:$0xf]
    %v2989 = vld [vmem:[#allocation10 + $0x444] sm:$0xff]
    %v2990 = vld [vmem:[#allocation10 + $0x44c] sm:$0xff]
    %v2991 = vld [vmem:[#allocation10 + $0x454] sm:$0xff]
    %v2992 = vld [vmem:[#allocation10 + $0x45c] sm:$0xf]
    %v2993 = vld [vmem:[#allocation10 + $0x460] sm:$0xff]
    %v2994 = vld [vmem:[#allocation10 + $0x468] sm:$0xff]
    %v2995 = vld [vmem:[#allocation10 + $0x470] sm:$0xff]
    %v2996 = vld [vmem:[#allocation10 + $0x478] sm:$0xf]
    %v2997 = vld [vmem:[#allocation10 + $0x47c] sm:$0xff]
    %v2998 = vld [vmem:[#allocation10 + $0x484] sm:$0xff]
    %v2999 = vld [vmem:[#allocation10 + $0x48c] sm:$0xff]
    %v3000 = vld [vmem:[#allocation10 + $0x494] sm:$0xf]
    %v3001 = vld [vmem:[#allocation10 + $0x498] sm:$0xff]
    %v3002 = vld [vmem:[#allocation10 + $0x4a0] sm:$0xff]
    %v3003 = vld [vmem:[#allocation10 + $0x4a8] sm:$0xff]
    %v3004 = vld [vmem:[#allocation10 + $0x4b0] sm:$0xf]
    %v3005 = vld [vmem:[#allocation10 + $0x4b4] sm:$0xff]
    %v3006 = vld [vmem:[#allocation10 + $0x4bc] sm:$0xff]
    %v3007 = vld [vmem:[#allocation10 + $0x4c4] sm:$0xff]
    %v3008 = vld [vmem:[#allocation10 + $0x4cc] sm:$0xf]
    %v3009 = vld [vmem:[#allocation10 + $0x4d0] sm:$0xff]
    %v3010 = vld [vmem:[#allocation10 + $0x4d8] sm:$0xff]
    %v3011 = vld [vmem:[#allocation10 + $0x4e0] sm:$0xff]
    %v3012 = vld [vmem:[#allocation10 + $0x4e8] sm:$0xf]
    %v3013 = vld [vmem:[#allocation10 + $0x4ec] sm:$0xff]
    %v3014 = vld [vmem:[#allocation10 + $0x4f4] sm:$0xff]
    %v3015 = vld [vmem:[#allocation10 + $0x4fc] sm:$0xff]
    %v3016 = vld [vmem:[#allocation10 + $0x504] sm:$0xf]
    %v3017 = vld [vmem:[#allocation10 + $0x508] sm:$0xff]
    %v3018 = vld [vmem:[#allocation10 + $0x510] sm:$0xff]
    %v3019 = vld [vmem:[#allocation10 + $0x518] sm:$0xff]
    %v3020 = vld [vmem:[#allocation10 + $0x520] sm:$0xf]
    %v3021 = vld [vmem:[#allocation10 + $0x524] sm:$0xff]
    %v3022 = vld [vmem:[#allocation10 + $0x52c] sm:$0xff]
    %v3023 = vld [vmem:[#allocation10 + $0x534] sm:$0xff]
    %v3024 = vld [vmem:[#allocation10 + $0x53c] sm:$0xf]
    %v3025 = vld [vmem:[#allocation10 + $0x540] sm:$0xff]
    %v3026 = vld [vmem:[#allocation10 + $0x548] sm:$0xff]
    %v3027 = vld [vmem:[#allocation10 + $0x550] sm:$0xff]
    %v3028 = vld [vmem:[#allocation10 + $0x558] sm:$0xf]
    %v3029 = vld [vmem:[#allocation10 + $0x55c] sm:$0xff]
    %v3030 = vld [vmem:[#allocation10 + $0x564] sm:$0xff]
    %v3031 = vld [vmem:[#allocation10 + $0x56c] sm:$0xff]
    %v3032 = vld [vmem:[#allocation10 + $0x574] sm:$0xf]
    %v3033 = vld [vmem:[#allocation10 + $0x578] sm:$0xff]
    %v3034 = vld [vmem:[#allocation10 + $0x580] sm:$0xff]
    %v3035 = vld [vmem:[#allocation10 + $0x588] sm:$0xff]
    %v3036 = vld [vmem:[#allocation10 + $0x590] sm:$0xf]
    %v3037 = vld [vmem:[#allocation10 + $0x594] sm:$0xff]
    %v3038 = vld [vmem:[#allocation10 + $0x59c] sm:$0xff]
    %v3039 = vld [vmem:[#allocation10 + $0x5a4] sm:$0xff]
    %v3040 = vld [vmem:[#allocation10 + $0x5ac] sm:$0xf]
    %v3041 = vld [vmem:[#allocation10 + $0x5b0] sm:$0xff]
    %v3042 = vld [vmem:[#allocation10 + $0x5b8] sm:$0xff]
    %v3043 = vld [vmem:[#allocation10 + $0x5c0] sm:$0xff]
    %v3044 = vld [vmem:[#allocation10 + $0x5c8] sm:$0xf]
    %v3045 = vld [vmem:[#allocation10 + $0x5cc] sm:$0xff]
    %v3046 = vld [vmem:[#allocation10 + $0x5d4] sm:$0xff]
    %v3047 = vld [vmem:[#allocation10 + $0x5dc] sm:$0xff]
    %v3048 = vld [vmem:[#allocation10 + $0x5e4] sm:$0xf]
    %v3049 = vld [vmem:[#allocation10 + $0x5e8] sm:$0xff]
    %v3050 = vld [vmem:[#allocation10 + $0x5f0] sm:$0xff]
    %v3051 = vld [vmem:[#allocation10 + $0x5f8] sm:$0xff]
    %v3052 = vld [vmem:[#allocation10 + $0x600] sm:$0xf]
    %v3053 = vld [vmem:[#allocation10 + $0x604] sm:$0xff]
    %v3054 = vld [vmem:[#allocation10 + $0x60c] sm:$0xff]
    %v3055 = vld [vmem:[#allocation10 + $0x614] sm:$0xff]
    %v3056 = vld [vmem:[#allocation10 + $0x61c] sm:$0xf]
    %s3057 = scalar_lea.vmem [#allocation10], 1568
    %v3058 = vld [vmem:[%s3057] sm:$0xff]
    %v3059 = vld [vmem:[%s3057 + $0x8] sm:$0xff]
    %v3060 = vld [vmem:[%s3057 + $0x10] sm:$0xff]
    %v3061 = vld [vmem:[%s3057 + $0x18] sm:$0xf]
    %v3062 = vld [vmem:[%s3057 + $0x1c] sm:$0xff]
    %v3063 = vld [vmem:[%s3057 + $0x24] sm:$0xff]
    %v3064 = vld [vmem:[%s3057 + $0x2c] sm:$0xff]
    %v3065 = vld [vmem:[%s3057 + $0x34] sm:$0xf]
    %v3066 = vld [vmem:[%s3057 + $0x38] sm:$0xff]
    %v3067 = vld [vmem:[%s3057 + $0x40] sm:$0xff]
    %v3068 = vld [vmem:[%s3057 + $0x48] sm:$0xff]
    %v3069 = vld [vmem:[%s3057 + $0x50] sm:$0xf]
    %v3070 = vld [vmem:[%s3057 + $0x54] sm:$0xff]
    %v3071 = vld [vmem:[%s3057 + $0x5c] sm:$0xff]
    %v3072 = vld [vmem:[%s3057 + $0x64] sm:$0xff]
    %v3073 = vld [vmem:[%s3057 + $0x6c] sm:$0xf]
    %v3074 = vld [vmem:[%s3057 + $0x70] sm:$0xff]
    %v3075 = vld [vmem:[%s3057 + $0x78] sm:$0xff]
    %v3076 = vld [vmem:[%s3057 + $0x80] sm:$0xff]
    %v3077 = vld [vmem:[%s3057 + $0x88] sm:$0xf]
    %v3078 = vld [vmem:[%s3057 + $0x8c] sm:$0xff]
    %v3079 = vld [vmem:[%s3057 + $0x94] sm:$0xff]
    %v3080 = vld [vmem:[%s3057 + $0x9c] sm:$0xff]
    %v3081 = vld [vmem:[%s3057 + $0xa4] sm:$0xf]
    %v3082 = vld [vmem:[%s3057 + $0xa8] sm:$0xff]
    %v3083 = vld [vmem:[%s3057 + $0xb0] sm:$0xff]
    %v3084 = vld [vmem:[%s3057 + $0xb8] sm:$0xff]
    %v3085 = vld [vmem:[%s3057 + $0xc0] sm:$0xf]
    %v3086 = vld [vmem:[%s3057 + $0xc4] sm:$0xff]
    %v3087 = vld [vmem:[%s3057 + $0xcc] sm:$0xff]
    %v3088 = vld [vmem:[%s3057 + $0xd4] sm:$0xff]
    %v3089 = vld [vmem:[%s3057 + $0xdc] sm:$0xf]
    %v3090 = vld [vmem:[%s3057 + $0xe0] sm:$0xff]
    %v3091 = vld [vmem:[%s3057 + $0xe8] sm:$0xff]
    %v3092 = vld [vmem:[%s3057 + $0xf0] sm:$0xff]
    %v3093 = vld [vmem:[%s3057 + $0xf8] sm:$0xf]
    %v3094 = vld [vmem:[%s3057 + $0xfc] sm:$0xff]
    %v3095 = vld [vmem:[%s3057 + $0x104] sm:$0xff]
    %v3096 = vld [vmem:[%s3057 + $0x10c] sm:$0xff]
    %v3097 = vld [vmem:[%s3057 + $0x114] sm:$0xf]
    %v3098 = vld [vmem:[%s3057 + $0x118] sm:$0xff]
    %v3099 = vld [vmem:[%s3057 + $0x120] sm:$0xff]
    %v3100 = vld [vmem:[%s3057 + $0x128] sm:$0xff]
    %v3101 = vld [vmem:[%s3057 + $0x130] sm:$0xf]
    %v3102 = vld [vmem:[%s3057 + $0x134] sm:$0xff]
    %v3103 = vld [vmem:[%s3057 + $0x13c] sm:$0xff]
    %v3104 = vld [vmem:[%s3057 + $0x144] sm:$0xff]
    %v3105 = vld [vmem:[%s3057 + $0x14c] sm:$0xf]
    %v3106 = vld [vmem:[%s3057 + $0x150] sm:$0xff]
    %v3107 = vld [vmem:[%s3057 + $0x158] sm:$0xff]
    %v3108 = vld [vmem:[%s3057 + $0x160] sm:$0xff]
    %v3109 = vld [vmem:[%s3057 + $0x168] sm:$0xf]
    %v3110 = vld [vmem:[%s3057 + $0x16c] sm:$0xff]
    %v3111 = vld [vmem:[%s3057 + $0x174] sm:$0xff]
    %v3112 = vld [vmem:[%s3057 + $0x17c] sm:$0xff]
    %v3113 = vld [vmem:[%s3057 + $0x184] sm:$0xf]
    %v3114 = vld [vmem:[%s3057 + $0x188] sm:$0xff]
    %v3115 = vld [vmem:[%s3057 + $0x190] sm:$0xff]
    %v3116 = vld [vmem:[%s3057 + $0x198] sm:$0xff]
    %v3117 = vld [vmem:[%s3057 + $0x1a0] sm:$0xf]
    %v3118 = vld [vmem:[%s3057 + $0x1a4] sm:$0xff]
    %v3119 = vld [vmem:[%s3057 + $0x1ac] sm:$0xff]
    %v3120 = vld [vmem:[%s3057 + $0x1b4] sm:$0xff]
    %v3121 = vld [vmem:[%s3057 + $0x1bc] sm:$0xf]
    %v3122 = vld [vmem:[%s3057 + $0x1c0] sm:$0xff]
    %v3123 = vld [vmem:[%s3057 + $0x1c8] sm:$0xff]
    %v3124 = vld [vmem:[%s3057 + $0x1d0] sm:$0xff]
    %v3125 = vld [vmem:[%s3057 + $0x1d8] sm:$0xf]
    %v3126 = vld [vmem:[%s3057 + $0x1dc] sm:$0xff]
    %v3127 = vld [vmem:[%s3057 + $0x1e4] sm:$0xff]
    %v3128 = vld [vmem:[%s3057 + $0x1ec] sm:$0xff]
    %v3129 = vld [vmem:[%s3057 + $0x1f4] sm:$0xf]
    %v3130 = vld [vmem:[%s3057 + $0x1f8] sm:$0xff]
    %v3131 = vld [vmem:[%s3057 + $0x200] sm:$0xff]
    %v3132 = vld [vmem:[%s3057 + $0x208] sm:$0xff]
    %v3133 = vld [vmem:[%s3057 + $0x210] sm:$0xf]
    %v3134 = vld [vmem:[%s3057 + $0x214] sm:$0xff]
    %v3135 = vld [vmem:[%s3057 + $0x21c] sm:$0xff]
    %v3136 = vld [vmem:[%s3057 + $0x224] sm:$0xff]
    %v3137 = vld [vmem:[%s3057 + $0x22c] sm:$0xf]
    %v3138 = vld [vmem:[%s3057 + $0x230] sm:$0xff]
    %v3139 = vld [vmem:[%s3057 + $0x238] sm:$0xff]
    %v3140 = vld [vmem:[%s3057 + $0x240] sm:$0xff]
    %v3141 = vld [vmem:[%s3057 + $0x248] sm:$0xf]
    %v3142 = vld [vmem:[%s3057 + $0x24c] sm:$0xff]
    %v3143 = vld [vmem:[%s3057 + $0x254] sm:$0xff]
    %v3144 = vld [vmem:[%s3057 + $0x25c] sm:$0xff]
    %v3145 = vld [vmem:[%s3057 + $0x264] sm:$0xf]
    %v3146 = vld [vmem:[%s3057 + $0x268] sm:$0xff]
    %v3147 = vld [vmem:[%s3057 + $0x270] sm:$0xff]
    %v3148 = vld [vmem:[%s3057 + $0x278] sm:$0xff]
    %v3149 = vld [vmem:[%s3057 + $0x280] sm:$0xf]
    %v3150 = vld [vmem:[%s3057 + $0x284] sm:$0xff]
    %v3151 = vld [vmem:[%s3057 + $0x28c] sm:$0xff]
    %v3152 = vld [vmem:[%s3057 + $0x294] sm:$0xff]
    %v3153 = vld [vmem:[%s3057 + $0x29c] sm:$0xf]
    %v3154 = vld [vmem:[%s3057 + $0x2a0] sm:$0xff]
    %v3155 = vld [vmem:[%s3057 + $0x2a8] sm:$0xff]
    %v3156 = vld [vmem:[%s3057 + $0x2b0] sm:$0xff]
    %v3157 = vld [vmem:[%s3057 + $0x2b8] sm:$0xf]
    %v3158 = vld [vmem:[%s3057 + $0x2bc] sm:$0xff]
    %v3159 = vld [vmem:[%s3057 + $0x2c4] sm:$0xff]
    %v3160 = vld [vmem:[%s3057 + $0x2cc] sm:$0xff]
    %v3161 = vld [vmem:[%s3057 + $0x2d4] sm:$0xf]
    %v3162 = vld [vmem:[%s3057 + $0x2d8] sm:$0xff]
    %v3163 = vld [vmem:[%s3057 + $0x2e0] sm:$0xff]
    %v3164 = vld [vmem:[%s3057 + $0x2e8] sm:$0xff]
    %v3165 = vld [vmem:[%s3057 + $0x2f0] sm:$0xf]
    %v3166 = vld [vmem:[%s3057 + $0x2f4] sm:$0xff]
    %v3167 = vld [vmem:[%s3057 + $0x2fc] sm:$0xff]
    %v3168 = vld [vmem:[%s3057 + $0x304] sm:$0xff]
    %v3169 = vld [vmem:[%s3057 + $0x30c] sm:$0xf]
    %v3170 = vld [vmem:[%s3057 + $0x310] sm:$0xff]
    %v3171 = vld [vmem:[%s3057 + $0x318] sm:$0xff]
    %v3172 = vld [vmem:[%s3057 + $0x320] sm:$0xff]
    %v3173 = vld [vmem:[%s3057 + $0x328] sm:$0xf]
    %v3174 = vld [vmem:[%s3057 + $0x32c] sm:$0xff]
    %v3175 = vld [vmem:[%s3057 + $0x334] sm:$0xff]
    %v3176 = vld [vmem:[%s3057 + $0x33c] sm:$0xff]
    %v3177 = vld [vmem:[%s3057 + $0x344] sm:$0xf]
    %v3178 = vld [vmem:[%s3057 + $0x348] sm:$0xff]
    %v3179 = vld [vmem:[%s3057 + $0x350] sm:$0xff]
    %v3180 = vld [vmem:[%s3057 + $0x358] sm:$0xff]
    %v3181 = vld [vmem:[%s3057 + $0x360] sm:$0xf]
    %v3182 = vld [vmem:[%s3057 + $0x364] sm:$0xff]
    %v3183 = vld [vmem:[%s3057 + $0x36c] sm:$0xff]
    %v3184 = vld [vmem:[%s3057 + $0x374] sm:$0xff]
    %v3185 = vld [vmem:[%s3057 + $0x37c] sm:$0xf]
    %v3186 = vld [vmem:[%s3057 + $0x380] sm:$0xff]
    %v3187 = vld [vmem:[%s3057 + $0x388] sm:$0xff]
    %v3188 = vld [vmem:[%s3057 + $0x390] sm:$0xff]
    %v3189 = vld [vmem:[%s3057 + $0x398] sm:$0xf]
    %v3190 = vld [vmem:[%s3057 + $0x39c] sm:$0xff]
    %v3191 = vld [vmem:[%s3057 + $0x3a4] sm:$0xff]
    %v3192 = vld [vmem:[%s3057 + $0x3ac] sm:$0xff]
    %v3193 = vld [vmem:[%s3057 + $0x3b4] sm:$0xf]
    %v3194 = vld [vmem:[%s3057 + $0x3b8] sm:$0xff]
    %v3195 = vld [vmem:[%s3057 + $0x3c0] sm:$0xff]
    %v3196 = vld [vmem:[%s3057 + $0x3c8] sm:$0xff]
    %v3197 = vld [vmem:[%s3057 + $0x3d0] sm:$0xf]
    %v3198 = vld [vmem:[%s3057 + $0x3d4] sm:$0xff]
    %v3199 = vld [vmem:[%s3057 + $0x3dc] sm:$0xff]
    %v3200 = vld [vmem:[%s3057 + $0x3e4] sm:$0xff]
    %v3201 = vld [vmem:[%s3057 + $0x3ec] sm:$0xf]
    %v3202 = vld [vmem:[%s3057 + $0x3f0] sm:$0xff]
    %v3203 = vld [vmem:[%s3057 + $0x3f8] sm:$0xff]
    %v3204 = vld [vmem:[%s3057 + $0x400] sm:$0xff]
    %v3205 = vld [vmem:[%s3057 + $0x408] sm:$0xf]
    %v3206 = vld [vmem:[%s3057 + $0x40c] sm:$0xff]
    %v3207 = vld [vmem:[%s3057 + $0x414] sm:$0xff]
    %v3208 = vld [vmem:[%s3057 + $0x41c] sm:$0xff]
    %v3209 = vld [vmem:[%s3057 + $0x424] sm:$0xf]
    %v3210 = vld [vmem:[%s3057 + $0x428] sm:$0xff]
    %v3211 = vld [vmem:[%s3057 + $0x430] sm:$0xff]
    %v3212 = vld [vmem:[%s3057 + $0x438] sm:$0xff]
    %v3213 = vld [vmem:[%s3057 + $0x440] sm:$0xf]
    %v3214 = vld [vmem:[%s3057 + $0x444] sm:$0xff]
    %v3215 = vld [vmem:[%s3057 + $0x44c] sm:$0xff]
    %v3216 = vld [vmem:[%s3057 + $0x454] sm:$0xff]
    %v3217 = vld [vmem:[%s3057 + $0x45c] sm:$0xf]
    %v3218 = vld [vmem:[%s3057 + $0x460] sm:$0xff]
    %v3219 = vld [vmem:[%s3057 + $0x468] sm:$0xff]
    %v3220 = vld [vmem:[%s3057 + $0x470] sm:$0xff]
    %v3221 = vld [vmem:[%s3057 + $0x478] sm:$0xf]
    %v3222 = vld [vmem:[%s3057 + $0x47c] sm:$0xff]
    %v3223 = vld [vmem:[%s3057 + $0x484] sm:$0xff]
    %v3224 = vld [vmem:[%s3057 + $0x48c] sm:$0xff]
    %v3225 = vld [vmem:[%s3057 + $0x494] sm:$0xf]
    %v3226 = vld [vmem:[%s3057 + $0x498] sm:$0xff]
    %v3227 = vld [vmem:[%s3057 + $0x4a0] sm:$0xff]
    %v3228 = vld [vmem:[%s3057 + $0x4a8] sm:$0xff]
    %v3229 = vld [vmem:[%s3057 + $0x4b0] sm:$0xf]
    %v3230 = vld [vmem:[%s3057 + $0x4b4] sm:$0xff]
    %v3231 = vld [vmem:[%s3057 + $0x4bc] sm:$0xff]
    %v3232 = vld [vmem:[%s3057 + $0x4c4] sm:$0xff]
    %v3233 = vld [vmem:[%s3057 + $0x4cc] sm:$0xf]
    %v3234 = vld [vmem:[%s3057 + $0x4d0] sm:$0xff]
    %v3235 = vld [vmem:[%s3057 + $0x4d8] sm:$0xff]
    %v3236 = vld [vmem:[%s3057 + $0x4e0] sm:$0xff]
    %v3237 = vld [vmem:[%s3057 + $0x4e8] sm:$0xf]
    %v3238 = vld [vmem:[%s3057 + $0x4ec] sm:$0xff]
    %v3239 = vld [vmem:[%s3057 + $0x4f4] sm:$0xff]
    %v3240 = vld [vmem:[%s3057 + $0x4fc] sm:$0xff]
    %v3241 = vld [vmem:[%s3057 + $0x504] sm:$0xf]
    %v3242 = vld [vmem:[%s3057 + $0x508] sm:$0xff]
    %v3243 = vld [vmem:[%s3057 + $0x510] sm:$0xff]
    %v3244 = vld [vmem:[%s3057 + $0x518] sm:$0xff]
    %v3245 = vld [vmem:[%s3057 + $0x520] sm:$0xf]
    %v3246 = vld [vmem:[%s3057 + $0x524] sm:$0xff]
    %v3247 = vld [vmem:[%s3057 + $0x52c] sm:$0xff]
    %v3248 = vld [vmem:[%s3057 + $0x534] sm:$0xff]
    %v3249 = vld [vmem:[%s3057 + $0x53c] sm:$0xf]
    %v3250 = vld [vmem:[%s3057 + $0x540] sm:$0xff]
    %v3251 = vld [vmem:[%s3057 + $0x548] sm:$0xff]
    %v3252 = vld [vmem:[%s3057 + $0x550] sm:$0xff]
    %v3253 = vld [vmem:[%s3057 + $0x558] sm:$0xf]
    %v3254 = vld [vmem:[%s3057 + $0x55c] sm:$0xff]
    %v3255 = vld [vmem:[%s3057 + $0x564] sm:$0xff]
    %v3256 = vld [vmem:[%s3057 + $0x56c] sm:$0xff]
    %v3257 = vld [vmem:[%s3057 + $0x574] sm:$0xf]
    %v3258 = vld [vmem:[%s3057 + $0x578] sm:$0xff]
    %v3259 = vld [vmem:[%s3057 + $0x580] sm:$0xff]
    %v3260 = vld [vmem:[%s3057 + $0x588] sm:$0xff]
    %v3261 = vld [vmem:[%s3057 + $0x590] sm:$0xf]
    %v3262 = vld [vmem:[%s3057 + $0x594] sm:$0xff]
    %v3263 = vld [vmem:[%s3057 + $0x59c] sm:$0xff]
    %v3264 = vld [vmem:[%s3057 + $0x5a4] sm:$0xff]
    %v3265 = vld [vmem:[%s3057 + $0x5ac] sm:$0xf]
    %v3266 = vld [vmem:[%s3057 + $0x5b0] sm:$0xff]
    %v3267 = vld [vmem:[%s3057 + $0x5b8] sm:$0xff]
    %v3268 = vld [vmem:[%s3057 + $0x5c0] sm:$0xff]
    %v3269 = vld [vmem:[%s3057 + $0x5c8] sm:$0xf]
    %v3270 = vld [vmem:[%s3057 + $0x5cc] sm:$0xff]
    %v3271 = vld [vmem:[%s3057 + $0x5d4] sm:$0xff]
    %v3272 = vld [vmem:[%s3057 + $0x5dc] sm:$0xff]
    %v3273 = vld [vmem:[%s3057 + $0x5e4] sm:$0xf]
    %v3274 = vld [vmem:[%s3057 + $0x5e8] sm:$0xff]
    %v3275 = vld [vmem:[%s3057 + $0x5f0] sm:$0xff]
    %v3276 = vld [vmem:[%s3057 + $0x5f8] sm:$0xff]
    %v3277 = vld [vmem:[%s3057 + $0x600] sm:$0xf]
    %v3278 = vld [vmem:[%s3057 + $0x604] sm:$0xff]
    %v3279 = vld [vmem:[%s3057 + $0x60c] sm:$0xff]
    %v3280 = vld [vmem:[%s3057 + $0x614] sm:$0xff]
    %v3281 = vld [vmem:[%s3057 + $0x61c] sm:$0xf]
    %v3506 = vunpack.c.l.b16 %v3058
    %v3507 = vunpack.c.h.b16 %v3058
    %v3508 = vunpack.c.l.b16 %v3059
    %v3509 = vunpack.c.h.b16 %v3059
    %v3510 = vunpack.c.l.b16 %v3060
    %v3511 = vunpack.c.h.b16 %v3060
    %v3512 = vunpack.c.l.b16 %v3061
    %v3513 = vunpack.c.l.b16 %v3062
    %v3514 = vunpack.c.h.b16 %v3062
    %v3515 = vunpack.c.l.b16 %v3063
    %v3516 = vunpack.c.h.b16 %v3063
    %v3517 = vunpack.c.l.b16 %v3064
    %v3518 = vunpack.c.h.b16 %v3064
    %v3519 = vunpack.c.l.b16 %v3065
    %v3520 = vunpack.c.l.b16 %v3066
    %v3521 = vunpack.c.h.b16 %v3066
    %v3522 = vunpack.c.l.b16 %v3067
    %v3523 = vunpack.c.h.b16 %v3067
    %v3524 = vunpack.c.l.b16 %v3068
    %v3525 = vunpack.c.h.b16 %v3068
    %v3526 = vunpack.c.l.b16 %v3069
    %v3527 = vunpack.c.l.b16 %v3070
    %v3528 = vunpack.c.h.b16 %v3070
    %v3529 = vunpack.c.l.b16 %v3071
    %v3530 = vunpack.c.h.b16 %v3071
    %v3531 = vunpack.c.l.b16 %v3072
    %v3532 = vunpack.c.h.b16 %v3072
    %v3533 = vunpack.c.l.b16 %v3073
    %v3534 = vunpack.c.l.b16 %v3074
    %v3535 = vunpack.c.h.b16 %v3074
    %v3536 = vunpack.c.l.b16 %v3075
    %v3537 = vunpack.c.h.b16 %v3075
    %v3538 = vunpack.c.l.b16 %v3076
    %v3539 = vunpack.c.h.b16 %v3076
    %v3540 = vunpack.c.l.b16 %v3077
    %v3541 = vunpack.c.l.b16 %v3078
    %v3542 = vunpack.c.h.b16 %v3078
    %v3543 = vunpack.c.l.b16 %v3079
    %v3544 = vunpack.c.h.b16 %v3079
    %v3545 = vunpack.c.l.b16 %v3080
    %v3546 = vunpack.c.h.b16 %v3080
    %v3547 = vunpack.c.l.b16 %v3081
    %v3548 = vunpack.c.l.b16 %v3082
    %v3549 = vunpack.c.h.b16 %v3082
    %v3550 = vunpack.c.l.b16 %v3083
    %v3551 = vunpack.c.h.b16 %v3083
    %v3552 = vunpack.c.l.b16 %v3084
    %v3553 = vunpack.c.h.b16 %v3084
    %v3554 = vunpack.c.l.b16 %v3085
    %v3555 = vunpack.c.l.b16 %v3086
    %v3556 = vunpack.c.h.b16 %v3086
    %v3557 = vunpack.c.l.b16 %v3087
    %v3558 = vunpack.c.h.b16 %v3087
    %v3559 = vunpack.c.l.b16 %v3088
    %v3560 = vunpack.c.h.b16 %v3088
    %v3561 = vunpack.c.l.b16 %v3089
    %v3562 = vunpack.c.l.b16 %v3090
    %v3563 = vunpack.c.h.b16 %v3090
    %v3564 = vunpack.c.l.b16 %v3091
    %v3565 = vunpack.c.h.b16 %v3091
    %v3566 = vunpack.c.l.b16 %v3092
    %v3567 = vunpack.c.h.b16 %v3092
    %v3568 = vunpack.c.l.b16 %v3093
    %v3569 = vunpack.c.l.b16 %v3094
    %v3570 = vunpack.c.h.b16 %v3094
    %v3571 = vunpack.c.l.b16 %v3095
    %v3572 = vunpack.c.h.b16 %v3095
    %v3573 = vunpack.c.l.b16 %v3096
    %v3574 = vunpack.c.h.b16 %v3096
    %v3575 = vunpack.c.l.b16 %v3097
    %v3576 = vunpack.c.l.b16 %v3098
    %v3577 = vunpack.c.h.b16 %v3098
    %v3578 = vunpack.c.l.b16 %v3099
    %v3579 = vunpack.c.h.b16 %v3099
    %v3580 = vunpack.c.l.b16 %v3100
    %v3581 = vunpack.c.h.b16 %v3100
    %v3582 = vunpack.c.l.b16 %v3101
    %v3583 = vunpack.c.l.b16 %v3102
    %v3584 = vunpack.c.h.b16 %v3102
    %v3585 = vunpack.c.l.b16 %v3103
    %v3586 = vunpack.c.h.b16 %v3103
    %v3587 = vunpack.c.l.b16 %v3104
    %v3588 = vunpack.c.h.b16 %v3104
    %v3589 = vunpack.c.l.b16 %v3105
    %v3590 = vunpack.c.l.b16 %v3106
    %v3591 = vunpack.c.h.b16 %v3106
    %v3592 = vunpack.c.l.b16 %v3107
    %v3593 = vunpack.c.h.b16 %v3107
    %v3594 = vunpack.c.l.b16 %v3108
    %v3595 = vunpack.c.h.b16 %v3108
    %v3596 = vunpack.c.l.b16 %v3109
    %v3597 = vunpack.c.l.b16 %v3110
    %v3598 = vunpack.c.h.b16 %v3110
    %v3599 = vunpack.c.l.b16 %v3111
    %v3600 = vunpack.c.h.b16 %v3111
    %v3601 = vunpack.c.l.b16 %v3112
    %v3602 = vunpack.c.h.b16 %v3112
    %v3603 = vunpack.c.l.b16 %v3113
    %v3604 = vunpack.c.l.b16 %v3114
    %v3605 = vunpack.c.h.b16 %v3114
    %v3606 = vunpack.c.l.b16 %v3115
    %v3607 = vunpack.c.h.b16 %v3115
    %v3608 = vunpack.c.l.b16 %v3116
    %v3609 = vunpack.c.h.b16 %v3116
    %v3610 = vunpack.c.l.b16 %v3117
    %v3611 = vunpack.c.l.b16 %v3118
    %v3612 = vunpack.c.h.b16 %v3118
    %v3613 = vunpack.c.l.b16 %v3119
    %v3614 = vunpack.c.h.b16 %v3119
    %v3615 = vunpack.c.l.b16 %v3120
    %v3616 = vunpack.c.h.b16 %v3120
    %v3617 = vunpack.c.l.b16 %v3121
    %v3618 = vunpack.c.l.b16 %v3122
    %v3619 = vunpack.c.h.b16 %v3122
    %v3620 = vunpack.c.l.b16 %v3123
    %v3621 = vunpack.c.h.b16 %v3123
    %v3622 = vunpack.c.l.b16 %v3124
    %v3623 = vunpack.c.h.b16 %v3124
    %v3624 = vunpack.c.l.b16 %v3125
    %v3625 = vunpack.c.l.b16 %v3126
    %v3626 = vunpack.c.h.b16 %v3126
    %v3627 = vunpack.c.l.b16 %v3127
    %v3628 = vunpack.c.h.b16 %v3127
    %v3629 = vunpack.c.l.b16 %v3128
    %v3630 = vunpack.c.h.b16 %v3128
    %v3631 = vunpack.c.l.b16 %v3129
    %v3632 = vunpack.c.l.b16 %v3130
    %v3633 = vunpack.c.h.b16 %v3130
    %v3634 = vunpack.c.l.b16 %v3131
    %v3635 = vunpack.c.h.b16 %v3131
    %v3636 = vunpack.c.l.b16 %v3132
    %v3637 = vunpack.c.h.b16 %v3132
    %v3638 = vunpack.c.l.b16 %v3133
    %v3639 = vunpack.c.l.b16 %v3134
    %v3640 = vunpack.c.h.b16 %v3134
    %v3641 = vunpack.c.l.b16 %v3135
    %v3642 = vunpack.c.h.b16 %v3135
    %v3643 = vunpack.c.l.b16 %v3136
    %v3644 = vunpack.c.h.b16 %v3136
    %v3645 = vunpack.c.l.b16 %v3137
    %v3646 = vunpack.c.l.b16 %v3138
    %v3647 = vunpack.c.h.b16 %v3138
    %v3648 = vunpack.c.l.b16 %v3139
    %v3649 = vunpack.c.h.b16 %v3139
    %v3650 = vunpack.c.l.b16 %v3140
    %v3651 = vunpack.c.h.b16 %v3140
    %v3652 = vunpack.c.l.b16 %v3141
    %v3653 = vunpack.c.l.b16 %v3142
    %v3654 = vunpack.c.h.b16 %v3142
    %v3655 = vunpack.c.l.b16 %v3143
    %v3656 = vunpack.c.h.b16 %v3143
    %v3657 = vunpack.c.l.b16 %v3144
    %v3658 = vunpack.c.h.b16 %v3144
    %v3659 = vunpack.c.l.b16 %v3145
    %v3660 = vunpack.c.l.b16 %v3146
    %v3661 = vunpack.c.h.b16 %v3146
    %v3662 = vunpack.c.l.b16 %v3147
    %v3663 = vunpack.c.h.b16 %v3147
    %v3664 = vunpack.c.l.b16 %v3148
    %v3665 = vunpack.c.h.b16 %v3148
    %v3666 = vunpack.c.l.b16 %v3149
    %v3667 = vunpack.c.l.b16 %v3150
    %v3668 = vunpack.c.h.b16 %v3150
    %v3669 = vunpack.c.l.b16 %v3151
    %v3670 = vunpack.c.h.b16 %v3151
    %v3671 = vunpack.c.l.b16 %v3152
    %v3672 = vunpack.c.h.b16 %v3152
    %v3673 = vunpack.c.l.b16 %v3153
    %v3674 = vunpack.c.l.b16 %v3154
    %v3675 = vunpack.c.h.b16 %v3154
    %v3676 = vunpack.c.l.b16 %v3155
    %v3677 = vunpack.c.h.b16 %v3155
    %v3678 = vunpack.c.l.b16 %v3156
    %v3679 = vunpack.c.h.b16 %v3156
    %v3680 = vunpack.c.l.b16 %v3157
    %v3681 = vunpack.c.l.b16 %v3158
    %v3682 = vunpack.c.h.b16 %v3158
    %v3683 = vunpack.c.l.b16 %v3159
    %v3684 = vunpack.c.h.b16 %v3159
    %v3685 = vunpack.c.l.b16 %v3160
    %v3686 = vunpack.c.h.b16 %v3160
    %v3687 = vunpack.c.l.b16 %v3161
    %v3688 = vunpack.c.l.b16 %v3162
    %v3689 = vunpack.c.h.b16 %v3162
    %v3690 = vunpack.c.l.b16 %v3163
    %v3691 = vunpack.c.h.b16 %v3163
    %v3692 = vunpack.c.l.b16 %v3164
    %v3693 = vunpack.c.h.b16 %v3164
    %v3694 = vunpack.c.l.b16 %v3165
    %v3695 = vunpack.c.l.b16 %v3166
    %v3696 = vunpack.c.h.b16 %v3166
    %v3697 = vunpack.c.l.b16 %v3167
    %v3698 = vunpack.c.h.b16 %v3167
    %v3699 = vunpack.c.l.b16 %v3168
    %v3700 = vunpack.c.h.b16 %v3168
    %v3701 = vunpack.c.l.b16 %v3169
    %v3702 = vunpack.c.l.b16 %v3170
    %v3703 = vunpack.c.h.b16 %v3170
    %v3704 = vunpack.c.l.b16 %v3171
    %v3705 = vunpack.c.h.b16 %v3171
    %v3706 = vunpack.c.l.b16 %v3172
    %v3707 = vunpack.c.h.b16 %v3172
    %v3708 = vunpack.c.l.b16 %v3173
    %v3709 = vunpack.c.l.b16 %v3174
    %v3710 = vunpack.c.h.b16 %v3174
    %v3711 = vunpack.c.l.b16 %v3175
    %v3712 = vunpack.c.h.b16 %v3175
    %v3713 = vunpack.c.l.b16 %v3176
    %v3714 = vunpack.c.h.b16 %v3176
    %v3715 = vunpack.c.l.b16 %v3177
    %v3716 = vunpack.c.l.b16 %v3178
    %v3717 = vunpack.c.h.b16 %v3178
    %v3718 = vunpack.c.l.b16 %v3179
    %v3719 = vunpack.c.h.b16 %v3179
    %v3720 = vunpack.c.l.b16 %v3180
    %v3721 = vunpack.c.h.b16 %v3180
    %v3722 = vunpack.c.l.b16 %v3181
    %v3723 = vunpack.c.l.b16 %v3182
    %v3724 = vunpack.c.h.b16 %v3182
    %v3725 = vunpack.c.l.b16 %v3183
    %v3726 = vunpack.c.h.b16 %v3183
    %v3727 = vunpack.c.l.b16 %v3184
    %v3728 = vunpack.c.h.b16 %v3184
    %v3729 = vunpack.c.l.b16 %v3185
    %v3730 = vunpack.c.l.b16 %v3186
    %v3731 = vunpack.c.h.b16 %v3186
    %v3732 = vunpack.c.l.b16 %v3187
    %v3733 = vunpack.c.h.b16 %v3187
    %v3734 = vunpack.c.l.b16 %v3188
    %v3735 = vunpack.c.h.b16 %v3188
    %v3736 = vunpack.c.l.b16 %v3189
    %v3737 = vunpack.c.l.b16 %v3190
    %v3738 = vunpack.c.h.b16 %v3190
    %v3739 = vunpack.c.l.b16 %v3191
    %v3740 = vunpack.c.h.b16 %v3191
    %v3741 = vunpack.c.l.b16 %v3192
    %v3742 = vunpack.c.h.b16 %v3192
    %v3743 = vunpack.c.l.b16 %v3193
    %v3744 = vunpack.c.l.b16 %v3194
    %v3745 = vunpack.c.h.b16 %v3194
    %v3746 = vunpack.c.l.b16 %v3195
    %v3747 = vunpack.c.h.b16 %v3195
    %v3748 = vunpack.c.l.b16 %v3196
    %v3749 = vunpack.c.h.b16 %v3196
    %v3750 = vunpack.c.l.b16 %v3197
    %v3751 = vunpack.c.l.b16 %v3198
    %v3752 = vunpack.c.h.b16 %v3198
    %v3753 = vunpack.c.l.b16 %v3199
    %v3754 = vunpack.c.h.b16 %v3199
    %v3755 = vunpack.c.l.b16 %v3200
    %v3756 = vunpack.c.h.b16 %v3200
    %v3757 = vunpack.c.l.b16 %v3201
    %v3758 = vunpack.c.l.b16 %v3202
    %v3759 = vunpack.c.h.b16 %v3202
    %v3760 = vunpack.c.l.b16 %v3203
    %v3761 = vunpack.c.h.b16 %v3203
    %v3762 = vunpack.c.l.b16 %v3204
    %v3763 = vunpack.c.h.b16 %v3204
    %v3764 = vunpack.c.l.b16 %v3205
    %v3765 = vunpack.c.l.b16 %v3206
    %v3766 = vunpack.c.h.b16 %v3206
    %v3767 = vunpack.c.l.b16 %v3207
    %v3768 = vunpack.c.h.b16 %v3207
    %v3769 = vunpack.c.l.b16 %v3208
    %v3770 = vunpack.c.h.b16 %v3208
    %v3771 = vunpack.c.l.b16 %v3209
    %v3772 = vunpack.c.l.b16 %v3210
    %v3773 = vunpack.c.h.b16 %v3210
    %v3774 = vunpack.c.l.b16 %v3211
    %v3775 = vunpack.c.h.b16 %v3211
    %v3776 = vunpack.c.l.b16 %v3212
    %v3777 = vunpack.c.h.b16 %v3212
    %v3778 = vunpack.c.l.b16 %v3213
    %v3779 = vunpack.c.l.b16 %v3214
    %v3780 = vunpack.c.h.b16 %v3214
    %v3781 = vunpack.c.l.b16 %v3215
    %v3782 = vunpack.c.h.b16 %v3215
    %v3783 = vunpack.c.l.b16 %v3216
    %v3784 = vunpack.c.h.b16 %v3216
    %v3785 = vunpack.c.l.b16 %v3217
    %v3786 = vunpack.c.l.b16 %v3218
    %v3787 = vunpack.c.h.b16 %v3218
    %v3788 = vunpack.c.l.b16 %v3219
    %v3789 = vunpack.c.h.b16 %v3219
    %v3790 = vunpack.c.l.b16 %v3220
    %v3791 = vunpack.c.h.b16 %v3220
    %v3792 = vunpack.c.l.b16 %v3221
    %v3793 = vunpack.c.l.b16 %v3222
    %v3794 = vunpack.c.h.b16 %v3222
    %v3795 = vunpack.c.l.b16 %v3223
    %v3796 = vunpack.c.h.b16 %v3223
    %v3797 = vunpack.c.l.b16 %v3224
    %v3798 = vunpack.c.h.b16 %v3224
    %v3799 = vunpack.c.l.b16 %v3225
    %v3800 = vunpack.c.l.b16 %v3226
    %v3801 = vunpack.c.h.b16 %v3226
    %v3802 = vunpack.c.l.b16 %v3227
    %v3803 = vunpack.c.h.b16 %v3227
    %v3804 = vunpack.c.l.b16 %v3228
    %v3805 = vunpack.c.h.b16 %v3228
    %v3806 = vunpack.c.l.b16 %v3229
    %v3807 = vunpack.c.l.b16 %v3230
    %v3808 = vunpack.c.h.b16 %v3230
    %v3809 = vunpack.c.l.b16 %v3231
    %v3810 = vunpack.c.h.b16 %v3231
    %v3811 = vunpack.c.l.b16 %v3232
    %v3812 = vunpack.c.h.b16 %v3232
    %v3813 = vunpack.c.l.b16 %v3233
    %v3814 = vunpack.c.l.b16 %v3234
    %v3815 = vunpack.c.h.b16 %v3234
    %v3816 = vunpack.c.l.b16 %v3235
    %v3817 = vunpack.c.h.b16 %v3235
    %v3818 = vunpack.c.l.b16 %v3236
    %v3819 = vunpack.c.h.b16 %v3236
    %v3820 = vunpack.c.l.b16 %v3237
    %v3821 = vunpack.c.l.b16 %v3238
    %v3822 = vunpack.c.h.b16 %v3238
    %v3823 = vunpack.c.l.b16 %v3239
    %v3824 = vunpack.c.h.b16 %v3239
    %v3825 = vunpack.c.l.b16 %v3240
    %v3826 = vunpack.c.h.b16 %v3240
    %v3827 = vunpack.c.l.b16 %v3241
    %v3828 = vunpack.c.l.b16 %v3242
    %v3829 = vunpack.c.h.b16 %v3242
    %v3830 = vunpack.c.l.b16 %v3243
    %v3831 = vunpack.c.h.b16 %v3243
    %v3832 = vunpack.c.l.b16 %v3244
    %v3833 = vunpack.c.h.b16 %v3244
    %v3834 = vunpack.c.l.b16 %v3245
    %v3835 = vunpack.c.l.b16 %v3246
    %v3836 = vunpack.c.h.b16 %v3246
    %v3837 = vunpack.c.l.b16 %v3247
    %v3838 = vunpack.c.h.b16 %v3247
    %v3839 = vunpack.c.l.b16 %v3248
    %v3840 = vunpack.c.h.b16 %v3248
    %v3841 = vunpack.c.l.b16 %v3249
    %v3842 = vunpack.c.l.b16 %v3250
    %v3843 = vunpack.c.h.b16 %v3250
    %v3844 = vunpack.c.l.b16 %v3251
    %v3845 = vunpack.c.h.b16 %v3251
    %v3846 = vunpack.c.l.b16 %v3252
    %v3847 = vunpack.c.h.b16 %v3252
    %v3848 = vunpack.c.l.b16 %v3253
    %v3849 = vunpack.c.l.b16 %v3254
    %v3850 = vunpack.c.h.b16 %v3254
    %v3851 = vunpack.c.l.b16 %v3255
    %v3852 = vunpack.c.h.b16 %v3255
    %v3853 = vunpack.c.l.b16 %v3256
    %v3854 = vunpack.c.h.b16 %v3256
    %v3855 = vunpack.c.l.b16 %v3257
    %v3856 = vunpack.c.l.b16 %v3258
    %v3857 = vunpack.c.h.b16 %v3258
    %v3858 = vunpack.c.l.b16 %v3259
    %v3859 = vunpack.c.h.b16 %v3259
    %v3860 = vunpack.c.l.b16 %v3260
    %v3861 = vunpack.c.h.b16 %v3260
    %v3862 = vunpack.c.l.b16 %v3261
    %v3863 = vunpack.c.l.b16 %v3262
    %v3864 = vunpack.c.h.b16 %v3262
    %v3865 = vunpack.c.l.b16 %v3263
    %v3866 = vunpack.c.h.b16 %v3263
    %v3867 = vunpack.c.l.b16 %v3264
    %v3868 = vunpack.c.h.b16 %v3264
    %v3869 = vunpack.c.l.b16 %v3265
    %v3870 = vunpack.c.l.b16 %v3266
    %v3871 = vunpack.c.h.b16 %v3266
    %v3872 = vunpack.c.l.b16 %v3267
    %v3873 = vunpack.c.h.b16 %v3267
    %v3874 = vunpack.c.l.b16 %v3268
    %v3875 = vunpack.c.h.b16 %v3268
    %v3876 = vunpack.c.l.b16 %v3269
    %v3877 = vunpack.c.l.b16 %v3270
    %v3878 = vunpack.c.h.b16 %v3270
    %v3879 = vunpack.c.l.b16 %v3271
    %v3880 = vunpack.c.h.b16 %v3271
    %v3881 = vunpack.c.l.b16 %v3272
    %v3882 = vunpack.c.h.b16 %v3272
    %v3883 = vunpack.c.l.b16 %v3273
    %v3884 = vunpack.c.l.b16 %v3274
    %v3885 = vunpack.c.h.b16 %v3274
    %v3886 = vunpack.c.l.b16 %v3275
    %v3887 = vunpack.c.h.b16 %v3275
    %v3888 = vunpack.c.l.b16 %v3276
    %v3889 = vunpack.c.h.b16 %v3276
    %v3890 = vunpack.c.l.b16 %v3277
    %v3891 = vunpack.c.l.b16 %v3278
    %v3892 = vunpack.c.h.b16 %v3278
    %v3893 = vunpack.c.l.b16 %v3279
    %v3894 = vunpack.c.h.b16 %v3279
    %v3895 = vunpack.c.l.b16 %v3280
    %v3896 = vunpack.c.h.b16 %v3280
    %v3897 = vunpack.c.l.b16 %v3281
    %v3898 = vpack.c.b16 %v3513, %v3506
    %v3899 = vpack.c.b16 %v3514, %v3507
    %v3900 = vpack.c.b16 %v3515, %v3508
    %v3901 = vpack.c.b16 %v3516, %v3509
    %v3902 = vpack.c.b16 %v3517, %v3510
    %v3903 = vpack.c.b16 %v3518, %v3511
    %v3904 = vpack.c.b16 %v3519, %v3512
    %v3905 = vpack.c.b16 %v3527, %v3520
    %v3906 = vpack.c.b16 %v3528, %v3521
    %v3907 = vpack.c.b16 %v3529, %v3522
    %v3908 = vpack.c.b16 %v3530, %v3523
    %v3909 = vpack.c.b16 %v3531, %v3524
    %v3910 = vpack.c.b16 %v3532, %v3525
    %v3911 = vpack.c.b16 %v3533, %v3526
    %v3912 = vpack.c.b16 %v3541, %v3534
    %v3913 = vpack.c.b16 %v3542, %v3535
    %v3914 = vpack.c.b16 %v3543, %v3536
    %v3915 = vpack.c.b16 %v3544, %v3537
    %v3916 = vpack.c.b16 %v3545, %v3538
    %v3917 = vpack.c.b16 %v3546, %v3539
    %v3918 = vpack.c.b16 %v3547, %v3540
    %v3919 = vpack.c.b16 %v3555, %v3548
    %v3920 = vpack.c.b16 %v3556, %v3549
    %v3921 = vpack.c.b16 %v3557, %v3550
    %v3922 = vpack.c.b16 %v3558, %v3551
    %v3923 = vpack.c.b16 %v3559, %v3552
    %v3924 = vpack.c.b16 %v3560, %v3553
    %v3925 = vpack.c.b16 %v3561, %v3554
    %v3926 = vpack.c.b16 %v3569, %v3562
    %v3927 = vpack.c.b16 %v3570, %v3563
    %v3928 = vpack.c.b16 %v3571, %v3564
    %v3929 = vpack.c.b16 %v3572, %v3565
    %v3930 = vpack.c.b16 %v3573, %v3566
    %v3931 = vpack.c.b16 %v3574, %v3567
    %v3932 = vpack.c.b16 %v3575, %v3568
    %v3933 = vpack.c.b16 %v3583, %v3576
    %v3934 = vpack.c.b16 %v3584, %v3577
    %v3935 = vpack.c.b16 %v3585, %v3578
    %v3936 = vpack.c.b16 %v3586, %v3579
    %v3937 = vpack.c.b16 %v3587, %v3580
    %v3938 = vpack.c.b16 %v3588, %v3581
    %v3939 = vpack.c.b16 %v3589, %v3582
    %v3940 = vpack.c.b16 %v3597, %v3590
    %v3941 = vpack.c.b16 %v3598, %v3591
    %v3942 = vpack.c.b16 %v3599, %v3592
    %v3943 = vpack.c.b16 %v3600, %v3593
    %v3944 = vpack.c.b16 %v3601, %v3594
    %v3945 = vpack.c.b16 %v3602, %v3595
    %v3946 = vpack.c.b16 %v3603, %v3596
    %v3947 = vpack.c.b16 %v3611, %v3604
    %v3948 = vpack.c.b16 %v3612, %v3605
    %v3949 = vpack.c.b16 %v3613, %v3606
    %v3950 = vpack.c.b16 %v3614, %v3607
    %v3951 = vpack.c.b16 %v3615, %v3608
    %v3952 = vpack.c.b16 %v3616, %v3609
    %v3953 = vpack.c.b16 %v3617, %v3610
    %v3954 = vpack.c.b16 %v3625, %v3618
    %v3955 = vpack.c.b16 %v3626, %v3619
    %v3956 = vpack.c.b16 %v3627, %v3620
    %v3957 = vpack.c.b16 %v3628, %v3621
    %v3958 = vpack.c.b16 %v3629, %v3622
    %v3959 = vpack.c.b16 %v3630, %v3623
    %v3960 = vpack.c.b16 %v3631, %v3624
    %v3961 = vpack.c.b16 %v3639, %v3632
    %v3962 = vpack.c.b16 %v3640, %v3633
    %v3963 = vpack.c.b16 %v3641, %v3634
    %v3964 = vpack.c.b16 %v3642, %v3635
    %v3965 = vpack.c.b16 %v3643, %v3636
    %v3966 = vpack.c.b16 %v3644, %v3637
    %v3967 = vpack.c.b16 %v3645, %v3638
    %v3968 = vpack.c.b16 %v3653, %v3646
    %v3969 = vpack.c.b16 %v3654, %v3647
    %v3970 = vpack.c.b16 %v3655, %v3648
    %v3971 = vpack.c.b16 %v3656, %v3649
    %v3972 = vpack.c.b16 %v3657, %v3650
    %v3973 = vpack.c.b16 %v3658, %v3651
    %v3974 = vpack.c.b16 %v3659, %v3652
    %v3975 = vpack.c.b16 %v3667, %v3660
    %v3976 = vpack.c.b16 %v3668, %v3661
    %v3977 = vpack.c.b16 %v3669, %v3662
    %v3978 = vpack.c.b16 %v3670, %v3663
    %v3979 = vpack.c.b16 %v3671, %v3664
    %v3980 = vpack.c.b16 %v3672, %v3665
    %v3981 = vpack.c.b16 %v3673, %v3666
    %v3982 = vpack.c.b16 %v3681, %v3674
    %v3983 = vpack.c.b16 %v3682, %v3675
    %v3984 = vpack.c.b16 %v3683, %v3676
    %v3985 = vpack.c.b16 %v3684, %v3677
    %v3986 = vpack.c.b16 %v3685, %v3678
    %v3987 = vpack.c.b16 %v3686, %v3679
    %v3988 = vpack.c.b16 %v3687, %v3680
    %v3989 = vpack.c.b16 %v3695, %v3688
    %v3990 = vpack.c.b16 %v3696, %v3689
    %v3991 = vpack.c.b16 %v3697, %v3690
    %v3992 = vpack.c.b16 %v3698, %v3691
    %v3993 = vpack.c.b16 %v3699, %v3692
    %v3994 = vpack.c.b16 %v3700, %v3693
    %v3995 = vpack.c.b16 %v3701, %v3694
    %v3996 = vpack.c.b16 %v3709, %v3702
    %v3997 = vpack.c.b16 %v3710, %v3703
    %v3998 = vpack.c.b16 %v3711, %v3704
    %v3999 = vpack.c.b16 %v3712, %v3705
    %v4000 = vpack.c.b16 %v3713, %v3706
    %v4001 = vpack.c.b16 %v3714, %v3707
    %v4002 = vpack.c.b16 %v3715, %v3708
    %v4003 = vpack.c.b16 %v3723, %v3716
    %v4004 = vpack.c.b16 %v3724, %v3717
    %v4005 = vpack.c.b16 %v3725, %v3718
    %v4006 = vpack.c.b16 %v3726, %v3719
    %v4007 = vpack.c.b16 %v3727, %v3720
    %v4008 = vpack.c.b16 %v3728, %v3721
    %v4009 = vpack.c.b16 %v3729, %v3722
    %v4010 = vpack.c.b16 %v3737, %v3730
    %v4011 = vpack.c.b16 %v3738, %v3731
    %v4012 = vpack.c.b16 %v3739, %v3732
    %v4013 = vpack.c.b16 %v3740, %v3733
    %v4014 = vpack.c.b16 %v3741, %v3734
    %v4015 = vpack.c.b16 %v3742, %v3735
    %v4016 = vpack.c.b16 %v3743, %v3736
    %v4017 = vpack.c.b16 %v3751, %v3744
    %v4018 = vpack.c.b16 %v3752, %v3745
    %v4019 = vpack.c.b16 %v3753, %v3746
    %v4020 = vpack.c.b16 %v3754, %v3747
    %v4021 = vpack.c.b16 %v3755, %v3748
    %v4022 = vpack.c.b16 %v3756, %v3749
    %v4023 = vpack.c.b16 %v3757, %v3750
    %v4024 = vpack.c.b16 %v3765, %v3758
    %v4025 = vpack.c.b16 %v3766, %v3759
    %v4026 = vpack.c.b16 %v3767, %v3760
    %v4027 = vpack.c.b16 %v3768, %v3761
    %v4028 = vpack.c.b16 %v3769, %v3762
    %v4029 = vpack.c.b16 %v3770, %v3763
    %v4030 = vpack.c.b16 %v3771, %v3764
    %v4031 = vpack.c.b16 %v3779, %v3772
    %v4032 = vpack.c.b16 %v3780, %v3773
    %v4033 = vpack.c.b16 %v3781, %v3774
    %v4034 = vpack.c.b16 %v3782, %v3775
    %v4035 = vpack.c.b16 %v3783, %v3776
    %v4036 = vpack.c.b16 %v3784, %v3777
    %v4037 = vpack.c.b16 %v3785, %v3778
    %v4038 = vpack.c.b16 %v3793, %v3786
    %v4039 = vpack.c.b16 %v3794, %v3787
    %v4040 = vpack.c.b16 %v3795, %v3788
    %v4041 = vpack.c.b16 %v3796, %v3789
    %v4042 = vpack.c.b16 %v3797, %v3790
    %v4043 = vpack.c.b16 %v3798, %v3791
    %v4044 = vpack.c.b16 %v3799, %v3792
    %v4045 = vpack.c.b16 %v3807, %v3800
    %v4046 = vpack.c.b16 %v3808, %v3801
    %v4047 = vpack.c.b16 %v3809, %v3802
    %v4048 = vpack.c.b16 %v3810, %v3803
    %v4049 = vpack.c.b16 %v3811, %v3804
    %v4050 = vpack.c.b16 %v3812, %v3805
    %v4051 = vpack.c.b16 %v3813, %v3806
    %v4052 = vpack.c.b16 %v3821, %v3814
    %v4053 = vpack.c.b16 %v3822, %v3815
    %v4054 = vpack.c.b16 %v3823, %v3816
    %v4055 = vpack.c.b16 %v3824, %v3817
    %v4056 = vpack.c.b16 %v3825, %v3818
    %v4057 = vpack.c.b16 %v3826, %v3819
    %v4058 = vpack.c.b16 %v3827, %v3820
    %v4059 = vpack.c.b16 %v3835, %v3828
    %v4060 = vpack.c.b16 %v3836, %v3829
    %v4061 = vpack.c.b16 %v3837, %v3830
    %v4062 = vpack.c.b16 %v3838, %v3831
    %v4063 = vpack.c.b16 %v3839, %v3832
    %v4064 = vpack.c.b16 %v3840, %v3833
    %v4065 = vpack.c.b16 %v3841, %v3834
    %v4066 = vpack.c.b16 %v3849, %v3842
    %v4067 = vpack.c.b16 %v3850, %v3843
    %v4068 = vpack.c.b16 %v3851, %v3844
    %v4069 = vpack.c.b16 %v3852, %v3845
    %v4070 = vpack.c.b16 %v3853, %v3846
    %v4071 = vpack.c.b16 %v3854, %v3847
    %v4072 = vpack.c.b16 %v3855, %v3848
    %v4073 = vpack.c.b16 %v3863, %v3856
    %v4074 = vpack.c.b16 %v3864, %v3857
    %v4075 = vpack.c.b16 %v3865, %v3858
    %v4076 = vpack.c.b16 %v3866, %v3859
    %v4077 = vpack.c.b16 %v3867, %v3860
    %v4078 = vpack.c.b16 %v3868, %v3861
    %v4079 = vpack.c.b16 %v3869, %v3862
    %v4080 = vpack.c.b16 %v3877, %v3870
    %v4081 = vpack.c.b16 %v3878, %v3871
    %v4082 = vpack.c.b16 %v3879, %v3872
    %v4083 = vpack.c.b16 %v3880, %v3873
    %v4084 = vpack.c.b16 %v3881, %v3874
    %v4085 = vpack.c.b16 %v3882, %v3875
    %v4086 = vpack.c.b16 %v3883, %v3876
    %v4087 = vpack.c.b16 %v3891, %v3884
    %v4088 = vpack.c.b16 %v3892, %v3885
    %v4089 = vpack.c.b16 %v3893, %v3886
    %v4090 = vpack.c.b16 %v3894, %v3887
    %v4091 = vpack.c.b16 %v3895, %v3888
    %v4092 = vpack.c.b16 %v3896, %v3889
    %v4093 = vpack.c.b16 %v3897, %v3890
    %v4291 = vsel %vm1415, %v2824, 0
    %4293 = vmatprep.subr.bf16.mxu0 %v3899
    %4294 = vmatpush1.bf16.msra.mxu0 %v3898
    %4295 = vmatprep.subr.bf16.mxu0 %v3906
    %4296 = vmatpush1.bf16.msra.mxu0 %v3905
    %4297 = vmatprep.subr.bf16.mxu0 %v3913
    %4298 = vmatpush1.bf16.msra.mxu0 %v3912
    %4299 = vmatprep.subr.bf16.mxu0 %v3920
    %4300 = vmatpush1.bf16.msra.mxu0 %v3919
    %4301 = vmatprep.subr.bf16.mxu0 %v3927
    %4302 = vmatpush1.bf16.msra.mxu0 %v3926
    %4303 = vmatprep.subr.bf16.mxu0 %v3934
    %4304 = vmatpush1.bf16.msra.mxu0 %v3933
    %4305 = vmatprep.subr.bf16.mxu0 %v3941
    %4306 = vmatpush1.bf16.msra.mxu0 %v3940
    %4307 = vmatprep.subr.bf16.mxu0 %v3948
    %4308 = vmatpush1.bf16.msra.mxu0 %v3947
    %4309 = vmatprep.subr.bf16.mxu0 %v3955
    %4310 = vmatpush1.bf16.msra.mxu0 %v3954
    %4311 = vmatprep.subr.bf16.mxu0 %v3962
    %4312 = vmatpush1.bf16.msra.mxu0 %v3961
    %4313 = vmatprep.subr.bf16.mxu0 %v3969
    %4314 = vmatpush1.bf16.msra.mxu0 %v3968
    %4315 = vmatprep.subr.bf16.mxu0 %v3976
    %4316 = vmatpush1.bf16.msra.mxu0 %v3975
    %4317 = vmatprep.subr.bf16.mxu0 %v3983
    %4318 = vmatpush1.bf16.msra.mxu0 %v3982
    %4319 = vmatprep.subr.bf16.mxu0 %v3990
    %4320 = vmatpush1.bf16.msra.mxu0 %v3989
    %4321 = vmatprep.subr.bf16.mxu0 %v3997
    %4322 = vmatpush1.bf16.msra.mxu0 %v3996
    %4323 = vmatprep.subr.bf16.mxu0 %v4004
    %4324 = vmatpush1.bf16.msra.mxu0 %v4003
    %4325 = vmatprep.mubr.bf16.mxu0 %v2822
    %4326 = vmatmul.mubr.bf16.gmra.mrb[0].mxu0 %v2821
    %v4327 = vpop.f32.mrb[0].mxu0
    %v4328 = vadd.f32 0.0, %v4327
    %v4329 = vpop.f32.mrb[0].mxu0
    %v4330 = vadd.f32 0.0, %v4329
    %v4331 = vpop.f32.mrb[0].mxu0
    %v4332 = vadd.f32 0.0, %v4331
    %v4333 = vpop.f32.mrb[0].mxu0
    %v4334 = vadd.f32 0.0, %v4333
    %4335 = vdwg.mxu0
    %4336 = vmatprep.subr.bf16.mxu0 %v4011
    %4337 = vmatpush1.bf16.msra.mxu0 %v4010
    %4338 = vmatprep.subr.bf16.mxu0 %v4018
    %4339 = vmatpush1.bf16.msra.mxu0 %v4017
    %4340 = vmatprep.subr.bf16.mxu0 %v4025
    %4341 = vmatpush1.bf16.msra.mxu0 %v4024
    %4342 = vmatprep.subr.bf16.mxu0 %v4032
    %4343 = vmatpush1.bf16.msra.mxu0 %v4031
    %4344 = vmatprep.subr.bf16.mxu0 %v4039
    %4345 = vmatpush1.bf16.msra.mxu0 %v4038
    %4346 = vmatprep.subr.bf16.mxu0 %v4046
    %4347 = vmatpush1.bf16.msra.mxu0 %v4045
    %4348 = vmatprep.subr.bf16.mxu0 %v4053
    %4349 = vmatpush1.bf16.msra.mxu0 %v4052
    %4350 = vmatprep.subr.bf16.mxu0 %v4060
    %4351 = vmatpush1.bf16.msra.mxu0 %v4059
    %4352 = vmatprep.subr.bf16.mxu0 %v4067
    %4353 = vmatpush1.bf16.msra.mxu0 %v4066
    %4354 = vmatprep.subr.bf16.mxu0 %v4074
    %4355 = vmatpush1.bf16.msra.mxu0 %v4073
    %4356 = vmatprep.subr.bf16.mxu0 %v4081
    %4357 = vmatpush1.bf16.msra.mxu0 %v4080
    %4358 = vmatprep.subr.bf16.mxu0 %v4088
    %4359 = vmatpush1.bf16.msra.mxu0 %v4087
    %4360 = vmatprep.subr.bf16.mxu0 0
    %4361 = vmatpush1.bf16.msra.mxu0 0
    %4362 = vmatprep.subr.bf16.mxu0 0
    %4363 = vmatpush1.bf16.msra.mxu0 0
    %4364 = vmatprep.subr.bf16.mxu0 0
    %4365 = vmatpush1.bf16.msra.mxu0 0
    %4366 = vmatprep.subr.bf16.mxu0 0
    %4367 = vmatpush1.bf16.msra.mxu0 0
    %4368 = vmatprep.mubr.bf16.mxu0 %v4291
    %4369 = vmatmul.mubr.bf16.gmra.mrb[0].mxu0 %v2823
    %v4370 = vpop.f32.mrb[0].mxu0
    %v4371 = vadd.f32 %v4328, %v4370
    %v4372 = vpop.f32.mrb[0].mxu0
    %v4373 = vadd.f32 %v4330, %v4372
    %v4374 = vpop.f32.mrb[0].mxu0
    %v4375 = vadd.f32 %v4332, %v4374
    %v4376 = vpop.f32.mrb[0].mxu0
    %v4377 = vadd.f32 %v4334, %v4376
    %4378 = vdwg.mxu0
    %4379 = vmatprep.subr.bf16.mxu0 %v3901
    %4380 = vmatpush1.bf16.msra.mxu0 %v3900
    %4381 = vmatprep.subr.bf16.mxu0 %v3908
    %4382 = vmatpush1.bf16.msra.mxu0 %v3907
    %4383 = vmatprep.subr.bf16.mxu0 %v3915
    %4384 = vmatpush1.bf16.msra.mxu0 %v3914
    %4385 = vmatprep.subr.bf16.mxu0 %v3922
    %4386 = vmatpush1.bf16.msra.mxu0 %v3921
    %4387 = vmatprep.subr.bf16.mxu0 %v3929
    %4388 = vmatpush1.bf16.msra.mxu0 %v3928
    %4389 = vmatprep.subr.bf16.mxu0 %v3936
    %4390 = vmatpush1.bf16.msra.mxu0 %v3935
    %4391 = vmatprep.subr.bf16.mxu0 %v3943
    %4392 = vmatpush1.bf16.msra.mxu0 %v3942
    %4393 = vmatprep.subr.bf16.mxu0 %v3950
    %4394 = vmatpush1.bf16.msra.mxu0 %v3949
    %4395 = vmatprep.subr.bf16.mxu0 %v3957
    %4396 = vmatpush1.bf16.msra.mxu0 %v3956
    %4397 = vmatprep.subr.bf16.mxu0 %v3964
    %4398 = vmatpush1.bf16.msra.mxu0 %v3963
    %4399 = vmatprep.subr.bf16.mxu0 %v3971
    %4400 = vmatpush1.bf16.msra.mxu0 %v3970
    %4401 = vmatprep.subr.bf16.mxu0 %v3978
    %4402 = vmatpush1.bf16.msra.mxu0 %v3977
    %4403 = vmatprep.subr.bf16.mxu0 %v3985
    %4404 = vmatpush1.bf16.msra.mxu0 %v3984
    %4405 = vmatprep.subr.bf16.mxu0 %v3992
    %4406 = vmatpush1.bf16.msra.mxu0 %v3991
    %4407 = vmatprep.subr.bf16.mxu0 %v3999
    %4408 = vmatpush1.bf16.msra.mxu0 %v3998
    %4409 = vmatprep.subr.bf16.mxu0 %v4006
    %4410 = vmatpush1.bf16.msra.mxu0 %v4005
    %4411 = vmatprep.mubr.bf16.mxu0 %v2822
    %4412 = vmatmul.mubr.bf16.gmra.mrb[0].mxu0 %v2821
    %v4413 = vpop.f32.mrb[0].mxu0
    %v4414 = vadd.f32 0.0, %v4413
    %v4415 = vpop.f32.mrb[0].mxu0
    %v4416 = vadd.f32 0.0, %v4415
    %v4417 = vpop.f32.mrb[0].mxu0
    %v4418 = vadd.f32 0.0, %v4417
    %v4419 = vpop.f32.mrb[0].mxu0
    %v4420 = vadd.f32 0.0, %v4419
    %4421 = vdwg.mxu0
    %4422 = vmatprep.subr.bf16.mxu0 %v4013
    %4423 = vmatpush1.bf16.msra.mxu0 %v4012
    %4424 = vmatprep.subr.bf16.mxu0 %v4020
    %4425 = vmatpush1.bf16.msra.mxu0 %v4019
    %4426 = vmatprep.subr.bf16.mxu0 %v4027
    %4427 = vmatpush1.bf16.msra.mxu0 %v4026
    %4428 = vmatprep.subr.bf16.mxu0 %v4034
    %4429 = vmatpush1.bf16.msra.mxu0 %v4033
    %4430 = vmatprep.subr.bf16.mxu0 %v4041
    %4431 = vmatpush1.bf16.msra.mxu0 %v4040
    %4432 = vmatprep.subr.bf16.mxu0 %v4048
    %4433 = vmatpush1.bf16.msra.mxu0 %v4047
    %4434 = vmatprep.subr.bf16.mxu0 %v4055
    %4435 = vmatpush1.bf16.msra.mxu0 %v4054
    %4436 = vmatprep.subr.bf16.mxu0 %v4062
    %4437 = vmatpush1.bf16.msra.mxu0 %v4061
    %4438 = vmatprep.subr.bf16.mxu0 %v4069
    %4439 = vmatpush1.bf16.msra.mxu0 %v4068
    %4440 = vmatprep.subr.bf16.mxu0 %v4076
    %4441 = vmatpush1.bf16.msra.mxu0 %v4075
    %4442 = vmatprep.subr.bf16.mxu0 %v4083
    %4443 = vmatpush1.bf16.msra.mxu0 %v4082
    %4444 = vmatprep.subr.bf16.mxu0 %v4090
    %4445 = vmatpush1.bf16.msra.mxu0 %v4089
    %4446 = vmatprep.subr.bf16.mxu0 0
    %4447 = vmatpush1.bf16.msra.mxu0 0
    %4448 = vmatprep.subr.bf16.mxu0 0
    %4449 = vmatpush1.bf16.msra.mxu0 0
    %4450 = vmatprep.subr.bf16.mxu0 0
    %4451 = vmatpush1.bf16.msra.mxu0 0
    %4452 = vmatprep.subr.bf16.mxu0 0
    %4453 = vmatpush1.bf16.msra.mxu0 0
    %4454 = vmatprep.mubr.bf16.mxu0 %v4291
    %4455 = vmatmul.mubr.bf16.gmra.mrb[0].mxu0 %v2823
    %v4456 = vpop.f32.mrb[0].mxu0
    %v4457 = vadd.f32 %v4414, %v4456
    %v4458 = vpop.f32.mrb[0].mxu0
    %v4459 = vadd.f32 %v4416, %v4458
    %v4460 = vpop.f32.mrb[0].mxu0
    %v4461 = vadd.f32 %v4418, %v4460
    %v4462 = vpop.f32.mrb[0].mxu0
    %v4463 = vadd.f32 %v4420, %v4462
    %4464 = vdwg.mxu0
    %4465 = vmatprep.subr.bf16.mxu0 %v3903
    %4466 = vmatpush1.bf16.msra.mxu0 %v3902
    %4467 = vmatprep.subr.bf16.mxu0 %v3910
    %4468 = vmatpush1.bf16.msra.mxu0 %v3909
    %4469 = vmatprep.subr.bf16.mxu0 %v3917
    %4470 = vmatpush1.bf16.msra.mxu0 %v3916
    %4471 = vmatprep.subr.bf16.mxu0 %v3924
    %4472 = vmatpush1.bf16.msra.mxu0 %v3923
    %4473 = vmatprep.subr.bf16.mxu0 %v3931
    %4474 = vmatpush1.bf16.msra.mxu0 %v3930
    %4475 = vmatprep.subr.bf16.mxu0 %v3938
    %4476 = vmatpush1.bf16.msra.mxu0 %v3937
    %4477 = vmatprep.subr.bf16.mxu0 %v3945
    %4478 = vmatpush1.bf16.msra.mxu0 %v3944
    %4479 = vmatprep.subr.bf16.mxu0 %v3952
    %4480 = vmatpush1.bf16.msra.mxu0 %v3951
    %4481 = vmatprep.subr.bf16.mxu0 %v3959
    %4482 = vmatpush1.bf16.msra.mxu0 %v3958
    %4483 = vmatprep.subr.bf16.mxu0 %v3966
    %4484 = vmatpush1.bf16.msra.mxu0 %v3965
    %4485 = vmatprep.subr.bf16.mxu0 %v3973
    %4486 = vmatpush1.bf16.msra.mxu0 %v3972
    %4487 = vmatprep.subr.bf16.mxu0 %v3980
    %4488 = vmatpush1.bf16.msra.mxu0 %v3979
    %4489 = vmatprep.subr.bf16.mxu0 %v3987
    %4490 = vmatpush1.bf16.msra.mxu0 %v3986
    %4491 = vmatprep.subr.bf16.mxu0 %v3994
    %4492 = vmatpush1.bf16.msra.mxu0 %v3993
    %4493 = vmatprep.subr.bf16.mxu0 %v4001
    %4494 = vmatpush1.bf16.msra.mxu0 %v4000
    %4495 = vmatprep.subr.bf16.mxu0 %v4008
    %4496 = vmatpush1.bf16.msra.mxu0 %v4007
    %4497 = vmatprep.mubr.bf16.mxu0 %v2822
    %4498 = vmatmul.mubr.bf16.gmra.mrb[0].mxu0 %v2821
    %v4499 = vpop.f32.mrb[0].mxu0
    %v4500 = vadd.f32 0.0, %v4499
    %v4501 = vpop.f32.mrb[0].mxu0
    %v4502 = vadd.f32 0.0, %v4501
    %v4503 = vpop.f32.mrb[0].mxu0
    %v4504 = vadd.f32 0.0, %v4503
    %v4505 = vpop.f32.mrb[0].mxu0
    %v4506 = vadd.f32 0.0, %v4505
    %4507 = vdwg.mxu0
    %4508 = vmatprep.subr.bf16.mxu0 %v4015
    %4509 = vmatpush1.bf16.msra.mxu0 %v4014
    %4510 = vmatprep.subr.bf16.mxu0 %v4022
    %4511 = vmatpush1.bf16.msra.mxu0 %v4021
    %4512 = vmatprep.subr.bf16.mxu0 %v4029
    %4513 = vmatpush1.bf16.msra.mxu0 %v4028
    %4514 = vmatprep.subr.bf16.mxu0 %v4036
    %4515 = vmatpush1.bf16.msra.mxu0 %v4035
    %4516 = vmatprep.subr.bf16.mxu0 %v4043
    %4517 = vmatpush1.bf16.msra.mxu0 %v4042
    %4518 = vmatprep.subr.bf16.mxu0 %v4050
    %4519 = vmatpush1.bf16.msra.mxu0 %v4049
    %4520 = vmatprep.subr.bf16.mxu0 %v4057
    %4521 = vmatpush1.bf16.msra.mxu0 %v4056
    %4522 = vmatprep.subr.bf16.mxu0 %v4064
    %4523 = vmatpush1.bf16.msra.mxu0 %v4063
    %4524 = vmatprep.subr.bf16.mxu0 %v4071
    %4525 = vmatpush1.bf16.msra.mxu0 %v4070
    %4526 = vmatprep.subr.bf16.mxu0 %v4078
    %4527 = vmatpush1.bf16.msra.mxu0 %v4077
    %4528 = vmatprep.subr.bf16.mxu0 %v4085
    %4529 = vmatpush1.bf16.msra.mxu0 %v4084
    %4530 = vmatprep.subr.bf16.mxu0 %v4092
    %4531 = vmatpush1.bf16.msra.mxu0 %v4091
    %4532 = vmatprep.subr.bf16.mxu0 0
    %4533 = vmatpush1.bf16.msra.mxu0 0
    %4534 = vmatprep.subr.bf16.mxu0 0
    %4535 = vmatpush1.bf16.msra.mxu0 0
    %4536 = vmatprep.subr.bf16.mxu0 0
    %4537 = vmatpush1.bf16.msra.mxu0 0
    %4538 = vmatprep.subr.bf16.mxu0 0
    %4539 = vmatpush1.bf16.msra.mxu0 0
    %4540 = vmatprep.mubr.bf16.mxu0 %v4291
    %4541 = vmatmul.mubr.bf16.gmra.mrb[0].mxu0 %v2823
    %v4542 = vpop.f32.mrb[0].mxu0
    %v4543 = vadd.f32 %v4500, %v4542
    %v4544 = vpop.f32.mrb[0].mxu0
    %v4545 = vadd.f32 %v4502, %v4544
    %v4546 = vpop.f32.mrb[0].mxu0
    %v4547 = vadd.f32 %v4504, %v4546
    %v4548 = vpop.f32.mrb[0].mxu0
    %v4549 = vadd.f32 %v4506, %v4548
    %4550 = vdwg.mxu0
    %4551 = vmatprep.subr.bf16.mxu0 0
    %4552 = vmatpush1.bf16.msra.mxu0 %v3904
    %4553 = vmatprep.subr.bf16.mxu0 0
    %4554 = vmatpush1.bf16.msra.mxu0 %v3911
    %4555 = vmatprep.subr.bf16.mxu0 0
    %4556 = vmatpush1.bf16.msra.mxu0 %v3918
    %4557 = vmatprep.subr.bf16.mxu0 0
    %4558 = vmatpush1.bf16.msra.mxu0 %v3925
    %4559 = vmatprep.subr.bf16.mxu0 0
    %4560 = vmatpush1.bf16.msra.mxu0 %v3932
    %4561 = vmatprep.subr.bf16.mxu0 0
    %4562 = vmatpush1.bf16.msra.mxu0 %v3939
    %4563 = vmatprep.subr.bf16.mxu0 0
    %4564 = vmatpush1.bf16.msra.mxu0 %v3946
    %4565 = vmatprep.subr.bf16.mxu0 0
    %4566 = vmatpush1.bf16.msra.mxu0 %v3953
    %4567 = vmatprep.subr.bf16.mxu0 0
    %4568 = vmatpush1.bf16.msra.mxu0 %v3960
    %4569 = vmatprep.subr.bf16.mxu0 0
    %4570 = vmatpush1.bf16.msra.mxu0 %v3967
    %4571 = vmatprep.subr.bf16.mxu0 0
    %4572 = vmatpush1.bf16.msra.mxu0 %v3974
    %4573 = vmatprep.subr.bf16.mxu0 0
    %4574 = vmatpush1.bf16.msra.mxu0 %v3981
    %4575 = vmatprep.subr.bf16.mxu0 0
    %4576 = vmatpush1.bf16.msra.mxu0 %v3988
    %4577 = vmatprep.subr.bf16.mxu0 0
    %4578 = vmatpush1.bf16.msra.mxu0 %v3995
    %4579 = vmatprep.subr.bf16.mxu0 0
    %4580 = vmatpush1.bf16.msra.mxu0 %v4002
    %4581 = vmatprep.subr.bf16.mxu0 0
    %4582 = vmatpush1.bf16.msra.mxu0 %v4009
    %4583 = vmatprep.mubr.bf16.mxu0 %v2822
    %4584 = vmatmul.mubr.bf16.gmra.mrb[0].mxu0 %v2821
    %v4585 = vpop.f32.mrb[0].mxu0
    %v4586 = vadd.f32 0.0, %v4585
    %v4587 = vpop.f32.mrb[0].mxu0
    %v4588 = vpop.f32.mrb[0].mxu0
    %v4589 = vadd.f32 0.0, %v4588
    %v4590 = vpop.f32.mrb[0].mxu0
    %4591 = vdwg.mxu0
    %4592 = vmatprep.subr.bf16.mxu0 0
    %4593 = vmatpush1.bf16.msra.mxu0 %v4016
    %4594 = vmatprep.subr.bf16.mxu0 0
    %4595 = vmatpush1.bf16.msra.mxu0 %v4023
    %4596 = vmatprep.subr.bf16.mxu0 0
    %4597 = vmatpush1.bf16.msra.mxu0 %v4030
    %4598 = vmatprep.subr.bf16.mxu0 0
    %4599 = vmatpush1.bf16.msra.mxu0 %v4037
    %4600 = vmatprep.subr.bf16.mxu0 0
    %4601 = vmatpush1.bf16.msra.mxu0 %v4044
    %4602 = vmatprep.subr.bf16.mxu0 0
    %4603 = vmatpush1.bf16.msra.mxu0 %v4051
    %4604 = vmatprep.subr.bf16.mxu0 0
    %4605 = vmatpush1.bf16.msra.mxu0 %v4058
    %4606 = vmatprep.subr.bf16.mxu0 0
    %4607 = vmatpush1.bf16.msra.mxu0 %v4065
    %4608 = vmatprep.subr.bf16.mxu0 0
    %4609 = vmatpush1.bf16.msra.mxu0 %v4072
    %4610 = vmatprep.subr.bf16.mxu0 0
    %4611 = vmatpush1.bf16.msra.mxu0 %v4079
    %4612 = vmatprep.subr.bf16.mxu0 0
    %4613 = vmatpush1.bf16.msra.mxu0 %v4086
    %4614 = vmatprep.subr.bf16.mxu0 0
    %4615 = vmatpush1.bf16.msra.mxu0 %v4093
    %4616 = vmatprep.subr.bf16.mxu0 0
    %4617 = vmatpush1.bf16.msra.mxu0 0
    %4618 = vmatprep.subr.bf16.mxu0 0
    %4619 = vmatpush1.bf16.msra.mxu0 0
    %4620 = vmatprep.subr.bf16.mxu0 0
    %4621 = vmatpush1.bf16.msra.mxu0 0
    %4622 = vmatprep.subr.bf16.mxu0 0
    %4623 = vmatpush1.bf16.msra.mxu0 0
    %4624 = vmatprep.mubr.bf16.mxu0 %v4291
    %4625 = vmatmul.mubr.bf16.gmra.mrb[0].mxu0 %v2823
    %v4626 = vpop.f32.mrb[0].mxu0
    %v4627 = vadd.f32 %v4586, %v4626
    %v4628 = vpop.f32.mrb[0].mxu0
    %v4629 = vpop.f32.mrb[0].mxu0
    %v4630 = vadd.f32 %v4589, %v4629
    %v4631 = vpop.f32.mrb[0].mxu0
    %4632 = vdwg.mxu0
    %v4637 = vrot.slane %v2825, 1
    %v4638 = vrot.slane %v2826, 1
    %v4639 = vrot.slane %v2827, 1
    %v4640 = vrot.slane %v2828, 1
    %v4645 = vsel %vm1415, %v4640, 0
    %4647 = vmatprep.subr.bf16.mxu0 %v3899
    %4648 = vmatpush1.bf16.msra.mxu0 %v3898
    %4649 = vmatprep.subr.bf16.mxu0 %v3906
    %4650 = vmatpush1.bf16.msra.mxu0 %v3905
    %4651 = vmatprep.subr.bf16.mxu0 %v3913
    %4652 = vmatpush1.bf16.msra.mxu0 %v3912
    %4653 = vmatprep.subr.bf16.mxu0 %v3920
    %4654 = vmatpush1.bf16.msra.mxu0 %v3919
    %4655 = vmatprep.subr.bf16.mxu0 %v3927
    %4656 = vmatpush1.bf16.msra.mxu0 %v3926
    %4657 = vmatprep.subr.bf16.mxu0 %v3934
    %4658 = vmatpush1.bf16.msra.mxu0 %v3933
    %4659 = vmatprep.subr.bf16.mxu0 %v3941
    %4660 = vmatpush1.bf16.msra.mxu0 %v3940
    %4661 = vmatprep.subr.bf16.mxu0 %v3948
    %4662 = vmatpush1.bf16.msra.mxu0 %v3947
    %4663 = vmatprep.subr.bf16.mxu0 %v3955
    %4664 = vmatpush1.bf16.msra.mxu0 %v3954
    %4665 = vmatprep.subr.bf16.mxu0 %v3962
    %4666 = vmatpush1.bf16.msra.mxu0 %v3961
    %4667 = vmatprep.subr.bf16.mxu0 %v3969
    %4668 = vmatpush1.bf16.msra.mxu0 %v3968
    %4669 = vmatprep.subr.bf16.mxu0 %v3976
    %4670 = vmatpush1.bf16.msra.mxu0 %v3975
    %4671 = vmatprep.subr.bf16.mxu0 %v3983
    %4672 = vmatpush1.bf16.msra.mxu0 %v3982
    %4673 = vmatprep.subr.bf16.mxu0 %v3990
    %4674 = vmatpush1.bf16.msra.mxu0 %v3989
    %4675 = vmatprep.subr.bf16.mxu0 %v3997
    %4676 = vmatpush1.bf16.msra.mxu0 %v3996
    %4677 = vmatprep.subr.bf16.mxu0 %v4004
    %4678 = vmatpush1.bf16.msra.mxu0 %v4003
    %4679 = vmatprep.mubr.bf16.mxu0 %v4638
    %4680 = vmatmul.mubr.bf16.gmra.mrb[0].mxu0 %v4637
    %v4681 = vpop.f32.mrb[0].mxu0
    %v4682 = vadd.f32 0.0, %v4681
    %v4683 = vpop.f32.mrb[0].mxu0
    %v4684 = vadd.f32 0.0, %v4683
    %v4685 = vpop.f32.mrb[0].mxu0
    %v4686 = vadd.f32 0.0, %v4685
    %v4687 = vpop.f32.mrb[0].mxu0
    %v4688 = vadd.f32 0.0, %v4687
    %4689 = vdwg.mxu0
    %4690 = vmatprep.subr.bf16.mxu0 %v4011
    %4691 = vmatpush1.bf16.msra.mxu0 %v4010
    %4692 = vmatprep.subr.bf16.mxu0 %v4018
    %4693 = vmatpush1.bf16.msra.mxu0 %v4017
    %4694 = vmatprep.subr.bf16.mxu0 %v4025
    %4695 = vmatpush1.bf16.msra.mxu0 %v4024
    %4696 = vmatprep.subr.bf16.mxu0 %v4032
    %4697 = vmatpush1.bf16.msra.mxu0 %v4031
    %4698 = vmatprep.subr.bf16.mxu0 %v4039
    %4699 = vmatpush1.bf16.msra.mxu0 %v4038
    %4700 = vmatprep.subr.bf16.mxu0 %v4046
    %4701 = vmatpush1.bf16.msra.mxu0 %v4045
    %4702 = vmatprep.subr.bf16.mxu0 %v4053
    %4703 = vmatpush1.bf16.msra.mxu0 %v4052
    %4704 = vmatprep.subr.bf16.mxu0 %v4060
    %4705 = vmatpush1.bf16.msra.mxu0 %v4059
    %4706 = vmatprep.subr.bf16.mxu0 %v4067
    %4707 = vmatpush1.bf16.msra.mxu0 %v4066
    %4708 = vmatprep.subr.bf16.mxu0 %v4074
    %4709 = vmatpush1.bf16.msra.mxu0 %v4073
    %4710 = vmatprep.subr.bf16.mxu0 %v4081
    %4711 = vmatpush1.bf16.msra.mxu0 %v4080
    %4712 = vmatprep.subr.bf16.mxu0 %v4088
    %4713 = vmatpush1.bf16.msra.mxu0 %v4087
    %4714 = vmatprep.subr.bf16.mxu0 0
    %4715 = vmatpush1.bf16.msra.mxu0 0
    %4716 = vmatprep.subr.bf16.mxu0 0
    %4717 = vmatpush1.bf16.msra.mxu0 0
    %4718 = vmatprep.subr.bf16.mxu0 0
    %4719 = vmatpush1.bf16.msra.mxu0 0
    %4720 = vmatprep.subr.bf16.mxu0 0
    %4721 = vmatpush1.bf16.msra.mxu0 0
    %4722 = vmatprep.mubr.bf16.mxu0 %v4645
    %4723 = vmatmul.mubr.bf16.gmra.mrb[0].mxu0 %v4639
    %v4724 = vpop.f32.mrb[0].mxu0
    %v4725 = vadd.f32 %v4682, %v4724
    %v4726 = vpop.f32.mrb[0].mxu0
    %v4727 = vadd.f32 %v4684, %v4726
    %v4728 = vpop.f32.mrb[0].mxu0
    %v4729 = vadd.f32 %v4686, %v4728
    %v4730 = vpop.f32.mrb[0].mxu0
    %v4731 = vadd.f32 %v4688, %v4730
    %4732 = vdwg.mxu0
    %4733 = vmatprep.subr.bf16.mxu0 %v3901
    %4734 = vmatpush1.bf16.msra.mxu0 %v3900
    %4735 = vmatprep.subr.bf16.mxu0 %v3908
    %4736 = vmatpush1.bf16.msra.mxu0 %v3907
    %4737 = vmatprep.subr.bf16.mxu0 %v3915
    %4738 = vmatpush1.bf16.msra.mxu0 %v3914
    %4739 = vmatprep.subr.bf16.mxu0 %v3922
    %4740 = vmatpush1.bf16.msra.mxu0 %v3921
    %4741 = vmatprep.subr.bf16.mxu0 %v3929
    %4742 = vmatpush1.bf16.msra.mxu0 %v3928
    %4743 = vmatprep.subr.bf16.mxu0 %v3936
    %4744 = vmatpush1.bf16.msra.mxu0 %v3935
    %4745 = vmatprep.subr.bf16.mxu0 %v3943
    %4746 = vmatpush1.bf16.msra.mxu0 %v3942
    %4747 = vmatprep.subr.bf16.mxu0 %v3950
    %4748 = vmatpush1.bf16.msra.mxu0 %v3949
    %4749 = vmatprep.subr.bf16.mxu0 %v3957
    %4750 = vmatpush1.bf16.msra.mxu0 %v3956
    %4751 = vmatprep.subr.bf16.mxu0 %v3964
    %4752 = vmatpush1.bf16.msra.mxu0 %v3963
    %4753 = vmatprep.subr.bf16.mxu0 %v3971
    %4754 = vmatpush1.bf16.msra.mxu0 %v3970
    %4755 = vmatprep.subr.bf16.mxu0 %v3978
    %4756 = vmatpush1.bf16.msra.mxu0 %v3977
    %4757 = vmatprep.subr.bf16.mxu0 %v3985
    %4758 = vmatpush1.bf16.msra.mxu0 %v3984
    %4759 = vmatprep.subr.bf16.mxu0 %v3992
    %4760 = vmatpush1.bf16.msra.mxu0 %v3991
    %4761 = vmatprep.subr.bf16.mxu0 %v3999
    %4762 = vmatpush1.bf16.msra.mxu0 %v3998
    %4763 = vmatprep.subr.bf16.mxu0 %v4006
    %4764 = vmatpush1.bf16.msra.mxu0 %v4005
    %4765 = vmatprep.mubr.bf16.mxu0 %v4638
    %4766 = vmatmul.mubr.bf16.gmra.mrb[0].mxu0 %v4637
    %v4767 = vpop.f32.mrb[0].mxu0
    %v4768 = vadd.f32 0.0, %v4767
    %v4769 = vpop.f32.mrb[0].mxu0
    %v4770 = vadd.f32 0.0, %v4769
    %v4771 = vpop.f32.mrb[0].mxu0
    %v4772 = vadd.f32 0.0, %v4771
    %v4773 = vpop.f32.mrb[0].mxu0
    %v4774 = vadd.f32 0.0, %v4773
    %4775 = vdwg.mxu0
    %4776 = vmatprep.subr.bf16.mxu0 %v4013
    %4777 = vmatpush1.bf16.msra.mxu0 %v4012
    %4778 = vmatprep.subr.bf16.mxu0 %v4020
    %4779 = vmatpush1.bf16.msra.mxu0 %v4019
    %4780 = vmatprep.subr.bf16.mxu0 %v4027
    %4781 = vmatpush1.bf16.msra.mxu0 %v4026
    %4782 = vmatprep.subr.bf16.mxu0 %v4034
    %4783 = vmatpush1.bf16.msra.mxu0 %v4033
    %4784 = vmatprep.subr.bf16.mxu0 %v4041
    %4785 = vmatpush1.bf16.msra.mxu0 %v4040
    %4786 = vmatprep.subr.bf16.mxu0 %v4048
    %4787 = vmatpush1.bf16.msra.mxu0 %v4047
    %4788 = vmatprep.subr.bf16.mxu0 %v4055
    %4789 = vmatpush1.bf16.msra.mxu0 %v4054
    %4790 = vmatprep.subr.bf16.mxu0 %v4062
    %4791 = vmatpush1.bf16.msra.mxu0 %v4061
    %4792 = vmatprep.subr.bf16.mxu0 %v4069
    %4793 = vmatpush1.bf16.msra.mxu0 %v4068
    %4794 = vmatprep.subr.bf16.mxu0 %v4076
    %4795 = vmatpush1.bf16.msra.mxu0 %v4075
    %4796 = vmatprep.subr.bf16.mxu0 %v4083
    %4797 = vmatpush1.bf16.msra.mxu0 %v4082
    %4798 = vmatprep.subr.bf16.mxu0 %v4090
    %4799 = vmatpush1.bf16.msra.mxu0 %v4089
    %4800 = vmatprep.subr.bf16.mxu0 0
    %4801 = vmatpush1.bf16.msra.mxu0 0
    %4802 = vmatprep.subr.bf16.mxu0 0
    %4803 = vmatpush1.bf16.msra.mxu0 0
    %4804 = vmatprep.subr.bf16.mxu0 0
    %4805 = vmatpush1.bf16.msra.mxu0 0
    %4806 = vmatprep.subr.bf16.mxu0 0
    %4807 = vmatpush1.bf16.msra.mxu0 0
    %4808 = vmatprep.mubr.bf16.mxu0 %v4645
    %4809 = vmatmul.mubr.bf16.gmra.mrb[0].mxu0 %v4639
    %v4810 = vpop.f32.mrb[0].mxu0
    %v4811 = vadd.f32 %v4768, %v4810
    %v4812 = vpop.f32.mrb[0].mxu0
    %v4813 = vadd.f32 %v4770, %v4812
    %v4814 = vpop.f32.mrb[0].mxu0
    %v4815 = vadd.f32 %v4772, %v4814
    %v4816 = vpop.f32.mrb[0].mxu0
    %v4817 = vadd.f32 %v4774, %v4816
    %4818 = vdwg.mxu0
    %4819 = vmatprep.subr.bf16.mxu0 %v3903
    %4820 = vmatpush1.bf16.msra.mxu0 %v3902
    %4821 = vmatprep.subr.bf16.mxu0 %v3910
    %4822 = vmatpush1.bf16.msra.mxu0 %v3909
    %4823 = vmatprep.subr.bf16.mxu0 %v3917
    %4824 = vmatpush1.bf16.msra.mxu0 %v3916
    %4825 = vmatprep.subr.bf16.mxu0 %v3924
    %4826 = vmatpush1.bf16.msra.mxu0 %v3923
    %4827 = vmatprep.subr.bf16.mxu0 %v3931
    %4828 = vmatpush1.bf16.msra.mxu0 %v3930
    %4829 = vmatprep.subr.bf16.mxu0 %v3938
    %4830 = vmatpush1.bf16.msra.mxu0 %v3937
    %4831 = vmatprep.subr.bf16.mxu0 %v3945
    %4832 = vmatpush1.bf16.msra.mxu0 %v3944
    %4833 = vmatprep.subr.bf16.mxu0 %v3952
    %4834 = vmatpush1.bf16.msra.mxu0 %v3951
    %4835 = vmatprep.subr.bf16.mxu0 %v3959
    %4836 = vmatpush1.bf16.msra.mxu0 %v3958
    %4837 = vmatprep.subr.bf16.mxu0 %v3966
    %4838 = vmatpush1.bf16.msra.mxu0 %v3965
    %4839 = vmatprep.subr.bf16.mxu0 %v3973
    %4840 = vmatpush1.bf16.msra.mxu0 %v3972
    %4841 = vmatprep.subr.bf16.mxu0 %v3980
    %4842 = vmatpush1.bf16.msra.mxu0 %v3979
    %4843 = vmatprep.subr.bf16.mxu0 %v3987
    %4844 = vmatpush1.bf16.msra.mxu0 %v3986
    %4845 = vmatprep.subr.bf16.mxu0 %v3994
    %4846 = vmatpush1.bf16.msra.mxu0 %v3993
    %4847 = vmatprep.subr.bf16.mxu0 %v4001
    %4848 = vmatpush1.bf16.msra.mxu0 %v4000
    %4849 = vmatprep.subr.bf16.mxu0 %v4008
    %4850 = vmatpush1.bf16.msra.mxu0 %v4007
    %4851 = vmatprep.mubr.bf16.mxu0 %v4638
    %4852 = vmatmul.mubr.bf16.gmra.mrb[0].mxu0 %v4637
    %v4853 = vpop.f32.mrb[0].mxu0
    %v4854 = vadd.f32 0.0, %v4853
    %v4855 = vpop.f32.mrb[0].mxu0
    %v4856 = vadd.f32 0.0, %v4855
    %v4857 = vpop.f32.mrb[0].mxu0
    %v4858 = vadd.f32 0.0, %v4857
    %v4859 = vpop.f32.mrb[0].mxu0
    %v4860 = vadd.f32 0.0, %v4859
    %4861 = vdwg.mxu0
    %4862 = vmatprep.subr.bf16.mxu0 %v4015
    %4863 = vmatpush1.bf16.msra.mxu0 %v4014
    %4864 = vmatprep.subr.bf16.mxu0 %v4022
    %4865 = vmatpush1.bf16.msra.mxu0 %v4021
    %4866 = vmatprep.subr.bf16.mxu0 %v4029
    %4867 = vmatpush1.bf16.msra.mxu0 %v4028
    %4868 = vmatprep.subr.bf16.mxu0 %v4036
    %4869 = vmatpush1.bf16.msra.mxu0 %v4035
    %4870 = vmatprep.subr.bf16.mxu0 %v4043
    %4871 = vmatpush1.bf16.msra.mxu0 %v4042
    %4872 = vmatprep.subr.bf16.mxu0 %v4050
    %4873 = vmatpush1.bf16.msra.mxu0 %v4049
    %4874 = vmatprep.subr.bf16.mxu0 %v4057
    %4875 = vmatpush1.bf16.msra.mxu0 %v4056
    %4876 = vmatprep.subr.bf16.mxu0 %v4064
    %4877 = vmatpush1.bf16.msra.mxu0 %v4063
    %4878 = vmatprep.subr.bf16.mxu0 %v4071
    %4879 = vmatpush1.bf16.msra.mxu0 %v4070
    %4880 = vmatprep.subr.bf16.mxu0 %v4078
    %4881 = vmatpush1.bf16.msra.mxu0 %v4077
    %4882 = vmatprep.subr.bf16.mxu0 %v4085
    %4883 = vmatpush1.bf16.msra.mxu0 %v4084
    %4884 = vmatprep.subr.bf16.mxu0 %v4092
    %4885 = vmatpush1.bf16.msra.mxu0 %v4091
    %4886 = vmatprep.subr.bf16.mxu0 0
    %4887 = vmatpush1.bf16.msra.mxu0 0
    %4888 = vmatprep.subr.bf16.mxu0 0
    %4889 = vmatpush1.bf16.msra.mxu0 0
    %4890 = vmatprep.subr.bf16.mxu0 0
    %4891 = vmatpush1.bf16.msra.mxu0 0
    %4892 = vmatprep.subr.bf16.mxu0 0
    %4893 = vmatpush1.bf16.msra.mxu0 0
    %4894 = vmatprep.mubr.bf16.mxu0 %v4645
    %4895 = vmatmul.mubr.bf16.gmra.mrb[0].mxu0 %v4639
    %v4896 = vpop.f32.mrb[0].mxu0
    %v4897 = vadd.f32 %v4854, %v4896
    %v4898 = vpop.f32.mrb[0].mxu0
    %v4899 = vadd.f32 %v4856, %v4898
    %v4900 = vpop.f32.mrb[0].mxu0
    %v4901 = vadd.f32 %v4858, %v4900
    %v4902 = vpop.f32.mrb[0].mxu0
    %v4903 = vadd.f32 %v4860, %v4902
    %4904 = vdwg.mxu0
    %4905 = vmatprep.subr.bf16.mxu0 0
    %4906 = vmatpush1.bf16.msra.mxu0 %v3904
    %4907 = vmatprep.subr.bf16.mxu0 0
    %4908 = vmatpush1.bf16.msra.mxu0 %v3911
    %4909 = vmatprep.subr.bf16.mxu0 0
    %4910 = vmatpush1.bf16.msra.mxu0 %v3918
    %4911 = vmatprep.subr.bf16.mxu0 0
    %4912 = vmatpush1.bf16.msra.mxu0 %v3925
    %4913 = vmatprep.subr.bf16.mxu0 0
    %4914 = vmatpush1.bf16.msra.mxu0 %v3932
    %4915 = vmatprep.subr.bf16.mxu0 0
    %4916 = vmatpush1.bf16.msra.mxu0 %v3939
    %4917 = vmatprep.subr.bf16.mxu0 0
    %4918 = vmatpush1.bf16.msra.mxu0 %v3946
    %4919 = vmatprep.subr.bf16.mxu0 0
    %4920 = vmatpush1.bf16.msra.mxu0 %v3953
    %4921 = vmatprep.subr.bf16.mxu0 0
    %4922 = vmatpush1.bf16.msra.mxu0 %v3960
    %4923 = vmatprep.subr.bf16.mxu0 0
    %4924 = vmatpush1.bf16.msra.mxu0 %v3967
    %4925 = vmatprep.subr.bf16.mxu0 0
    %4926 = vmatpush1.bf16.msra.mxu0 %v3974
    %4927 = vmatprep.subr.bf16.mxu0 0
    %4928 = vmatpush1.bf16.msra.mxu0 %v3981
    %4929 = vmatprep.subr.bf16.mxu0 0
    %4930 = vmatpush1.bf16.msra.mxu0 %v3988
    %4931 = vmatprep.subr.bf16.mxu0 0
    %4932 = vmatpush1.bf16.msra.mxu0 %v3995
    %4933 = vmatprep.subr.bf16.mxu0 0
    %4934 = vmatpush1.bf16.msra.mxu0 %v4002
    %4935 = vmatprep.subr.bf16.mxu0 0
    %4936 = vmatpush1.bf16.msra.mxu0 %v4009
    %4937 = vmatprep.mubr.bf16.mxu0 %v4638
    %4938 = vmatmul.mubr.bf16.gmra.mrb[0].mxu0 %v4637
    %v4939 = vpop.f32.mrb[0].mxu0
    %v4940 = vadd.f32 0.0, %v4939
    %v4941 = vpop.f32.mrb[0].mxu0
    %v4942 = vpop.f32.mrb[0].mxu0
    %v4943 = vadd.f32 0.0, %v4942
    %v4944 = vpop.f32.mrb[0].mxu0
    %4945 = vdwg.mxu0
    %4946 = vmatprep.subr.bf16.mxu0 0
    %4947 = vmatpush1.bf16.msra.mxu0 %v4016
    %4948 = vmatprep.subr.bf16.mxu0 0
    %4949 = vmatpush1.bf16.msra.mxu0 %v4023
    %4950 = vmatprep.subr.bf16.mxu0 0
    %4951 = vmatpush1.bf16.msra.mxu0 %v4030
    %4952 = vmatprep.subr.bf16.mxu0 0
    %4953 = vmatpush1.bf16.msra.mxu0 %v4037
    %4954 = vmatprep.subr.bf16.mxu0 0
    %4955 = vmatpush1.bf16.msra.mxu0 %v4044
    %4956 = vmatprep.subr.bf16.mxu0 0
    %4957 = vmatpush1.bf16.msra.mxu0 %v4051
    %4958 = vmatprep.subr.bf16.mxu0 0
    %4959 = vmatpush1.bf16.msra.mxu0 %v4058
    %4960 = vmatprep.subr.bf16.mxu0 0
    %4961 = vmatpush1.bf16.msra.mxu0 %v4065
    %4962 = vmatprep.subr.bf16.mxu0 0
    %4963 = vmatpush1.bf16.msra.mxu0 %v4072
    %4964 = vmatprep.subr.bf16.mxu0 0
    %4965 = vmatpush1.bf16.msra.mxu0 %v4079
    %4966 = vmatprep.subr.bf16.mxu0 0
    %4967 = vmatpush1.bf16.msra.mxu0 %v4086
    %4968 = vmatprep.subr.bf16.mxu0 0
    %4969 = vmatpush1.bf16.msra.mxu0 %v4093
    %4970 = vmatprep.subr.bf16.mxu0 0
    %4971 = vmatpush1.bf16.msra.mxu0 0
    %4972 = vmatprep.subr.bf16.mxu0 0
    %4973 = vmatpush1.bf16.msra.mxu0 0
    %4974 = vmatprep.subr.bf16.mxu0 0
    %4975 = vmatpush1.bf16.msra.mxu0 0
    %4976 = vmatprep.subr.bf16.mxu0 0
    %4977 = vmatpush1.bf16.msra.mxu0 0
    %4978 = vmatprep.mubr.bf16.mxu0 %v4645
    %4979 = vmatmul.mubr.bf16.gmra.mrb[0].mxu0 %v4639
    %v4980 = vpop.f32.mrb[0].mxu0
    %v4981 = vadd.f32 %v4940, %v4980
    %v4982 = vpop.f32.mrb[0].mxu0
    %v4983 = vpop.f32.mrb[0].mxu0
    %v4984 = vadd.f32 %v4943, %v4983
    %v4985 = vpop.f32.mrb[0].mxu0
    %4986 = vdwg.mxu0
    %v5211 = vunpack.c.l.b16 %v2833
    %v5212 = vunpack.c.h.b16 %v2833
    %v5213 = vunpack.c.l.b16 %v2834
    %v5214 = vunpack.c.h.b16 %v2834
    %v5215 = vunpack.c.l.b16 %v2835
    %v5216 = vunpack.c.h.b16 %v2835
    %v5217 = vunpack.c.l.b16 %v2836
    %v5218 = vunpack.c.l.b16 %v2837
    %v5219 = vunpack.c.h.b16 %v2837
    %v5220 = vunpack.c.l.b16 %v2838
    %v5221 = vunpack.c.h.b16 %v2838
    %v5222 = vunpack.c.l.b16 %v2839
    %v5223 = vunpack.c.h.b16 %v2839
    %v5224 = vunpack.c.l.b16 %v2840
    %v5225 = vunpack.c.l.b16 %v2841
    %v5226 = vunpack.c.h.b16 %v2841
    %v5227 = vunpack.c.l.b16 %v2842
    %v5228 = vunpack.c.h.b16 %v2842
    %v5229 = vunpack.c.l.b16 %v2843
    %v5230 = vunpack.c.h.b16 %v2843
    %v5231 = vunpack.c.l.b16 %v2844
    %v5232 = vunpack.c.l.b16 %v2845
    %v5233 = vunpack.c.h.b16 %v2845
    %v5234 = vunpack.c.l.b16 %v2846
    %v5235 = vunpack.c.h.b16 %v2846
    %v5236 = vunpack.c.l.b16 %v2847
    %v5237 = vunpack.c.h.b16 %v2847
    %v5238 = vunpack.c.l.b16 %v2848
    %v5239 = vunpack.c.l.b16 %v2849
    %v5240 = vunpack.c.h.b16 %v2849
    %v5241 = vunpack.c.l.b16 %v2850
    %v5242 = vunpack.c.h.b16 %v2850
    %v5243 = vunpack.c.l.b16 %v2851
    %v5244 = vunpack.c.h.b16 %v2851
    %v5245 = vunpack.c.l.b16 %v2852
    %v5246 = vunpack.c.l.b16 %v2853
    %v5247 = vunpack.c.h.b16 %v2853
    %v5248 = vunpack.c.l.b16 %v2854
    %v5249 = vunpack.c.h.b16 %v2854
    %v5250 = vunpack.c.l.b16 %v2855
    %v5251 = vunpack.c.h.b16 %v2855
    %v5252 = vunpack.c.l.b16 %v2856
    %v5253 = vunpack.c.l.b16 %v2857
    %v5254 = vunpack.c.h.b16 %v2857
    %v5255 = vunpack.c.l.b16 %v2858
    %v5256 = vunpack.c.h.b16 %v2858
    %v5257 = vunpack.c.l.b16 %v2859
    %v5258 = vunpack.c.h.b16 %v2859
    %v5259 = vunpack.c.l.b16 %v2860
    %v5260 = vunpack.c.l.b16 %v2861
    %v5261 = vunpack.c.h.b16 %v2861
    %v5262 = vunpack.c.l.b16 %v2862
    %v5263 = vunpack.c.h.b16 %v2862
    %v5264 = vunpack.c.l.b16 %v2863
    %v5265 = vunpack.c.h.b16 %v2863
    %v5266 = vunpack.c.l.b16 %v2864
    %v5267 = vunpack.c.l.b16 %v2865
    %v5268 = vunpack.c.h.b16 %v2865
    %v5269 = vunpack.c.l.b16 %v2866
    %v5270 = vunpack.c.h.b16 %v2866
    %v5271 = vunpack.c.l.b16 %v2867
    %v5272 = vunpack.c.h.b16 %v2867
    %v5273 = vunpack.c.l.b16 %v2868
    %v5274 = vunpack.c.l.b16 %v2869
    %v5275 = vunpack.c.h.b16 %v2869
    %v5276 = vunpack.c.l.b16 %v2870
    %v5277 = vunpack.c.h.b16 %v2870
    %v5278 = vunpack.c.l.b16 %v2871
    %v5279 = vunpack.c.h.b16 %v2871
    %v5280 = vunpack.c.l.b16 %v2872
    %v5281 = vunpack.c.l.b16 %v2873
    %v5282 = vunpack.c.h.b16 %v2873
    %v5283 = vunpack.c.l.b16 %v2874
    %v5284 = vunpack.c.h.b16 %v2874
    %v5285 = vunpack.c.l.b16 %v2875
    %v5286 = vunpack.c.h.b16 %v2875
    %v5287 = vunpack.c.l.b16 %v2876
    %v5288 = vunpack.c.l.b16 %v2877
    %v5289 = vunpack.c.h.b16 %v2877
    %v5290 = vunpack.c.l.b16 %v2878
    %v5291 = vunpack.c.h.b16 %v2878
    %v5292 = vunpack.c.l.b16 %v2879
    %v5293 = vunpack.c.h.b16 %v2879
    %v5294 = vunpack.c.l.b16 %v2880
    %v5295 = vunpack.c.l.b16 %v2881
    %v5296 = vunpack.c.h.b16 %v2881
    %v5297 = vunpack.c.l.b16 %v2882
    %v5298 = vunpack.c.h.b16 %v2882
    %v5299 = vunpack.c.l.b16 %v2883
    %v5300 = vunpack.c.h.b16 %v2883
    %v5301 = vunpack.c.l.b16 %v2884
    %v5302 = vunpack.c.l.b16 %v2885
    %v5303 = vunpack.c.h.b16 %v2885
    %v5304 = vunpack.c.l.b16 %v2886
    %v5305 = vunpack.c.h.b16 %v2886
    %v5306 = vunpack.c.l.b16 %v2887
    %v5307 = vunpack.c.h.b16 %v2887
    %v5308 = vunpack.c.l.b16 %v2888
    %v5309 = vunpack.c.l.b16 %v2889
    %v5310 = vunpack.c.h.b16 %v2889
    %v5311 = vunpack.c.l.b16 %v2890
    %v5312 = vunpack.c.h.b16 %v2890
    %v5313 = vunpack.c.l.b16 %v2891
    %v5314 = vunpack.c.h.b16 %v2891
    %v5315 = vunpack.c.l.b16 %v2892
    %v5316 = vunpack.c.l.b16 %v2893
    %v5317 = vunpack.c.h.b16 %v2893
    %v5318 = vunpack.c.l.b16 %v2894
    %v5319 = vunpack.c.h.b16 %v2894
    %v5320 = vunpack.c.l.b16 %v2895
    %v5321 = vunpack.c.h.b16 %v2895
    %v5322 = vunpack.c.l.b16 %v2896
    %v5323 = vunpack.c.l.b16 %v2897
    %v5324 = vunpack.c.h.b16 %v2897
    %v5325 = vunpack.c.l.b16 %v2898
    %v5326 = vunpack.c.h.b16 %v2898
    %v5327 = vunpack.c.l.b16 %v2899
    %v5328 = vunpack.c.h.b16 %v2899
    %v5329 = vunpack.c.l.b16 %v2900
    %v5330 = vunpack.c.l.b16 %v2901
    %v5331 = vunpack.c.h.b16 %v2901
    %v5332 = vunpack.c.l.b16 %v2902
    %v5333 = vunpack.c.h.b16 %v2902
    %v5334 = vunpack.c.l.b16 %v2903
    %v5335 = vunpack.c.h.b16 %v2903
    %v5336 = vunpack.c.l.b16 %v2904
    %v5337 = vunpack.c.l.b16 %v2905
    %v5338 = vunpack.c.h.b16 %v2905
    %v5339 = vunpack.c.l.b16 %v2906
    %v5340 = vunpack.c.h.b16 %v2906
    %v5341 = vunpack.c.l.b16 %v2907
    %v5342 = vunpack.c.h.b16 %v2907
    %v5343 = vunpack.c.l.b16 %v2908
    %v5344 = vunpack.c.l.b16 %v2909
    %v5345 = vunpack.c.h.b16 %v2909
    %v5346 = vunpack.c.l.b16 %v2910
    %v5347 = vunpack.c.h.b16 %v2910
    %v5348 = vunpack.c.l.b16 %v2911
    %v5349 = vunpack.c.h.b16 %v2911
    %v5350 = vunpack.c.l.b16 %v2912
    %v5351 = vunpack.c.l.b16 %v2913
    %v5352 = vunpack.c.h.b16 %v2913
    %v5353 = vunpack.c.l.b16 %v2914
    %v5354 = vunpack.c.h.b16 %v2914
    %v5355 = vunpack.c.l.b16 %v2915
    %v5356 = vunpack.c.h.b16 %v2915
    %v5357 = vunpack.c.l.b16 %v2916
    %v5358 = vunpack.c.l.b16 %v2917
    %v5359 = vunpack.c.h.b16 %v2917
    %v5360 = vunpack.c.l.b16 %v2918
    %v5361 = vunpack.c.h.b16 %v2918
    %v5362 = vunpack.c.l.b16 %v2919
    %v5363 = vunpack.c.h.b16 %v2919
    %v5364 = vunpack.c.l.b16 %v2920
    %v5365 = vunpack.c.l.b16 %v2921
    %v5366 = vunpack.c.h.b16 %v2921
    %v5367 = vunpack.c.l.b16 %v2922
    %v5368 = vunpack.c.h.b16 %v2922
    %v5369 = vunpack.c.l.b16 %v2923
    %v5370 = vunpack.c.h.b16 %v2923
    %v5371 = vunpack.c.l.b16 %v2924
    %v5372 = vunpack.c.l.b16 %v2925
    %v5373 = vunpack.c.h.b16 %v2925
    %v5374 = vunpack.c.l.b16 %v2926
    %v5375 = vunpack.c.h.b16 %v2926
    %v5376 = vunpack.c.l.b16 %v2927
    %v5377 = vunpack.c.h.b16 %v2927
    %v5378 = vunpack.c.l.b16 %v2928
    %v5379 = vunpack.c.l.b16 %v2929
    %v5380 = vunpack.c.h.b16 %v2929
    %v5381 = vunpack.c.l.b16 %v2930
    %v5382 = vunpack.c.h.b16 %v2930
    %v5383 = vunpack.c.l.b16 %v2931
    %v5384 = vunpack.c.h.b16 %v2931
    %v5385 = vunpack.c.l.b16 %v2932
    %v5386 = vunpack.c.l.b16 %v2933
    %v5387 = vunpack.c.h.b16 %v2933
    %v5388 = vunpack.c.l.b16 %v2934
    %v5389 = vunpack.c.h.b16 %v2934
    %v5390 = vunpack.c.l.b16 %v2935
    %v5391 = vunpack.c.h.b16 %v2935
    %v5392 = vunpack.c.l.b16 %v2936
    %v5393 = vunpack.c.l.b16 %v2937
    %v5394 = vunpack.c.h.b16 %v2937
    %v5395 = vunpack.c.l.b16 %v2938
    %v5396 = vunpack.c.h.b16 %v2938
    %v5397 = vunpack.c.l.b16 %v2939
    %v5398 = vunpack.c.h.b16 %v2939
    %v5399 = vunpack.c.l.b16 %v2940
    %v5400 = vunpack.c.l.b16 %v2941
    %v5401 = vunpack.c.h.b16 %v2941
    %v5402 = vunpack.c.l.b16 %v2942
    %v5403 = vunpack.c.h.b16 %v2942
    %v5404 = vunpack.c.l.b16 %v2943
    %v5405 = vunpack.c.h.b16 %v2943
    %v5406 = vunpack.c.l.b16 %v2944
    %v5407 = vunpack.c.l.b16 %v2945
    %v5408 = vunpack.c.h.b16 %v2945
    %v5409 = vunpack.c.l.b16 %v2946
    %v5410 = vunpack.c.h.b16 %v2946
    %v5411 = vunpack.c.l.b16 %v2947
    %v5412 = vunpack.c.h.b16 %v2947
    %v5413 = vunpack.c.l.b16 %v2948
    %v5414 = vunpack.c.l.b16 %v2949
    %v5415 = vunpack.c.h.b16 %v2949
    %v5416 = vunpack.c.l.b16 %v2950
    %v5417 = vunpack.c.h.b16 %v2950
    %v5418 = vunpack.c.l.b16 %v2951
    %v5419 = vunpack.c.h.b16 %v2951
    %v5420 = vunpack.c.l.b16 %v2952
    %v5421 = vunpack.c.l.b16 %v2953
    %v5422 = vunpack.c.h.b16 %v2953
    %v5423 = vunpack.c.l.b16 %v2954
    %v5424 = vunpack.c.h.b16 %v2954
    %v5425 = vunpack.c.l.b16 %v2955
    %v5426 = vunpack.c.h.b16 %v2955
    %v5427 = vunpack.c.l.b16 %v2956
    %v5428 = vunpack.c.l.b16 %v2957
    %v5429 = vunpack.c.h.b16 %v2957
    %v5430 = vunpack.c.l.b16 %v2958
    %v5431 = vunpack.c.h.b16 %v2958
    %v5432 = vunpack.c.l.b16 %v2959
    %v5433 = vunpack.c.h.b16 %v2959
    %v5434 = vunpack.c.l.b16 %v2960
    %v5435 = vunpack.c.l.b16 %v2961
    %v5436 = vunpack.c.h.b16 %v2961
    %v5437 = vunpack.c.l.b16 %v2962
    %v5438 = vunpack.c.h.b16 %v2962
    %v5439 = vunpack.c.l.b16 %v2963
    %v5440 = vunpack.c.h.b16 %v2963
    %v5441 = vunpack.c.l.b16 %v2964
    %v5442 = vunpack.c.l.b16 %v2965
    %v5443 = vunpack.c.h.b16 %v2965
    %v5444 = vunpack.c.l.b16 %v2966
    %v5445 = vunpack.c.h.b16 %v2966
    %v5446 = vunpack.c.l.b16 %v2967
    %v5447 = vunpack.c.h.b16 %v2967
    %v5448 = vunpack.c.l.b16 %v2968
    %v5449 = vunpack.c.l.b16 %v2969
    %v5450 = vunpack.c.h.b16 %v2969
    %v5451 = vunpack.c.l.b16 %v2970
    %v5452 = vunpack.c.h.b16 %v2970
    %v5453 = vunpack.c.l.b16 %v2971
    %v5454 = vunpack.c.h.b16 %v2971
    %v5455 = vunpack.c.l.b16 %v2972
    %v5456 = vunpack.c.l.b16 %v2973
    %v5457 = vunpack.c.h.b16 %v2973
    %v5458 = vunpack.c.l.b16 %v2974
    %v5459 = vunpack.c.h.b16 %v2974
    %v5460 = vunpack.c.l.b16 %v2975
    %v5461 = vunpack.c.h.b16 %v2975
    %v5462 = vunpack.c.l.b16 %v2976
    %v5463 = vunpack.c.l.b16 %v2977
    %v5464 = vunpack.c.h.b16 %v2977
    %v5465 = vunpack.c.l.b16 %v2978
    %v5466 = vunpack.c.h.b16 %v2978
    %v5467 = vunpack.c.l.b16 %v2979
    %v5468 = vunpack.c.h.b16 %v2979
    %v5469 = vunpack.c.l.b16 %v2980
    %v5470 = vunpack.c.l.b16 %v2981
    %v5471 = vunpack.c.h.b16 %v2981
    %v5472 = vunpack.c.l.b16 %v2982
    %v5473 = vunpack.c.h.b16 %v2982
    %v5474 = vunpack.c.l.b16 %v2983
    %v5475 = vunpack.c.h.b16 %v2983
    %v5476 = vunpack.c.l.b16 %v2984
    %v5477 = vunpack.c.l.b16 %v2985
    %v5478 = vunpack.c.h.b16 %v2985
    %v5479 = vunpack.c.l.b16 %v2986
    %v5480 = vunpack.c.h.b16 %v2986
    %v5481 = vunpack.c.l.b16 %v2987
    %v5482 = vunpack.c.h.b16 %v2987
    %v5483 = vunpack.c.l.b16 %v2988
    %v5484 = vunpack.c.l.b16 %v2989
    %v5485 = vunpack.c.h.b16 %v2989
    %v5486 = vunpack.c.l.b16 %v2990
    %v5487 = vunpack.c.h.b16 %v2990
    %v5488 = vunpack.c.l.b16 %v2991
    %v5489 = vunpack.c.h.b16 %v2991
    %v5490 = vunpack.c.l.b16 %v2992
    %v5491 = vunpack.c.l.b16 %v2993
    %v5492 = vunpack.c.h.b16 %v2993
    %v5493 = vunpack.c.l.b16 %v2994
    %v5494 = vunpack.c.h.b16 %v2994
    %v5495 = vunpack.c.l.b16 %v2995
    %v5496 = vunpack.c.h.b16 %v2995
    %v5497 = vunpack.c.l.b16 %v2996
    %v5498 = vunpack.c.l.b16 %v2997
    %v5499 = vunpack.c.h.b16 %v2997
    %v5500 = vunpack.c.l.b16 %v2998
    %v5501 = vunpack.c.h.b16 %v2998
    %v5502 = vunpack.c.l.b16 %v2999
    %v5503 = vunpack.c.h.b16 %v2999
    %v5504 = vunpack.c.l.b16 %v3000
    %v5505 = vunpack.c.l.b16 %v3001
    %v5506 = vunpack.c.h.b16 %v3001
    %v5507 = vunpack.c.l.b16 %v3002
    %v5508 = vunpack.c.h.b16 %v3002
    %v5509 = vunpack.c.l.b16 %v3003
    %v5510 = vunpack.c.h.b16 %v3003
    %v5511 = vunpack.c.l.b16 %v3004
    %v5512 = vunpack.c.l.b16 %v3005
    %v5513 = vunpack.c.h.b16 %v3005
    %v5514 = vunpack.c.l.b16 %v3006
    %v5515 = vunpack.c.h.b16 %v3006
    %v5516 = vunpack.c.l.b16 %v3007
    %v5517 = vunpack.c.h.b16 %v3007
    %v5518 = vunpack.c.l.b16 %v3008
    %v5519 = vunpack.c.l.b16 %v3009
    %v5520 = vunpack.c.h.b16 %v3009
    %v5521 = vunpack.c.l.b16 %v3010
    %v5522 = vunpack.c.h.b16 %v3010
    %v5523 = vunpack.c.l.b16 %v3011
    %v5524 = vunpack.c.h.b16 %v3011
    %v5525 = vunpack.c.l.b16 %v3012
    %v5526 = vunpack.c.l.b16 %v3013
    %v5527 = vunpack.c.h.b16 %v3013
    %v5528 = vunpack.c.l.b16 %v3014
    %v5529 = vunpack.c.h.b16 %v3014
    %v5530 = vunpack.c.l.b16 %v3015
    %v5531 = vunpack.c.h.b16 %v3015
    %v5532 = vunpack.c.l.b16 %v3016
    %v5533 = vunpack.c.l.b16 %v3017
    %v5534 = vunpack.c.h.b16 %v3017
    %v5535 = vunpack.c.l.b16 %v3018
    %v5536 = vunpack.c.h.b16 %v3018
    %v5537 = vunpack.c.l.b16 %v3019
    %v5538 = vunpack.c.h.b16 %v3019
    %v5539 = vunpack.c.l.b16 %v3020
    %v5540 = vunpack.c.l.b16 %v3021
    %v5541 = vunpack.c.h.b16 %v3021
    %v5542 = vunpack.c.l.b16 %v3022
    %v5543 = vunpack.c.h.b16 %v3022
    %v5544 = vunpack.c.l.b16 %v3023
    %v5545 = vunpack.c.h.b16 %v3023
    %v5546 = vunpack.c.l.b16 %v3024
    %v5547 = vunpack.c.l.b16 %v3025
    %v5548 = vunpack.c.h.b16 %v3025
    %v5549 = vunpack.c.l.b16 %v3026
    %v5550 = vunpack.c.h.b16 %v3026
    %v5551 = vunpack.c.l.b16 %v3027
    %v5552 = vunpack.c.h.b16 %v3027
    %v5553 = vunpack.c.l.b16 %v3028
    %v5554 = vunpack.c.l.b16 %v3029
    %v5555 = vunpack.c.h.b16 %v3029
    %v5556 = vunpack.c.l.b16 %v3030
    %v5557 = vunpack.c.h.b16 %v3030
    %v5558 = vunpack.c.l.b16 %v3031
    %v5559 = vunpack.c.h.b16 %v3031
    %v5560 = vunpack.c.l.b16 %v3032
    %v5561 = vunpack.c.l.b16 %v3033
    %v5562 = vunpack.c.h.b16 %v3033
    %v5563 = vunpack.c.l.b16 %v3034
    %v5564 = vunpack.c.h.b16 %v3034
    %v5565 = vunpack.c.l.b16 %v3035
    %v5566 = vunpack.c.h.b16 %v3035
    %v5567 = vunpack.c.l.b16 %v3036
    %v5568 = vunpack.c.l.b16 %v3037
    %v5569 = vunpack.c.h.b16 %v3037
    %v5570 = vunpack.c.l.b16 %v3038
    %v5571 = vunpack.c.h.b16 %v3038
    %v5572 = vunpack.c.l.b16 %v3039
    %v5573 = vunpack.c.h.b16 %v3039
    %v5574 = vunpack.c.l.b16 %v3040
    %v5575 = vunpack.c.l.b16 %v3041
    %v5576 = vunpack.c.h.b16 %v3041
    %v5577 = vunpack.c.l.b16 %v3042
    %v5578 = vunpack.c.h.b16 %v3042
    %v5579 = vunpack.c.l.b16 %v3043
    %v5580 = vunpack.c.h.b16 %v3043
    %v5581 = vunpack.c.l.b16 %v3044
    %v5582 = vunpack.c.l.b16 %v3045
    %v5583 = vunpack.c.h.b16 %v3045
    %v5584 = vunpack.c.l.b16 %v3046
    %v5585 = vunpack.c.h.b16 %v3046
    %v5586 = vunpack.c.l.b16 %v3047
    %v5587 = vunpack.c.h.b16 %v3047
    %v5588 = vunpack.c.l.b16 %v3048
    %v5589 = vunpack.c.l.b16 %v3049
    %v5590 = vunpack.c.h.b16 %v3049
    %v5591 = vunpack.c.l.b16 %v3050
    %v5592 = vunpack.c.h.b16 %v3050
    %v5593 = vunpack.c.l.b16 %v3051
    %v5594 = vunpack.c.h.b16 %v3051
    %v5595 = vunpack.c.l.b16 %v3052
    %v5596 = vunpack.c.l.b16 %v3053
    %v5597 = vunpack.c.h.b16 %v3053
    %v5598 = vunpack.c.l.b16 %v3054
    %v5599 = vunpack.c.h.b16 %v3054
    %v5600 = vunpack.c.l.b16 %v3055
    %v5601 = vunpack.c.h.b16 %v3055
    %v5602 = vunpack.c.l.b16 %v3056
    %v5603 = vpack.c.b16 %v5218, %v5211
    %v5604 = vpack.c.b16 %v5219, %v5212
    %v5605 = vpack.c.b16 %v5220, %v5213
    %v5606 = vpack.c.b16 %v5221, %v5214
    %v5607 = vpack.c.b16 %v5222, %v5215
    %v5608 = vpack.c.b16 %v5223, %v5216
    %v5609 = vpack.c.b16 %v5224, %v5217
    %v5610 = vpack.c.b16 %v5232, %v5225
    %v5611 = vpack.c.b16 %v5233, %v5226
    %v5612 = vpack.c.b16 %v5234, %v5227
    %v5613 = vpack.c.b16 %v5235, %v5228
    %v5614 = vpack.c.b16 %v5236, %v5229
    %v5615 = vpack.c.b16 %v5237, %v5230
    %v5616 = vpack.c.b16 %v5238, %v5231
    %v5617 = vpack.c.b16 %v5246, %v5239
    %v5618 = vpack.c.b16 %v5247, %v5240
    %v5619 = vpack.c.b16 %v5248, %v5241
    %v5620 = vpack.c.b16 %v5249, %v5242
    %v5621 = vpack.c.b16 %v5250, %v5243
    %v5622 = vpack.c.b16 %v5251, %v5244
    %v5623 = vpack.c.b16 %v5252, %v5245
    %v5624 = vpack.c.b16 %v5260, %v5253
    %v5625 = vpack.c.b16 %v5261, %v5254
    %v5626 = vpack.c.b16 %v5262, %v5255
    %v5627 = vpack.c.b16 %v5263, %v5256
    %v5628 = vpack.c.b16 %v5264, %v5257
    %v5629 = vpack.c.b16 %v5265, %v5258
    %v5630 = vpack.c.b16 %v5266, %v5259
    %v5631 = vpack.c.b16 %v5274, %v5267
    %v5632 = vpack.c.b16 %v5275, %v5268
    %v5633 = vpack.c.b16 %v5276, %v5269
    %v5634 = vpack.c.b16 %v5277, %v5270
    %v5635 = vpack.c.b16 %v5278, %v5271
    %v5636 = vpack.c.b16 %v5279, %v5272
    %v5637 = vpack.c.b16 %v5280, %v5273
    %v5638 = vpack.c.b16 %v5288, %v5281
    %v5639 = vpack.c.b16 %v5289, %v5282
    %v5640 = vpack.c.b16 %v5290, %v5283
    %v5641 = vpack.c.b16 %v5291, %v5284
    %v5642 = vpack.c.b16 %v5292, %v5285
    %v5643 = vpack.c.b16 %v5293, %v5286
    %v5644 = vpack.c.b16 %v5294, %v5287
    %v5645 = vpack.c.b16 %v5302, %v5295
    %v5646 = vpack.c.b16 %v5303, %v5296
    %v5647 = vpack.c.b16 %v5304, %v5297
    %v5648 = vpack.c.b16 %v5305, %v5298
    %v5649 = vpack.c.b16 %v5306, %v5299
    %v5650 = vpack.c.b16 %v5307, %v5300
    %v5651 = vpack.c.b16 %v5308, %v5301
    %v5652 = vpack.c.b16 %v5316, %v5309
    %v5653 = vpack.c.b16 %v5317, %v5310
    %v5654 = vpack.c.b16 %v5318, %v5311
    %v5655 = vpack.c.b16 %v5319, %v5312
    %v5656 = vpack.c.b16 %v5320, %v5313
    %v5657 = vpack.c.b16 %v5321, %v5314
    %v5658 = vpack.c.b16 %v5322, %v5315
    %v5659 = vpack.c.b16 %v5330, %v5323
    %v5660 = vpack.c.b16 %v5331, %v5324
    %v5661 = vpack.c.b16 %v5332, %v5325
    %v5662 = vpack.c.b16 %v5333, %v5326
    %v5663 = vpack.c.b16 %v5334, %v5327
    %v5664 = vpack.c.b16 %v5335, %v5328
    %v5665 = vpack.c.b16 %v5336, %v5329
    %v5666 = vpack.c.b16 %v5344, %v5337
    %v5667 = vpack.c.b16 %v5345, %v5338
    %v5668 = vpack.c.b16 %v5346, %v5339
    %v5669 = vpack.c.b16 %v5347, %v5340
    %v5670 = vpack.c.b16 %v5348, %v5341
    %v5671 = vpack.c.b16 %v5349, %v5342
    %v5672 = vpack.c.b16 %v5350, %v5343
    %v5673 = vpack.c.b16 %v5358, %v5351
    %v5674 = vpack.c.b16 %v5359, %v5352
    %v5675 = vpack.c.b16 %v5360, %v5353
    %v5676 = vpack.c.b16 %v5361, %v5354
    %v5677 = vpack.c.b16 %v5362, %v5355
    %v5678 = vpack.c.b16 %v5363, %v5356
    %v5679 = vpack.c.b16 %v5364, %v5357
    %v5680 = vpack.c.b16 %v5372, %v5365
    %v5681 = vpack.c.b16 %v5373, %v5366
    %v5682 = vpack.c.b16 %v5374, %v5367
    %v5683 = vpack.c.b16 %v5375, %v5368
    %v5684 = vpack.c.b16 %v5376, %v5369
    %v5685 = vpack.c.b16 %v5377, %v5370
    %v5686 = vpack.c.b16 %v5378, %v5371
    %v5687 = vpack.c.b16 %v5386, %v5379
    %v5688 = vpack.c.b16 %v5387, %v5380
    %v5689 = vpack.c.b16 %v5388, %v5381
    %v5690 = vpack.c.b16 %v5389, %v5382
    %v5691 = vpack.c.b16 %v5390, %v5383
    %v5692 = vpack.c.b16 %v5391, %v5384
    %v5693 = vpack.c.b16 %v5392, %v5385
    %v5694 = vpack.c.b16 %v5400, %v5393
    %v5695 = vpack.c.b16 %v5401, %v5394
    %v5696 = vpack.c.b16 %v5402, %v5395
    %v5697 = vpack.c.b16 %v5403, %v5396
    %v5698 = vpack.c.b16 %v5404, %v5397
    %v5699 = vpack.c.b16 %v5405, %v5398
    %v5700 = vpack.c.b16 %v5406, %v5399
    %v5701 = vpack.c.b16 %v5414, %v5407
    %v5702 = vpack.c.b16 %v5415, %v5408
    %v5703 = vpack.c.b16 %v5416, %v5409
    %v5704 = vpack.c.b16 %v5417, %v5410
    %v5705 = vpack.c.b16 %v5418, %v5411
    %v5706 = vpack.c.b16 %v5419, %v5412
    %v5707 = vpack.c.b16 %v5420, %v5413
    %v5708 = vpack.c.b16 %v5428, %v5421
    %v5709 = vpack.c.b16 %v5429, %v5422
    %v5710 = vpack.c.b16 %v5430, %v5423
    %v5711 = vpack.c.b16 %v5431, %v5424
    %v5712 = vpack.c.b16 %v5432, %v5425
    %v5713 = vpack.c.b16 %v5433, %v5426
    %v5714 = vpack.c.b16 %v5434, %v5427
    %v5715 = vpack.c.b16 %v5442, %v5435
    %v5716 = vpack.c.b16 %v5443, %v5436
    %v5717 = vpack.c.b16 %v5444, %v5437
    %v5718 = vpack.c.b16 %v5445, %v5438
    %v5719 = vpack.c.b16 %v5446, %v5439
    %v5720 = vpack.c.b16 %v5447, %v5440
    %v5721 = vpack.c.b16 %v5448, %v5441
    %v5722 = vpack.c.b16 %v5456, %v5449
    %v5723 = vpack.c.b16 %v5457, %v5450
    %v5724 = vpack.c.b16 %v5458, %v5451
    %v5725 = vpack.c.b16 %v5459, %v5452
    %v5726 = vpack.c.b16 %v5460, %v5453
    %v5727 = vpack.c.b16 %v5461, %v5454
    %v5728 = vpack.c.b16 %v5462, %v5455
    %v5729 = vpack.c.b16 %v5470, %v5463
    %v5730 = vpack.c.b16 %v5471, %v5464
    %v5731 = vpack.c.b16 %v5472, %v5465
    %v5732 = vpack.c.b16 %v5473, %v5466
    %v5733 = vpack.c.b16 %v5474, %v5467
    %v5734 = vpack.c.b16 %v5475, %v5468
    %v5735 = vpack.c.b16 %v5476, %v5469
    %v5736 = vpack.c.b16 %v5484, %v5477
    %v5737 = vpack.c.b16 %v5485, %v5478
    %v5738 = vpack.c.b16 %v5486, %v5479
    %v5739 = vpack.c.b16 %v5487, %v5480
    %v5740 = vpack.c.b16 %v5488, %v5481
    %v5741 = vpack.c.b16 %v5489, %v5482
    %v5742 = vpack.c.b16 %v5490, %v5483
    %v5743 = vpack.c.b16 %v5498, %v5491
    %v5744 = vpack.c.b16 %v5499, %v5492
    %v5745 = vpack.c.b16 %v5500, %v5493
    %v5746 = vpack.c.b16 %v5501, %v5494
    %v5747 = vpack.c.b16 %v5502, %v5495
    %v5748 = vpack.c.b16 %v5503, %v5496
    %v5749 = vpack.c.b16 %v5504, %v5497
    %v5750 = vpack.c.b16 %v5512, %v5505
    %v5751 = vpack.c.b16 %v5513, %v5506
    %v5752 = vpack.c.b16 %v5514, %v5507
    %v5753 = vpack.c.b16 %v5515, %v5508
    %v5754 = vpack.c.b16 %v5516, %v5509
    %v5755 = vpack.c.b16 %v5517, %v5510
    %v5756 = vpack.c.b16 %v5518, %v5511
    %v5757 = vpack.c.b16 %v5526, %v5519
    %v5758 = vpack.c.b16 %v5527, %v5520
    %v5759 = vpack.c.b16 %v5528, %v5521
    %v5760 = vpack.c.b16 %v5529, %v5522
    %v5761 = vpack.c.b16 %v5530, %v5523
    %v5762 = vpack.c.b16 %v5531, %v5524
    %v5763 = vpack.c.b16 %v5532, %v5525
    %v5764 = vpack.c.b16 %v5540, %v5533
    %v5765 = vpack.c.b16 %v5541, %v5534
    %v5766 = vpack.c.b16 %v5542, %v5535
    %v5767 = vpack.c.b16 %v5543, %v5536
    %v5768 = vpack.c.b16 %v5544, %v5537
    %v5769 = vpack.c.b16 %v5545, %v5538
    %v5770 = vpack.c.b16 %v5546, %v5539
    %v5771 = vpack.c.b16 %v5554, %v5547
    %v5772 = vpack.c.b16 %v5555, %v5548
    %v5773 = vpack.c.b16 %v5556, %v5549
    %v5774 = vpack.c.b16 %v5557, %v5550
    %v5775 = vpack.c.b16 %v5558, %v5551
    %v5776 = vpack.c.b16 %v5559, %v5552
    %v5777 = vpack.c.b16 %v5560, %v5553
    %v5778 = vpack.c.b16 %v5568, %v5561
    %v5779 = vpack.c.b16 %v5569, %v5562
    %v5780 = vpack.c.b16 %v5570, %v5563
    %v5781 = vpack.c.b16 %v5571, %v5564
    %v5782 = vpack.c.b16 %v5572, %v5565
    %v5783 = vpack.c.b16 %v5573, %v5566
    %v5784 = vpack.c.b16 %v5574, %v5567
    %v5785 = vpack.c.b16 %v5582, %v5575
    %v5786 = vpack.c.b16 %v5583, %v5576
    %v5787 = vpack.c.b16 %v5584, %v5577
    %v5788 = vpack.c.b16 %v5585, %v5578
    %v5789 = vpack.c.b16 %v5586, %v5579
    %v5790 = vpack.c.b16 %v5587, %v5580
    %v5791 = vpack.c.b16 %v5588, %v5581
    %v5792 = vpack.c.b16 %v5596, %v5589
    %v5793 = vpack.c.b16 %v5597, %v5590
    %v5794 = vpack.c.b16 %v5598, %v5591
    %v5795 = vpack.c.b16 %v5599, %v5592
    %v5796 = vpack.c.b16 %v5600, %v5593
    %v5797 = vpack.c.b16 %v5601, %v5594
    %v5798 = vpack.c.b16 %v5602, %v5595
    %v5996 = vsel %vm1415, %v2820, 0
    %5998 = vmatprep.subr.bf16.mxu0 %v5604
    %5999 = vmatpush1.bf16.msra.mxu0 %v5603
    %6000 = vmatprep.subr.bf16.mxu0 %v5611
    %6001 = vmatpush1.bf16.msra.mxu0 %v5610
    %6002 = vmatprep.subr.bf16.mxu0 %v5618
    %6003 = vmatpush1.bf16.msra.mxu0 %v5617
    %6004 = vmatprep.subr.bf16.mxu0 %v5625
    %6005 = vmatpush1.bf16.msra.mxu0 %v5624
    %6006 = vmatprep.subr.bf16.mxu0 %v5632
    %6007 = vmatpush1.bf16.msra.mxu0 %v5631
    %6008 = vmatprep.subr.bf16.mxu0 %v5639
    %6009 = vmatpush1.bf16.msra.mxu0 %v5638
    %6010 = vmatprep.subr.bf16.mxu0 %v5646
    %6011 = vmatpush1.bf16.msra.mxu0 %v5645
    %6012 = vmatprep.subr.bf16.mxu0 %v5653
    %6013 = vmatpush1.bf16.msra.mxu0 %v5652
    %6014 = vmatprep.subr.bf16.mxu0 %v5660
    %6015 = vmatpush1.bf16.msra.mxu0 %v5659
    %6016 = vmatprep.subr.bf16.mxu0 %v5667
    %6017 = vmatpush1.bf16.msra.mxu0 %v5666
    %6018 = vmatprep.subr.bf16.mxu0 %v5674
    %6019 = vmatpush1.bf16.msra.mxu0 %v5673
    %6020 = vmatprep.subr.bf16.mxu0 %v5681
    %6021 = vmatpush1.bf16.msra.mxu0 %v5680
    %6022 = vmatprep.subr.bf16.mxu0 %v5688
    %6023 = vmatpush1.bf16.msra.mxu0 %v5687
    %6024 = vmatprep.subr.bf16.mxu0 %v5695
    %6025 = vmatpush1.bf16.msra.mxu0 %v5694
    %6026 = vmatprep.subr.bf16.mxu0 %v5702
    %6027 = vmatpush1.bf16.msra.mxu0 %v5701
    %6028 = vmatprep.subr.bf16.mxu0 %v5709
    %6029 = vmatpush1.bf16.msra.mxu0 %v5708
    %6030 = vmatprep.mubr.bf16.mxu0 %v2818
    %6031 = vmatmul.mubr.bf16.gmra.mrb[0].mxu0 %v2817
    %v6032 = vpop.f32.mrb[0].mxu0
    %v6033 = vadd.f32 %v4371, %v6032
    %v6034 = vpop.f32.mrb[0].mxu0
    %v6035 = vadd.f32 %v4373, %v6034
    %v6036 = vpop.f32.mrb[0].mxu0
    %v6037 = vadd.f32 %v4375, %v6036
    %v6038 = vpop.f32.mrb[0].mxu0
    %v6039 = vadd.f32 %v4377, %v6038
    %6040 = vdwg.mxu0
    %6041 = vmatprep.subr.bf16.mxu0 %v5716
    %6042 = vmatpush1.bf16.msra.mxu0 %v5715
    %6043 = vmatprep.subr.bf16.mxu0 %v5723
    %6044 = vmatpush1.bf16.msra.mxu0 %v5722
    %6045 = vmatprep.subr.bf16.mxu0 %v5730
    %6046 = vmatpush1.bf16.msra.mxu0 %v5729
    %6047 = vmatprep.subr.bf16.mxu0 %v5737
    %6048 = vmatpush1.bf16.msra.mxu0 %v5736
    %6049 = vmatprep.subr.bf16.mxu0 %v5744
    %6050 = vmatpush1.bf16.msra.mxu0 %v5743
    %6051 = vmatprep.subr.bf16.mxu0 %v5751
    %6052 = vmatpush1.bf16.msra.mxu0 %v5750
    %6053 = vmatprep.subr.bf16.mxu0 %v5758
    %6054 = vmatpush1.bf16.msra.mxu0 %v5757
    %6055 = vmatprep.subr.bf16.mxu0 %v5765
    %6056 = vmatpush1.bf16.msra.mxu0 %v5764
    %6057 = vmatprep.subr.bf16.mxu0 %v5772
    %6058 = vmatpush1.bf16.msra.mxu0 %v5771
    %6059 = vmatprep.subr.bf16.mxu0 %v5779
    %6060 = vmatpush1.bf16.msra.mxu0 %v5778
    %6061 = vmatprep.subr.bf16.mxu0 %v5786
    %6062 = vmatpush1.bf16.msra.mxu0 %v5785
    %6063 = vmatprep.subr.bf16.mxu0 %v5793
    %6064 = vmatpush1.bf16.msra.mxu0 %v5792
    %6065 = vmatprep.subr.bf16.mxu0 0
    %6066 = vmatpush1.bf16.msra.mxu0 0
    %6067 = vmatprep.subr.bf16.mxu0 0
    %6068 = vmatpush1.bf16.msra.mxu0 0
    %6069 = vmatprep.subr.bf16.mxu0 0
    %6070 = vmatpush1.bf16.msra.mxu0 0
    %6071 = vmatprep.subr.bf16.mxu0 0
    %6072 = vmatpush1.bf16.msra.mxu0 0
    %6073 = vmatprep.mubr.bf16.mxu0 %v5996
    %6074 = vmatmul.mubr.bf16.gmra.mrb[0].mxu0 %v2819
    %v6075 = vpop.f32.mrb[0].mxu0
    %v6076 = vadd.f32 %v6033, %v6075
    %v6077 = vpop.f32.mrb[0].mxu0
    %v6078 = vadd.f32 %v6035, %v6077
    %v6079 = vpop.f32.mrb[0].mxu0
    %v6080 = vadd.f32 %v6037, %v6079
    %v6081 = vpop.f32.mrb[0].mxu0
    %v6082 = vadd.f32 %v6039, %v6081
    %6083 = vdwg.mxu0
    %6084 = vmatprep.subr.bf16.mxu0 %v5606
    %6085 = vmatpush1.bf16.msra.mxu0 %v5605
    %6086 = vmatprep.subr.bf16.mxu0 %v5613
    %6087 = vmatpush1.bf16.msra.mxu0 %v5612
    %6088 = vmatprep.subr.bf16.mxu0 %v5620
    %6089 = vmatpush1.bf16.msra.mxu0 %v5619
    %6090 = vmatprep.subr.bf16.mxu0 %v5627
    %6091 = vmatpush1.bf16.msra.mxu0 %v5626
    %6092 = vmatprep.subr.bf16.mxu0 %v5634
    %6093 = vmatpush1.bf16.msra.mxu0 %v5633
    %6094 = vmatprep.subr.bf16.mxu0 %v5641
    %6095 = vmatpush1.bf16.msra.mxu0 %v5640
    %6096 = vmatprep.subr.bf16.mxu0 %v5648
    %6097 = vmatpush1.bf16.msra.mxu0 %v5647
    %6098 = vmatprep.subr.bf16.mxu0 %v5655
    %6099 = vmatpush1.bf16.msra.mxu0 %v5654
    %6100 = vmatprep.subr.bf16.mxu0 %v5662
    %6101 = vmatpush1.bf16.msra.mxu0 %v5661
    %6102 = vmatprep.subr.bf16.mxu0 %v5669
    %6103 = vmatpush1.bf16.msra.mxu0 %v5668
    %6104 = vmatprep.subr.bf16.mxu0 %v5676
    %6105 = vmatpush1.bf16.msra.mxu0 %v5675
    %6106 = vmatprep.subr.bf16.mxu0 %v5683
    %6107 = vmatpush1.bf16.msra.mxu0 %v5682
    %6108 = vmatprep.subr.bf16.mxu0 %v5690
    %6109 = vmatpush1.bf16.msra.mxu0 %v5689
    %6110 = vmatprep.subr.bf16.mxu0 %v5697
    %6111 = vmatpush1.bf16.msra.mxu0 %v5696
    %6112 = vmatprep.subr.bf16.mxu0 %v5704
    %6113 = vmatpush1.bf16.msra.mxu0 %v5703
    %6114 = vmatprep.subr.bf16.mxu0 %v5711
    %6115 = vmatpush1.bf16.msra.mxu0 %v5710
    %6116 = vmatprep.mubr.bf16.mxu0 %v2818
    %6117 = vmatmul.mubr.bf16.gmra.mrb[0].mxu0 %v2817
    %v6118 = vpop.f32.mrb[0].mxu0
    %v6119 = vadd.f32 %v4457, %v6118
    %v6120 = vpop.f32.mrb[0].mxu0
    %v6121 = vadd.f32 %v4459, %v6120
    %v6122 = vpop.f32.mrb[0].mxu0
    %v6123 = vadd.f32 %v4461, %v6122
    %v6124 = vpop.f32.mrb[0].mxu0
    %v6125 = vadd.f32 %v4463, %v6124
    %6126 = vdwg.mxu0
    %6127 = vmatprep.subr.bf16.mxu0 %v5718
    %6128 = vmatpush1.bf16.msra.mxu0 %v5717
    %6129 = vmatprep.subr.bf16.mxu0 %v5725
    %6130 = vmatpush1.bf16.msra.mxu0 %v5724
    %6131 = vmatprep.subr.bf16.mxu0 %v5732
    %6132 = vmatpush1.bf16.msra.mxu0 %v5731
    %6133 = vmatprep.subr.bf16.mxu0 %v5739
    %6134 = vmatpush1.bf16.msra.mxu0 %v5738
    %6135 = vmatprep.subr.bf16.mxu0 %v5746
    %6136 = vmatpush1.bf16.msra.mxu0 %v5745
    %6137 = vmatprep.subr.bf16.mxu0 %v5753
    %6138 = vmatpush1.bf16.msra.mxu0 %v5752
    %6139 = vmatprep.subr.bf16.mxu0 %v5760
    %6140 = vmatpush1.bf16.msra.mxu0 %v5759
    %6141 = vmatprep.subr.bf16.mxu0 %v5767
    %6142 = vmatpush1.bf16.msra.mxu0 %v5766
    %6143 = vmatprep.subr.bf16.mxu0 %v5774
    %6144 = vmatpush1.bf16.msra.mxu0 %v5773
    %6145 = vmatprep.subr.bf16.mxu0 %v5781
    %6146 = vmatpush1.bf16.msra.mxu0 %v5780
    %6147 = vmatprep.subr.bf16.mxu0 %v5788
    %6148 = vmatpush1.bf16.msra.mxu0 %v5787
    %6149 = vmatprep.subr.bf16.mxu0 %v5795
    %6150 = vmatpush1.bf16.msra.mxu0 %v5794
    %6151 = vmatprep.subr.bf16.mxu0 0
    %6152 = vmatpush1.bf16.msra.mxu0 0
    %6153 = vmatprep.subr.bf16.mxu0 0
    %6154 = vmatpush1.bf16.msra.mxu0 0
    %6155 = vmatprep.subr.bf16.mxu0 0
    %6156 = vmatpush1.bf16.msra.mxu0 0
    %6157 = vmatprep.subr.bf16.mxu0 0
    %6158 = vmatpush1.bf16.msra.mxu0 0
    %6159 = vmatprep.mubr.bf16.mxu0 %v5996
    %6160 = vmatmul.mubr.bf16.gmra.mrb[0].mxu0 %v2819
    %v6161 = vpop.f32.mrb[0].mxu0
    %v6162 = vadd.f32 %v6119, %v6161
    %v6163 = vpop.f32.mrb[0].mxu0
    %v6164 = vadd.f32 %v6121, %v6163
    %v6165 = vpop.f32.mrb[0].mxu0
    %v6166 = vadd.f32 %v6123, %v6165
    %v6167 = vpop.f32.mrb[0].mxu0
    %v6168 = vadd.f32 %v6125, %v6167
    %6169 = vdwg.mxu0
    %6170 = vmatprep.subr.bf16.mxu0 %v5608
    %6171 = vmatpush1.bf16.msra.mxu0 %v5607
    %6172 = vmatprep.subr.bf16.mxu0 %v5615
    %6173 = vmatpush1.bf16.msra.mxu0 %v5614
    %6174 = vmatprep.subr.bf16.mxu0 %v5622
    %6175 = vmatpush1.bf16.msra.mxu0 %v5621
    %6176 = vmatprep.subr.bf16.mxu0 %v5629
    %6177 = vmatpush1.bf16.msra.mxu0 %v5628
    %6178 = vmatprep.subr.bf16.mxu0 %v5636
    %6179 = vmatpush1.bf16.msra.mxu0 %v5635
    %6180 = vmatprep.subr.bf16.mxu0 %v5643
    %6181 = vmatpush1.bf16.msra.mxu0 %v5642
    %6182 = vmatprep.subr.bf16.mxu0 %v5650
    %6183 = vmatpush1.bf16.msra.mxu0 %v5649
    %6184 = vmatprep.subr.bf16.mxu0 %v5657
    %6185 = vmatpush1.bf16.msra.mxu0 %v5656
    %6186 = vmatprep.subr.bf16.mxu0 %v5664
    %6187 = vmatpush1.bf16.msra.mxu0 %v5663
    %6188 = vmatprep.subr.bf16.mxu0 %v5671
    %6189 = vmatpush1.bf16.msra.mxu0 %v5670
    %6190 = vmatprep.subr.bf16.mxu0 %v5678
    %6191 = vmatpush1.bf16.msra.mxu0 %v5677
    %6192 = vmatprep.subr.bf16.mxu0 %v5685
    %6193 = vmatpush1.bf16.msra.mxu0 %v5684
    %6194 = vmatprep.subr.bf16.mxu0 %v5692
    %6195 = vmatpush1.bf16.msra.mxu0 %v5691
    %6196 = vmatprep.subr.bf16.mxu0 %v5699
    %6197 = vmatpush1.bf16.msra.mxu0 %v5698
    %6198 = vmatprep.subr.bf16.mxu0 %v5706
    %6199 = vmatpush1.bf16.msra.mxu0 %v5705
    %6200 = vmatprep.subr.bf16.mxu0 %v5713
    %6201 = vmatpush1.bf16.msra.mxu0 %v5712
    %6202 = vmatprep.mubr.bf16.mxu0 %v2818
    %6203 = vmatmul.mubr.bf16.gmra.mrb[0].mxu0 %v2817
    %v6204 = vpop.f32.mrb[0].mxu0
    %v6205 = vadd.f32 %v4543, %v6204
    %v6206 = vpop.f32.mrb[0].mxu0
    %v6207 = vadd.f32 %v4545, %v6206
    %v6208 = vpop.f32.mrb[0].mxu0
    %v6209 = vadd.f32 %v4547, %v6208
    %v6210 = vpop.f32.mrb[0].mxu0
    %v6211 = vadd.f32 %v4549, %v6210
    %6212 = vdwg.mxu0
    %6213 = vmatprep.subr.bf16.mxu0 %v5720
    %6214 = vmatpush1.bf16.msra.mxu0 %v5719
    %6215 = vmatprep.subr.bf16.mxu0 %v5727
    %6216 = vmatpush1.bf16.msra.mxu0 %v5726
    %6217 = vmatprep.subr.bf16.mxu0 %v5734
    %6218 = vmatpush1.bf16.msra.mxu0 %v5733
    %6219 = vmatprep.subr.bf16.mxu0 %v5741
    %6220 = vmatpush1.bf16.msra.mxu0 %v5740
    %6221 = vmatprep.subr.bf16.mxu0 %v5748
    %6222 = vmatpush1.bf16.msra.mxu0 %v5747
    %6223 = vmatprep.subr.bf16.mxu0 %v5755
    %6224 = vmatpush1.bf16.msra.mxu0 %v5754
    %6225 = vmatprep.subr.bf16.mxu0 %v5762
    %6226 = vmatpush1.bf16.msra.mxu0 %v5761
    %6227 = vmatprep.subr.bf16.mxu0 %v5769
    %6228 = vmatpush1.bf16.msra.mxu0 %v5768
    %6229 = vmatprep.subr.bf16.mxu0 %v5776
    %6230 = vmatpush1.bf16.msra.mxu0 %v5775
    %6231 = vmatprep.subr.bf16.mxu0 %v5783
    %6232 = vmatpush1.bf16.msra.mxu0 %v5782
    %6233 = vmatprep.subr.bf16.mxu0 %v5790
    %6234 = vmatpush1.bf16.msra.mxu0 %v5789
    %6235 = vmatprep.subr.bf16.mxu0 %v5797
    %6236 = vmatpush1.bf16.msra.mxu0 %v5796
    %6237 = vmatprep.subr.bf16.mxu0 0
    %6238 = vmatpush1.bf16.msra.mxu0 0
    %6239 = vmatprep.subr.bf16.mxu0 0
    %6240 = vmatpush1.bf16.msra.mxu0 0
    %6241 = vmatprep.subr.bf16.mxu0 0
    %6242 = vmatpush1.bf16.msra.mxu0 0
    %6243 = vmatprep.subr.bf16.mxu0 0
    %6244 = vmatpush1.bf16.msra.mxu0 0
    %6245 = vmatprep.mubr.bf16.mxu0 %v5996
    %6246 = vmatmul.mubr.bf16.gmra.mrb[0].mxu0 %v2819
    %v6247 = vpop.f32.mrb[0].mxu0
    %v6248 = vadd.f32 %v6205, %v6247
    %v6249 = vpop.f32.mrb[0].mxu0
    %v6250 = vadd.f32 %v6207, %v6249
    %v6251 = vpop.f32.mrb[0].mxu0
    %v6252 = vadd.f32 %v6209, %v6251
    %v6253 = vpop.f32.mrb[0].mxu0
    %v6254 = vadd.f32 %v6211, %v6253
    %6255 = vdwg.mxu0
    %6256 = vmatprep.subr.bf16.mxu0 0
    %6257 = vmatpush1.bf16.msra.mxu0 %v5609
    %6258 = vmatprep.subr.bf16.mxu0 0
    %6259 = vmatpush1.bf16.msra.mxu0 %v5616
    %6260 = vmatprep.subr.bf16.mxu0 0
    %6261 = vmatpush1.bf16.msra.mxu0 %v5623
    %6262 = vmatprep.subr.bf16.mxu0 0
    %6263 = vmatpush1.bf16.msra.mxu0 %v5630
    %6264 = vmatprep.subr.bf16.mxu0 0
    %6265 = vmatpush1.bf16.msra.mxu0 %v5637
    %6266 = vmatprep.subr.bf16.mxu0 0
    %6267 = vmatpush1.bf16.msra.mxu0 %v5644
    %6268 = vmatprep.subr.bf16.mxu0 0
    %6269 = vmatpush1.bf16.msra.mxu0 %v5651
    %6270 = vmatprep.subr.bf16.mxu0 0
    %6271 = vmatpush1.bf16.msra.mxu0 %v5658
    %6272 = vmatprep.subr.bf16.mxu0 0
    %6273 = vmatpush1.bf16.msra.mxu0 %v5665
    %6274 = vmatprep.subr.bf16.mxu0 0
    %6275 = vmatpush1.bf16.msra.mxu0 %v5672
    %6276 = vmatprep.subr.bf16.mxu0 0
    %6277 = vmatpush1.bf16.msra.mxu0 %v5679
    %6278 = vmatprep.subr.bf16.mxu0 0
    %6279 = vmatpush1.bf16.msra.mxu0 %v5686
    %6280 = vmatprep.subr.bf16.mxu0 0
    %6281 = vmatpush1.bf16.msra.mxu0 %v5693
    %6282 = vmatprep.subr.bf16.mxu0 0
    %6283 = vmatpush1.bf16.msra.mxu0 %v5700
    %6284 = vmatprep.subr.bf16.mxu0 0
    %6285 = vmatpush1.bf16.msra.mxu0 %v5707
    %6286 = vmatprep.subr.bf16.mxu0 0
    %6287 = vmatpush1.bf16.msra.mxu0 %v5714
    %6288 = vmatprep.mubr.bf16.mxu0 %v2818
    %6289 = vmatmul.mubr.bf16.gmra.mrb[0].mxu0 %v2817
    %v6290 = vpop.f32.mrb[0].mxu0
    %v6291 = vadd.f32 %v4627, %v6290
    %v6292 = vpop.f32.mrb[0].mxu0
    %v6293 = vpop.f32.mrb[0].mxu0
    %v6294 = vadd.f32 %v4630, %v6293
    %v6295 = vpop.f32.mrb[0].mxu0
    %6296 = vdwg.mxu0
    %6297 = vmatprep.subr.bf16.mxu0 0
    %6298 = vmatpush1.bf16.msra.mxu0 %v5721
    %6299 = vmatprep.subr.bf16.mxu0 0
    %6300 = vmatpush1.bf16.msra.mxu0 %v5728
    %6301 = vmatprep.subr.bf16.mxu0 0
    %6302 = vmatpush1.bf16.msra.mxu0 %v5735
    %6303 = vmatprep.subr.bf16.mxu0 0
    %6304 = vmatpush1.bf16.msra.mxu0 %v5742
    %6305 = vmatprep.subr.bf16.mxu0 0
    %6306 = vmatpush1.bf16.msra.mxu0 %v5749
    %6307 = vmatprep.subr.bf16.mxu0 0
    %6308 = vmatpush1.bf16.msra.mxu0 %v5756
    %6309 = vmatprep.subr.bf16.mxu0 0
    %6310 = vmatpush1.bf16.msra.mxu0 %v5763
    %6311 = vmatprep.subr.bf16.mxu0 0
    %6312 = vmatpush1.bf16.msra.mxu0 %v5770
    %6313 = vmatprep.subr.bf16.mxu0 0
    %6314 = vmatpush1.bf16.msra.mxu0 %v5777
    %6315 = vmatprep.subr.bf16.mxu0 0
    %6316 = vmatpush1.bf16.msra.mxu0 %v5784
    %6317 = vmatprep.subr.bf16.mxu0 0
    %6318 = vmatpush1.bf16.msra.mxu0 %v5791
    %6319 = vmatprep.subr.bf16.mxu0 0
    %6320 = vmatpush1.bf16.msra.mxu0 %v5798
    %6321 = vmatprep.subr.bf16.mxu0 0
    %6322 = vmatpush1.bf16.msra.mxu0 0
    %6323 = vmatprep.subr.bf16.mxu0 0
    %6324 = vmatpush1.bf16.msra.mxu0 0
    %6325 = vmatprep.subr.bf16.mxu0 0
    %6326 = vmatpush1.bf16.msra.mxu0 0
    %6327 = vmatprep.subr.bf16.mxu0 0
    %6328 = vmatpush1.bf16.msra.mxu0 0
    %6329 = vmatprep.mubr.bf16.mxu0 %v5996
    %6330 = vmatmul.mubr.bf16.gmra.mrb[0].mxu0 %v2819
    %v6331 = vpop.f32.mrb[0].mxu0
    %v6332 = vadd.f32 %v6291, %v6331
    %v6333 = vpop.f32.mrb[0].mxu0
    %v6334 = vpop.f32.mrb[0].mxu0
    %v6335 = vadd.f32 %v6294, %v6334
    %v6336 = vpop.f32.mrb[0].mxu0
    %6337 = vdwg.mxu0
    %6338 = vmatprep.subr.bf16.mxu0 %v5604
    %6339 = vmatpush1.bf16.msra.mxu0 %v5603
    %6340 = vmatprep.subr.bf16.mxu0 %v5611
    %6341 = vmatpush1.bf16.msra.mxu0 %v5610
    %6342 = vmatprep.subr.bf16.mxu0 %v5618
    %6343 = vmatpush1.bf16.msra.mxu0 %v5617
    %6344 = vmatprep.subr.bf16.mxu0 %v5625
    %6345 = vmatpush1.bf16.msra.mxu0 %v5624
    %6346 = vmatprep.subr.bf16.mxu0 %v5632
    %6347 = vmatpush1.bf16.msra.mxu0 %v5631
    %6348 = vmatprep.subr.bf16.mxu0 %v5639
    %6349 = vmatpush1.bf16.msra.mxu0 %v5638
    %6350 = vmatprep.subr.bf16.mxu0 %v5646
    %6351 = vmatpush1.bf16.msra.mxu0 %v5645
    %6352 = vmatprep.subr.bf16.mxu0 %v5653
    %6353 = vmatpush1.bf16.msra.mxu0 %v5652
    %6354 = vmatprep.subr.bf16.mxu0 %v5660
    %6355 = vmatpush1.bf16.msra.mxu0 %v5659
    %6356 = vmatprep.subr.bf16.mxu0 %v5667
    %6357 = vmatpush1.bf16.msra.mxu0 %v5666
    %6358 = vmatprep.subr.bf16.mxu0 %v5674
    %6359 = vmatpush1.bf16.msra.mxu0 %v5673
    %6360 = vmatprep.subr.bf16.mxu0 %v5681
    %6361 = vmatpush1.bf16.msra.mxu0 %v5680
    %6362 = vmatprep.subr.bf16.mxu0 %v5688
    %6363 = vmatpush1.bf16.msra.mxu0 %v5687
    %6364 = vmatprep.subr.bf16.mxu0 %v5695
    %6365 = vmatpush1.bf16.msra.mxu0 %v5694
    %6366 = vmatprep.subr.bf16.mxu0 %v5702
    %6367 = vmatpush1.bf16.msra.mxu0 %v5701
    %6368 = vmatprep.subr.bf16.mxu0 %v5709
    %6369 = vmatpush1.bf16.msra.mxu0 %v5708
    %6370 = vmatprep.mubr.bf16.mxu0 %v2822
    %6371 = vmatmul.mubr.bf16.gmra.mrb[0].mxu0 %v2821
    %v6372 = vpop.f32.mrb[0].mxu0
    %v6373 = vadd.f32 %v4725, %v6372
    %v6374 = vpop.f32.mrb[0].mxu0
    %v6375 = vadd.f32 %v4727, %v6374
    %v6376 = vpop.f32.mrb[0].mxu0
    %v6377 = vadd.f32 %v4729, %v6376
    %v6378 = vpop.f32.mrb[0].mxu0
    %v6379 = vadd.f32 %v4731, %v6378
    %6380 = vdwg.mxu0
    %6381 = vmatprep.subr.bf16.mxu0 %v5716
    %6382 = vmatpush1.bf16.msra.mxu0 %v5715
    %6383 = vmatprep.subr.bf16.mxu0 %v5723
    %6384 = vmatpush1.bf16.msra.mxu0 %v5722
    %6385 = vmatprep.subr.bf16.mxu0 %v5730
    %6386 = vmatpush1.bf16.msra.mxu0 %v5729
    %6387 = vmatprep.subr.bf16.mxu0 %v5737
    %6388 = vmatpush1.bf16.msra.mxu0 %v5736
    %6389 = vmatprep.subr.bf16.mxu0 %v5744
    %6390 = vmatpush1.bf16.msra.mxu0 %v5743
    %6391 = vmatprep.subr.bf16.mxu0 %v5751
    %6392 = vmatpush1.bf16.msra.mxu0 %v5750
    %6393 = vmatprep.subr.bf16.mxu0 %v5758
    %6394 = vmatpush1.bf16.msra.mxu0 %v5757
    %6395 = vmatprep.subr.bf16.mxu0 %v5765
    %6396 = vmatpush1.bf16.msra.mxu0 %v5764
    %6397 = vmatprep.subr.bf16.mxu0 %v5772
    %6398 = vmatpush1.bf16.msra.mxu0 %v5771
    %6399 = vmatprep.subr.bf16.mxu0 %v5779
    %6400 = vmatpush1.bf16.msra.mxu0 %v5778
    %6401 = vmatprep.subr.bf16.mxu0 %v5786
    %6402 = vmatpush1.bf16.msra.mxu0 %v5785
    %6403 = vmatprep.subr.bf16.mxu0 %v5793
    %6404 = vmatpush1.bf16.msra.mxu0 %v5792
    %6405 = vmatprep.subr.bf16.mxu0 0
    %6406 = vmatpush1.bf16.msra.mxu0 0
    %6407 = vmatprep.subr.bf16.mxu0 0
    %6408 = vmatpush1.bf16.msra.mxu0 0
    %6409 = vmatprep.subr.bf16.mxu0 0
    %6410 = vmatpush1.bf16.msra.mxu0 0
    %6411 = vmatprep.subr.bf16.mxu0 0
    %6412 = vmatpush1.bf16.msra.mxu0 0
    %6413 = vmatprep.mubr.bf16.mxu0 %v4291
    %6414 = vmatmul.mubr.bf16.gmra.mrb[0].mxu0 %v2823
    %v6415 = vpop.f32.mrb[0].mxu0
    %v6416 = vadd.f32 %v6373, %v6415
    %v6417 = vpop.f32.mrb[0].mxu0
    %v6418 = vadd.f32 %v6375, %v6417
    %v6419 = vpop.f32.mrb[0].mxu0
    %v6420 = vadd.f32 %v6377, %v6419
    %v6421 = vpop.f32.mrb[0].mxu0
    %v6422 = vadd.f32 %v6379, %v6421
    %6423 = vdwg.mxu0
    %6424 = vmatprep.subr.bf16.mxu0 %v5606
    %6425 = vmatpush1.bf16.msra.mxu0 %v5605
    %6426 = vmatprep.subr.bf16.mxu0 %v5613
    %6427 = vmatpush1.bf16.msra.mxu0 %v5612
    %6428 = vmatprep.subr.bf16.mxu0 %v5620
    %6429 = vmatpush1.bf16.msra.mxu0 %v5619
    %6430 = vmatprep.subr.bf16.mxu0 %v5627
    %6431 = vmatpush1.bf16.msra.mxu0 %v5626
    %6432 = vmatprep.subr.bf16.mxu0 %v5634
    %6433 = vmatpush1.bf16.msra.mxu0 %v5633
    %6434 = vmatprep.subr.bf16.mxu0 %v5641
    %6435 = vmatpush1.bf16.msra.mxu0 %v5640
    %6436 = vmatprep.subr.bf16.mxu0 %v5648
    %6437 = vmatpush1.bf16.msra.mxu0 %v5647
    %6438 = vmatprep.subr.bf16.mxu0 %v5655
    %6439 = vmatpush1.bf16.msra.mxu0 %v5654
    %6440 = vmatprep.subr.bf16.mxu0 %v5662
    %6441 = vmatpush1.bf16.msra.mxu0 %v5661
    %6442 = vmatprep.subr.bf16.mxu0 %v5669
    %6443 = vmatpush1.bf16.msra.mxu0 %v5668
    %6444 = vmatprep.subr.bf16.mxu0 %v5676
    %6445 = vmatpush1.bf16.msra.mxu0 %v5675
    %6446 = vmatprep.subr.bf16.mxu0 %v5683
    %6447 = vmatpush1.bf16.msra.mxu0 %v5682
    %6448 = vmatprep.subr.bf16.mxu0 %v5690
    %6449 = vmatpush1.bf16.msra.mxu0 %v5689
    %6450 = vmatprep.subr.bf16.mxu0 %v5697
    %6451 = vmatpush1.bf16.msra.mxu0 %v5696
    %6452 = vmatprep.subr.bf16.mxu0 %v5704
    %6453 = vmatpush1.bf16.msra.mxu0 %v5703
    %6454 = vmatprep.subr.bf16.mxu0 %v5711
    %6455 = vmatpush1.bf16.msra.mxu0 %v5710
    %6456 = vmatprep.mubr.bf16.mxu0 %v2822
    %6457 = vmatmul.mubr.bf16.gmra.mrb[0].mxu0 %v2821
    %v6458 = vpop.f32.mrb[0].mxu0
    %v6459 = vadd.f32 %v4811, %v6458
    %v6460 = vpop.f32.mrb[0].mxu0
    %v6461 = vadd.f32 %v4813, %v6460
    %v6462 = vpop.f32.mrb[0].mxu0
    %v6463 = vadd.f32 %v4815, %v6462
    %v6464 = vpop.f32.mrb[0].mxu0
    %v6465 = vadd.f32 %v4817, %v6464
    %6466 = vdwg.mxu0
    %6467 = vmatprep.subr.bf16.mxu0 %v5718
    %6468 = vmatpush1.bf16.msra.mxu0 %v5717
    %6469 = vmatprep.subr.bf16.mxu0 %v5725
    %6470 = vmatpush1.bf16.msra.mxu0 %v5724
    %6471 = vmatprep.subr.bf16.mxu0 %v5732
    %6472 = vmatpush1.bf16.msra.mxu0 %v5731
    %6473 = vmatprep.subr.bf16.mxu0 %v5739
    %6474 = vmatpush1.bf16.msra.mxu0 %v5738
    %6475 = vmatprep.subr.bf16.mxu0 %v5746
    %6476 = vmatpush1.bf16.msra.mxu0 %v5745
    %6477 = vmatprep.subr.bf16.mxu0 %v5753
    %6478 = vmatpush1.bf16.msra.mxu0 %v5752
    %6479 = vmatprep.subr.bf16.mxu0 %v5760
    %6480 = vmatpush1.bf16.msra.mxu0 %v5759
    %6481 = vmatprep.subr.bf16.mxu0 %v5767
    %6482 = vmatpush1.bf16.msra.mxu0 %v5766
    %6483 = vmatprep.subr.bf16.mxu0 %v5774
    %6484 = vmatpush1.bf16.msra.mxu0 %v5773
    %6485 = vmatprep.subr.bf16.mxu0 %v5781
    %6486 = vmatpush1.bf16.msra.mxu0 %v5780
    %6487 = vmatprep.subr.bf16.mxu0 %v5788
    %6488 = vmatpush1.bf16.msra.mxu0 %v5787
    %6489 = vmatprep.subr.bf16.mxu0 %v5795
    %6490 = vmatpush1.bf16.msra.mxu0 %v5794
    %6491 = vmatprep.subr.bf16.mxu0 0
    %6492 = vmatpush1.bf16.msra.mxu0 0
    %6493 = vmatprep.subr.bf16.mxu0 0
    %6494 = vmatpush1.bf16.msra.mxu0 0
    %6495 = vmatprep.subr.bf16.mxu0 0
    %6496 = vmatpush1.bf16.msra.mxu0 0
    %6497 = vmatprep.subr.bf16.mxu0 0
    %6498 = vmatpush1.bf16.msra.mxu0 0
    %6499 = vmatprep.mubr.bf16.mxu0 %v4291
    %6500 = vmatmul.mubr.bf16.gmra.mrb[0].mxu0 %v2823
    %v6501 = vpop.f32.mrb[0].mxu0
    %v6502 = vadd.f32 %v6459, %v6501
    %v6503 = vpop.f32.mrb[0].mxu0
    %v6504 = vadd.f32 %v6461, %v6503
    %v6505 = vpop.f32.mrb[0].mxu0
    %v6506 = vadd.f32 %v6463, %v6505
    %v6507 = vpop.f32.mrb[0].mxu0
    %v6508 = vadd.f32 %v6465, %v6507
    %6509 = vdwg.mxu0
    %6510 = vmatprep.subr.bf16.mxu0 %v5608
    %6511 = vmatpush1.bf16.msra.mxu0 %v5607
    %6512 = vmatprep.subr.bf16.mxu0 %v5615
    %6513 = vmatpush1.bf16.msra.mxu0 %v5614
    %6514 = vmatprep.subr.bf16.mxu0 %v5622
    %6515 = vmatpush1.bf16.msra.mxu0 %v5621
    %6516 = vmatprep.subr.bf16.mxu0 %v5629
    %6517 = vmatpush1.bf16.msra.mxu0 %v5628
    %6518 = vmatprep.subr.bf16.mxu0 %v5636
    %6519 = vmatpush1.bf16.msra.mxu0 %v5635
    %6520 = vmatprep.subr.bf16.mxu0 %v5643
    %6521 = vmatpush1.bf16.msra.mxu0 %v5642
    %6522 = vmatprep.subr.bf16.mxu0 %v5650
    %6523 = vmatpush1.bf16.msra.mxu0 %v5649
    %6524 = vmatprep.subr.bf16.mxu0 %v5657
    %6525 = vmatpush1.bf16.msra.mxu0 %v5656
    %6526 = vmatprep.subr.bf16.mxu0 %v5664
    %6527 = vmatpush1.bf16.msra.mxu0 %v5663
    %6528 = vmatprep.subr.bf16.mxu0 %v5671
    %6529 = vmatpush1.bf16.msra.mxu0 %v5670
    %6530 = vmatprep.subr.bf16.mxu0 %v5678
    %6531 = vmatpush1.bf16.msra.mxu0 %v5677
    %6532 = vmatprep.subr.bf16.mxu0 %v5685
    %6533 = vmatpush1.bf16.msra.mxu0 %v5684
    %6534 = vmatprep.subr.bf16.mxu0 %v5692
    %6535 = vmatpush1.bf16.msra.mxu0 %v5691
    %6536 = vmatprep.subr.bf16.mxu0 %v5699
    %6537 = vmatpush1.bf16.msra.mxu0 %v5698
    %6538 = vmatprep.subr.bf16.mxu0 %v5706
    %6539 = vmatpush1.bf16.msra.mxu0 %v5705
    %6540 = vmatprep.subr.bf16.mxu0 %v5713
    %6541 = vmatpush1.bf16.msra.mxu0 %v5712
    %6542 = vmatprep.mubr.bf16.mxu0 %v2822
    %6543 = vmatmul.mubr.bf16.gmra.mrb[0].mxu0 %v2821
    %v6544 = vpop.f32.mrb[0].mxu0
    %v6545 = vadd.f32 %v4897, %v6544
    %v6546 = vpop.f32.mrb[0].mxu0
    %v6547 = vadd.f32 %v4899, %v6546
    %v6548 = vpop.f32.mrb[0].mxu0
    %v6549 = vadd.f32 %v4901, %v6548
    %v6550 = vpop.f32.mrb[0].mxu0
    %v6551 = vadd.f32 %v4903, %v6550
    %6552 = vdwg.mxu0
    %6553 = vmatprep.subr.bf16.mxu0 %v5720
    %6554 = vmatpush1.bf16.msra.mxu0 %v5719
    %6555 = vmatprep.subr.bf16.mxu0 %v5727
    %6556 = vmatpush1.bf16.msra.mxu0 %v5726
    %6557 = vmatprep.subr.bf16.mxu0 %v5734
    %6558 = vmatpush1.bf16.msra.mxu0 %v5733
    %6559 = vmatprep.subr.bf16.mxu0 %v5741
    %6560 = vmatpush1.bf16.msra.mxu0 %v5740
    %6561 = vmatprep.subr.bf16.mxu0 %v5748
    %6562 = vmatpush1.bf16.msra.mxu0 %v5747
    %6563 = vmatprep.subr.bf16.mxu0 %v5755
    %6564 = vmatpush1.bf16.msra.mxu0 %v5754
    %6565 = vmatprep.subr.bf16.mxu0 %v5762
    %6566 = vmatpush1.bf16.msra.mxu0 %v5761
    %6567 = vmatprep.subr.bf16.mxu0 %v5769
    %6568 = vmatpush1.bf16.msra.mxu0 %v5768
    %6569 = vmatprep.subr.bf16.mxu0 %v5776
    %6570 = vmatpush1.bf16.msra.mxu0 %v5775
    %6571 = vmatprep.subr.bf16.mxu0 %v5783
    %6572 = vmatpush1.bf16.msra.mxu0 %v5782
    %6573 = vmatprep.subr.bf16.mxu0 %v5790
    %6574 = vmatpush1.bf16.msra.mxu0 %v5789
    %6575 = vmatprep.subr.bf16.mxu0 %v5797
    %6576 = vmatpush1.bf16.msra.mxu0 %v5796
    %6577 = vmatprep.subr.bf16.mxu0 0
    %6578 = vmatpush1.bf16.msra.mxu0 0
    %6579 = vmatprep.subr.bf16.mxu0 0
    %6580 = vmatpush1.bf16.msra.mxu0 0
    %6581 = vmatprep.subr.bf16.mxu0 0
    %6582 = vmatpush1.bf16.msra.mxu0 0
    %6583 = vmatprep.subr.bf16.mxu0 0
    %6584 = vmatpush1.bf16.msra.mxu0 0
    %6585 = vmatprep.mubr.bf16.mxu0 %v4291
    %6586 = vmatmul.mubr.bf16.gmra.mrb[0].mxu0 %v2823
    %v6587 = vpop.f32.mrb[0].mxu0
    %v6588 = vadd.f32 %v6545, %v6587
    %v6589 = vpop.f32.mrb[0].mxu0
    %v6590 = vadd.f32 %v6547, %v6589
    %v6591 = vpop.f32.mrb[0].mxu0
    %v6592 = vadd.f32 %v6549, %v6591
    %v6593 = vpop.f32.mrb[0].mxu0
    %v6594 = vadd.f32 %v6551, %v6593
    %6595 = vdwg.mxu0
    %6596 = vmatprep.subr.bf16.mxu0 0
    %6597 = vmatpush1.bf16.msra.mxu0 %v5609
    %6598 = vmatprep.subr.bf16.mxu0 0
    %6599 = vmatpush1.bf16.msra.mxu0 %v5616
    %6600 = vmatprep.subr.bf16.mxu0 0
    %6601 = vmatpush1.bf16.msra.mxu0 %v5623
    %6602 = vmatprep.subr.bf16.mxu0 0
    %6603 = vmatpush1.bf16.msra.mxu0 %v5630
    %6604 = vmatprep.subr.bf16.mxu0 0
    %6605 = vmatpush1.bf16.msra.mxu0 %v5637
    %6606 = vmatprep.subr.bf16.mxu0 0
    %6607 = vmatpush1.bf16.msra.mxu0 %v5644
    %6608 = vmatprep.subr.bf16.mxu0 0
    %6609 = vmatpush1.bf16.msra.mxu0 %v5651
    %6610 = vmatprep.subr.bf16.mxu0 0
    %6611 = vmatpush1.bf16.msra.mxu0 %v5658
    %6612 = vmatprep.subr.bf16.mxu0 0
    %6613 = vmatpush1.bf16.msra.mxu0 %v5665
    %6614 = vmatprep.subr.bf16.mxu0 0
    %6615 = vmatpush1.bf16.msra.mxu0 %v5672
    %6616 = vmatprep.subr.bf16.mxu0 0
    %6617 = vmatpush1.bf16.msra.mxu0 %v5679
    %6618 = vmatprep.subr.bf16.mxu0 0
    %6619 = vmatpush1.bf16.msra.mxu0 %v5686
    %6620 = vmatprep.subr.bf16.mxu0 0
    %6621 = vmatpush1.bf16.msra.mxu0 %v5693
    %6622 = vmatprep.subr.bf16.mxu0 0
    %6623 = vmatpush1.bf16.msra.mxu0 %v5700
    %6624 = vmatprep.subr.bf16.mxu0 0
    %6625 = vmatpush1.bf16.msra.mxu0 %v5707
    %6626 = vmatprep.subr.bf16.mxu0 0
    %6627 = vmatpush1.bf16.msra.mxu0 %v5714
    %6628 = vmatprep.mubr.bf16.mxu0 %v2822
    %6629 = vmatmul.mubr.bf16.gmra.mrb[0].mxu0 %v2821
    %v6630 = vpop.f32.mrb[0].mxu0
    %v6631 = vadd.f32 %v4981, %v6630
    %v6632 = vpop.f32.mrb[0].mxu0
    %v6633 = vpop.f32.mrb[0].mxu0
    %v6634 = vadd.f32 %v4984, %v6633
    %v6635 = vpop.f32.mrb[0].mxu0
    %6636 = vdwg.mxu0
    %6637 = vmatprep.subr.bf16.mxu0 0
    %6638 = vmatpush1.bf16.msra.mxu0 %v5721
    %6639 = vmatprep.subr.bf16.mxu0 0
    %6640 = vmatpush1.bf16.msra.mxu0 %v5728
    %6641 = vmatprep.subr.bf16.mxu0 0
    %6642 = vmatpush1.bf16.msra.mxu0 %v5735
    %6643 = vmatprep.subr.bf16.mxu0 0
    %6644 = vmatpush1.bf16.msra.mxu0 %v5742
    %6645 = vmatprep.subr.bf16.mxu0 0
    %6646 = vmatpush1.bf16.msra.mxu0 %v5749
    %6647 = vmatprep.subr.bf16.mxu0 0
    %6648 = vmatpush1.bf16.msra.mxu0 %v5756
    %6649 = vmatprep.subr.bf16.mxu0 0
    %6650 = vmatpush1.bf16.msra.mxu0 %v5763
    %6651 = vmatprep.subr.bf16.mxu0 0
    %6652 = vmatpush1.bf16.msra.mxu0 %v5770
    %6653 = vmatprep.subr.bf16.mxu0 0
    %6654 = vmatpush1.bf16.msra.mxu0 %v5777
    %6655 = vmatprep.subr.bf16.mxu0 0
    %6656 = vmatpush1.bf16.msra.mxu0 %v5784
    %6657 = vmatprep.subr.bf16.mxu0 0
    %6658 = vmatpush1.bf16.msra.mxu0 %v5791
    %6659 = vmatprep.subr.bf16.mxu0 0
    %6660 = vmatpush1.bf16.msra.mxu0 %v5798
    %6661 = vmatprep.subr.bf16.mxu0 0
    %6662 = vmatpush1.bf16.msra.mxu0 0
    %6663 = vmatprep.subr.bf16.mxu0 0
    %6664 = vmatpush1.bf16.msra.mxu0 0
    %6665 = vmatprep.subr.bf16.mxu0 0
    %6666 = vmatpush1.bf16.msra.mxu0 0
    %6667 = vmatprep.subr.bf16.mxu0 0
    %6668 = vmatpush1.bf16.msra.mxu0 0
    %6669 = vmatprep.mubr.bf16.mxu0 %v4291
    %6670 = vmatmul.mubr.bf16.gmra.mrb[0].mxu0 %v2823
    %v6671 = vpop.f32.mrb[0].mxu0
    %v6672 = vadd.f32 %v6631, %v6671
    %v6673 = vpop.f32.mrb[0].mxu0
    %v6674 = vpop.f32.mrb[0].mxu0
    %v6675 = vadd.f32 %v6634, %v6674
    %v6676 = vpop.f32.mrb[0].mxu0
    %6677 = vdwg.mxu0
    %s6678 = scalar_lea.vmem [#allocation10], 3136
    %v6679 = vld [vmem:[%s6678] sm:$0xff]
    %v6680 = vld [vmem:[%s6678 + $0x8] sm:$0xff]
    %v6681 = vld [vmem:[%s6678 + $0x10] sm:$0xff]
    %v6682 = vld [vmem:[%s6678 + $0x18] sm:$0xf]
    %v6683 = vld [vmem:[%s6678 + $0x1c] sm:$0xff]
    %v6684 = vld [vmem:[%s6678 + $0x24] sm:$0xff]
    %v6685 = vld [vmem:[%s6678 + $0x2c] sm:$0xff]
    %v6686 = vld [vmem:[%s6678 + $0x34] sm:$0xf]
    %v6687 = vld [vmem:[%s6678 + $0x38] sm:$0xff]
    %v6688 = vld [vmem:[%s6678 + $0x40] sm:$0xff]
    %v6689 = vld [vmem:[%s6678 + $0x48] sm:$0xff]
    %v6690 = vld [vmem:[%s6678 + $0x50] sm:$0xf]
    %v6691 = vld [vmem:[%s6678 + $0x54] sm:$0xff]
    %v6692 = vld [vmem:[%s6678 + $0x5c] sm:$0xff]
    %v6693 = vld [vmem:[%s6678 + $0x64] sm:$0xff]
    %v6694 = vld [vmem:[%s6678 + $0x6c] sm:$0xf]
    %v6695 = vld [vmem:[%s6678 + $0x70] sm:$0xff]
    %v6696 = vld [vmem:[%s6678 + $0x78] sm:$0xff]
    %v6697 = vld [vmem:[%s6678 + $0x80] sm:$0xff]
    %v6698 = vld [vmem:[%s6678 + $0x88] sm:$0xf]
    %v6699 = vld [vmem:[%s6678 + $0x8c] sm:$0xff]
    %v6700 = vld [vmem:[%s6678 + $0x94] sm:$0xff]
    %v6701 = vld [vmem:[%s6678 + $0x9c] sm:$0xff]
    %v6702 = vld [vmem:[%s6678 + $0xa4] sm:$0xf]
    %v6703 = vld [vmem:[%s6678 + $0xa8] sm:$0xff]
    %v6704 = vld [vmem:[%s6678 + $0xb0] sm:$0xff]
    %v6705 = vld [vmem:[%s6678 + $0xb8] sm:$0xff]
    %v6706 = vld [vmem:[%s6678 + $0xc0] sm:$0xf]
    %v6707 = vld [vmem:[%s6678 + $0xc4] sm:$0xff]
    %v6708 = vld [vmem:[%s6678 + $0xcc] sm:$0xff]
    %v6709 = vld [vmem:[%s6678 + $0xd4] sm:$0xff]
    %v6710 = vld [vmem:[%s6678 + $0xdc] sm:$0xf]
    %v6711 = vld [vmem:[%s6678 + $0xe0] sm:$0xff]
    %v6712 = vld [vmem:[%s6678 + $0xe8] sm:$0xff]
    %v6713 = vld [vmem:[%s6678 + $0xf0] sm:$0xff]
    %v6714 = vld [vmem:[%s6678 + $0xf8] sm:$0xf]
    %v6715 = vld [vmem:[%s6678 + $0xfc] sm:$0xff]
    %v6716 = vld [vmem:[%s6678 + $0x104] sm:$0xff]
    %v6717 = vld [vmem:[%s6678 + $0x10c] sm:$0xff]
    %v6718 = vld [vmem:[%s6678 + $0x114] sm:$0xf]
    %v6719 = vld [vmem:[%s6678 + $0x118] sm:$0xff]
    %v6720 = vld [vmem:[%s6678 + $0x120] sm:$0xff]
    %v6721 = vld [vmem:[%s6678 + $0x128] sm:$0xff]
    %v6722 = vld [vmem:[%s6678 + $0x130] sm:$0xf]
    %v6723 = vld [vmem:[%s6678 + $0x134] sm:$0xff]
    %v6724 = vld [vmem:[%s6678 + $0x13c] sm:$0xff]
    %v6725 = vld [vmem:[%s6678 + $0x144] sm:$0xff]
    %v6726 = vld [vmem:[%s6678 + $0x14c] sm:$0xf]
    %v6727 = vld [vmem:[%s6678 + $0x150] sm:$0xff]
    %v6728 = vld [vmem:[%s6678 + $0x158] sm:$0xff]
    %v6729 = vld [vmem:[%s6678 + $0x160] sm:$0xff]
    %v6730 = vld [vmem:[%s6678 + $0x168] sm:$0xf]
    %v6731 = vld [vmem:[%s6678 + $0x16c] sm:$0xff]
    %v6732 = vld [vmem:[%s6678 + $0x174] sm:$0xff]
    %v6733 = vld [vmem:[%s6678 + $0x17c] sm:$0xff]
    %v6734 = vld [vmem:[%s6678 + $0x184] sm:$0xf]
    %v6735 = vld [vmem:[%s6678 + $0x188] sm:$0xff]
    %v6736 = vld [vmem:[%s6678 + $0x190] sm:$0xff]
    %v6737 = vld [vmem:[%s6678 + $0x198] sm:$0xff]
    %v6738 = vld [vmem:[%s6678 + $0x1a0] sm:$0xf]
    %v6739 = vld [vmem:[%s6678 + $0x1a4] sm:$0xff]
    %v6740 = vld [vmem:[%s6678 + $0x1ac] sm:$0xff]
    %v6741 = vld [vmem:[%s6678 + $0x1b4] sm:$0xff]
    %v6742 = vld [vmem:[%s6678 + $0x1bc] sm:$0xf]
    %v6743 = vld [vmem:[%s6678 + $0x1c0] sm:$0xff]
    %v6744 = vld [vmem:[%s6678 + $0x1c8] sm:$0xff]
    %v6745 = vld [vmem:[%s6678 + $0x1d0] sm:$0xff]
    %v6746 = vld [vmem:[%s6678 + $0x1d8] sm:$0xf]
    %v6747 = vld [vmem:[%s6678 + $0x1dc] sm:$0xff]
    %v6748 = vld [vmem:[%s6678 + $0x1e4] sm:$0xff]
    %v6749 = vld [vmem:[%s6678 + $0x1ec] sm:$0xff]
    %v6750 = vld [vmem:[%s6678 + $0x1f4] sm:$0xf]
    %v6751 = vld [vmem:[%s6678 + $0x1f8] sm:$0xff]
    %v6752 = vld [vmem:[%s6678 + $0x200] sm:$0xff]
    %v6753 = vld [vmem:[%s6678 + $0x208] sm:$0xff]
    %v6754 = vld [vmem:[%s6678 + $0x210] sm:$0xf]
    %v6755 = vld [vmem:[%s6678 + $0x214] sm:$0xff]
    %v6756 = vld [vmem:[%s6678 + $0x21c] sm:$0xff]
    %v6757 = vld [vmem:[%s6678 + $0x224] sm:$0xff]
    %v6758 = vld [vmem:[%s6678 + $0x22c] sm:$0xf]
    %v6759 = vld [vmem:[%s6678 + $0x230] sm:$0xff]
    %v6760 = vld [vmem:[%s6678 + $0x238] sm:$0xff]
    %v6761 = vld [vmem:[%s6678 + $0x240] sm:$0xff]
    %v6762 = vld [vmem:[%s6678 + $0x248] sm:$0xf]
    %v6763 = vld [vmem:[%s6678 + $0x24c] sm:$0xff]
    %v6764 = vld [vmem:[%s6678 + $0x254] sm:$0xff]
    %v6765 = vld [vmem:[%s6678 + $0x25c] sm:$0xff]
    %v6766 = vld [vmem:[%s6678 + $0x264] sm:$0xf]
    %v6767 = vld [vmem:[%s6678 + $0x268] sm:$0xff]
    %v6768 = vld [vmem:[%s6678 + $0x270] sm:$0xff]
    %v6769 = vld [vmem:[%s6678 + $0x278] sm:$0xff]
    %v6770 = vld [vmem:[%s6678 + $0x280] sm:$0xf]
    %v6771 = vld [vmem:[%s6678 + $0x284] sm:$0xff]
    %v6772 = vld [vmem:[%s6678 + $0x28c] sm:$0xff]
    %v6773 = vld [vmem:[%s6678 + $0x294] sm:$0xff]
    %v6774 = vld [vmem:[%s6678 + $0x29c] sm:$0xf]
    %v6775 = vld [vmem:[%s6678 + $0x2a0] sm:$0xff]
    %v6776 = vld [vmem:[%s6678 + $0x2a8] sm:$0xff]
    %v6777 = vld [vmem:[%s6678 + $0x2b0] sm:$0xff]
    %v6778 = vld [vmem:[%s6678 + $0x2b8] sm:$0xf]
    %v6779 = vld [vmem:[%s6678 + $0x2bc] sm:$0xff]
    %v6780 = vld [vmem:[%s6678 + $0x2c4] sm:$0xff]
    %v6781 = vld [vmem:[%s6678 + $0x2cc] sm:$0xff]
    %v6782 = vld [vmem:[%s6678 + $0x2d4] sm:$0xf]
    %v6783 = vld [vmem:[%s6678 + $0x2d8] sm:$0xff]
    %v6784 = vld [vmem:[%s6678 + $0x2e0] sm:$0xff]
    %v6785 = vld [vmem:[%s6678 + $0x2e8] sm:$0xff]
    %v6786 = vld [vmem:[%s6678 + $0x2f0] sm:$0xf]
    %v6787 = vld [vmem:[%s6678 + $0x2f4] sm:$0xff]
    %v6788 = vld [vmem:[%s6678 + $0x2fc] sm:$0xff]
    %v6789 = vld [vmem:[%s6678 + $0x304] sm:$0xff]
    %v6790 = vld [vmem:[%s6678 + $0x30c] sm:$0xf]
    %v6791 = vld [vmem:[%s6678 + $0x310] sm:$0xff]
    %v6792 = vld [vmem:[%s6678 + $0x318] sm:$0xff]
    %v6793 = vld [vmem:[%s6678 + $0x320] sm:$0xff]
    %v6794 = vld [vmem:[%s6678 + $0x328] sm:$0xf]
    %v6795 = vld [vmem:[%s6678 + $0x32c] sm:$0xff]
    %v6796 = vld [vmem:[%s6678 + $0x334] sm:$0xff]
    %v6797 = vld [vmem:[%s6678 + $0x33c] sm:$0xff]
    %v6798 = vld [vmem:[%s6678 + $0x344] sm:$0xf]
    %v6799 = vld [vmem:[%s6678 + $0x348] sm:$0xff]
    %v6800 = vld [vmem:[%s6678 + $0x350] sm:$0xff]
    %v6801 = vld [vmem:[%s6678 + $0x358] sm:$0xff]
    %v6802 = vld [vmem:[%s6678 + $0x360] sm:$0xf]
    %v6803 = vld [vmem:[%s6678 + $0x364] sm:$0xff]
    %v6804 = vld [vmem:[%s6678 + $0x36c] sm:$0xff]
    %v6805 = vld [vmem:[%s6678 + $0x374] sm:$0xff]
    %v6806 = vld [vmem:[%s6678 + $0x37c] sm:$0xf]
    %v6807 = vld [vmem:[%s6678 + $0x380] sm:$0xff]
    %v6808 = vld [vmem:[%s6678 + $0x388] sm:$0xff]
    %v6809 = vld [vmem:[%s6678 + $0x390] sm:$0xff]
    %v6810 = vld [vmem:[%s6678 + $0x398] sm:$0xf]
    %v6811 = vld [vmem:[%s6678 + $0x39c] sm:$0xff]
    %v6812 = vld [vmem:[%s6678 + $0x3a4] sm:$0xff]
    %v6813 = vld [vmem:[%s6678 + $0x3ac] sm:$0xff]
    %v6814 = vld [vmem:[%s6678 + $0x3b4] sm:$0xf]
    %v6815 = vld [vmem:[%s6678 + $0x3b8] sm:$0xff]
    %v6816 = vld [vmem:[%s6678 + $0x3c0] sm:$0xff]
    %v6817 = vld [vmem:[%s6678 + $0x3c8] sm:$0xff]
    %v6818 = vld [vmem:[%s6678 + $0x3d0] sm:$0xf]
    %v6819 = vld [vmem:[%s6678 + $0x3d4] sm:$0xff]
    %v6820 = vld [vmem:[%s6678 + $0x3dc] sm:$0xff]
    %v6821 = vld [vmem:[%s6678 + $0x3e4] sm:$0xff]
    %v6822 = vld [vmem:[%s6678 + $0x3ec] sm:$0xf]
    %v6823 = vld [vmem:[%s6678 + $0x3f0] sm:$0xff]
    %v6824 = vld [vmem:[%s6678 + $0x3f8] sm:$0xff]
    %v6825 = vld [vmem:[%s6678 + $0x400] sm:$0xff]
    %v6826 = vld [vmem:[%s6678 + $0x408] sm:$0xf]
    %v6827 = vld [vmem:[%s6678 + $0x40c] sm:$0xff]
    %v6828 = vld [vmem:[%s6678 + $0x414] sm:$0xff]
    %v6829 = vld [vmem:[%s6678 + $0x41c] sm:$0xff]
    %v6830 = vld [vmem:[%s6678 + $0x424] sm:$0xf]
    %v6831 = vld [vmem:[%s6678 + $0x428] sm:$0xff]
    %v6832 = vld [vmem:[%s6678 + $0x430] sm:$0xff]
    %v6833 = vld [vmem:[%s6678 + $0x438] sm:$0xff]
    %v6834 = vld [vmem:[%s6678 + $0x440] sm:$0xf]
    %v6835 = vld [vmem:[%s6678 + $0x444] sm:$0xff]
    %v6836 = vld [vmem:[%s6678 + $0x44c] sm:$0xff]
    %v6837 = vld [vmem:[%s6678 + $0x454] sm:$0xff]
    %v6838 = vld [vmem:[%s6678 + $0x45c] sm:$0xf]
    %v6839 = vld [vmem:[%s6678 + $0x460] sm:$0xff]
    %v6840 = vld [vmem:[%s6678 + $0x468] sm:$0xff]
    %v6841 = vld [vmem:[%s6678 + $0x470] sm:$0xff]
    %v6842 = vld [vmem:[%s6678 + $0x478] sm:$0xf]
    %v6843 = vld [vmem:[%s6678 + $0x47c] sm:$0xff]
    %v6844 = vld [vmem:[%s6678 + $0x484] sm:$0xff]
    %v6845 = vld [vmem:[%s6678 + $0x48c] sm:$0xff]
    %v6846 = vld [vmem:[%s6678 + $0x494] sm:$0xf]
    %v6847 = vld [vmem:[%s6678 + $0x498] sm:$0xff]
    %v6848 = vld [vmem:[%s6678 + $0x4a0] sm:$0xff]
    %v6849 = vld [vmem:[%s6678 + $0x4a8] sm:$0xff]
    %v6850 = vld [vmem:[%s6678 + $0x4b0] sm:$0xf]
    %v6851 = vld [vmem:[%s6678 + $0x4b4] sm:$0xff]
    %v6852 = vld [vmem:[%s6678 + $0x4bc] sm:$0xff]
    %v6853 = vld [vmem:[%s6678 + $0x4c4] sm:$0xff]
    %v6854 = vld [vmem:[%s6678 + $0x4cc] sm:$0xf]
    %v6855 = vld [vmem:[%s6678 + $0x4d0] sm:$0xff]
    %v6856 = vld [vmem:[%s6678 + $0x4d8] sm:$0xff]
    %v6857 = vld [vmem:[%s6678 + $0x4e0] sm:$0xff]
    %v6858 = vld [vmem:[%s6678 + $0x4e8] sm:$0xf]
    %v6859 = vld [vmem:[%s6678 + $0x4ec] sm:$0xff]
    %v6860 = vld [vmem:[%s6678 + $0x4f4] sm:$0xff]
    %v6861 = vld [vmem:[%s6678 + $0x4fc] sm:$0xff]
    %v6862 = vld [vmem:[%s6678 + $0x504] sm:$0xf]
    %v6863 = vld [vmem:[%s6678 + $0x508] sm:$0xff]
    %v6864 = vld [vmem:[%s6678 + $0x510] sm:$0xff]
    %v6865 = vld [vmem:[%s6678 + $0x518] sm:$0xff]
    %v6866 = vld [vmem:[%s6678 + $0x520] sm:$0xf]
    %v6867 = vld [vmem:[%s6678 + $0x524] sm:$0xff]
    %v6868 = vld [vmem:[%s6678 + $0x52c] sm:$0xff]
    %v6869 = vld [vmem:[%s6678 + $0x534] sm:$0xff]
    %v6870 = vld [vmem:[%s6678 + $0x53c] sm:$0xf]
    %v6871 = vld [vmem:[%s6678 + $0x540] sm:$0xff]
    %v6872 = vld [vmem:[%s6678 + $0x548] sm:$0xff]
    %v6873 = vld [vmem:[%s6678 + $0x550] sm:$0xff]
    %v6874 = vld [vmem:[%s6678 + $0x558] sm:$0xf]
    %v6875 = vld [vmem:[%s6678 + $0x55c] sm:$0xff]
    %v6876 = vld [vmem:[%s6678 + $0x564] sm:$0xff]
    %v6877 = vld [vmem:[%s6678 + $0x56c] sm:$0xff]
    %v6878 = vld [vmem:[%s6678 + $0x574] sm:$0xf]
    %v6879 = vld [vmem:[%s6678 + $0x578] sm:$0xff]
    %v6880 = vld [vmem:[%s6678 + $0x580] sm:$0xff]
    %v6881 = vld [vmem:[%s6678 + $0x588] sm:$0xff]
    %v6882 = vld [vmem:[%s6678 + $0x590] sm:$0xf]
    %v6883 = vld [vmem:[%s6678 + $0x594] sm:$0xff]
    %v6884 = vld [vmem:[%s6678 + $0x59c] sm:$0xff]
    %v6885 = vld [vmem:[%s6678 + $0x5a4] sm:$0xff]
    %v6886 = vld [vmem:[%s6678 + $0x5ac] sm:$0xf]
    %v6887 = vld [vmem:[%s6678 + $0x5b0] sm:$0xff]
    %v6888 = vld [vmem:[%s6678 + $0x5b8] sm:$0xff]
    %v6889 = vld [vmem:[%s6678 + $0x5c0] sm:$0xff]
    %v6890 = vld [vmem:[%s6678 + $0x5c8] sm:$0xf]
    %v6891 = vld [vmem:[%s6678 + $0x5cc] sm:$0xff]
    %v6892 = vld [vmem:[%s6678 + $0x5d4] sm:$0xff]
    %v6893 = vld [vmem:[%s6678 + $0x5dc] sm:$0xff]
    %v6894 = vld [vmem:[%s6678 + $0x5e4] sm:$0xf]
    %v6895 = vld [vmem:[%s6678 + $0x5e8] sm:$0xff]
    %v6896 = vld [vmem:[%s6678 + $0x5f0] sm:$0xff]
    %v6897 = vld [vmem:[%s6678 + $0x5f8] sm:$0xff]
    %v6898 = vld [vmem:[%s6678 + $0x600] sm:$0xf]
    %v6899 = vld [vmem:[%s6678 + $0x604] sm:$0xff]
    %v6900 = vld [vmem:[%s6678 + $0x60c] sm:$0xff]
    %v6901 = vld [vmem:[%s6678 + $0x614] sm:$0xff]
    %v6902 = vld [vmem:[%s6678 + $0x61c] sm:$0xf]
    %v7127 = vunpack.c.l.b16 %v6679
    %v7128 = vunpack.c.h.b16 %v6679
    %v7129 = vunpack.c.l.b16 %v6680
    %v7130 = vunpack.c.h.b16 %v6680
    %v7131 = vunpack.c.l.b16 %v6681
    %v7132 = vunpack.c.h.b16 %v6681
    %v7133 = vunpack.c.l.b16 %v6682
    %v7134 = vunpack.c.l.b16 %v6683
    %v7135 = vunpack.c.h.b16 %v6683
    %v7136 = vunpack.c.l.b16 %v6684
    %v7137 = vunpack.c.h.b16 %v6684
    %v7138 = vunpack.c.l.b16 %v6685
    %v7139 = vunpack.c.h.b16 %v6685
    %v7140 = vunpack.c.l.b16 %v6686
    %v7141 = vunpack.c.l.b16 %v6687
    %v7142 = vunpack.c.h.b16 %v6687
    %v7143 = vunpack.c.l.b16 %v6688
    %v7144 = vunpack.c.h.b16 %v6688
    %v7145 = vunpack.c.l.b16 %v6689
    %v7146 = vunpack.c.h.b16 %v6689
    %v7147 = vunpack.c.l.b16 %v6690
    %v7148 = vunpack.c.l.b16 %v6691
    %v7149 = vunpack.c.h.b16 %v6691
    %v7150 = vunpack.c.l.b16 %v6692
    %v7151 = vunpack.c.h.b16 %v6692
    %v7152 = vunpack.c.l.b16 %v6693
    %v7153 = vunpack.c.h.b16 %v6693
    %v7154 = vunpack.c.l.b16 %v6694
    %v7155 = vunpack.c.l.b16 %v6695
    %v7156 = vunpack.c.h.b16 %v6695
    %v7157 = vunpack.c.l.b16 %v6696
    %v7158 = vunpack.c.h.b16 %v6696
    %v7159 = vunpack.c.l.b16 %v6697
    %v7160 = vunpack.c.h.b16 %v6697
    %v7161 = vunpack.c.l.b16 %v6698
    %v7162 = vunpack.c.l.b16 %v6699
    %v7163 = vunpack.c.h.b16 %v6699
    %v7164 = vunpack.c.l.b16 %v6700
    %v7165 = vunpack.c.h.b16 %v6700
    %v7166 = vunpack.c.l.b16 %v6701
    %v7167 = vunpack.c.h.b16 %v6701
    %v7168 = vunpack.c.l.b16 %v6702
    %v7169 = vunpack.c.l.b16 %v6703
    %v7170 = vunpack.c.h.b16 %v6703
    %v7171 = vunpack.c.l.b16 %v6704
    %v7172 = vunpack.c.h.b16 %v6704
    %v7173 = vunpack.c.l.b16 %v6705
    %v7174 = vunpack.c.h.b16 %v6705
    %v7175 = vunpack.c.l.b16 %v6706
    %v7176 = vunpack.c.l.b16 %v6707
    %v7177 = vunpack.c.h.b16 %v6707
    %v7178 = vunpack.c.l.b16 %v6708
    %v7179 = vunpack.c.h.b16 %v6708
    %v7180 = vunpack.c.l.b16 %v6709
    %v7181 = vunpack.c.h.b16 %v6709
    %v7182 = vunpack.c.l.b16 %v6710
    %v7183 = vunpack.c.l.b16 %v6711
    %v7184 = vunpack.c.h.b16 %v6711
    %v7185 = vunpack.c.l.b16 %v6712
    %v7186 = vunpack.c.h.b16 %v6712
    %v7187 = vunpack.c.l.b16 %v6713
    %v7188 = vunpack.c.h.b16 %v6713
    %v7189 = vunpack.c.l.b16 %v6714
    %v7190 = vunpack.c.l.b16 %v6715
    %v7191 = vunpack.c.h.b16 %v6715
    %v7192 = vunpack.c.l.b16 %v6716
    %v7193 = vunpack.c.h.b16 %v6716
    %v7194 = vunpack.c.l.b16 %v6717
    %v7195 = vunpack.c.h.b16 %v6717
    %v7196 = vunpack.c.l.b16 %v6718
    %v7197 = vunpack.c.l.b16 %v6719
    %v7198 = vunpack.c.h.b16 %v6719
    %v7199 = vunpack.c.l.b16 %v6720
    %v7200 = vunpack.c.h.b16 %v6720
    %v7201 = vunpack.c.l.b16 %v6721
    %v7202 = vunpack.c.h.b16 %v6721
    %v7203 = vunpack.c.l.b16 %v6722
    %v7204 = vunpack.c.l.b16 %v6723
    %v7205 = vunpack.c.h.b16 %v6723
    %v7206 = vunpack.c.l.b16 %v6724
    %v7207 = vunpack.c.h.b16 %v6724
    %v7208 = vunpack.c.l.b16 %v6725
    %v7209 = vunpack.c.h.b16 %v6725
    %v7210 = vunpack.c.l.b16 %v6726
    %v7211 = vunpack.c.l.b16 %v6727
    %v7212 = vunpack.c.h.b16 %v6727
    %v7213 = vunpack.c.l.b16 %v6728
    %v7214 = vunpack.c.h.b16 %v6728
    %v7215 = vunpack.c.l.b16 %v6729
    %v7216 = vunpack.c.h.b16 %v6729
    %v7217 = vunpack.c.l.b16 %v6730
    %v7218 = vunpack.c.l.b16 %v6731
    %v7219 = vunpack.c.h.b16 %v6731
    %v7220 = vunpack.c.l.b16 %v6732
    %v7221 = vunpack.c.h.b16 %v6732
    %v7222 = vunpack.c.l.b16 %v6733
    %v7223 = vunpack.c.h.b16 %v6733
    %v7224 = vunpack.c.l.b16 %v6734
    %v7225 = vunpack.c.l.b16 %v6735
    %v7226 = vunpack.c.h.b16 %v6735
    %v7227 = vunpack.c.l.b16 %v6736
    %v7228 = vunpack.c.h.b16 %v6736
    %v7229 = vunpack.c.l.b16 %v6737
    %v7230 = vunpack.c.h.b16 %v6737
    %v7231 = vunpack.c.l.b16 %v6738
    %v7232 = vunpack.c.l.b16 %v6739
    %v7233 = vunpack.c.h.b16 %v6739
    %v7234 = vunpack.c.l.b16 %v6740
    %v7235 = vunpack.c.h.b16 %v6740
    %v7236 = vunpack.c.l.b16 %v6741
    %v7237 = vunpack.c.h.b16 %v6741
    %v7238 = vunpack.c.l.b16 %v6742
    %v7239 = vunpack.c.l.b16 %v6743
    %v7240 = vunpack.c.h.b16 %v6743
    %v7241 = vunpack.c.l.b16 %v6744
    %v7242 = vunpack.c.h.b16 %v6744
    %v7243 = vunpack.c.l.b16 %v6745
    %v7244 = vunpack.c.h.b16 %v6745
    %v7245 = vunpack.c.l.b16 %v6746
    %v7246 = vunpack.c.l.b16 %v6747
    %v7247 = vunpack.c.h.b16 %v6747
    %v7248 = vunpack.c.l.b16 %v6748
    %v7249 = vunpack.c.h.b16 %v6748
    %v7250 = vunpack.c.l.b16 %v6749
    %v7251 = vunpack.c.h.b16 %v6749
    %v7252 = vunpack.c.l.b16 %v6750
    %v7253 = vunpack.c.l.b16 %v6751
    %v7254 = vunpack.c.h.b16 %v6751
    %v7255 = vunpack.c.l.b16 %v6752
    %v7256 = vunpack.c.h.b16 %v6752
    %v7257 = vunpack.c.l.b16 %v6753
    %v7258 = vunpack.c.h.b16 %v6753
    %v7259 = vunpack.c.l.b16 %v6754
    %v7260 = vunpack.c.l.b16 %v6755
    %v7261 = vunpack.c.h.b16 %v6755
    %v7262 = vunpack.c.l.b16 %v6756
    %v7263 = vunpack.c.h.b16 %v6756
    %v7264 = vunpack.c.l.b16 %v6757
    %v7265 = vunpack.c.h.b16 %v6757
    %v7266 = vunpack.c.l.b16 %v6758
    %v7267 = vunpack.c.l.b16 %v6759
    %v7268 = vunpack.c.h.b16 %v6759
    %v7269 = vunpack.c.l.b16 %v6760
    %v7270 = vunpack.c.h.b16 %v6760
    %v7271 = vunpack.c.l.b16 %v6761
    %v7272 = vunpack.c.h.b16 %v6761
    %v7273 = vunpack.c.l.b16 %v6762
    %v7274 = vunpack.c.l.b16 %v6763
    %v7275 = vunpack.c.h.b16 %v6763
    %v7276 = vunpack.c.l.b16 %v6764
    %v7277 = vunpack.c.h.b16 %v6764
    %v7278 = vunpack.c.l.b16 %v6765
    %v7279 = vunpack.c.h.b16 %v6765
    %v7280 = vunpack.c.l.b16 %v6766
    %v7281 = vunpack.c.l.b16 %v6767
    %v7282 = vunpack.c.h.b16 %v6767
    %v7283 = vunpack.c.l.b16 %v6768
    %v7284 = vunpack.c.h.b16 %v6768
    %v7285 = vunpack.c.l.b16 %v6769
    %v7286 = vunpack.c.h.b16 %v6769
    %v7287 = vunpack.c.l.b16 %v6770
    %v7288 = vunpack.c.l.b16 %v6771
    %v7289 = vunpack.c.h.b16 %v6771
    %v7290 = vunpack.c.l.b16 %v6772
    %v7291 = vunpack.c.h.b16 %v6772
    %v7292 = vunpack.c.l.b16 %v6773
    %v7293 = vunpack.c.h.b16 %v6773
    %v7294 = vunpack.c.l.b16 %v6774
    %v7295 = vunpack.c.l.b16 %v6775
    %v7296 = vunpack.c.h.b16 %v6775
    %v7297 = vunpack.c.l.b16 %v6776
    %v7298 = vunpack.c.h.b16 %v6776
    %v7299 = vunpack.c.l.b16 %v6777
    %v7300 = vunpack.c.h.b16 %v6777
    %v7301 = vunpack.c.l.b16 %v6778
    %v7302 = vunpack.c.l.b16 %v6779
    %v7303 = vunpack.c.h.b16 %v6779
    %v7304 = vunpack.c.l.b16 %v6780
    %v7305 = vunpack.c.h.b16 %v6780
    %v7306 = vunpack.c.l.b16 %v6781
    %v7307 = vunpack.c.h.b16 %v6781
    %v7308 = vunpack.c.l.b16 %v6782
    %v7309 = vunpack.c.l.b16 %v6783
    %v7310 = vunpack.c.h.b16 %v6783
    %v7311 = vunpack.c.l.b16 %v6784
    %v7312 = vunpack.c.h.b16 %v6784
    %v7313 = vunpack.c.l.b16 %v6785
    %v7314 = vunpack.c.h.b16 %v6785
    %v7315 = vunpack.c.l.b16 %v6786
    %v7316 = vunpack.c.l.b16 %v6787
    %v7317 = vunpack.c.h.b16 %v6787
    %v7318 = vunpack.c.l.b16 %v6788
    %v7319 = vunpack.c.h.b16 %v6788
    %v7320 = vunpack.c.l.b16 %v6789
    %v7321 = vunpack.c.h.b16 %v6789
    %v7322 = vunpack.c.l.b16 %v6790
    %v7323 = vunpack.c.l.b16 %v6791
    %v7324 = vunpack.c.h.b16 %v6791
    %v7325 = vunpack.c.l.b16 %v6792
    %v7326 = vunpack.c.h.b16 %v6792
    %v7327 = vunpack.c.l.b16 %v6793
    %v7328 = vunpack.c.h.b16 %v6793
    %v7329 = vunpack.c.l.b16 %v6794
    %v7330 = vunpack.c.l.b16 %v6795
    %v7331 = vunpack.c.h.b16 %v6795
    %v7332 = vunpack.c.l.b16 %v6796
    %v7333 = vunpack.c.h.b16 %v6796
    %v7334 = vunpack.c.l.b16 %v6797
    %v7335 = vunpack.c.h.b16 %v6797
    %v7336 = vunpack.c.l.b16 %v6798
    %v7337 = vunpack.c.l.b16 %v6799
    %v7338 = vunpack.c.h.b16 %v6799
    %v7339 = vunpack.c.l.b16 %v6800
    %v7340 = vunpack.c.h.b16 %v6800
    %v7341 = vunpack.c.l.b16 %v6801
    %v7342 = vunpack.c.h.b16 %v6801
    %v7343 = vunpack.c.l.b16 %v6802
    %v7344 = vunpack.c.l.b16 %v6803
    %v7345 = vunpack.c.h.b16 %v6803
    %v7346 = vunpack.c.l.b16 %v6804
    %v7347 = vunpack.c.h.b16 %v6804
    %v7348 = vunpack.c.l.b16 %v6805
    %v7349 = vunpack.c.h.b16 %v6805
    %v7350 = vunpack.c.l.b16 %v6806
    %v7351 = vunpack.c.l.b16 %v6807
    %v7352 = vunpack.c.h.b16 %v6807
    %v7353 = vunpack.c.l.b16 %v6808
    %v7354 = vunpack.c.h.b16 %v6808
    %v7355 = vunpack.c.l.b16 %v6809
    %v7356 = vunpack.c.h.b16 %v6809
    %v7357 = vunpack.c.l.b16 %v6810
    %v7358 = vunpack.c.l.b16 %v6811
    %v7359 = vunpack.c.h.b16 %v6811
    %v7360 = vunpack.c.l.b16 %v6812
    %v7361 = vunpack.c.h.b16 %v6812
    %v7362 = vunpack.c.l.b16 %v6813
    %v7363 = vunpack.c.h.b16 %v6813
    %v7364 = vunpack.c.l.b16 %v6814
    %v7365 = vunpack.c.l.b16 %v6815
    %v7366 = vunpack.c.h.b16 %v6815
    %v7367 = vunpack.c.l.b16 %v6816
    %v7368 = vunpack.c.h.b16 %v6816
    %v7369 = vunpack.c.l.b16 %v6817
    %v7370 = vunpack.c.h.b16 %v6817
    %v7371 = vunpack.c.l.b16 %v6818
    %v7372 = vunpack.c.l.b16 %v6819
    %v7373 = vunpack.c.h.b16 %v6819
    %v7374 = vunpack.c.l.b16 %v6820
    %v7375 = vunpack.c.h.b16 %v6820
    %v7376 = vunpack.c.l.b16 %v6821
    %v7377 = vunpack.c.h.b16 %v6821
    %v7378 = vunpack.c.l.b16 %v6822
    %v7379 = vunpack.c.l.b16 %v6823
    %v7380 = vunpack.c.h.b16 %v6823
    %v7381 = vunpack.c.l.b16 %v6824
    %v7382 = vunpack.c.h.b16 %v6824
    %v7383 = vunpack.c.l.b16 %v6825
    %v7384 = vunpack.c.h.b16 %v6825
    %v7385 = vunpack.c.l.b16 %v6826
    %v7386 = vunpack.c.l.b16 %v6827
    %v7387 = vunpack.c.h.b16 %v6827
    %v7388 = vunpack.c.l.b16 %v6828
    %v7389 = vunpack.c.h.b16 %v6828
    %v7390 = vunpack.c.l.b16 %v6829
    %v7391 = vunpack.c.h.b16 %v6829
    %v7392 = vunpack.c.l.b16 %v6830
    %v7393 = vunpack.c.l.b16 %v6831
    %v7394 = vunpack.c.h.b16 %v6831
    %v7395 = vunpack.c.l.b16 %v6832
    %v7396 = vunpack.c.h.b16 %v6832
    %v7397 = vunpack.c.l.b16 %v6833
    %v7398 = vunpack.c.h.b16 %v6833
    %v7399 = vunpack.c.l.b16 %v6834
    %v7400 = vunpack.c.l.b16 %v6835
    %v7401 = vunpack.c.h.b16 %v6835
    %v7402 = vunpack.c.l.b16 %v6836
    %v7403 = vunpack.c.h.b16 %v6836
    %v7404 = vunpack.c.l.b16 %v6837
    %v7405 = vunpack.c.h.b16 %v6837
    %v7406 = vunpack.c.l.b16 %v6838
    %v7407 = vunpack.c.l.b16 %v6839
    %v7408 = vunpack.c.h.b16 %v6839
    %v7409 = vunpack.c.l.b16 %v6840
    %v7410 = vunpack.c.h.b16 %v6840
    %v7411 = vunpack.c.l.b16 %v6841
    %v7412 = vunpack.c.h.b16 %v6841
    %v7413 = vunpack.c.l.b16 %v6842
    %v7414 = vunpack.c.l.b16 %v6843
    %v7415 = vunpack.c.h.b16 %v6843
    %v7416 = vunpack.c.l.b16 %v6844
    %v7417 = vunpack.c.h.b16 %v6844
    %v7418 = vunpack.c.l.b16 %v6845
    %v7419 = vunpack.c.h.b16 %v6845
    %v7420 = vunpack.c.l.b16 %v6846
    %v7421 = vunpack.c.l.b16 %v6847
    %v7422 = vunpack.c.h.b16 %v6847
    %v7423 = vunpack.c.l.b16 %v6848
    %v7424 = vunpack.c.h.b16 %v6848
    %v7425 = vunpack.c.l.b16 %v6849
    %v7426 = vunpack.c.h.b16 %v6849
    %v7427 = vunpack.c.l.b16 %v6850
    %v7428 = vunpack.c.l.b16 %v6851
    %v7429 = vunpack.c.h.b16 %v6851
    %v7430 = vunpack.c.l.b16 %v6852
    %v7431 = vunpack.c.h.b16 %v6852
    %v7432 = vunpack.c.l.b16 %v6853
    %v7433 = vunpack.c.h.b16 %v6853
    %v7434 = vunpack.c.l.b16 %v6854
    %v7435 = vunpack.c.l.b16 %v6855
    %v7436 = vunpack.c.h.b16 %v6855
    %v7437 = vunpack.c.l.b16 %v6856
    %v7438 = vunpack.c.h.b16 %v6856
    %v7439 = vunpack.c.l.b16 %v6857
    %v7440 = vunpack.c.h.b16 %v6857
    %v7441 = vunpack.c.l.b16 %v6858
    %v7442 = vunpack.c.l.b16 %v6859
    %v7443 = vunpack.c.h.b16 %v6859
    %v7444 = vunpack.c.l.b16 %v6860
    %v7445 = vunpack.c.h.b16 %v6860
    %v7446 = vunpack.c.l.b16 %v6861
    %v7447 = vunpack.c.h.b16 %v6861
    %v7448 = vunpack.c.l.b16 %v6862
    %v7449 = vunpack.c.l.b16 %v6863
    %v7450 = vunpack.c.h.b16 %v6863
    %v7451 = vunpack.c.l.b16 %v6864
    %v7452 = vunpack.c.h.b16 %v6864
    %v7453 = vunpack.c.l.b16 %v6865
    %v7454 = vunpack.c.h.b16 %v6865
    %v7455 = vunpack.c.l.b16 %v6866
    %v7456 = vunpack.c.l.b16 %v6867
    %v7457 = vunpack.c.h.b16 %v6867
    %v7458 = vunpack.c.l.b16 %v6868
    %v7459 = vunpack.c.h.b16 %v6868
    %v7460 = vunpack.c.l.b16 %v6869
    %v7461 = vunpack.c.h.b16 %v6869
    %v7462 = vunpack.c.l.b16 %v6870
    %v7463 = vunpack.c.l.b16 %v6871
    %v7464 = vunpack.c.h.b16 %v6871
    %v7465 = vunpack.c.l.b16 %v6872
    %v7466 = vunpack.c.h.b16 %v6872
    %v7467 = vunpack.c.l.b16 %v6873
    %v7468 = vunpack.c.h.b16 %v6873
    %v7469 = vunpack.c.l.b16 %v6874
    %v7470 = vunpack.c.l.b16 %v6875
    %v7471 = vunpack.c.h.b16 %v6875
    %v7472 = vunpack.c.l.b16 %v6876
    %v7473 = vunpack.c.h.b16 %v6876
    %v7474 = vunpack.c.l.b16 %v6877
    %v7475 = vunpack.c.h.b16 %v6877
    %v7476 = vunpack.c.l.b16 %v6878
    %v7477 = vunpack.c.l.b16 %v6879
    %v7478 = vunpack.c.h.b16 %v6879
    %v7479 = vunpack.c.l.b16 %v6880
    %v7480 = vunpack.c.h.b16 %v6880
    %v7481 = vunpack.c.l.b16 %v6881
    %v7482 = vunpack.c.h.b16 %v6881
    %v7483 = vunpack.c.l.b16 %v6882
    %v7484 = vunpack.c.l.b16 %v6883
    %v7485 = vunpack.c.h.b16 %v6883
    %v7486 = vunpack.c.l.b16 %v6884
    %v7487 = vunpack.c.h.b16 %v6884
    %v7488 = vunpack.c.l.b16 %v6885
    %v7489 = vunpack.c.h.b16 %v6885
    %v7490 = vunpack.c.l.b16 %v6886
    %v7491 = vunpack.c.l.b16 %v6887
    %v7492 = vunpack.c.h.b16 %v6887
    %v7493 = vunpack.c.l.b16 %v6888
    %v7494 = vunpack.c.h.b16 %v6888
    %v7495 = vunpack.c.l.b16 %v6889
    %v7496 = vunpack.c.h.b16 %v6889
    %v7497 = vunpack.c.l.b16 %v6890
    %v7498 = vunpack.c.l.b16 %v6891
    %v7499 = vunpack.c.h.b16 %v6891
    %v7500 = vunpack.c.l.b16 %v6892
    %v7501 = vunpack.c.h.b16 %v6892
    %v7502 = vunpack.c.l.b16 %v6893
    %v7503 = vunpack.c.h.b16 %v6893
    %v7504 = vunpack.c.l.b16 %v6894
    %v7505 = vunpack.c.l.b16 %v6895
    %v7506 = vunpack.c.h.b16 %v6895
    %v7507 = vunpack.c.l.b16 %v6896
    %v7508 = vunpack.c.h.b16 %v6896
    %v7509 = vunpack.c.l.b16 %v6897
    %v7510 = vunpack.c.h.b16 %v6897
    %v7511 = vunpack.c.l.b16 %v6898
    %v7512 = vunpack.c.l.b16 %v6899
    %v7513 = vunpack.c.h.b16 %v6899
    %v7514 = vunpack.c.l.b16 %v6900
    %v7515 = vunpack.c.h.b16 %v6900
    %v7516 = vunpack.c.l.b16 %v6901
    %v7517 = vunpack.c.h.b16 %v6901
    %v7518 = vunpack.c.l.b16 %v6902
    %v7519 = vpack.c.b16 %v7134, %v7127
    %v7520 = vpack.c.b16 %v7135, %v7128
    %v7521 = vpack.c.b16 %v7136, %v7129
    %v7522 = vpack.c.b16 %v7137, %v7130
    %v7523 = vpack.c.b16 %v7138, %v7131
    %v7524 = vpack.c.b16 %v7139, %v7132
    %v7525 = vpack.c.b16 %v7140, %v7133
    %v7526 = vpack.c.b16 %v7148, %v7141
    %v7527 = vpack.c.b16 %v7149, %v7142
    %v7528 = vpack.c.b16 %v7150, %v7143
    %v7529 = vpack.c.b16 %v7151, %v7144
    %v7530 = vpack.c.b16 %v7152, %v7145
    %v7531 = vpack.c.b16 %v7153, %v7146
    %v7532 = vpack.c.b16 %v7154, %v7147
    %v7533 = vpack.c.b16 %v7162, %v7155
    %v7534 = vpack.c.b16 %v7163, %v7156
    %v7535 = vpack.c.b16 %v7164, %v7157
    %v7536 = vpack.c.b16 %v7165, %v7158
    %v7537 = vpack.c.b16 %v7166, %v7159
    %v7538 = vpack.c.b16 %v7167, %v7160
    %v7539 = vpack.c.b16 %v7168, %v7161
    %v7540 = vpack.c.b16 %v7176, %v7169
    %v7541 = vpack.c.b16 %v7177, %v7170
    %v7542 = vpack.c.b16 %v7178, %v7171
    %v7543 = vpack.c.b16 %v7179, %v7172
    %v7544 = vpack.c.b16 %v7180, %v7173
    %v7545 = vpack.c.b16 %v7181, %v7174
    %v7546 = vpack.c.b16 %v7182, %v7175
    %v7547 = vpack.c.b16 %v7190, %v7183
    %v7548 = vpack.c.b16 %v7191, %v7184
    %v7549 = vpack.c.b16 %v7192, %v7185
    %v7550 = vpack.c.b16 %v7193, %v7186
    %v7551 = vpack.c.b16 %v7194, %v7187
    %v7552 = vpack.c.b16 %v7195, %v7188
    %v7553 = vpack.c.b16 %v7196, %v7189
    %v7554 = vpack.c.b16 %v7204, %v7197
    %v7555 = vpack.c.b16 %v7205, %v7198
    %v7556 = vpack.c.b16 %v7206, %v7199
    %v7557 = vpack.c.b16 %v7207, %v7200
    %v7558 = vpack.c.b16 %v7208, %v7201
    %v7559 = vpack.c.b16 %v7209, %v7202
    %v7560 = vpack.c.b16 %v7210, %v7203
    %v7561 = vpack.c.b16 %v7218, %v7211
    %v7562 = vpack.c.b16 %v7219, %v7212
    %v7563 = vpack.c.b16 %v7220, %v7213
    %v7564 = vpack.c.b16 %v7221, %v7214
    %v7565 = vpack.c.b16 %v7222, %v7215
    %v7566 = vpack.c.b16 %v7223, %v7216
    %v7567 = vpack.c.b16 %v7224, %v7217
    %v7568 = vpack.c.b16 %v7232, %v7225
    %v7569 = vpack.c.b16 %v7233, %v7226
    %v7570 = vpack.c.b16 %v7234, %v7227
    %v7571 = vpack.c.b16 %v7235, %v7228
    %v7572 = vpack.c.b16 %v7236, %v7229
    %v7573 = vpack.c.b16 %v7237, %v7230
    %v7574 = vpack.c.b16 %v7238, %v7231
    %v7575 = vpack.c.b16 %v7246, %v7239
    %v7576 = vpack.c.b16 %v7247, %v7240
    %v7577 = vpack.c.b16 %v7248, %v7241
    %v7578 = vpack.c.b16 %v7249, %v7242
    %v7579 = vpack.c.b16 %v7250, %v7243
    %v7580 = vpack.c.b16 %v7251, %v7244
    %v7581 = vpack.c.b16 %v7252, %v7245
    %v7582 = vpack.c.b16 %v7260, %v7253
    %v7583 = vpack.c.b16 %v7261, %v7254
    %v7584 = vpack.c.b16 %v7262, %v7255
    %v7585 = vpack.c.b16 %v7263, %v7256
    %v7586 = vpack.c.b16 %v7264, %v7257
    %v7587 = vpack.c.b16 %v7265, %v7258
    %v7588 = vpack.c.b16 %v7266, %v7259
    %v7589 = vpack.c.b16 %v7274, %v7267
    %v7590 = vpack.c.b16 %v7275, %v7268
    %v7591 = vpack.c.b16 %v7276, %v7269
    %v7592 = vpack.c.b16 %v7277, %v7270
    %v7593 = vpack.c.b16 %v7278, %v7271
    %v7594 = vpack.c.b16 %v7279, %v7272
    %v7595 = vpack.c.b16 %v7280, %v7273
    %v7596 = vpack.c.b16 %v7288, %v7281
    %v7597 = vpack.c.b16 %v7289, %v7282
    %v7598 = vpack.c.b16 %v7290, %v7283
    %v7599 = vpack.c.b16 %v7291, %v7284
    %v7600 = vpack.c.b16 %v7292, %v7285
    %v7601 = vpack.c.b16 %v7293, %v7286
    %v7602 = vpack.c.b16 %v7294, %v7287
    %v7603 = vpack.c.b16 %v7302, %v7295
    %v7604 = vpack.c.b16 %v7303, %v7296
    %v7605 = vpack.c.b16 %v7304, %v7297
    %v7606 = vpack.c.b16 %v7305, %v7298
    %v7607 = vpack.c.b16 %v7306, %v7299
    %v7608 = vpack.c.b16 %v7307, %v7300
    %v7609 = vpack.c.b16 %v7308, %v7301
    %v7610 = vpack.c.b16 %v7316, %v7309
    %v7611 = vpack.c.b16 %v7317, %v7310
    %v7612 = vpack.c.b16 %v7318, %v7311
    %v7613 = vpack.c.b16 %v7319, %v7312
    %v7614 = vpack.c.b16 %v7320, %v7313
    %v7615 = vpack.c.b16 %v7321, %v7314
    %v7616 = vpack.c.b16 %v7322, %v7315
    %v7617 = vpack.c.b16 %v7330, %v7323
    %v7618 = vpack.c.b16 %v7331, %v7324
    %v7619 = vpack.c.b16 %v7332, %v7325
    %v7620 = vpack.c.b16 %v7333, %v7326
    %v7621 = vpack.c.b16 %v7334, %v7327
    %v7622 = vpack.c.b16 %v7335, %v7328
    %v7623 = vpack.c.b16 %v7336, %v7329
    %v7624 = vpack.c.b16 %v7344, %v7337
    %v7625 = vpack.c.b16 %v7345, %v7338
    %v7626 = vpack.c.b16 %v7346, %v7339
    %v7627 = vpack.c.b16 %v7347, %v7340
    %v7628 = vpack.c.b16 %v7348, %v7341
    %v7629 = vpack.c.b16 %v7349, %v7342
    %v7630 = vpack.c.b16 %v7350, %v7343
    %v7631 = vpack.c.b16 %v7358, %v7351
    %v7632 = vpack.c.b16 %v7359, %v7352
    %v7633 = vpack.c.b16 %v7360, %v7353
    %v7634 = vpack.c.b16 %v7361, %v7354
    %v7635 = vpack.c.b16 %v7362, %v7355
    %v7636 = vpack.c.b16 %v7363, %v7356
    %v7637 = vpack.c.b16 %v7364, %v7357
    %v7638 = vpack.c.b16 %v7372, %v7365
    %v7639 = vpack.c.b16 %v7373, %v7366
    %v7640 = vpack.c.b16 %v7374, %v7367
    %v7641 = vpack.c.b16 %v7375, %v7368
    %v7642 = vpack.c.b16 %v7376, %v7369
    %v7643 = vpack.c.b16 %v7377, %v7370
    %v7644 = vpack.c.b16 %v7378, %v7371
    %v7645 = vpack.c.b16 %v7386, %v7379
    %v7646 = vpack.c.b16 %v7387, %v7380
    %v7647 = vpack.c.b16 %v7388, %v7381
    %v7648 = vpack.c.b16 %v7389, %v7382
    %v7649 = vpack.c.b16 %v7390, %v7383
    %v7650 = vpack.c.b16 %v7391, %v7384
    %v7651 = vpack.c.b16 %v7392, %v7385
    %v7652 = vpack.c.b16 %v7400, %v7393
    %v7653 = vpack.c.b16 %v7401, %v7394
    %v7654 = vpack.c.b16 %v7402, %v7395
    %v7655 = vpack.c.b16 %v7403, %v7396
    %v7656 = vpack.c.b16 %v7404, %v7397
    %v7657 = vpack.c.b16 %v7405, %v7398
    %v7658 = vpack.c.b16 %v7406, %v7399
    %v7659 = vpack.c.b16 %v7414, %v7407
    %v7660 = vpack.c.b16 %v7415, %v7408
    %v7661 = vpack.c.b16 %v7416, %v7409
    %v7662 = vpack.c.b16 %v7417, %v7410
    %v7663 = vpack.c.b16 %v7418, %v7411
    %v7664 = vpack.c.b16 %v7419, %v7412
    %v7665 = vpack.c.b16 %v7420, %v7413
    %v7666 = vpack.c.b16 %v7428, %v7421
    %v7667 = vpack.c.b16 %v7429, %v7422
    %v7668 = vpack.c.b16 %v7430, %v7423
    %v7669 = vpack.c.b16 %v7431, %v7424
    %v7670 = vpack.c.b16 %v7432, %v7425
    %v7671 = vpack.c.b16 %v7433, %v7426
    %v7672 = vpack.c.b16 %v7434, %v7427
    %v7673 = vpack.c.b16 %v7442, %v7435
    %v7674 = vpack.c.b16 %v7443, %v7436
    %v7675 = vpack.c.b16 %v7444, %v7437
    %v7676 = vpack.c.b16 %v7445, %v7438
    %v7677 = vpack.c.b16 %v7446, %v7439
    %v7678 = vpack.c.b16 %v7447, %v7440
    %v7679 = vpack.c.b16 %v7448, %v7441
    %v7680 = vpack.c.b16 %v7456, %v7449
    %v7681 = vpack.c.b16 %v7457, %v7450
    %v7682 = vpack.c.b16 %v7458, %v7451
    %v7683 = vpack.c.b16 %v7459, %v7452
    %v7684 = vpack.c.b16 %v7460, %v7453
    %v7685 = vpack.c.b16 %v7461, %v7454
    %v7686 = vpack.c.b16 %v7462, %v7455
    %v7687 = vpack.c.b16 %v7470, %v7463
    %v7688 = vpack.c.b16 %v7471, %v7464
    %v7689 = vpack.c.b16 %v7472, %v7465
    %v7690 = vpack.c.b16 %v7473, %v7466
    %v7691 = vpack.c.b16 %v7474, %v7467
    %v7692 = vpack.c.b16 %v7475, %v7468
    %v7693 = vpack.c.b16 %v7476, %v7469
    %v7694 = vpack.c.b16 %v7484, %v7477
    %v7695 = vpack.c.b16 %v7485, %v7478
    %v7696 = vpack.c.b16 %v7486, %v7479
    %v7697 = vpack.c.b16 %v7487, %v7480
    %v7698 = vpack.c.b16 %v7488, %v7481
    %v7699 = vpack.c.b16 %v7489, %v7482
    %v7700 = vpack.c.b16 %v7490, %v7483
    %v7701 = vpack.c.b16 %v7498, %v7491
    %v7702 = vpack.c.b16 %v7499, %v7492
    %v7703 = vpack.c.b16 %v7500, %v7493
    %v7704 = vpack.c.b16 %v7501, %v7494
    %v7705 = vpack.c.b16 %v7502, %v7495
    %v7706 = vpack.c.b16 %v7503, %v7496
    %v7707 = vpack.c.b16 %v7504, %v7497
    %v7708 = vpack.c.b16 %v7512, %v7505
    %v7709 = vpack.c.b16 %v7513, %v7506
    %v7710 = vpack.c.b16 %v7514, %v7507
    %v7711 = vpack.c.b16 %v7515, %v7508
    %v7712 = vpack.c.b16 %v7516, %v7509
    %v7713 = vpack.c.b16 %v7517, %v7510
    %v7714 = vpack.c.b16 %v7518, %v7511
    %7911 = vmatprep.subr.bf16.mxu0 %v7520
    %7912 = vmatpush1.bf16.msra.mxu0 %v7519
    %7913 = vmatprep.subr.bf16.mxu0 %v7527
    %7914 = vmatpush1.bf16.msra.mxu0 %v7526
    %7915 = vmatprep.subr.bf16.mxu0 %v7534
    %7916 = vmatpush1.bf16.msra.mxu0 %v7533
    %7917 = vmatprep.subr.bf16.mxu0 %v7541
    %7918 = vmatpush1.bf16.msra.mxu0 %v7540
    %7919 = vmatprep.subr.bf16.mxu0 %v7548
    %7920 = vmatpush1.bf16.msra.mxu0 %v7547
    %7921 = vmatprep.subr.bf16.mxu0 %v7555
    %7922 = vmatpush1.bf16.msra.mxu0 %v7554
    %7923 = vmatprep.subr.bf16.mxu0 %v7562
    %7924 = vmatpush1.bf16.msra.mxu0 %v7561
    %7925 = vmatprep.subr.bf16.mxu0 %v7569
    %7926 = vmatpush1.bf16.msra.mxu0 %v7568
    %7927 = vmatprep.subr.bf16.mxu0 %v7576
    %7928 = vmatpush1.bf16.msra.mxu0 %v7575
    %7929 = vmatprep.subr.bf16.mxu0 %v7583
    %7930 = vmatpush1.bf16.msra.mxu0 %v7582
    %7931 = vmatprep.subr.bf16.mxu0 %v7590
    %7932 = vmatpush1.bf16.msra.mxu0 %v7589
    %7933 = vmatprep.subr.bf16.mxu0 %v7597
    %7934 = vmatpush1.bf16.msra.mxu0 %v7596
    %7935 = vmatprep.subr.bf16.mxu0 %v7604
    %7936 = vmatpush1.bf16.msra.mxu0 %v7603
    %7937 = vmatprep.subr.bf16.mxu0 %v7611
    %7938 = vmatpush1.bf16.msra.mxu0 %v7610
    %7939 = vmatprep.subr.bf16.mxu0 %v7618
    %7940 = vmatpush1.bf16.msra.mxu0 %v7617
    %7941 = vmatprep.subr.bf16.mxu0 %v7625
    %7942 = vmatpush1.bf16.msra.mxu0 %v7624
    %7943 = vmatprep.mubr.bf16.mxu0 %v4638
    %7944 = vmatmul.mubr.bf16.gmra.mrb[0].mxu0 %v4637
    %v7945 = vpop.f32.mrb[0].mxu0
    %v7946 = vadd.f32 0.0, %v7945
    %v7947 = vpop.f32.mrb[0].mxu0
    %v7948 = vadd.f32 0.0, %v7947
    %v7949 = vpop.f32.mrb[0].mxu0
    %v7950 = vadd.f32 0.0, %v7949
    %v7951 = vpop.f32.mrb[0].mxu0
    %v7952 = vadd.f32 0.0, %v7951
    %7953 = vdwg.mxu0
    %7954 = vmatprep.subr.bf16.mxu0 %v7632
    %7955 = vmatpush1.bf16.msra.mxu0 %v7631
    %7956 = vmatprep.subr.bf16.mxu0 %v7639
    %7957 = vmatpush1.bf16.msra.mxu0 %v7638
    %7958 = vmatprep.subr.bf16.mxu0 %v7646
    %7959 = vmatpush1.bf16.msra.mxu0 %v7645
    %7960 = vmatprep.subr.bf16.mxu0 %v7653
    %7961 = vmatpush1.bf16.msra.mxu0 %v7652
    %7962 = vmatprep.subr.bf16.mxu0 %v7660
    %7963 = vmatpush1.bf16.msra.mxu0 %v7659
    %7964 = vmatprep.subr.bf16.mxu0 %v7667
    %7965 = vmatpush1.bf16.msra.mxu0 %v7666
    %7966 = vmatprep.subr.bf16.mxu0 %v7674
    %7967 = vmatpush1.bf16.msra.mxu0 %v7673
    %7968 = vmatprep.subr.bf16.mxu0 %v7681
    %7969 = vmatpush1.bf16.msra.mxu0 %v7680
    %7970 = vmatprep.subr.bf16.mxu0 %v7688
    %7971 = vmatpush1.bf16.msra.mxu0 %v7687
    %7972 = vmatprep.subr.bf16.mxu0 %v7695
    %7973 = vmatpush1.bf16.msra.mxu0 %v7694
    %7974 = vmatprep.subr.bf16.mxu0 %v7702
    %7975 = vmatpush1.bf16.msra.mxu0 %v7701
    %7976 = vmatprep.subr.bf16.mxu0 %v7709
    %7977 = vmatpush1.bf16.msra.mxu0 %v7708
    %7978 = vmatprep.subr.bf16.mxu0 0
    %7979 = vmatpush1.bf16.msra.mxu0 0
    %7980 = vmatprep.subr.bf16.mxu0 0
    %7981 = vmatpush1.bf16.msra.mxu0 0
    %7982 = vmatprep.subr.bf16.mxu0 0
    %7983 = vmatpush1.bf16.msra.mxu0 0
    %7984 = vmatprep.subr.bf16.mxu0 0
    %7985 = vmatpush1.bf16.msra.mxu0 0
    %7986 = vmatprep.mubr.bf16.mxu0 %v4645
    %7987 = vmatmul.mubr.bf16.gmra.mrb[0].mxu0 %v4639
    %v7988 = vpop.f32.mrb[0].mxu0
    %v7989 = vadd.f32 %v7946, %v7988
    %v7990 = vpop.f32.mrb[0].mxu0
    %v7991 = vadd.f32 %v7948, %v7990
    %v7992 = vpop.f32.mrb[0].mxu0
    %v7993 = vadd.f32 %v7950, %v7992
    %v7994 = vpop.f32.mrb[0].mxu0
    %v7995 = vadd.f32 %v7952, %v7994
    %7996 = vdwg.mxu0
    %7997 = vmatprep.subr.bf16.mxu0 %v7522
    %7998 = vmatpush1.bf16.msra.mxu0 %v7521
    %7999 = vmatprep.subr.bf16.mxu0 %v7529
    %8000 = vmatpush1.bf16.msra.mxu0 %v7528
    %8001 = vmatprep.subr.bf16.mxu0 %v7536
    %8002 = vmatpush1.bf16.msra.mxu0 %v7535
    %8003 = vmatprep.subr.bf16.mxu0 %v7543
    %8004 = vmatpush1.bf16.msra.mxu0 %v7542
    %8005 = vmatprep.subr.bf16.mxu0 %v7550
    %8006 = vmatpush1.bf16.msra.mxu0 %v7549
    %8007 = vmatprep.subr.bf16.mxu0 %v7557
    %8008 = vmatpush1.bf16.msra.mxu0 %v7556
    %8009 = vmatprep.subr.bf16.mxu0 %v7564
    %8010 = vmatpush1.bf16.msra.mxu0 %v7563
    %8011 = vmatprep.subr.bf16.mxu0 %v7571
    %8012 = vmatpush1.bf16.msra.mxu0 %v7570
    %8013 = vmatprep.subr.bf16.mxu0 %v7578
    %8014 = vmatpush1.bf16.msra.mxu0 %v7577
    %8015 = vmatprep.subr.bf16.mxu0 %v7585
    %8016 = vmatpush1.bf16.msra.mxu0 %v7584
    %8017 = vmatprep.subr.bf16.mxu0 %v7592
    %8018 = vmatpush1.bf16.msra.mxu0 %v7591
    %8019 = vmatprep.subr.bf16.mxu0 %v7599
    %8020 = vmatpush1.bf16.msra.mxu0 %v7598
    %8021 = vmatprep.subr.bf16.mxu0 %v7606
    %8022 = vmatpush1.bf16.msra.mxu0 %v7605
    %8023 = vmatprep.subr.bf16.mxu0 %v7613
    %8024 = vmatpush1.bf16.msra.mxu0 %v7612
    %8025 = vmatprep.subr.bf16.mxu0 %v7620
    %8026 = vmatpush1.bf16.msra.mxu0 %v7619
    %8027 = vmatprep.subr.bf16.mxu0 %v7627
    %8028 = vmatpush1.bf16.msra.mxu0 %v7626
    %8029 = vmatprep.mubr.bf16.mxu0 %v4638
    %8030 = vmatmul.mubr.bf16.gmra.mrb[0].mxu0 %v4637
    %v8031 = vpop.f32.mrb[0].mxu0
    %v8032 = vadd.f32 0.0, %v8031
    %v8033 = vpop.f32.mrb[0].mxu0
    %v8034 = vadd.f32 0.0, %v8033
    %v8035 = vpop.f32.mrb[0].mxu0
    %v8036 = vadd.f32 0.0, %v8035
    %v8037 = vpop.f32.mrb[0].mxu0
    %v8038 = vadd.f32 0.0, %v8037
    %8039 = vdwg.mxu0
    %8040 = vmatprep.subr.bf16.mxu0 %v7634
    %8041 = vmatpush1.bf16.msra.mxu0 %v7633
    %8042 = vmatprep.subr.bf16.mxu0 %v7641
    %8043 = vmatpush1.bf16.msra.mxu0 %v7640
    %8044 = vmatprep.subr.bf16.mxu0 %v7648
    %8045 = vmatpush1.bf16.msra.mxu0 %v7647
    %8046 = vmatprep.subr.bf16.mxu0 %v7655
    %8047 = vmatpush1.bf16.msra.mxu0 %v7654
    %8048 = vmatprep.subr.bf16.mxu0 %v7662
    %8049 = vmatpush1.bf16.msra.mxu0 %v7661
    %8050 = vmatprep.subr.bf16.mxu0 %v7669
    %8051 = vmatpush1.bf16.msra.mxu0 %v7668
    %8052 = vmatprep.subr.bf16.mxu0 %v7676
    %8053 = vmatpush1.bf16.msra.mxu0 %v7675
    %8054 = vmatprep.subr.bf16.mxu0 %v7683
    %8055 = vmatpush1.bf16.msra.mxu0 %v7682
    %8056 = vmatprep.subr.bf16.mxu0 %v7690
    %8057 = vmatpush1.bf16.msra.mxu0 %v7689
    %8058 = vmatprep.subr.bf16.mxu0 %v7697
    %8059 = vmatpush1.bf16.msra.mxu0 %v7696
    %8060 = vmatprep.subr.bf16.mxu0 %v7704
    %8061 = vmatpush1.bf16.msra.mxu0 %v7703
    %8062 = vmatprep.subr.bf16.mxu0 %v7711
    %8063 = vmatpush1.bf16.msra.mxu0 %v7710
    %8064 = vmatprep.subr.bf16.mxu0 0
    %8065 = vmatpush1.bf16.msra.mxu0 0
    %8066 = vmatprep.subr.bf16.mxu0 0
    %8067 = vmatpush1.bf16.msra.mxu0 0
    %8068 = vmatprep.subr.bf16.mxu0 0
    %8069 = vmatpush1.bf16.msra.mxu0 0
    %8070 = vmatprep.subr.bf16.mxu0 0
    %8071 = vmatpush1.bf16.msra.mxu0 0
    %8072 = vmatprep.mubr.bf16.mxu0 %v4645
    %8073 = vmatmul.mubr.bf16.gmra.mrb[0].mxu0 %v4639
    %v8074 = vpop.f32.mrb[0].mxu0
    %v8075 = vadd.f32 %v8032, %v8074
    %v8076 = vpop.f32.mrb[0].mxu0
    %v8077 = vadd.f32 %v8034, %v8076
    %v8078 = vpop.f32.mrb[0].mxu0
    %v8079 = vadd.f32 %v8036, %v8078
    %v8080 = vpop.f32.mrb[0].mxu0
    %v8081 = vadd.f32 %v8038, %v8080
    %8082 = vdwg.mxu0
    %8083 = vmatprep.subr.bf16.mxu0 %v7524
    %8084 = vmatpush1.bf16.msra.mxu0 %v7523
    %8085 = vmatprep.subr.bf16.mxu0 %v7531
    %8086 = vmatpush1.bf16.msra.mxu0 %v7530
    %8087 = vmatprep.subr.bf16.mxu0 %v7538
    %8088 = vmatpush1.bf16.msra.mxu0 %v7537
    %8089 = vmatprep.subr.bf16.mxu0 %v7545
    %8090 = vmatpush1.bf16.msra.mxu0 %v7544
    %8091 = vmatprep.subr.bf16.mxu0 %v7552
    %8092 = vmatpush1.bf16.msra.mxu0 %v7551
    %8093 = vmatprep.subr.bf16.mxu0 %v7559
    %8094 = vmatpush1.bf16.msra.mxu0 %v7558
    %8095 = vmatprep.subr.bf16.mxu0 %v7566
    %8096 = vmatpush1.bf16.msra.mxu0 %v7565
    %8097 = vmatprep.subr.bf16.mxu0 %v7573
    %8098 = vmatpush1.bf16.msra.mxu0 %v7572
    %8099 = vmatprep.subr.bf16.mxu0 %v7580
    %8100 = vmatpush1.bf16.msra.mxu0 %v7579
    %8101 = vmatprep.subr.bf16.mxu0 %v7587
    %8102 = vmatpush1.bf16.msra.mxu0 %v7586
    %8103 = vmatprep.subr.bf16.mxu0 %v7594
    %8104 = vmatpush1.bf16.msra.mxu0 %v7593
    %8105 = vmatprep.subr.bf16.mxu0 %v7601
    %8106 = vmatpush1.bf16.msra.mxu0 %v7600
    %8107 = vmatprep.subr.bf16.mxu0 %v7608
    %8108 = vmatpush1.bf16.msra.mxu0 %v7607
    %8109 = vmatprep.subr.bf16.mxu0 %v7615
    %8110 = vmatpush1.bf16.msra.mxu0 %v7614
    %8111 = vmatprep.subr.bf16.mxu0 %v7622
    %8112 = vmatpush1.bf16.msra.mxu0 %v7621
    %8113 = vmatprep.subr.bf16.mxu0 %v7629
    %8114 = vmatpush1.bf16.msra.mxu0 %v7628
    %8115 = vmatprep.mubr.bf16.mxu0 %v4638
    %8116 = vmatmul.mubr.bf16.gmra.mrb[0].mxu0 %v4637
    %v8117 = vpop.f32.mrb[0].mxu0
    %v8118 = vadd.f32 0.0, %v8117
    %v8119 = vpop.f32.mrb[0].mxu0
    %v8120 = vadd.f32 0.0, %v8119
    %v8121 = vpop.f32.mrb[0].mxu0
    %v8122 = vadd.f32 0.0, %v8121
    %v8123 = vpop.f32.mrb[0].mxu0
    %v8124 = vadd.f32 0.0, %v8123
    %8125 = vdwg.mxu0
    %8126 = vmatprep.subr.bf16.mxu0 %v7636
    %8127 = vmatpush1.bf16.msra.mxu0 %v7635
    %8128 = vmatprep.subr.bf16.mxu0 %v7643
    %8129 = vmatpush1.bf16.msra.mxu0 %v7642
    %8130 = vmatprep.subr.bf16.mxu0 %v7650
    %8131 = vmatpush1.bf16.msra.mxu0 %v7649
    %8132 = vmatprep.subr.bf16.mxu0 %v7657
    %8133 = vmatpush1.bf16.msra.mxu0 %v7656
    %8134 = vmatprep.subr.bf16.mxu0 %v7664
    %8135 = vmatpush1.bf16.msra.mxu0 %v7663
    %8136 = vmatprep.subr.bf16.mxu0 %v7671
    %8137 = vmatpush1.bf16.msra.mxu0 %v7670
    %8138 = vmatprep.subr.bf16.mxu0 %v7678
    %8139 = vmatpush1.bf16.msra.mxu0 %v7677
    %8140 = vmatprep.subr.bf16.mxu0 %v7685
    %8141 = vmatpush1.bf16.msra.mxu0 %v7684
    %8142 = vmatprep.subr.bf16.mxu0 %v7692
    %8143 = vmatpush1.bf16.msra.mxu0 %v7691
    %8144 = vmatprep.subr.bf16.mxu0 %v7699
    %8145 = vmatpush1.bf16.msra.mxu0 %v7698
    %8146 = vmatprep.subr.bf16.mxu0 %v7706
    %8147 = vmatpush1.bf16.msra.mxu0 %v7705
    %8148 = vmatprep.subr.bf16.mxu0 %v7713
    %8149 = vmatpush1.bf16.msra.mxu0 %v7712
    %8150 = vmatprep.subr.bf16.mxu0 0
    %8151 = vmatpush1.bf16.msra.mxu0 0
    %8152 = vmatprep.subr.bf16.mxu0 0
    %8153 = vmatpush1.bf16.msra.mxu0 0
    %8154 = vmatprep.subr.bf16.mxu0 0
    %8155 = vmatpush1.bf16.msra.mxu0 0
    %8156 = vmatprep.subr.bf16.mxu0 0
    %8157 = vmatpush1.bf16.msra.mxu0 0
    %8158 = vmatprep.mubr.bf16.mxu0 %v4645
    %8159 = vmatmul.mubr.bf16.gmra.mrb[0].mxu0 %v4639
    %v8160 = vpop.f32.mrb[0].mxu0
    %v8161 = vadd.f32 %v8118, %v8160
    %v8162 = vpop.f32.mrb[0].mxu0
    %v8163 = vadd.f32 %v8120, %v8162
    %v8164 = vpop.f32.mrb[0].mxu0
    %v8165 = vadd.f32 %v8122, %v8164
    %v8166 = vpop.f32.mrb[0].mxu0
    %v8167 = vadd.f32 %v8124, %v8166
    %8168 = vdwg.mxu0
    %8169 = vmatprep.subr.bf16.mxu0 0
    %8170 = vmatpush1.bf16.msra.mxu0 %v7525
    %8171 = vmatprep.subr.bf16.mxu0 0
    %8172 = vmatpush1.bf16.msra.mxu0 %v7532
    %8173 = vmatprep.subr.bf16.mxu0 0
    %8174 = vmatpush1.bf16.msra.mxu0 %v7539
    %8175 = vmatprep.subr.bf16.mxu0 0
    %8176 = vmatpush1.bf16.msra.mxu0 %v7546
    %8177 = vmatprep.subr.bf16.mxu0 0
    %8178 = vmatpush1.bf16.msra.mxu0 %v7553
    %8179 = vmatprep.subr.bf16.mxu0 0
    %8180 = vmatpush1.bf16.msra.mxu0 %v7560
    %8181 = vmatprep.subr.bf16.mxu0 0
    %8182 = vmatpush1.bf16.msra.mxu0 %v7567
    %8183 = vmatprep.subr.bf16.mxu0 0
    %8184 = vmatpush1.bf16.msra.mxu0 %v7574
    %8185 = vmatprep.subr.bf16.mxu0 0
    %8186 = vmatpush1.bf16.msra.mxu0 %v7581
    %8187 = vmatprep.subr.bf16.mxu0 0
    %8188 = vmatpush1.bf16.msra.mxu0 %v7588
    %8189 = vmatprep.subr.bf16.mxu0 0
    %8190 = vmatpush1.bf16.msra.mxu0 %v7595
    %8191 = vmatprep.subr.bf16.mxu0 0
    %8192 = vmatpush1.bf16.msra.mxu0 %v7602
    %8193 = vmatprep.subr.bf16.mxu0 0
    %8194 = vmatpush1.bf16.msra.mxu0 %v7609
    %8195 = vmatprep.subr.bf16.mxu0 0
    %8196 = vmatpush1.bf16.msra.mxu0 %v7616
    %8197 = vmatprep.subr.bf16.mxu0 0
    %8198 = vmatpush1.bf16.msra.mxu0 %v7623
    %8199 = vmatprep.subr.bf16.mxu0 0
    %8200 = vmatpush1.bf16.msra.mxu0 %v7630
    %8201 = vmatprep.mubr.bf16.mxu0 %v4638
    %8202 = vmatmul.mubr.bf16.gmra.mrb[0].mxu0 %v4637
    %v8203 = vpop.f32.mrb[0].mxu0
    %v8204 = vadd.f32 0.0, %v8203
    %v8205 = vpop.f32.mrb[0].mxu0
    %v8206 = vpop.f32.mrb[0].mxu0
    %v8207 = vadd.f32 0.0, %v8206
    %v8208 = vpop.f32.mrb[0].mxu0
    %8209 = vdwg.mxu0
    %8210 = vmatprep.subr.bf16.mxu0 0
    %8211 = vmatpush1.bf16.msra.mxu0 %v7637
    %8212 = vmatprep.subr.bf16.mxu0 0
    %8213 = vmatpush1.bf16.msra.mxu0 %v7644
    %8214 = vmatprep.subr.bf16.mxu0 0
    %8215 = vmatpush1.bf16.msra.mxu0 %v7651
    %8216 = vmatprep.subr.bf16.mxu0 0
    %8217 = vmatpush1.bf16.msra.mxu0 %v7658
    %8218 = vmatprep.subr.bf16.mxu0 0
    %8219 = vmatpush1.bf16.msra.mxu0 %v7665
    %8220 = vmatprep.subr.bf16.mxu0 0
    %8221 = vmatpush1.bf16.msra.mxu0 %v7672
    %8222 = vmatprep.subr.bf16.mxu0 0
    %8223 = vmatpush1.bf16.msra.mxu0 %v7679
    %8224 = vmatprep.subr.bf16.mxu0 0
    %8225 = vmatpush1.bf16.msra.mxu0 %v7686
    %8226 = vmatprep.subr.bf16.mxu0 0
    %8227 = vmatpush1.bf16.msra.mxu0 %v7693
    %8228 = vmatprep.subr.bf16.mxu0 0
    %8229 = vmatpush1.bf16.msra.mxu0 %v7700
    %8230 = vmatprep.subr.bf16.mxu0 0
    %8231 = vmatpush1.bf16.msra.mxu0 %v7707
    %8232 = vmatprep.subr.bf16.mxu0 0
    %8233 = vmatpush1.bf16.msra.mxu0 %v7714
    %8234 = vmatprep.subr.bf16.mxu0 0
    %8235 = vmatpush1.bf16.msra.mxu0 0
    %8236 = vmatprep.subr.bf16.mxu0 0
    %8237 = vmatpush1.bf16.msra.mxu0 0
    %8238 = vmatprep.subr.bf16.mxu0 0
    %8239 = vmatpush1.bf16.msra.mxu0 0
    %8240 = vmatprep.subr.bf16.mxu0 0
    %8241 = vmatpush1.bf16.msra.mxu0 0
    %8242 = vmatprep.mubr.bf16.mxu0 %v4645
    %8243 = vmatmul.mubr.bf16.gmra.mrb[0].mxu0 %v4639
    %v8244 = vpop.f32.mrb[0].mxu0
    %v8245 = vadd.f32 %v8204, %v8244
    %v8246 = vpop.f32.mrb[0].mxu0
    %v8247 = vpop.f32.mrb[0].mxu0
    %v8248 = vadd.f32 %v8207, %v8247
    %v8249 = vpop.f32.mrb[0].mxu0
    %8250 = vdwg.mxu0
    %v8255 = vrot.slane %v2829, 1
    %v8256 = vrot.slane %v2830, 1
    %v8257 = vrot.slane %v2831, 1
    %v8258 = vrot.slane %v2832, 1
    %v8263 = vsel %vm1415, %v8258, 0
    %8265 = vmatprep.subr.bf16.mxu0 %v7520
    %8266 = vmatpush1.bf16.msra.mxu0 %v7519
    %8267 = vmatprep.subr.bf16.mxu0 %v7527
    %8268 = vmatpush1.bf16.msra.mxu0 %v7526
    %8269 = vmatprep.subr.bf16.mxu0 %v7534
    %8270 = vmatpush1.bf16.msra.mxu0 %v7533
    %8271 = vmatprep.subr.bf16.mxu0 %v7541
    %8272 = vmatpush1.bf16.msra.mxu0 %v7540
    %8273 = vmatprep.subr.bf16.mxu0 %v7548
    %8274 = vmatpush1.bf16.msra.mxu0 %v7547
    %8275 = vmatprep.subr.bf16.mxu0 %v7555
    %8276 = vmatpush1.bf16.msra.mxu0 %v7554
    %8277 = vmatprep.subr.bf16.mxu0 %v7562
    %8278 = vmatpush1.bf16.msra.mxu0 %v7561
    %8279 = vmatprep.subr.bf16.mxu0 %v7569
    %8280 = vmatpush1.bf16.msra.mxu0 %v7568
    %8281 = vmatprep.subr.bf16.mxu0 %v7576
    %8282 = vmatpush1.bf16.msra.mxu0 %v7575
    %8283 = vmatprep.subr.bf16.mxu0 %v7583
    %8284 = vmatpush1.bf16.msra.mxu0 %v7582
    %8285 = vmatprep.subr.bf16.mxu0 %v7590
    %8286 = vmatpush1.bf16.msra.mxu0 %v7589
    %8287 = vmatprep.subr.bf16.mxu0 %v7597
    %8288 = vmatpush1.bf16.msra.mxu0 %v7596
    %8289 = vmatprep.subr.bf16.mxu0 %v7604
    %8290 = vmatpush1.bf16.msra.mxu0 %v7603
    %8291 = vmatprep.subr.bf16.mxu0 %v7611
    %8292 = vmatpush1.bf16.msra.mxu0 %v7610
    %8293 = vmatprep.subr.bf16.mxu0 %v7618
    %8294 = vmatpush1.bf16.msra.mxu0 %v7617
    %8295 = vmatprep.subr.bf16.mxu0 %v7625
    %8296 = vmatpush1.bf16.msra.mxu0 %v7624
    %8297 = vmatprep.mubr.bf16.mxu0 %v8256
    %8298 = vmatmul.mubr.bf16.gmra.mrb[0].mxu0 %v8255
    %v8299 = vpop.f32.mrb[0].mxu0
    %v8300 = vadd.f32 0.0, %v8299
    %v8301 = vpop.f32.mrb[0].mxu0
    %v8302 = vadd.f32 0.0, %v8301
    %v8303 = vpop.f32.mrb[0].mxu0
    %v8304 = vadd.f32 0.0, %v8303
    %v8305 = vpop.f32.mrb[0].mxu0
    %v8306 = vadd.f32 0.0, %v8305
    %8307 = vdwg.mxu0
    %8308 = vmatprep.subr.bf16.mxu0 %v7632
    %8309 = vmatpush1.bf16.msra.mxu0 %v7631
    %8310 = vmatprep.subr.bf16.mxu0 %v7639
    %8311 = vmatpush1.bf16.msra.mxu0 %v7638
    %8312 = vmatprep.subr.bf16.mxu0 %v7646
    %8313 = vmatpush1.bf16.msra.mxu0 %v7645
    %8314 = vmatprep.subr.bf16.mxu0 %v7653
    %8315 = vmatpush1.bf16.msra.mxu0 %v7652
    %8316 = vmatprep.subr.bf16.mxu0 %v7660
    %8317 = vmatpush1.bf16.msra.mxu0 %v7659
    %8318 = vmatprep.subr.bf16.mxu0 %v7667
    %8319 = vmatpush1.bf16.msra.mxu0 %v7666
    %8320 = vmatprep.subr.bf16.mxu0 %v7674
    %8321 = vmatpush1.bf16.msra.mxu0 %v7673
    %8322 = vmatprep.subr.bf16.mxu0 %v7681
    %8323 = vmatpush1.bf16.msra.mxu0 %v7680
    %8324 = vmatprep.subr.bf16.mxu0 %v7688
    %8325 = vmatpush1.bf16.msra.mxu0 %v7687
    %8326 = vmatprep.subr.bf16.mxu0 %v7695
    %8327 = vmatpush1.bf16.msra.mxu0 %v7694
    %8328 = vmatprep.subr.bf16.mxu0 %v7702
    %8329 = vmatpush1.bf16.msra.mxu0 %v7701
    %8330 = vmatprep.subr.bf16.mxu0 %v7709
    %8331 = vmatpush1.bf16.msra.mxu0 %v7708
    %8332 = vmatprep.subr.bf16.mxu0 0
    %8333 = vmatpush1.bf16.msra.mxu0 0
    %8334 = vmatprep.subr.bf16.mxu0 0
    %8335 = vmatpush1.bf16.msra.mxu0 0
    %8336 = vmatprep.subr.bf16.mxu0 0
    %8337 = vmatpush1.bf16.msra.mxu0 0
    %8338 = vmatprep.subr.bf16.mxu0 0
    %8339 = vmatpush1.bf16.msra.mxu0 0
    %8340 = vmatprep.mubr.bf16.mxu0 %v8263
    %8341 = vmatmul.mubr.bf16.gmra.mrb[0].mxu0 %v8257
    %v8342 = vpop.f32.mrb[0].mxu0
    %v8343 = vadd.f32 %v8300, %v8342
    %v8344 = vpop.f32.mrb[0].mxu0
    %v8345 = vadd.f32 %v8302, %v8344
    %v8346 = vpop.f32.mrb[0].mxu0
    %v8347 = vadd.f32 %v8304, %v8346
    %v8348 = vpop.f32.mrb[0].mxu0
    %v8349 = vadd.f32 %v8306, %v8348
    %8350 = vdwg.mxu0
    %8351 = vmatprep.subr.bf16.mxu0 %v7522
    %8352 = vmatpush1.bf16.msra.mxu0 %v7521
    %8353 = vmatprep.subr.bf16.mxu0 %v7529
    %8354 = vmatpush1.bf16.msra.mxu0 %v7528
    %8355 = vmatprep.subr.bf16.mxu0 %v7536
    %8356 = vmatpush1.bf16.msra.mxu0 %v7535
    %8357 = vmatprep.subr.bf16.mxu0 %v7543
    %8358 = vmatpush1.bf16.msra.mxu0 %v7542
    %8359 = vmatprep.subr.bf16.mxu0 %v7550
    %8360 = vmatpush1.bf16.msra.mxu0 %v7549
    %8361 = vmatprep.subr.bf16.mxu0 %v7557
    %8362 = vmatpush1.bf16.msra.mxu0 %v7556
    %8363 = vmatprep.subr.bf16.mxu0 %v7564
    %8364 = vmatpush1.bf16.msra.mxu0 %v7563
    %8365 = vmatprep.subr.bf16.mxu0 %v7571
    %8366 = vmatpush1.bf16.msra.mxu0 %v7570
    %8367 = vmatprep.subr.bf16.mxu0 %v7578
    %8368 = vmatpush1.bf16.msra.mxu0 %v7577
    %8369 = vmatprep.subr.bf16.mxu0 %v7585
    %8370 = vmatpush1.bf16.msra.mxu0 %v7584
    %8371 = vmatprep.subr.bf16.mxu0 %v7592
    %8372 = vmatpush1.bf16.msra.mxu0 %v7591
    %8373 = vmatprep.subr.bf16.mxu0 %v7599
    %8374 = vmatpush1.bf16.msra.mxu0 %v7598
    %8375 = vmatprep.subr.bf16.mxu0 %v7606
    %8376 = vmatpush1.bf16.msra.mxu0 %v7605
    %8377 = vmatprep.subr.bf16.mxu0 %v7613
    %8378 = vmatpush1.bf16.msra.mxu0 %v7612
    %8379 = vmatprep.subr.bf16.mxu0 %v7620
    %8380 = vmatpush1.bf16.msra.mxu0 %v7619
    %8381 = vmatprep.subr.bf16.mxu0 %v7627
    %8382 = vmatpush1.bf16.msra.mxu0 %v7626
    %8383 = vmatprep.mubr.bf16.mxu0 %v8256
    %8384 = vmatmul.mubr.bf16.gmra.mrb[0].mxu0 %v8255
    %v8385 = vpop.f32.mrb[0].mxu0
    %v8386 = vadd.f32 0.0, %v8385
    %v8387 = vpop.f32.mrb[0].mxu0
    %v8388 = vadd.f32 0.0, %v8387
    %v8389 = vpop.f32.mrb[0].mxu0
    %v8390 = vadd.f32 0.0, %v8389
    %v8391 = vpop.f32.mrb[0].mxu0
    %v8392 = vadd.f32 0.0, %v8391
    %8393 = vdwg.mxu0
    %8394 = vmatprep.subr.bf16.mxu0 %v7634
    %8395 = vmatpush1.bf16.msra.mxu0 %v7633
    %8396 = vmatprep.subr.bf16.mxu0 %v7641
    %8397 = vmatpush1.bf16.msra.mxu0 %v7640
    %8398 = vmatprep.subr.bf16.mxu0 %v7648
    %8399 = vmatpush1.bf16.msra.mxu0 %v7647
    %8400 = vmatprep.subr.bf16.mxu0 %v7655
    %8401 = vmatpush1.bf16.msra.mxu0 %v7654
    %8402 = vmatprep.subr.bf16.mxu0 %v7662
    %8403 = vmatpush1.bf16.msra.mxu0 %v7661
    %8404 = vmatprep.subr.bf16.mxu0 %v7669
    %8405 = vmatpush1.bf16.msra.mxu0 %v7668
    %8406 = vmatprep.subr.bf16.mxu0 %v7676
    %8407 = vmatpush1.bf16.msra.mxu0 %v7675
    %8408 = vmatprep.subr.bf16.mxu0 %v7683
    %8409 = vmatpush1.bf16.msra.mxu0 %v7682
    %8410 = vmatprep.subr.bf16.mxu0 %v7690
    %8411 = vmatpush1.bf16.msra.mxu0 %v7689
    %8412 = vmatprep.subr.bf16.mxu0 %v7697
    %8413 = vmatpush1.bf16.msra.mxu0 %v7696
    %8414 = vmatprep.subr.bf16.mxu0 %v7704
    %8415 = vmatpush1.bf16.msra.mxu0 %v7703
    %8416 = vmatprep.subr.bf16.mxu0 %v7711
    %8417 = vmatpush1.bf16.msra.mxu0 %v7710
    %8418 = vmatprep.subr.bf16.mxu0 0
    %8419 = vmatpush1.bf16.msra.mxu0 0
    %8420 = vmatprep.subr.bf16.mxu0 0
    %8421 = vmatpush1.bf16.msra.mxu0 0
    %8422 = vmatprep.subr.bf16.mxu0 0
    %8423 = vmatpush1.bf16.msra.mxu0 0
    %8424 = vmatprep.subr.bf16.mxu0 0
    %8425 = vmatpush1.bf16.msra.mxu0 0
    %8426 = vmatprep.mubr.bf16.mxu0 %v8263
    %8427 = vmatmul.mubr.bf16.gmra.mrb[0].mxu0 %v8257
    %v8428 = vpop.f32.mrb[0].mxu0
    %v8429 = vadd.f32 %v8386, %v8428
    %v8430 = vpop.f32.mrb[0].mxu0
    %v8431 = vadd.f32 %v8388, %v8430
    %v8432 = vpop.f32.mrb[0].mxu0
    %v8433 = vadd.f32 %v8390, %v8432
    %v8434 = vpop.f32.mrb[0].mxu0
    %v8435 = vadd.f32 %v8392, %v8434
    %8436 = vdwg.mxu0
    %8437 = vmatprep.subr.bf16.mxu0 %v7524
    %8438 = vmatpush1.bf16.msra.mxu0 %v7523
    %8439 = vmatprep.subr.bf16.mxu0 %v7531
    %8440 = vmatpush1.bf16.msra.mxu0 %v7530
    %8441 = vmatprep.subr.bf16.mxu0 %v7538
    %8442 = vmatpush1.bf16.msra.mxu0 %v7537
    %8443 = vmatprep.subr.bf16.mxu0 %v7545
    %8444 = vmatpush1.bf16.msra.mxu0 %v7544
    %8445 = vmatprep.subr.bf16.mxu0 %v7552
    %8446 = vmatpush1.bf16.msra.mxu0 %v7551
    %8447 = vmatprep.subr.bf16.mxu0 %v7559
    %8448 = vmatpush1.bf16.msra.mxu0 %v7558
    %8449 = vmatprep.subr.bf16.mxu0 %v7566
    %8450 = vmatpush1.bf16.msra.mxu0 %v7565
    %8451 = vmatprep.subr.bf16.mxu0 %v7573
    %8452 = vmatpush1.bf16.msra.mxu0 %v7572
    %8453 = vmatprep.subr.bf16.mxu0 %v7580
    %8454 = vmatpush1.bf16.msra.mxu0 %v7579
    %8455 = vmatprep.subr.bf16.mxu0 %v7587
    %8456 = vmatpush1.bf16.msra.mxu0 %v7586
    %8457 = vmatprep.subr.bf16.mxu0 %v7594
    %8458 = vmatpush1.bf16.msra.mxu0 %v7593
    %8459 = vmatprep.subr.bf16.mxu0 %v7601
    %8460 = vmatpush1.bf16.msra.mxu0 %v7600
    %8461 = vmatprep.subr.bf16.mxu0 %v7608
    %8462 = vmatpush1.bf16.msra.mxu0 %v7607
    %8463 = vmatprep.subr.bf16.mxu0 %v7615
    %8464 = vmatpush1.bf16.msra.mxu0 %v7614
    %8465 = vmatprep.subr.bf16.mxu0 %v7622
    %8466 = vmatpush1.bf16.msra.mxu0 %v7621
    %8467 = vmatprep.subr.bf16.mxu0 %v7629
    %8468 = vmatpush1.bf16.msra.mxu0 %v7628
    %8469 = vmatprep.mubr.bf16.mxu0 %v8256
    %8470 = vmatmul.mubr.bf16.gmra.mrb[0].mxu0 %v8255
    %v8471 = vpop.f32.mrb[0].mxu0
    %v8472 = vadd.f32 0.0, %v8471
    %v8473 = vpop.f32.mrb[0].mxu0
    %v8474 = vadd.f32 0.0, %v8473
    %v8475 = vpop.f32.mrb[0].mxu0
    %v8476 = vadd.f32 0.0, %v8475
    %v8477 = vpop.f32.mrb[0].mxu0
    %v8478 = vadd.f32 0.0, %v8477
    %8479 = vdwg.mxu0
    %8480 = vmatprep.subr.bf16.mxu0 %v7636
    %8481 = vmatpush1.bf16.msra.mxu0 %v7635
    %8482 = vmatprep.subr.bf16.mxu0 %v7643
    %8483 = vmatpush1.bf16.msra.mxu0 %v7642
    %8484 = vmatprep.subr.bf16.mxu0 %v7650
    %8485 = vmatpush1.bf16.msra.mxu0 %v7649
    %8486 = vmatprep.subr.bf16.mxu0 %v7657
    %8487 = vmatpush1.bf16.msra.mxu0 %v7656
    %8488 = vmatprep.subr.bf16.mxu0 %v7664
    %8489 = vmatpush1.bf16.msra.mxu0 %v7663
    %8490 = vmatprep.subr.bf16.mxu0 %v7671
    %8491 = vmatpush1.bf16.msra.mxu0 %v7670
    %8492 = vmatprep.subr.bf16.mxu0 %v7678
    %8493 = vmatpush1.bf16.msra.mxu0 %v7677
    %8494 = vmatprep.subr.bf16.mxu0 %v7685
    %8495 = vmatpush1.bf16.msra.mxu0 %v7684
    %8496 = vmatprep.subr.bf16.mxu0 %v7692
    %8497 = vmatpush1.bf16.msra.mxu0 %v7691
    %8498 = vmatprep.subr.bf16.mxu0 %v7699
    %8499 = vmatpush1.bf16.msra.mxu0 %v7698
    %8500 = vmatprep.subr.bf16.mxu0 %v7706
    %8501 = vmatpush1.bf16.msra.mxu0 %v7705
    %8502 = vmatprep.subr.bf16.mxu0 %v7713
    %8503 = vmatpush1.bf16.msra.mxu0 %v7712
    %8504 = vmatprep.subr.bf16.mxu0 0
    %8505 = vmatpush1.bf16.msra.mxu0 0
    %8506 = vmatprep.subr.bf16.mxu0 0
    %8507 = vmatpush1.bf16.msra.mxu0 0
    %8508 = vmatprep.subr.bf16.mxu0 0
    %8509 = vmatpush1.bf16.msra.mxu0 0
    %8510 = vmatprep.subr.bf16.mxu0 0
    %8511 = vmatpush1.bf16.msra.mxu0 0
    %8512 = vmatprep.mubr.bf16.mxu0 %v8263
    %8513 = vmatmul.mubr.bf16.gmra.mrb[0].mxu0 %v8257
    %v8514 = vpop.f32.mrb[0].mxu0
    %v8515 = vadd.f32 %v8472, %v8514
    %v8516 = vpop.f32.mrb[0].mxu0
    %v8517 = vadd.f32 %v8474, %v8516
    %v8518 = vpop.f32.mrb[0].mxu0
    %v8519 = vadd.f32 %v8476, %v8518
    %v8520 = vpop.f32.mrb[0].mxu0
    %v8521 = vadd.f32 %v8478, %v8520
    %8522 = vdwg.mxu0
    %8523 = vmatprep.subr.bf16.mxu0 0
    %8524 = vmatpush1.bf16.msra.mxu0 %v7525
    %8525 = vmatprep.subr.bf16.mxu0 0
    %8526 = vmatpush1.bf16.msra.mxu0 %v7532
    %8527 = vmatprep.subr.bf16.mxu0 0
    %8528 = vmatpush1.bf16.msra.mxu0 %v7539
    %8529 = vmatprep.subr.bf16.mxu0 0
    %8530 = vmatpush1.bf16.msra.mxu0 %v7546
    %8531 = vmatprep.subr.bf16.mxu0 0
    %8532 = vmatpush1.bf16.msra.mxu0 %v7553
    %8533 = vmatprep.subr.bf16.mxu0 0
    %8534 = vmatpush1.bf16.msra.mxu0 %v7560
    %8535 = vmatprep.subr.bf16.mxu0 0
    %8536 = vmatpush1.bf16.msra.mxu0 %v7567
    %8537 = vmatprep.subr.bf16.mxu0 0
    %8538 = vmatpush1.bf16.msra.mxu0 %v7574
    %8539 = vmatprep.subr.bf16.mxu0 0
    %8540 = vmatpush1.bf16.msra.mxu0 %v7581
    %8541 = vmatprep.subr.bf16.mxu0 0
    %8542 = vmatpush1.bf16.msra.mxu0 %v7588
    %8543 = vmatprep.subr.bf16.mxu0 0
    %8544 = vmatpush1.bf16.msra.mxu0 %v7595
    %8545 = vmatprep.subr.bf16.mxu0 0
    %8546 = vmatpush1.bf16.msra.mxu0 %v7602
    %8547 = vmatprep.subr.bf16.mxu0 0
    %8548 = vmatpush1.bf16.msra.mxu0 %v7609
    %8549 = vmatprep.subr.bf16.mxu0 0
    %8550 = vmatpush1.bf16.msra.mxu0 %v7616
    %8551 = vmatprep.subr.bf16.mxu0 0
    %8552 = vmatpush1.bf16.msra.mxu0 %v7623
    %8553 = vmatprep.subr.bf16.mxu0 0
    %8554 = vmatpush1.bf16.msra.mxu0 %v7630
    %8555 = vmatprep.mubr.bf16.mxu0 %v8256
    %8556 = vmatmul.mubr.bf16.gmra.mrb[0].mxu0 %v8255
    %v8557 = vpop.f32.mrb[0].mxu0
    %v8558 = vadd.f32 0.0, %v8557
    %v8559 = vpop.f32.mrb[0].mxu0
    %v8560 = vpop.f32.mrb[0].mxu0
    %v8561 = vadd.f32 0.0, %v8560
    %v8562 = vpop.f32.mrb[0].mxu0
    %8563 = vdwg.mxu0
    %8564 = vmatprep.subr.bf16.mxu0 0
    %8565 = vmatpush1.bf16.msra.mxu0 %v7637
    %8566 = vmatprep.subr.bf16.mxu0 0
    %8567 = vmatpush1.bf16.msra.mxu0 %v7644
    %8568 = vmatprep.subr.bf16.mxu0 0
    %8569 = vmatpush1.bf16.msra.mxu0 %v7651
    %8570 = vmatprep.subr.bf16.mxu0 0
    %8571 = vmatpush1.bf16.msra.mxu0 %v7658
    %8572 = vmatprep.subr.bf16.mxu0 0
    %8573 = vmatpush1.bf16.msra.mxu0 %v7665
    %8574 = vmatprep.subr.bf16.mxu0 0
    %8575 = vmatpush1.bf16.msra.mxu0 %v7672
    %8576 = vmatprep.subr.bf16.mxu0 0
    %8577 = vmatpush1.bf16.msra.mxu0 %v7679
    %8578 = vmatprep.subr.bf16.mxu0 0
    %8579 = vmatpush1.bf16.msra.mxu0 %v7686
    %8580 = vmatprep.subr.bf16.mxu0 0
    %8581 = vmatpush1.bf16.msra.mxu0 %v7693
    %8582 = vmatprep.subr.bf16.mxu0 0
    %8583 = vmatpush1.bf16.msra.mxu0 %v7700
    %8584 = vmatprep.subr.bf16.mxu0 0
    %8585 = vmatpush1.bf16.msra.mxu0 %v7707
    %8586 = vmatprep.subr.bf16.mxu0 0
    %8587 = vmatpush1.bf16.msra.mxu0 %v7714
    %8588 = vmatprep.subr.bf16.mxu0 0
    %8589 = vmatpush1.bf16.msra.mxu0 0
    %8590 = vmatprep.subr.bf16.mxu0 0
    %8591 = vmatpush1.bf16.msra.mxu0 0
    %8592 = vmatprep.subr.bf16.mxu0 0
    %8593 = vmatpush1.bf16.msra.mxu0 0
    %8594 = vmatprep.subr.bf16.mxu0 0
    %8595 = vmatpush1.bf16.msra.mxu0 0
    %8596 = vmatprep.mubr.bf16.mxu0 %v8263
    %8597 = vmatmul.mubr.bf16.gmra.mrb[0].mxu0 %v8257
    %v8598 = vpop.f32.mrb[0].mxu0
    %v8599 = vadd.f32 %v8558, %v8598
    %v8600 = vpop.f32.mrb[0].mxu0
    %v8601 = vpop.f32.mrb[0].mxu0
    %v8602 = vadd.f32 %v8561, %v8601
    %v8603 = vpop.f32.mrb[0].mxu0
    %8604 = vdwg.mxu0
    %v8605 = vadd.f32 %v6076, %v7989
    %v8606 = vadd.f32 %v6078, %v7991
    %v8607 = vadd.f32 %v6162, %v8075
    %v8608 = vadd.f32 %v6164, %v8077
    %v8609 = vadd.f32 %v6248, %v8161
    %v8610 = vadd.f32 %v6250, %v8163
    %v8611 = vadd.f32 %v6332, %v8245
    %v8612 = vadd.f32 %v6080, %v7993
    %v8613 = vadd.f32 %v6082, %v7995
    %v8614 = vadd.f32 %v6166, %v8079
    %v8615 = vadd.f32 %v6168, %v8081
    %v8616 = vadd.f32 %v6252, %v8165
    %v8617 = vadd.f32 %v6254, %v8167
    %v8618 = vadd.f32 %v6335, %v8248
    %v8619 = vadd.f32 %v6416, %v8343
    %v8620 = vadd.f32 %v6418, %v8345
    %v8621 = vadd.f32 %v6502, %v8429
    %v8622 = vadd.f32 %v6504, %v8431
    %v8623 = vadd.f32 %v6588, %v8515
    %v8624 = vadd.f32 %v6590, %v8517
    %v8625 = vadd.f32 %v6672, %v8599
    %v8626 = vadd.f32 %v6420, %v8347
    %v8627 = vadd.f32 %v6422, %v8349
    %v8628 = vadd.f32 %v6506, %v8433
    %v8629 = vadd.f32 %v6508, %v8435
    %v8630 = vadd.f32 %v6592, %v8519
    %v8631 = vadd.f32 %v6594, %v8521
    %v8632 = vadd.f32 %v6675, %v8602
    %v8633 = vmax.f32 %v8605, %v8619
    %v8634 = vmax.f32 %v8606, %v8620
    %v8635 = vmax.f32 %v8607, %v8621
    %v8636 = vmax.f32 %v8608, %v8622
    %v8637 = vmax.f32 %v8609, %v8623
    %v8638 = vmax.f32 %v8610, %v8624
    %v8639 = vmax.f32 %v8611, %v8625
    %v8640 = vmax.f32 %v8612, %v8626
    %v8641 = vmax.f32 %v8613, %v8627
    %v8642 = vmax.f32 %v8614, %v8628
    %v8643 = vmax.f32 %v8615, %v8629
    %v8644 = vmax.f32 %v8616, %v8630
    %v8645 = vmax.f32 %v8617, %v8631
    %v8646 = vmax.f32 %v8618, %v8632
    %8655 = vrot.lane.b32.xlu0 %v8636, 64
    %v8656 = vpop.permute.xlu0 %8655
    %8657 = vrot.lane.b32.xlu0 %v8637, 64
    %v8658 = vpop.permute.xlu0 %8657
    %8659 = vrot.lane.b32.xlu0 %v8638, 64
    %v8660 = vpop.permute.xlu0 %8659
    %8661 = vrot.lane.b32.xlu0 %v8639, 64
    %v8662 = vpop.permute.xlu0 %8661
    %8663 = vrot.lane.b32.xlu0 %v8643, 64
    %v8664 = vpop.permute.xlu0 %8663
    %8665 = vrot.lane.b32.xlu0 %v8644, 64
    %v8666 = vpop.permute.xlu0 %8665
    %8667 = vrot.lane.b32.xlu0 %v8645, 64
    %v8668 = vpop.permute.xlu0 %8667
    %8669 = vrot.lane.b32.xlu0 %v8646, 64
    %v8670 = vpop.permute.xlu0 %8669
    %v8671 = vsel %vm1415, %v8656, %v8658
    %v8672 = vsel %vm1415, %v8658, %v8660
    %v8673 = vsel %vm1415, %v8660, %v8662
    %v8674 = vsel %vm1415, %v8664, %v8666
    %v8675 = vsel %vm1415, %v8666, %v8668
    %v8676 = vsel %vm1415, %v8668, %v8670
    %v8685 = vmax.f32 %v8633, %v8671
    %v8686 = vmax.f32 %v8634, %v8672
    %v8687 = vmax.f32 %v8635, %v8673
    %v8688 = vmax.f32 %v8636, %v8662
    %v8689 = vmax.f32 %v8640, %v8674
    %v8690 = vmax.f32 %v8641, %v8675
    %v8691 = vmax.f32 %v8642, %v8676
    %v8692 = vmax.f32 %v8643, %v8670
    %v8693 = vld [vmem:[#allocation11] sm:$0xf]
    %v8695 = vlaneseq
    %v8696 = vshrl.u32 %v8695, 7
    %v8697 = vsub.s32 0, %v8696
    %v8698 = vrot.slane %v8693, %v8697
    %v8699 = vlaneseq
    %v8700 = vshrl.u32 %v8699, 7
    %v8701 = vsub.s32 1, %v8700
    %v8702 = vrot.slane %v8693, %v8701
    %v8703 = vlaneseq
    %v8704 = vshrl.u32 %v8703, 7
    %v8705 = vsub.s32 2, %v8704
    %v8706 = vrot.slane %v8693, %v8705
    %v8707 = vlaneseq
    %v8708 = vshrl.u32 %v8707, 7
    %v8709 = vsub.s32 3, %v8708
    %v8710 = vrot.slane %v8693, %v8709
    %v8715 = vadd.f32 %v8685, %v8698
    %v8716 = vadd.f32 %v8686, %v8702
    %v8717 = vadd.f32 %v8687, %v8706
    %v8718 = vadd.f32 %v8688, %v8710
    %v8719 = vadd.f32 %v8689, %v8698
    %v8720 = vadd.f32 %v8690, %v8702
    %v8721 = vadd.f32 %v8691, %v8706
    %v8722 = vadd.f32 %v8692, %v8710
    %v8723 = vmax.f32 %v8715, 0.0
    %v8724 = vmax.f32 %v8716, 0.0
    %v8725 = vmax.f32 %v8717, 0.0
    %v8726 = vmax.f32 %v8718, 0.0
    %v8727 = vmax.f32 %v8719, 0.0
    %v8728 = vmax.f32 %v8720, 0.0
    %v8729 = vmax.f32 %v8721, 0.0
    %v8730 = vmax.f32 %v8722, 0.0
    %v8731 = vpack.c.bf16 %v8727, %v8723
    %v8732 = vpack.c.bf16 %v8728, %v8724
    %v8733 = vpack.c.bf16 %v8729, %v8725
    %v8734 = vpack.c.bf16 %v8730, %v8726
    %v8739 = vunpack.c.l.b16 %v8731
    %v8740 = vunpack.c.l.b16 %v8732
    %v8741 = vunpack.c.l.b16 %v8733
    %v8742 = vunpack.c.l.b16 %v8734
    %v8743 = vunpack.c.h.b16 %v8731
    %v8744 = vunpack.c.h.b16 %v8732
    %v8745 = vunpack.c.h.b16 %v8733
    %v8746 = vunpack.c.h.b16 %v8734
    %v8747 = vpack.c.b16 %v8740, %v8739
    %v8748 = vpack.c.b16 %v8742, %v8741
    %v8749 = vpack.c.b16 %v8744, %v8743
    %v8750 = vpack.c.b16 %v8746, %v8745
    %8755 = vst [vmem:[#allocation4] sm:$0xff] %v8747
    %vm8756 = vcmask 523268
    %vm8757 = vmor %vm8756, %vm1033
    %8758 = vst.msk [vmem:[#allocation4 + $0x8] sm:$0xff] %vm8757, %v8748
    %8759 = vst [vmem:[#allocation4 + $0x10] sm:$0x77] %v8749
    %vm8760 = vcmask 1042432
    %vm8761 = vcmask 522244
    %vm8762 = vmor %vm8761, %vm8760
    %8763 = vst.msk [vmem:[#allocation4 + $0x18] sm:$0x77] %vm8762, %v8750
    %v8764 = vld [vmem:[#allocation4] sm:$0x11]
    %v8765 = vld [vmem:[#allocation4 + $0x8] sm:$0x11]
    %v8766 = vld [vmem:[#allocation13] sm:$0xf]
    %v8767 = vld [vmem:[#allocation13 + $0x4] sm:$0xf]
    %v8768 = vld [vmem:[#allocation13 + $0x8] sm:$0xf]
    %v8769 = vld [vmem:[#allocation13 + $0xc] sm:$0xf]
    %v8770 = vld [vmem:[#allocation13 + $0x10] sm:$0xf]
    %v8771 = vld [vmem:[#allocation13 + $0x14] sm:$0xf]
    %v8772 = vld [vmem:[#allocation13 + $0x18] sm:$0xf]
    %v8773 = vld [vmem:[#allocation13 + $0x1c] sm:$0xf]
    %v8774 = vld [vmem:[#allocation13 + $0x20] sm:$0xf]
    %v8775 = vld [vmem:[#allocation13 + $0x24] sm:$0xf]
    %v8776 = vld [vmem:[#allocation13 + $0x28] sm:$0xf]
    %v8777 = vld [vmem:[#allocation13 + $0x2c] sm:$0xf]
    %v8778 = vld [vmem:[#allocation13 + $0x30] sm:$0xf]
    %v8779 = vld [vmem:[#allocation13 + $0x34] sm:$0xf]
    %v8780 = vld [vmem:[#allocation13 + $0x38] sm:$0xf]
    %v8781 = vld [vmem:[#allocation13 + $0x3c] sm:$0xf]
    %v8782 = vld [vmem:[#allocation13 + $0x40] sm:$0xf]
    %v8783 = vld [vmem:[#allocation13 + $0x44] sm:$0xf]
    %v8784 = vld [vmem:[#allocation13 + $0x48] sm:$0xf]
    %v8785 = vld [vmem:[#allocation13 + $0x4c] sm:$0xf]
    %v8786 = vld [vmem:[#allocation13 + $0x50] sm:$0xf]
    %v8787 = vld [vmem:[#allocation13 + $0x54] sm:$0xf]
    %v8788 = vld [vmem:[#allocation13 + $0x58] sm:$0xf]
    %v8789 = vld [vmem:[#allocation13 + $0x5c] sm:$0xf]
    %v8790 = vld [vmem:[#allocation13 + $0x60] sm:$0xf]
    %v8791 = vld [vmem:[#allocation13 + $0x64] sm:$0xf]
    %v8792 = vld [vmem:[#allocation13 + $0x68] sm:$0xf]
    %v8793 = vld [vmem:[#allocation13 + $0x6c] sm:$0xf]
    %v8794 = vld [vmem:[#allocation13 + $0x70] sm:$0xf]
    %v8795 = vld [vmem:[#allocation13 + $0x74] sm:$0xf]
    %v8796 = vld [vmem:[#allocation13 + $0x78] sm:$0xf]
    %v8797 = vld [vmem:[#allocation13 + $0x7c] sm:$0xf]
    %v8798 = vld [vmem:[#allocation13 + $0x80] sm:$0xf]
    %v8799 = vld [vmem:[#allocation13 + $0x84] sm:$0xf]
    %v8800 = vld [vmem:[#allocation13 + $0x88] sm:$0xf]
    %v8801 = vld [vmem:[#allocation13 + $0x8c] sm:$0xf]
    %v8802 = vld [vmem:[#allocation13 + $0x90] sm:$0xf]
    %v8803 = vld [vmem:[#allocation13 + $0x94] sm:$0xf]
    %v8804 = vld [vmem:[#allocation13 + $0x98] sm:$0xf]
    %v8805 = vld [vmem:[#allocation13 + $0x9c] sm:$0xf]
    %v8806 = vld [vmem:[#allocation13 + $0xa0] sm:$0xf]
    %v8807 = vld [vmem:[#allocation13 + $0xa4] sm:$0xf]
    %v8808 = vld [vmem:[#allocation13 + $0xa8] sm:$0xf]
    %v8809 = vld [vmem:[#allocation13 + $0xac] sm:$0xf]
    %v8810 = vld [vmem:[#allocation13 + $0xb0] sm:$0xf]
    %v8811 = vld [vmem:[#allocation13 + $0xb4] sm:$0xf]
    %v8812 = vld [vmem:[#allocation13 + $0xb8] sm:$0xf]
    %v8813 = vld [vmem:[#allocation13 + $0xbc] sm:$0xf]
    %v8814 = vld [vmem:[#allocation13 + $0xc0] sm:$0xf]
    %v8815 = vld [vmem:[#allocation13 + $0xc4] sm:$0xf]
    %v8816 = vld [vmem:[#allocation13 + $0xc8] sm:$0xf]
    %v8817 = vld [vmem:[#allocation13 + $0xcc] sm:$0xf]
    %v8818 = vld [vmem:[#allocation13 + $0xd0] sm:$0xf]
    %v8819 = vld [vmem:[#allocation13 + $0xd4] sm:$0xf]
    %v8820 = vld [vmem:[#allocation13 + $0xd8] sm:$0xf]
    %v8821 = vld [vmem:[#allocation13 + $0xdc] sm:$0xf]
    %v8822 = vld [vmem:[#allocation4] sm:$0x22]
    %v8823 = vld [vmem:[#allocation4 + $0x8] sm:$0x22]
    %s8824 = scalar_lea.vmem [#allocation13], 224
    %v8825 = vld [vmem:[%s8824] sm:$0xf]
    %v8826 = vld [vmem:[%s8824 + $0x4] sm:$0xf]
    %v8827 = vld [vmem:[%s8824 + $0x8] sm:$0xf]
    %v8828 = vld [vmem:[%s8824 + $0xc] sm:$0xf]
    %v8829 = vld [vmem:[%s8824 + $0x10] sm:$0xf]
    %v8830 = vld [vmem:[%s8824 + $0x14] sm:$0xf]
    %v8831 = vld [vmem:[%s8824 + $0x18] sm:$0xf]
    %v8832 = vld [vmem:[%s8824 + $0x1c] sm:$0xf]
    %v8833 = vld [vmem:[%s8824 + $0x20] sm:$0xf]
    %v8834 = vld [vmem:[%s8824 + $0x24] sm:$0xf]
    %v8835 = vld [vmem:[%s8824 + $0x28] sm:$0xf]
    %v8836 = vld [vmem:[%s8824 + $0x2c] sm:$0xf]
    %v8837 = vld [vmem:[%s8824 + $0x30] sm:$0xf]
    %v8838 = vld [vmem:[%s8824 + $0x34] sm:$0xf]
    %v8839 = vld [vmem:[%s8824 + $0x38] sm:$0xf]
    %v8840 = vld [vmem:[%s8824 + $0x3c] sm:$0xf]
    %v8841 = vld [vmem:[%s8824 + $0x40] sm:$0xf]
    %v8842 = vld [vmem:[%s8824 + $0x44] sm:$0xf]
    %v8843 = vld [vmem:[%s8824 + $0x48] sm:$0xf]
    %v8844 = vld [vmem:[%s8824 + $0x4c] sm:$0xf]
    %v8845 = vld [vmem:[%s8824 + $0x50] sm:$0xf]
    %v8846 = vld [vmem:[%s8824 + $0x54] sm:$0xf]
    %v8847 = vld [vmem:[%s8824 + $0x58] sm:$0xf]
    %v8848 = vld [vmem:[%s8824 + $0x5c] sm:$0xf]
    %v8849 = vld [vmem:[%s8824 + $0x60] sm:$0xf]
    %v8850 = vld [vmem:[%s8824 + $0x64] sm:$0xf]
    %v8851 = vld [vmem:[%s8824 + $0x68] sm:$0xf]
    %v8852 = vld [vmem:[%s8824 + $0x6c] sm:$0xf]
    %v8853 = vld [vmem:[%s8824 + $0x70] sm:$0xf]
    %v8854 = vld [vmem:[%s8824 + $0x74] sm:$0xf]
    %v8855 = vld [vmem:[%s8824 + $0x78] sm:$0xf]
    %v8856 = vld [vmem:[%s8824 + $0x7c] sm:$0xf]
    %v8857 = vld [vmem:[%s8824 + $0x80] sm:$0xf]
    %v8858 = vld [vmem:[%s8824 + $0x84] sm:$0xf]
    %v8859 = vld [vmem:[%s8824 + $0x88] sm:$0xf]
    %v8860 = vld [vmem:[%s8824 + $0x8c] sm:$0xf]
    %v8861 = vld [vmem:[%s8824 + $0x90] sm:$0xf]
    %v8862 = vld [vmem:[%s8824 + $0x94] sm:$0xf]
    %v8863 = vld [vmem:[%s8824 + $0x98] sm:$0xf]
    %v8864 = vld [vmem:[%s8824 + $0x9c] sm:$0xf]
    %v8865 = vld [vmem:[%s8824 + $0xa0] sm:$0xf]
    %v8866 = vld [vmem:[%s8824 + $0xa4] sm:$0xf]
    %v8867 = vld [vmem:[%s8824 + $0xa8] sm:$0xf]
    %v8868 = vld [vmem:[%s8824 + $0xac] sm:$0xf]
    %v8869 = vld [vmem:[%s8824 + $0xb0] sm:$0xf]
    %v8870 = vld [vmem:[%s8824 + $0xb4] sm:$0xf]
    %v8871 = vld [vmem:[%s8824 + $0xb8] sm:$0xf]
    %v8872 = vld [vmem:[%s8824 + $0xbc] sm:$0xf]
    %v8873 = vld [vmem:[%s8824 + $0xc0] sm:$0xf]
    %v8874 = vld [vmem:[%s8824 + $0xc4] sm:$0xf]
    %v8875 = vld [vmem:[%s8824 + $0xc8] sm:$0xf]
    %v8876 = vld [vmem:[%s8824 + $0xcc] sm:$0xf]
    %v8877 = vld [vmem:[%s8824 + $0xd0] sm:$0xf]
    %v8878 = vld [vmem:[%s8824 + $0xd4] sm:$0xf]
    %v8879 = vld [vmem:[%s8824 + $0xd8] sm:$0xf]
    %v8880 = vld [vmem:[%s8824 + $0xdc] sm:$0xf]
    %v8883 = vunpack.c.l.b16 %v8822
    %v8884 = vunpack.c.h.b16 %v8822
    %v8885 = vunpack.c.l.b16 %v8823
    %v8886 = vunpack.c.h.b16 %v8823
    %v8887 = vpack.c.b16 %v8883, %v8883
    %v8888 = vpack.c.b16 %v8884, %v8884
    %v8889 = vpack.c.b16 %v8885, %v8885
    %v8890 = vpack.c.b16 %v8886, %v8886
    %v8891 = vrot.slane %v8887, 1
    %v8892 = vrot.slane %v8888, 1
    %v8893 = vrot.slane %v8889, 1
    %v8894 = vrot.slane %v8890, 1
    %v8954 = vunpack.c.l.b16 %v8825
    %v8955 = vunpack.c.l.b16 %v8826
    %v8956 = vunpack.c.l.b16 %v8827
    %v8957 = vunpack.c.l.b16 %v8828
    %v8958 = vunpack.c.l.b16 %v8829
    %v8959 = vunpack.c.l.b16 %v8830
    %v8960 = vunpack.c.l.b16 %v8831
    %v8961 = vunpack.c.l.b16 %v8832
    %v8962 = vunpack.c.l.b16 %v8833
    %v8963 = vunpack.c.l.b16 %v8834
    %v8964 = vunpack.c.l.b16 %v8835
    %v8965 = vunpack.c.l.b16 %v8836
    %v8966 = vunpack.c.l.b16 %v8837
    %v8967 = vunpack.c.l.b16 %v8838
    %v8968 = vunpack.c.l.b16 %v8839
    %v8969 = vunpack.c.l.b16 %v8840
    %v8970 = vunpack.c.l.b16 %v8841
    %v8971 = vunpack.c.l.b16 %v8842
    %v8972 = vunpack.c.l.b16 %v8843
    %v8973 = vunpack.c.l.b16 %v8844
    %v8974 = vunpack.c.l.b16 %v8845
    %v8975 = vunpack.c.l.b16 %v8846
    %v8976 = vunpack.c.l.b16 %v8847
    %v8977 = vunpack.c.l.b16 %v8848
    %v8978 = vunpack.c.l.b16 %v8849
    %v8979 = vunpack.c.l.b16 %v8850
    %v8980 = vunpack.c.l.b16 %v8851
    %v8981 = vunpack.c.l.b16 %v8852
    %v8982 = vunpack.c.l.b16 %v8853
    %v8983 = vunpack.c.l.b16 %v8854
    %v8984 = vunpack.c.l.b16 %v8855
    %v8985 = vunpack.c.l.b16 %v8856
    %v8986 = vunpack.c.l.b16 %v8857
    %v8987 = vunpack.c.l.b16 %v8858
    %v8988 = vunpack.c.l.b16 %v8859
    %v8989 = vunpack.c.l.b16 %v8860
    %v8990 = vunpack.c.l.b16 %v8861
    %v8991 = vunpack.c.l.b16 %v8862
    %v8992 = vunpack.c.l.b16 %v8863
    %v8993 = vunpack.c.l.b16 %v8864
    %v8994 = vunpack.c.l.b16 %v8865
    %v8995 = vunpack.c.l.b16 %v8866
    %v8996 = vunpack.c.l.b16 %v8867
    %v8997 = vunpack.c.l.b16 %v8868
    %v8998 = vunpack.c.l.b16 %v8869
    %v8999 = vunpack.c.l.b16 %v8870
    %v9000 = vunpack.c.l.b16 %v8871
    %v9001 = vunpack.c.l.b16 %v8872
    %v9002 = vunpack.c.l.b16 %v8873
    %v9003 = vunpack.c.l.b16 %v8874
    %v9004 = vunpack.c.l.b16 %v8875
    %v9005 = vunpack.c.l.b16 %v8876
    %v9006 = vunpack.c.l.b16 %v8877
    %v9007 = vunpack.c.l.b16 %v8878
    %v9008 = vunpack.c.l.b16 %v8879
    %v9009 = vunpack.c.l.b16 %v8880
    %v9010 = vpack.c.b16 %v8955, %v8954
    %v9011 = vpack.c.b16 %v8957, %v8956
    %v9012 = vpack.c.b16 %v8959, %v8958
    %v9013 = vpack.c.b16 %v8961, %v8960
    %v9014 = vpack.c.b16 %v8963, %v8962
    %v9015 = vpack.c.b16 %v8965, %v8964
    %v9016 = vpack.c.b16 %v8967, %v8966
    %v9017 = vpack.c.b16 %v8969, %v8968
    %v9018 = vpack.c.b16 %v8971, %v8970
    %v9019 = vpack.c.b16 %v8973, %v8972
    %v9020 = vpack.c.b16 %v8975, %v8974
    %v9021 = vpack.c.b16 %v8977, %v8976
    %v9022 = vpack.c.b16 %v8979, %v8978
    %v9023 = vpack.c.b16 %v8981, %v8980
    %v9024 = vpack.c.b16 %v8983, %v8982
    %v9025 = vpack.c.b16 %v8985, %v8984
    %v9026 = vpack.c.b16 %v8987, %v8986
    %v9027 = vpack.c.b16 %v8989, %v8988
    %v9028 = vpack.c.b16 %v8991, %v8990
    %v9029 = vpack.c.b16 %v8993, %v8992
    %v9030 = vpack.c.b16 %v8995, %v8994
    %v9031 = vpack.c.b16 %v8997, %v8996
    %v9032 = vpack.c.b16 %v8999, %v8998
    %v9033 = vpack.c.b16 %v9001, %v9000
    %v9034 = vpack.c.b16 %v9003, %v9002
    %v9035 = vpack.c.b16 %v9005, %v9004
    %v9036 = vpack.c.b16 %v9007, %v9006
    %v9037 = vpack.c.b16 %v9009, %v9008
    %v9067 = vsel %vm1415, %v8894, 0
    %9069 = vmatprep.subr.bf16.mxu0 0
    %9070 = vmatpush1.bf16.msra.mxu0 %v9010
    %9071 = vmatprep.subr.bf16.mxu0 0
    %9072 = vmatpush1.bf16.msra.mxu0 %v9011
    %9073 = vmatprep.subr.bf16.mxu0 0
    %9074 = vmatpush1.bf16.msra.mxu0 %v9012
    %9075 = vmatprep.subr.bf16.mxu0 0
    %9076 = vmatpush1.bf16.msra.mxu0 %v9013
    %9077 = vmatprep.subr.bf16.mxu0 0
    %9078 = vmatpush1.bf16.msra.mxu0 %v9014
    %9079 = vmatprep.subr.bf16.mxu0 0
    %9080 = vmatpush1.bf16.msra.mxu0 %v9015
    %9081 = vmatprep.subr.bf16.mxu0 0
    %9082 = vmatpush1.bf16.msra.mxu0 %v9016
    %9083 = vmatprep.subr.bf16.mxu0 0
    %9084 = vmatpush1.bf16.msra.mxu0 %v9017
    %9085 = vmatprep.subr.bf16.mxu0 0
    %9086 = vmatpush1.bf16.msra.mxu0 %v9018
    %9087 = vmatprep.subr.bf16.mxu0 0
    %9088 = vmatpush1.bf16.msra.mxu0 %v9019
    %9089 = vmatprep.subr.bf16.mxu0 0
    %9090 = vmatpush1.bf16.msra.mxu0 %v9020
    %9091 = vmatprep.subr.bf16.mxu0 0
    %9092 = vmatpush1.bf16.msra.mxu0 %v9021
    %9093 = vmatprep.subr.bf16.mxu0 0
    %9094 = vmatpush1.bf16.msra.mxu0 %v9022
    %9095 = vmatprep.subr.bf16.mxu0 0
    %9096 = vmatpush1.bf16.msra.mxu0 %v9023
    %9097 = vmatprep.subr.bf16.mxu0 0
    %9098 = vmatpush1.bf16.msra.mxu0 %v9024
    %9099 = vmatprep.subr.bf16.mxu0 0
    %9100 = vmatpush1.bf16.msra.mxu0 %v9025
    %9101 = vmatprep.mubr.bf16.mxu0 %v8892
    %9102 = vmatmul.mubr.bf16.gmra.mrb[0].mxu0 %v8891
    %v9103 = vpop.f32.mrb[0].mxu0
    %v9104 = vadd.f32 0.0, %v9103
    %v9105 = vpop.f32.mrb[0].mxu0
    %v9106 = vpop.f32.mrb[0].mxu0
    %v9107 = vpop.f32.mrb[0].mxu0
    %9108 = vdwg.mxu0
    %9109 = vmatprep.subr.bf16.mxu0 0
    %9110 = vmatpush1.bf16.msra.mxu0 %v9026
    %9111 = vmatprep.subr.bf16.mxu0 0
    %9112 = vmatpush1.bf16.msra.mxu0 %v9027
    %9113 = vmatprep.subr.bf16.mxu0 0
    %9114 = vmatpush1.bf16.msra.mxu0 %v9028
    %9115 = vmatprep.subr.bf16.mxu0 0
    %9116 = vmatpush1.bf16.msra.mxu0 %v9029
    %9117 = vmatprep.subr.bf16.mxu0 0
    %9118 = vmatpush1.bf16.msra.mxu0 %v9030
    %9119 = vmatprep.subr.bf16.mxu0 0
    %9120 = vmatpush1.bf16.msra.mxu0 %v9031
    %9121 = vmatprep.subr.bf16.mxu0 0
    %9122 = vmatpush1.bf16.msra.mxu0 %v9032
    %9123 = vmatprep.subr.bf16.mxu0 0
    %9124 = vmatpush1.bf16.msra.mxu0 %v9033
    %9125 = vmatprep.subr.bf16.mxu0 0
    %9126 = vmatpush1.bf16.msra.mxu0 %v9034
    %9127 = vmatprep.subr.bf16.mxu0 0
    %9128 = vmatpush1.bf16.msra.mxu0 %v9035
    %9129 = vmatprep.subr.bf16.mxu0 0
    %9130 = vmatpush1.bf16.msra.mxu0 %v9036
    %9131 = vmatprep.subr.bf16.mxu0 0
    %9132 = vmatpush1.bf16.msra.mxu0 %v9037
    %9133 = vmatprep.subr.bf16.mxu0 0
    %9134 = vmatpush1.bf16.msra.mxu0 0
    %9135 = vmatprep.subr.bf16.mxu0 0
    %9136 = vmatpush1.bf16.msra.mxu0 0
    %9137 = vmatprep.subr.bf16.mxu0 0
    %9138 = vmatpush1.bf16.msra.mxu0 0
    %9139 = vmatprep.subr.bf16.mxu0 0
    %9140 = vmatpush1.bf16.msra.mxu0 0
    %9141 = vmatprep.mubr.bf16.mxu0 %v9067
    %9142 = vmatmul.mubr.bf16.gmra.mrb[0].mxu0 %v8893
    %v9143 = vpop.f32.mrb[0].mxu0
    %v9144 = vadd.f32 %v9104, %v9143
    %v9145 = vpop.f32.mrb[0].mxu0
    %v9146 = vpop.f32.mrb[0].mxu0
    %v9147 = vpop.f32.mrb[0].mxu0
    %9148 = vdwg.mxu0
    %v9151 = vunpack.c.l.b16 %v8764
    %v9152 = vunpack.c.h.b16 %v8764
    %v9153 = vunpack.c.l.b16 %v8765
    %v9154 = vunpack.c.h.b16 %v8765
    %v9155 = vpack.c.b16 %v9151, %v9151
    %v9156 = vpack.c.b16 %v9152, %v9152
    %v9157 = vpack.c.b16 %v9153, %v9153
    %v9158 = vpack.c.b16 %v9154, %v9154
    %v9218 = vunpack.c.l.b16 %v8766
    %v9219 = vunpack.c.l.b16 %v8767
    %v9220 = vunpack.c.l.b16 %v8768
    %v9221 = vunpack.c.l.b16 %v8769
    %v9222 = vunpack.c.l.b16 %v8770
    %v9223 = vunpack.c.l.b16 %v8771
    %v9224 = vunpack.c.l.b16 %v8772
    %v9225 = vunpack.c.l.b16 %v8773
    %v9226 = vunpack.c.l.b16 %v8774
    %v9227 = vunpack.c.l.b16 %v8775
    %v9228 = vunpack.c.l.b16 %v8776
    %v9229 = vunpack.c.l.b16 %v8777
    %v9230 = vunpack.c.l.b16 %v8778
    %v9231 = vunpack.c.l.b16 %v8779
    %v9232 = vunpack.c.l.b16 %v8780
    %v9233 = vunpack.c.l.b16 %v8781
    %v9234 = vunpack.c.l.b16 %v8782
    %v9235 = vunpack.c.l.b16 %v8783
    %v9236 = vunpack.c.l.b16 %v8784
    %v9237 = vunpack.c.l.b16 %v8785
    %v9238 = vunpack.c.l.b16 %v8786
    %v9239 = vunpack.c.l.b16 %v8787
    %v9240 = vunpack.c.l.b16 %v8788
    %v9241 = vunpack.c.l.b16 %v8789
    %v9242 = vunpack.c.l.b16 %v8790
    %v9243 = vunpack.c.l.b16 %v8791
    %v9244 = vunpack.c.l.b16 %v8792
    %v9245 = vunpack.c.l.b16 %v8793
    %v9246 = vunpack.c.l.b16 %v8794
    %v9247 = vunpack.c.l.b16 %v8795
    %v9248 = vunpack.c.l.b16 %v8796
    %v9249 = vunpack.c.l.b16 %v8797
    %v9250 = vunpack.c.l.b16 %v8798
    %v9251 = vunpack.c.l.b16 %v8799
    %v9252 = vunpack.c.l.b16 %v8800
    %v9253 = vunpack.c.l.b16 %v8801
    %v9254 = vunpack.c.l.b16 %v8802
    %v9255 = vunpack.c.l.b16 %v8803
    %v9256 = vunpack.c.l.b16 %v8804
    %v9257 = vunpack.c.l.b16 %v8805
    %v9258 = vunpack.c.l.b16 %v8806
    %v9259 = vunpack.c.l.b16 %v8807
    %v9260 = vunpack.c.l.b16 %v8808
    %v9261 = vunpack.c.l.b16 %v8809
    %v9262 = vunpack.c.l.b16 %v8810
    %v9263 = vunpack.c.l.b16 %v8811
    %v9264 = vunpack.c.l.b16 %v8812
    %v9265 = vunpack.c.l.b16 %v8813
    %v9266 = vunpack.c.l.b16 %v8814
    %v9267 = vunpack.c.l.b16 %v8815
    %v9268 = vunpack.c.l.b16 %v8816
    %v9269 = vunpack.c.l.b16 %v8817
    %v9270 = vunpack.c.l.b16 %v8818
    %v9271 = vunpack.c.l.b16 %v8819
    %v9272 = vunpack.c.l.b16 %v8820
    %v9273 = vunpack.c.l.b16 %v8821
    %v9274 = vpack.c.b16 %v9219, %v9218
    %v9275 = vpack.c.b16 %v9221, %v9220
    %v9276 = vpack.c.b16 %v9223, %v9222
    %v9277 = vpack.c.b16 %v9225, %v9224
    %v9278 = vpack.c.b16 %v9227, %v9226
    %v9279 = vpack.c.b16 %v9229, %v9228
    %v9280 = vpack.c.b16 %v9231, %v9230
    %v9281 = vpack.c.b16 %v9233, %v9232
    %v9282 = vpack.c.b16 %v9235, %v9234
    %v9283 = vpack.c.b16 %v9237, %v9236
    %v9284 = vpack.c.b16 %v9239, %v9238
    %v9285 = vpack.c.b16 %v9241, %v9240
    %v9286 = vpack.c.b16 %v9243, %v9242
    %v9287 = vpack.c.b16 %v9245, %v9244
    %v9288 = vpack.c.b16 %v9247, %v9246
    %v9289 = vpack.c.b16 %v9249, %v9248
    %v9290 = vpack.c.b16 %v9251, %v9250
    %v9291 = vpack.c.b16 %v9253, %v9252
    %v9292 = vpack.c.b16 %v9255, %v9254
    %v9293 = vpack.c.b16 %v9257, %v9256
    %v9294 = vpack.c.b16 %v9259, %v9258
    %v9295 = vpack.c.b16 %v9261, %v9260
    %v9296 = vpack.c.b16 %v9263, %v9262
    %v9297 = vpack.c.b16 %v9265, %v9264
    %v9298 = vpack.c.b16 %v9267, %v9266
    %v9299 = vpack.c.b16 %v9269, %v9268
    %v9300 = vpack.c.b16 %v9271, %v9270
    %v9301 = vpack.c.b16 %v9273, %v9272
    %v9331 = vsel %vm1415, %v9158, 0
    %9333 = vmatprep.subr.bf16.mxu0 0
    %9334 = vmatpush1.bf16.msra.mxu0 %v9274
    %9335 = vmatprep.subr.bf16.mxu0 0
    %9336 = vmatpush1.bf16.msra.mxu0 %v9275
    %9337 = vmatprep.subr.bf16.mxu0 0
    %9338 = vmatpush1.bf16.msra.mxu0 %v9276
    %9339 = vmatprep.subr.bf16.mxu0 0
    %9340 = vmatpush1.bf16.msra.mxu0 %v9277
    %9341 = vmatprep.subr.bf16.mxu0 0
    %9342 = vmatpush1.bf16.msra.mxu0 %v9278
    %9343 = vmatprep.subr.bf16.mxu0 0
    %9344 = vmatpush1.bf16.msra.mxu0 %v9279
    %9345 = vmatprep.subr.bf16.mxu0 0
    %9346 = vmatpush1.bf16.msra.mxu0 %v9280
    %9347 = vmatprep.subr.bf16.mxu0 0
    %9348 = vmatpush1.bf16.msra.mxu0 %v9281
    %9349 = vmatprep.subr.bf16.mxu0 0
    %9350 = vmatpush1.bf16.msra.mxu0 %v9282
    %9351 = vmatprep.subr.bf16.mxu0 0
    %9352 = vmatpush1.bf16.msra.mxu0 %v9283
    %9353 = vmatprep.subr.bf16.mxu0 0
    %9354 = vmatpush1.bf16.msra.mxu0 %v9284
    %9355 = vmatprep.subr.bf16.mxu0 0
    %9356 = vmatpush1.bf16.msra.mxu0 %v9285
    %9357 = vmatprep.subr.bf16.mxu0 0
    %9358 = vmatpush1.bf16.msra.mxu0 %v9286
    %9359 = vmatprep.subr.bf16.mxu0 0
    %9360 = vmatpush1.bf16.msra.mxu0 %v9287
    %9361 = vmatprep.subr.bf16.mxu0 0
    %9362 = vmatpush1.bf16.msra.mxu0 %v9288
    %9363 = vmatprep.subr.bf16.mxu0 0
    %9364 = vmatpush1.bf16.msra.mxu0 %v9289
    %9365 = vmatprep.mubr.bf16.mxu0 %v9156
    %9366 = vmatmul.mubr.bf16.gmra.mrb[0].mxu0 %v9155
    %v9367 = vpop.f32.mrb[0].mxu0
    %v9368 = vadd.f32 %v9144, %v9367
    %v9369 = vpop.f32.mrb[0].mxu0
    %v9370 = vpop.f32.mrb[0].mxu0
    %v9371 = vpop.f32.mrb[0].mxu0
    %9372 = vdwg.mxu0
    %9373 = vmatprep.subr.bf16.mxu0 0
    %9374 = vmatpush1.bf16.msra.mxu0 %v9290
    %9375 = vmatprep.subr.bf16.mxu0 0
    %9376 = vmatpush1.bf16.msra.mxu0 %v9291
    %9377 = vmatprep.subr.bf16.mxu0 0
    %9378 = vmatpush1.bf16.msra.mxu0 %v9292
    %9379 = vmatprep.subr.bf16.mxu0 0
    %9380 = vmatpush1.bf16.msra.mxu0 %v9293
    %9381 = vmatprep.subr.bf16.mxu0 0
    %9382 = vmatpush1.bf16.msra.mxu0 %v9294
    %9383 = vmatprep.subr.bf16.mxu0 0
    %9384 = vmatpush1.bf16.msra.mxu0 %v9295
    %9385 = vmatprep.subr.bf16.mxu0 0
    %9386 = vmatpush1.bf16.msra.mxu0 %v9296
    %9387 = vmatprep.subr.bf16.mxu0 0
    %9388 = vmatpush1.bf16.msra.mxu0 %v9297
    %9389 = vmatprep.subr.bf16.mxu0 0
    %9390 = vmatpush1.bf16.msra.mxu0 %v9298
    %9391 = vmatprep.subr.bf16.mxu0 0
    %9392 = vmatpush1.bf16.msra.mxu0 %v9299
    %9393 = vmatprep.subr.bf16.mxu0 0
    %9394 = vmatpush1.bf16.msra.mxu0 %v9300
    %9395 = vmatprep.subr.bf16.mxu0 0
    %9396 = vmatpush1.bf16.msra.mxu0 %v9301
    %9397 = vmatprep.subr.bf16.mxu0 0
    %9398 = vmatpush1.bf16.msra.mxu0 0
    %9399 = vmatprep.subr.bf16.mxu0 0
    %9400 = vmatpush1.bf16.msra.mxu0 0
    %9401 = vmatprep.subr.bf16.mxu0 0
    %9402 = vmatpush1.bf16.msra.mxu0 0
    %9403 = vmatprep.subr.bf16.mxu0 0
    %9404 = vmatpush1.bf16.msra.mxu0 0
    %9405 = vmatprep.mubr.bf16.mxu0 %v9331
    %9406 = vmatmul.mubr.bf16.gmra.mrb[0].mxu0 %v9157
    %v9407 = vpop.f32.mrb[0].mxu0
    %v9408 = vadd.f32 %v9368, %v9407
    %v9409 = vpop.f32.mrb[0].mxu0
    %v9410 = vpop.f32.mrb[0].mxu0
    %v9411 = vpop.f32.mrb[0].mxu0
    %9412 = vdwg.mxu0
    %v9413 = vld [vmem:[#allocation4] sm:$0x44]
    %v9414 = vld [vmem:[#allocation4 + $0x8] sm:$0x44]
    %s9415 = scalar_lea.vmem [#allocation13], 448
    %v9416 = vld [vmem:[%s9415] sm:$0xf]
    %v9417 = vld [vmem:[%s9415 + $0x4] sm:$0xf]
    %v9418 = vld [vmem:[%s9415 + $0x8] sm:$0xf]
    %v9419 = vld [vmem:[%s9415 + $0xc] sm:$0xf]
    %v9420 = vld [vmem:[%s9415 + $0x10] sm:$0xf]
    %v9421 = vld [vmem:[%s9415 + $0x14] sm:$0xf]
    %v9422 = vld [vmem:[%s9415 + $0x18] sm:$0xf]
    %v9423 = vld [vmem:[%s9415 + $0x1c] sm:$0xf]
    %v9424 = vld [vmem:[%s9415 + $0x20] sm:$0xf]
    %v9425 = vld [vmem:[%s9415 + $0x24] sm:$0xf]
    %v9426 = vld [vmem:[%s9415 + $0x28] sm:$0xf]
    %v9427 = vld [vmem:[%s9415 + $0x2c] sm:$0xf]
    %v9428 = vld [vmem:[%s9415 + $0x30] sm:$0xf]
    %v9429 = vld [vmem:[%s9415 + $0x34] sm:$0xf]
    %v9430 = vld [vmem:[%s9415 + $0x38] sm:$0xf]
    %v9431 = vld [vmem:[%s9415 + $0x3c] sm:$0xf]
    %v9432 = vld [vmem:[%s9415 + $0x40] sm:$0xf]
    %v9433 = vld [vmem:[%s9415 + $0x44] sm:$0xf]
    %v9434 = vld [vmem:[%s9415 + $0x48] sm:$0xf]
    %v9435 = vld [vmem:[%s9415 + $0x4c] sm:$0xf]
    %v9436 = vld [vmem:[%s9415 + $0x50] sm:$0xf]
    %v9437 = vld [vmem:[%s9415 + $0x54] sm:$0xf]
    %v9438 = vld [vmem:[%s9415 + $0x58] sm:$0xf]
    %v9439 = vld [vmem:[%s9415 + $0x5c] sm:$0xf]
    %v9440 = vld [vmem:[%s9415 + $0x60] sm:$0xf]
    %v9441 = vld [vmem:[%s9415 + $0x64] sm:$0xf]
    %v9442 = vld [vmem:[%s9415 + $0x68] sm:$0xf]
    %v9443 = vld [vmem:[%s9415 + $0x6c] sm:$0xf]
    %v9444 = vld [vmem:[%s9415 + $0x70] sm:$0xf]
    %v9445 = vld [vmem:[%s9415 + $0x74] sm:$0xf]
    %v9446 = vld [vmem:[%s9415 + $0x78] sm:$0xf]
    %v9447 = vld [vmem:[%s9415 + $0x7c] sm:$0xf]
    %v9448 = vld [vmem:[%s9415 + $0x80] sm:$0xf]
    %v9449 = vld [vmem:[%s9415 + $0x84] sm:$0xf]
    %v9450 = vld [vmem:[%s9415 + $0x88] sm:$0xf]
    %v9451 = vld [vmem:[%s9415 + $0x8c] sm:$0xf]
    %v9452 = vld [vmem:[%s9415 + $0x90] sm:$0xf]
    %v9453 = vld [vmem:[%s9415 + $0x94] sm:$0xf]
    %v9454 = vld [vmem:[%s9415 + $0x98] sm:$0xf]
    %v9455 = vld [vmem:[%s9415 + $0x9c] sm:$0xf]
    %v9456 = vld [vmem:[%s9415 + $0xa0] sm:$0xf]
    %v9457 = vld [vmem:[%s9415 + $0xa4] sm:$0xf]
    %v9458 = vld [vmem:[%s9415 + $0xa8] sm:$0xf]
    %v9459 = vld [vmem:[%s9415 + $0xac] sm:$0xf]
    %v9460 = vld [vmem:[%s9415 + $0xb0] sm:$0xf]
    %v9461 = vld [vmem:[%s9415 + $0xb4] sm:$0xf]
    %v9462 = vld [vmem:[%s9415 + $0xb8] sm:$0xf]
    %v9463 = vld [vmem:[%s9415 + $0xbc] sm:$0xf]
    %v9464 = vld [vmem:[%s9415 + $0xc0] sm:$0xf]
    %v9465 = vld [vmem:[%s9415 + $0xc4] sm:$0xf]
    %v9466 = vld [vmem:[%s9415 + $0xc8] sm:$0xf]
    %v9467 = vld [vmem:[%s9415 + $0xcc] sm:$0xf]
    %v9468 = vld [vmem:[%s9415 + $0xd0] sm:$0xf]
    %v9469 = vld [vmem:[%s9415 + $0xd4] sm:$0xf]
    %v9470 = vld [vmem:[%s9415 + $0xd8] sm:$0xf]
    %v9471 = vld [vmem:[%s9415 + $0xdc] sm:$0xf]
    %v9474 = vunpack.c.l.b16 %v9413
    %v9475 = vunpack.c.h.b16 %v9413
    %v9476 = vunpack.c.l.b16 %v9414
    %v9477 = vunpack.c.h.b16 %v9414
    %v9478 = vpack.c.b16 %v9474, %v9474
    %v9479 = vpack.c.b16 %v9475, %v9475
    %v9480 = vpack.c.b16 %v9476, %v9476
    %v9481 = vpack.c.b16 %v9477, %v9477
    %v9482 = vrot.slane %v9478, 2
    %v9483 = vrot.slane %v9479, 2
    %v9484 = vrot.slane %v9480, 2
    %v9485 = vrot.slane %v9481, 2
    %v9545 = vunpack.c.l.b16 %v9416
    %v9546 = vunpack.c.l.b16 %v9417
    %v9547 = vunpack.c.l.b16 %v9418
    %v9548 = vunpack.c.l.b16 %v9419
    %v9549 = vunpack.c.l.b16 %v9420
    %v9550 = vunpack.c.l.b16 %v9421
    %v9551 = vunpack.c.l.b16 %v9422
    %v9552 = vunpack.c.l.b16 %v9423
    %v9553 = vunpack.c.l.b16 %v9424
    %v9554 = vunpack.c.l.b16 %v9425
    %v9555 = vunpack.c.l.b16 %v9426
    %v9556 = vunpack.c.l.b16 %v9427
    %v9557 = vunpack.c.l.b16 %v9428
    %v9558 = vunpack.c.l.b16 %v9429
    %v9559 = vunpack.c.l.b16 %v9430
    %v9560 = vunpack.c.l.b16 %v9431
    %v9561 = vunpack.c.l.b16 %v9432
    %v9562 = vunpack.c.l.b16 %v9433
    %v9563 = vunpack.c.l.b16 %v9434
    %v9564 = vunpack.c.l.b16 %v9435
    %v9565 = vunpack.c.l.b16 %v9436
    %v9566 = vunpack.c.l.b16 %v9437
    %v9567 = vunpack.c.l.b16 %v9438
    %v9568 = vunpack.c.l.b16 %v9439
    %v9569 = vunpack.c.l.b16 %v9440
    %v9570 = vunpack.c.l.b16 %v9441
    %v9571 = vunpack.c.l.b16 %v9442
    %v9572 = vunpack.c.l.b16 %v9443
    %v9573 = vunpack.c.l.b16 %v9444
    %v9574 = vunpack.c.l.b16 %v9445
    %v9575 = vunpack.c.l.b16 %v9446
    %v9576 = vunpack.c.l.b16 %v9447
    %v9577 = vunpack.c.l.b16 %v9448
    %v9578 = vunpack.c.l.b16 %v9449
    %v9579 = vunpack.c.l.b16 %v9450
    %v9580 = vunpack.c.l.b16 %v9451
    %v9581 = vunpack.c.l.b16 %v9452
    %v9582 = vunpack.c.l.b16 %v9453
    %v9583 = vunpack.c.l.b16 %v9454
    %v9584 = vunpack.c.l.b16 %v9455
    %v9585 = vunpack.c.l.b16 %v9456
    %v9586 = vunpack.c.l.b16 %v9457
    %v9587 = vunpack.c.l.b16 %v9458
    %v9588 = vunpack.c.l.b16 %v9459
    %v9589 = vunpack.c.l.b16 %v9460
    %v9590 = vunpack.c.l.b16 %v9461
    %v9591 = vunpack.c.l.b16 %v9462
    %v9592 = vunpack.c.l.b16 %v9463
    %v9593 = vunpack.c.l.b16 %v9464
    %v9594 = vunpack.c.l.b16 %v9465
    %v9595 = vunpack.c.l.b16 %v9466
    %v9596 = vunpack.c.l.b16 %v9467
    %v9597 = vunpack.c.l.b16 %v9468
    %v9598 = vunpack.c.l.b16 %v9469
    %v9599 = vunpack.c.l.b16 %v9470
    %v9600 = vunpack.c.l.b16 %v9471
    %v9601 = vpack.c.b16 %v9546, %v9545
    %v9602 = vpack.c.b16 %v9548, %v9547
    %v9603 = vpack.c.b16 %v9550, %v9549
    %v9604 = vpack.c.b16 %v9552, %v9551
    %v9605 = vpack.c.b16 %v9554, %v9553
    %v9606 = vpack.c.b16 %v9556, %v9555
    %v9607 = vpack.c.b16 %v9558, %v9557
    %v9608 = vpack.c.b16 %v9560, %v9559
    %v9609 = vpack.c.b16 %v9562, %v9561
    %v9610 = vpack.c.b16 %v9564, %v9563
    %v9611 = vpack.c.b16 %v9566, %v9565
    %v9612 = vpack.c.b16 %v9568, %v9567
    %v9613 = vpack.c.b16 %v9570, %v9569
    %v9614 = vpack.c.b16 %v9572, %v9571
    %v9615 = vpack.c.b16 %v9574, %v9573
    %v9616 = vpack.c.b16 %v9576, %v9575
    %v9617 = vpack.c.b16 %v9578, %v9577
    %v9618 = vpack.c.b16 %v9580, %v9579
    %v9619 = vpack.c.b16 %v9582, %v9581
    %v9620 = vpack.c.b16 %v9584, %v9583
    %v9621 = vpack.c.b16 %v9586, %v9585
    %v9622 = vpack.c.b16 %v9588, %v9587
    %v9623 = vpack.c.b16 %v9590, %v9589
    %v9624 = vpack.c.b16 %v9592, %v9591
    %v9625 = vpack.c.b16 %v9594, %v9593
    %v9626 = vpack.c.b16 %v9596, %v9595
    %v9627 = vpack.c.b16 %v9598, %v9597
    %v9628 = vpack.c.b16 %v9600, %v9599
    %v9658 = vsel %vm1415, %v9485, 0
    %9660 = vmatprep.subr.bf16.mxu0 0
    %9661 = vmatpush1.bf16.msra.mxu0 %v9601
    %9662 = vmatprep.subr.bf16.mxu0 0
    %9663 = vmatpush1.bf16.msra.mxu0 %v9602
    %9664 = vmatprep.subr.bf16.mxu0 0
    %9665 = vmatpush1.bf16.msra.mxu0 %v9603
    %9666 = vmatprep.subr.bf16.mxu0 0
    %9667 = vmatpush1.bf16.msra.mxu0 %v9604
    %9668 = vmatprep.subr.bf16.mxu0 0
    %9669 = vmatpush1.bf16.msra.mxu0 %v9605
    %9670 = vmatprep.subr.bf16.mxu0 0
    %9671 = vmatpush1.bf16.msra.mxu0 %v9606
    %9672 = vmatprep.subr.bf16.mxu0 0
    %9673 = vmatpush1.bf16.msra.mxu0 %v9607
    %9674 = vmatprep.subr.bf16.mxu0 0
    %9675 = vmatpush1.bf16.msra.mxu0 %v9608
    %9676 = vmatprep.subr.bf16.mxu0 0
    %9677 = vmatpush1.bf16.msra.mxu0 %v9609
    %9678 = vmatprep.subr.bf16.mxu0 0
    %9679 = vmatpush1.bf16.msra.mxu0 %v9610
    %9680 = vmatprep.subr.bf16.mxu0 0
    %9681 = vmatpush1.bf16.msra.mxu0 %v9611
    %9682 = vmatprep.subr.bf16.mxu0 0
    %9683 = vmatpush1.bf16.msra.mxu0 %v9612
    %9684 = vmatprep.subr.bf16.mxu0 0
    %9685 = vmatpush1.bf16.msra.mxu0 %v9613
    %9686 = vmatprep.subr.bf16.mxu0 0
    %9687 = vmatpush1.bf16.msra.mxu0 %v9614
    %9688 = vmatprep.subr.bf16.mxu0 0
    %9689 = vmatpush1.bf16.msra.mxu0 %v9615
    %9690 = vmatprep.subr.bf16.mxu0 0
    %9691 = vmatpush1.bf16.msra.mxu0 %v9616
    %9692 = vmatprep.mubr.bf16.mxu0 %v9483
    %9693 = vmatmul.mubr.bf16.gmra.mrb[0].mxu0 %v9482
    %v9694 = vpop.f32.mrb[0].mxu0
    %v9695 = vadd.f32 0.0, %v9694
    %v9696 = vpop.f32.mrb[0].mxu0
    %v9697 = vpop.f32.mrb[0].mxu0
    %v9698 = vpop.f32.mrb[0].mxu0
    %9699 = vdwg.mxu0
    %9700 = vmatprep.subr.bf16.mxu0 0
    %9701 = vmatpush1.bf16.msra.mxu0 %v9617
    %9702 = vmatprep.subr.bf16.mxu0 0
    %9703 = vmatpush1.bf16.msra.mxu0 %v9618
    %9704 = vmatprep.subr.bf16.mxu0 0
    %9705 = vmatpush1.bf16.msra.mxu0 %v9619
    %9706 = vmatprep.subr.bf16.mxu0 0
    %9707 = vmatpush1.bf16.msra.mxu0 %v9620
    %9708 = vmatprep.subr.bf16.mxu0 0
    %9709 = vmatpush1.bf16.msra.mxu0 %v9621
    %9710 = vmatprep.subr.bf16.mxu0 0
    %9711 = vmatpush1.bf16.msra.mxu0 %v9622
    %9712 = vmatprep.subr.bf16.mxu0 0
    %9713 = vmatpush1.bf16.msra.mxu0 %v9623
    %9714 = vmatprep.subr.bf16.mxu0 0
    %9715 = vmatpush1.bf16.msra.mxu0 %v9624
    %9716 = vmatprep.subr.bf16.mxu0 0
    %9717 = vmatpush1.bf16.msra.mxu0 %v9625
    %9718 = vmatprep.subr.bf16.mxu0 0
    %9719 = vmatpush1.bf16.msra.mxu0 %v9626
    %9720 = vmatprep.subr.bf16.mxu0 0
    %9721 = vmatpush1.bf16.msra.mxu0 %v9627
    %9722 = vmatprep.subr.bf16.mxu0 0
    %9723 = vmatpush1.bf16.msra.mxu0 %v9628
    %9724 = vmatprep.subr.bf16.mxu0 0
    %9725 = vmatpush1.bf16.msra.mxu0 0
    %9726 = vmatprep.subr.bf16.mxu0 0
    %9727 = vmatpush1.bf16.msra.mxu0 0
    %9728 = vmatprep.subr.bf16.mxu0 0
    %9729 = vmatpush1.bf16.msra.mxu0 0
    %9730 = vmatprep.subr.bf16.mxu0 0
    %9731 = vmatpush1.bf16.msra.mxu0 0
    %9732 = vmatprep.mubr.bf16.mxu0 %v9658
    %9733 = vmatmul.mubr.bf16.gmra.mrb[0].mxu0 %v9484
    %v9734 = vpop.f32.mrb[0].mxu0
    %v9735 = vadd.f32 %v9695, %v9734
    %v9736 = vpop.f32.mrb[0].mxu0
    %v9737 = vpop.f32.mrb[0].mxu0
    %v9738 = vpop.f32.mrb[0].mxu0
    %9739 = vdwg.mxu0
    %v9740 = vadd.f32 %v9408, %v9735
    %v9741 = vld [vmem:[#allocation4] sm:$0x88]
    %v9742 = vld [vmem:[#allocation4 + $0x8] sm:$0x88]
    %s9743 = scalar_lea.vmem [#allocation13], 672
    %v9744 = vld [vmem:[%s9743] sm:$0xf]
    %v9745 = vld [vmem:[%s9743 + $0x4] sm:$0xf]
    %v9746 = vld [vmem:[%s9743 + $0x8] sm:$0xf]
    %v9747 = vld [vmem:[%s9743 + $0xc] sm:$0xf]
    %v9748 = vld [vmem:[%s9743 + $0x10] sm:$0xf]
    %v9749 = vld [vmem:[%s9743 + $0x14] sm:$0xf]
    %v9750 = vld [vmem:[%s9743 + $0x18] sm:$0xf]
    %v9751 = vld [vmem:[%s9743 + $0x1c] sm:$0xf]
    %v9752 = vld [vmem:[%s9743 + $0x20] sm:$0xf]
    %v9753 = vld [vmem:[%s9743 + $0x24] sm:$0xf]
    %v9754 = vld [vmem:[%s9743 + $0x28] sm:$0xf]
    %v9755 = vld [vmem:[%s9743 + $0x2c] sm:$0xf]
    %v9756 = vld [vmem:[%s9743 + $0x30] sm:$0xf]
    %v9757 = vld [vmem:[%s9743 + $0x34] sm:$0xf]
    %v9758 = vld [vmem:[%s9743 + $0x38] sm:$0xf]
    %v9759 = vld [vmem:[%s9743 + $0x3c] sm:$0xf]
    %v9760 = vld [vmem:[%s9743 + $0x40] sm:$0xf]
    %v9761 = vld [vmem:[%s9743 + $0x44] sm:$0xf]
    %v9762 = vld [vmem:[%s9743 + $0x48] sm:$0xf]
    %v9763 = vld [vmem:[%s9743 + $0x4c] sm:$0xf]
    %v9764 = vld [vmem:[%s9743 + $0x50] sm:$0xf]
    %v9765 = vld [vmem:[%s9743 + $0x54] sm:$0xf]
    %v9766 = vld [vmem:[%s9743 + $0x58] sm:$0xf]
    %v9767 = vld [vmem:[%s9743 + $0x5c] sm:$0xf]
    %v9768 = vld [vmem:[%s9743 + $0x60] sm:$0xf]
    %v9769 = vld [vmem:[%s9743 + $0x64] sm:$0xf]
    %v9770 = vld [vmem:[%s9743 + $0x68] sm:$0xf]
    %v9771 = vld [vmem:[%s9743 + $0x6c] sm:$0xf]
    %v9772 = vld [vmem:[%s9743 + $0x70] sm:$0xf]
    %v9773 = vld [vmem:[%s9743 + $0x74] sm:$0xf]
    %v9774 = vld [vmem:[%s9743 + $0x78] sm:$0xf]
    %v9775 = vld [vmem:[%s9743 + $0x7c] sm:$0xf]
    %v9776 = vld [vmem:[%s9743 + $0x80] sm:$0xf]
    %v9777 = vld [vmem:[%s9743 + $0x84] sm:$0xf]
    %v9778 = vld [vmem:[%s9743 + $0x88] sm:$0xf]
    %v9779 = vld [vmem:[%s9743 + $0x8c] sm:$0xf]
    %v9780 = vld [vmem:[%s9743 + $0x90] sm:$0xf]
    %v9781 = vld [vmem:[%s9743 + $0x94] sm:$0xf]
    %v9782 = vld [vmem:[%s9743 + $0x98] sm:$0xf]
    %v9783 = vld [vmem:[%s9743 + $0x9c] sm:$0xf]
    %v9784 = vld [vmem:[%s9743 + $0xa0] sm:$0xf]
    %v9785 = vld [vmem:[%s9743 + $0xa4] sm:$0xf]
    %v9786 = vld [vmem:[%s9743 + $0xa8] sm:$0xf]
    %v9787 = vld [vmem:[%s9743 + $0xac] sm:$0xf]
    %v9788 = vld [vmem:[%s9743 + $0xb0] sm:$0xf]
    %v9789 = vld [vmem:[%s9743 + $0xb4] sm:$0xf]
    %v9790 = vld [vmem:[%s9743 + $0xb8] sm:$0xf]
    %v9791 = vld [vmem:[%s9743 + $0xbc] sm:$0xf]
    %v9792 = vld [vmem:[%s9743 + $0xc0] sm:$0xf]
    %v9793 = vld [vmem:[%s9743 + $0xc4] sm:$0xf]
    %v9794 = vld [vmem:[%s9743 + $0xc8] sm:$0xf]
    %v9795 = vld [vmem:[%s9743 + $0xcc] sm:$0xf]
    %v9796 = vld [vmem:[%s9743 + $0xd0] sm:$0xf]
    %v9797 = vld [vmem:[%s9743 + $0xd4] sm:$0xf]
    %v9798 = vld [vmem:[%s9743 + $0xd8] sm:$0xf]
    %v9799 = vld [vmem:[%s9743 + $0xdc] sm:$0xf]
    %v9802 = vunpack.c.l.b16 %v9741
    %v9803 = vunpack.c.h.b16 %v9741
    %v9804 = vunpack.c.l.b16 %v9742
    %v9805 = vunpack.c.h.b16 %v9742
    %v9806 = vpack.c.b16 %v9802, %v9802
    %v9807 = vpack.c.b16 %v9803, %v9803
    %v9808 = vpack.c.b16 %v9804, %v9804
    %v9809 = vpack.c.b16 %v9805, %v9805
    %v9810 = vrot.slane %v9806, 3
    %v9811 = vrot.slane %v9807, 3
    %v9812 = vrot.slane %v9808, 3
    %v9813 = vrot.slane %v9809, 3
    %v9873 = vunpack.c.l.b16 %v9744
    %v9874 = vunpack.c.l.b16 %v9745
    %v9875 = vunpack.c.l.b16 %v9746
    %v9876 = vunpack.c.l.b16 %v9747
    %v9877 = vunpack.c.l.b16 %v9748
    %v9878 = vunpack.c.l.b16 %v9749
    %v9879 = vunpack.c.l.b16 %v9750
    %v9880 = vunpack.c.l.b16 %v9751
    %v9881 = vunpack.c.l.b16 %v9752
    %v9882 = vunpack.c.l.b16 %v9753
    %v9883 = vunpack.c.l.b16 %v9754
    %v9884 = vunpack.c.l.b16 %v9755
    %v9885 = vunpack.c.l.b16 %v9756
    %v9886 = vunpack.c.l.b16 %v9757
    %v9887 = vunpack.c.l.b16 %v9758
    %v9888 = vunpack.c.l.b16 %v9759
    %v9889 = vunpack.c.l.b16 %v9760
    %v9890 = vunpack.c.l.b16 %v9761
    %v9891 = vunpack.c.l.b16 %v9762
    %v9892 = vunpack.c.l.b16 %v9763
    %v9893 = vunpack.c.l.b16 %v9764
    %v9894 = vunpack.c.l.b16 %v9765
    %v9895 = vunpack.c.l.b16 %v9766
    %v9896 = vunpack.c.l.b16 %v9767
    %v9897 = vunpack.c.l.b16 %v9768
    %v9898 = vunpack.c.l.b16 %v9769
    %v9899 = vunpack.c.l.b16 %v9770
    %v9900 = vunpack.c.l.b16 %v9771
    %v9901 = vunpack.c.l.b16 %v9772
    %v9902 = vunpack.c.l.b16 %v9773
    %v9903 = vunpack.c.l.b16 %v9774
    %v9904 = vunpack.c.l.b16 %v9775
    %v9905 = vunpack.c.l.b16 %v9776
    %v9906 = vunpack.c.l.b16 %v9777
    %v9907 = vunpack.c.l.b16 %v9778
    %v9908 = vunpack.c.l.b16 %v9779
    %v9909 = vunpack.c.l.b16 %v9780
    %v9910 = vunpack.c.l.b16 %v9781
    %v9911 = vunpack.c.l.b16 %v9782
    %v9912 = vunpack.c.l.b16 %v9783
    %v9913 = vunpack.c.l.b16 %v9784
    %v9914 = vunpack.c.l.b16 %v9785
    %v9915 = vunpack.c.l.b16 %v9786
    %v9916 = vunpack.c.l.b16 %v9787
    %v9917 = vunpack.c.l.b16 %v9788
    %v9918 = vunpack.c.l.b16 %v9789
    %v9919 = vunpack.c.l.b16 %v9790
    %v9920 = vunpack.c.l.b16 %v9791
    %v9921 = vunpack.c.l.b16 %v9792
    %v9922 = vunpack.c.l.b16 %v9793
    %v9923 = vunpack.c.l.b16 %v9794
    %v9924 = vunpack.c.l.b16 %v9795
    %v9925 = vunpack.c.l.b16 %v9796
    %v9926 = vunpack.c.l.b16 %v9797
    %v9927 = vunpack.c.l.b16 %v9798
    %v9928 = vunpack.c.l.b16 %v9799
    %v9929 = vpack.c.b16 %v9874, %v9873
    %v9930 = vpack.c.b16 %v9876, %v9875
    %v9931 = vpack.c.b16 %v9878, %v9877
    %v9932 = vpack.c.b16 %v9880, %v9879
    %v9933 = vpack.c.b16 %v9882, %v9881
    %v9934 = vpack.c.b16 %v9884, %v9883
    %v9935 = vpack.c.b16 %v9886, %v9885
    %v9936 = vpack.c.b16 %v9888, %v9887
    %v9937 = vpack.c.b16 %v9890, %v9889
    %v9938 = vpack.c.b16 %v9892, %v9891
    %v9939 = vpack.c.b16 %v9894, %v9893
    %v9940 = vpack.c.b16 %v9896, %v9895
    %v9941 = vpack.c.b16 %v9898, %v9897
    %v9942 = vpack.c.b16 %v9900, %v9899
    %v9943 = vpack.c.b16 %v9902, %v9901
    %v9944 = vpack.c.b16 %v9904, %v9903
    %v9945 = vpack.c.b16 %v9906, %v9905
    %v9946 = vpack.c.b16 %v9908, %v9907
    %v9947 = vpack.c.b16 %v9910, %v9909
    %v9948 = vpack.c.b16 %v9912, %v9911
    %v9949 = vpack.c.b16 %v9914, %v9913
    %v9950 = vpack.c.b16 %v9916, %v9915
    %v9951 = vpack.c.b16 %v9918, %v9917
    %v9952 = vpack.c.b16 %v9920, %v9919
    %v9953 = vpack.c.b16 %v9922, %v9921
    %v9954 = vpack.c.b16 %v9924, %v9923
    %v9955 = vpack.c.b16 %v9926, %v9925
    %v9956 = vpack.c.b16 %v9928, %v9927
    %v9986 = vsel %vm1415, %v9813, 0
    %9988 = vmatprep.subr.bf16.mxu0 0
    %9989 = vmatpush1.bf16.msra.mxu0 %v9929
    %9990 = vmatprep.subr.bf16.mxu0 0
    %9991 = vmatpush1.bf16.msra.mxu0 %v9930
    %9992 = vmatprep.subr.bf16.mxu0 0
    %9993 = vmatpush1.bf16.msra.mxu0 %v9931
    %9994 = vmatprep.subr.bf16.mxu0 0
    %9995 = vmatpush1.bf16.msra.mxu0 %v9932
    %9996 = vmatprep.subr.bf16.mxu0 0
    %9997 = vmatpush1.bf16.msra.mxu0 %v9933
    %9998 = vmatprep.subr.bf16.mxu0 0
    %9999 = vmatpush1.bf16.msra.mxu0 %v9934
    %10000 = vmatprep.subr.bf16.mxu0 0
    %10001 = vmatpush1.bf16.msra.mxu0 %v9935
    %10002 = vmatprep.subr.bf16.mxu0 0
    %10003 = vmatpush1.bf16.msra.mxu0 %v9936
    %10004 = vmatprep.subr.bf16.mxu0 0
    %10005 = vmatpush1.bf16.msra.mxu0 %v9937
    %10006 = vmatprep.subr.bf16.mxu0 0
    %10007 = vmatpush1.bf16.msra.mxu0 %v9938
    %10008 = vmatprep.subr.bf16.mxu0 0
    %10009 = vmatpush1.bf16.msra.mxu0 %v9939
    %10010 = vmatprep.subr.bf16.mxu0 0
    %10011 = vmatpush1.bf16.msra.mxu0 %v9940
    %10012 = vmatprep.subr.bf16.mxu0 0
    %10013 = vmatpush1.bf16.msra.mxu0 %v9941
    %10014 = vmatprep.subr.bf16.mxu0 0
    %10015 = vmatpush1.bf16.msra.mxu0 %v9942
    %10016 = vmatprep.subr.bf16.mxu0 0
    %10017 = vmatpush1.bf16.msra.mxu0 %v9943
    %10018 = vmatprep.subr.bf16.mxu0 0
    %10019 = vmatpush1.bf16.msra.mxu0 %v9944
    %10020 = vmatprep.mubr.bf16.mxu0 %v9811
    %10021 = vmatmul.mubr.bf16.gmra.mrb[0].mxu0 %v9810
    %v10022 = vpop.f32.mrb[0].mxu0
    %v10023 = vadd.f32 0.0, %v10022
    %v10024 = vpop.f32.mrb[0].mxu0
    %v10025 = vpop.f32.mrb[0].mxu0
    %v10026 = vpop.f32.mrb[0].mxu0
    %10027 = vdwg.mxu0
    %10028 = vmatprep.subr.bf16.mxu0 0
    %10029 = vmatpush1.bf16.msra.mxu0 %v9945
    %10030 = vmatprep.subr.bf16.mxu0 0
    %10031 = vmatpush1.bf16.msra.mxu0 %v9946
    %10032 = vmatprep.subr.bf16.mxu0 0
    %10033 = vmatpush1.bf16.msra.mxu0 %v9947
    %10034 = vmatprep.subr.bf16.mxu0 0
    %10035 = vmatpush1.bf16.msra.mxu0 %v9948
    %10036 = vmatprep.subr.bf16.mxu0 0
    %10037 = vmatpush1.bf16.msra.mxu0 %v9949
    %10038 = vmatprep.subr.bf16.mxu0 0
    %10039 = vmatpush1.bf16.msra.mxu0 %v9950
    %10040 = vmatprep.subr.bf16.mxu0 0
    %10041 = vmatpush1.bf16.msra.mxu0 %v9951
    %10042 = vmatprep.subr.bf16.mxu0 0
    %10043 = vmatpush1.bf16.msra.mxu0 %v9952
    %10044 = vmatprep.subr.bf16.mxu0 0
    %10045 = vmatpush1.bf16.msra.mxu0 %v9953
    %10046 = vmatprep.subr.bf16.mxu0 0
    %10047 = vmatpush1.bf16.msra.mxu0 %v9954
    %10048 = vmatprep.subr.bf16.mxu0 0
    %10049 = vmatpush1.bf16.msra.mxu0 %v9955
    %10050 = vmatprep.subr.bf16.mxu0 0
    %10051 = vmatpush1.bf16.msra.mxu0 %v9956
    %10052 = vmatprep.subr.bf16.mxu0 0
    %10053 = vmatpush1.bf16.msra.mxu0 0
    %10054 = vmatprep.subr.bf16.mxu0 0
    %10055 = vmatpush1.bf16.msra.mxu0 0
    %10056 = vmatprep.subr.bf16.mxu0 0
    %10057 = vmatpush1.bf16.msra.mxu0 0
    %10058 = vmatprep.subr.bf16.mxu0 0
    %10059 = vmatpush1.bf16.msra.mxu0 0
    %10060 = vmatprep.mubr.bf16.mxu0 %v9986
    %10061 = vmatmul.mubr.bf16.gmra.mrb[0].mxu0 %v9812
    %v10062 = vpop.f32.mrb[0].mxu0
    %v10063 = vadd.f32 %v10023, %v10062
    %v10064 = vpop.f32.mrb[0].mxu0
    %v10065 = vpop.f32.mrb[0].mxu0
    %v10066 = vpop.f32.mrb[0].mxu0
    %10067 = vdwg.mxu0
    %v10068 = vadd.f32 %v9740, %v10063
    %v10069 = vld [vmem:[#allocation4 + $0x10] sm:$0x11]
    %v10070 = vld [vmem:[#allocation4 + $0x18] sm:$0x11]
    %s10071 = scalar_lea.vmem [#allocation13], 896
    %v10072 = vld [vmem:[%s10071] sm:$0xf]
    %v10073 = vld [vmem:[%s10071 + $0x4] sm:$0xf]
    %v10074 = vld [vmem:[%s10071 + $0x8] sm:$0xf]
    %v10075 = vld [vmem:[%s10071 + $0xc] sm:$0xf]
    %v10076 = vld [vmem:[%s10071 + $0x10] sm:$0xf]
    %v10077 = vld [vmem:[%s10071 + $0x14] sm:$0xf]
    %v10078 = vld [vmem:[%s10071 + $0x18] sm:$0xf]
    %v10079 = vld [vmem:[%s10071 + $0x1c] sm:$0xf]
    %v10080 = vld [vmem:[%s10071 + $0x20] sm:$0xf]
    %v10081 = vld [vmem:[%s10071 + $0x24] sm:$0xf]
    %v10082 = vld [vmem:[%s10071 + $0x28] sm:$0xf]
    %v10083 = vld [vmem:[%s10071 + $0x2c] sm:$0xf]
    %v10084 = vld [vmem:[%s10071 + $0x30] sm:$0xf]
    %v10085 = vld [vmem:[%s10071 + $0x34] sm:$0xf]
    %v10086 = vld [vmem:[%s10071 + $0x38] sm:$0xf]
    %v10087 = vld [vmem:[%s10071 + $0x3c] sm:$0xf]
    %v10088 = vld [vmem:[%s10071 + $0x40] sm:$0xf]
    %v10089 = vld [vmem:[%s10071 + $0x44] sm:$0xf]
    %v10090 = vld [vmem:[%s10071 + $0x48] sm:$0xf]
    %v10091 = vld [vmem:[%s10071 + $0x4c] sm:$0xf]
    %v10092 = vld [vmem:[%s10071 + $0x50] sm:$0xf]
    %v10093 = vld [vmem:[%s10071 + $0x54] sm:$0xf]
    %v10094 = vld [vmem:[%s10071 + $0x58] sm:$0xf]
    %v10095 = vld [vmem:[%s10071 + $0x5c] sm:$0xf]
    %v10096 = vld [vmem:[%s10071 + $0x60] sm:$0xf]
    %v10097 = vld [vmem:[%s10071 + $0x64] sm:$0xf]
    %v10098 = vld [vmem:[%s10071 + $0x68] sm:$0xf]
    %v10099 = vld [vmem:[%s10071 + $0x6c] sm:$0xf]
    %v10100 = vld [vmem:[%s10071 + $0x70] sm:$0xf]
    %v10101 = vld [vmem:[%s10071 + $0x74] sm:$0xf]
    %v10102 = vld [vmem:[%s10071 + $0x78] sm:$0xf]
    %v10103 = vld [vmem:[%s10071 + $0x7c] sm:$0xf]
    %v10104 = vld [vmem:[%s10071 + $0x80] sm:$0xf]
    %v10105 = vld [vmem:[%s10071 + $0x84] sm:$0xf]
    %v10106 = vld [vmem:[%s10071 + $0x88] sm:$0xf]
    %v10107 = vld [vmem:[%s10071 + $0x8c] sm:$0xf]
    %v10108 = vld [vmem:[%s10071 + $0x90] sm:$0xf]
    %v10109 = vld [vmem:[%s10071 + $0x94] sm:$0xf]
    %v10110 = vld [vmem:[%s10071 + $0x98] sm:$0xf]
    %v10111 = vld [vmem:[%s10071 + $0x9c] sm:$0xf]
    %v10112 = vld [vmem:[%s10071 + $0xa0] sm:$0xf]
    %v10113 = vld [vmem:[%s10071 + $0xa4] sm:$0xf]
    %v10114 = vld [vmem:[%s10071 + $0xa8] sm:$0xf]
    %v10115 = vld [vmem:[%s10071 + $0xac] sm:$0xf]
    %v10116 = vld [vmem:[%s10071 + $0xb0] sm:$0xf]
    %v10117 = vld [vmem:[%s10071 + $0xb4] sm:$0xf]
    %v10118 = vld [vmem:[%s10071 + $0xb8] sm:$0xf]
    %v10119 = vld [vmem:[%s10071 + $0xbc] sm:$0xf]
    %v10120 = vld [vmem:[%s10071 + $0xc0] sm:$0xf]
    %v10121 = vld [vmem:[%s10071 + $0xc4] sm:$0xf]
    %v10122 = vld [vmem:[%s10071 + $0xc8] sm:$0xf]
    %v10123 = vld [vmem:[%s10071 + $0xcc] sm:$0xf]
    %v10124 = vld [vmem:[%s10071 + $0xd0] sm:$0xf]
    %v10125 = vld [vmem:[%s10071 + $0xd4] sm:$0xf]
    %v10126 = vld [vmem:[%s10071 + $0xd8] sm:$0xf]
    %v10127 = vld [vmem:[%s10071 + $0xdc] sm:$0xf]
    %v10130 = vunpack.c.l.b16 %v10069
    %v10131 = vunpack.c.h.b16 %v10069
    %v10132 = vunpack.c.l.b16 %v10070
    %v10133 = vunpack.c.h.b16 %v10070
    %v10134 = vpack.c.b16 %v10130, %v10130
    %v10135 = vpack.c.b16 %v10131, %v10131
    %v10136 = vpack.c.b16 %v10132, %v10132
    %v10137 = vpack.c.b16 %v10133, %v10133
    %v10197 = vunpack.c.l.b16 %v10072
    %v10198 = vunpack.c.l.b16 %v10073
    %v10199 = vunpack.c.l.b16 %v10074
    %v10200 = vunpack.c.l.b16 %v10075
    %v10201 = vunpack.c.l.b16 %v10076
    %v10202 = vunpack.c.l.b16 %v10077
    %v10203 = vunpack.c.l.b16 %v10078
    %v10204 = vunpack.c.l.b16 %v10079
    %v10205 = vunpack.c.l.b16 %v10080
    %v10206 = vunpack.c.l.b16 %v10081
    %v10207 = vunpack.c.l.b16 %v10082
    %v10208 = vunpack.c.l.b16 %v10083
    %v10209 = vunpack.c.l.b16 %v10084
    %v10210 = vunpack.c.l.b16 %v10085
    %v10211 = vunpack.c.l.b16 %v10086
    %v10212 = vunpack.c.l.b16 %v10087
    %v10213 = vunpack.c.l.b16 %v10088
    %v10214 = vunpack.c.l.b16 %v10089
    %v10215 = vunpack.c.l.b16 %v10090
    %v10216 = vunpack.c.l.b16 %v10091
    %v10217 = vunpack.c.l.b16 %v10092
    %v10218 = vunpack.c.l.b16 %v10093
    %v10219 = vunpack.c.l.b16 %v10094
    %v10220 = vunpack.c.l.b16 %v10095
    %v10221 = vunpack.c.l.b16 %v10096
    %v10222 = vunpack.c.l.b16 %v10097
    %v10223 = vunpack.c.l.b16 %v10098
    %v10224 = vunpack.c.l.b16 %v10099
    %v10225 = vunpack.c.l.b16 %v10100
    %v10226 = vunpack.c.l.b16 %v10101
    %v10227 = vunpack.c.l.b16 %v10102
    %v10228 = vunpack.c.l.b16 %v10103
    %v10229 = vunpack.c.l.b16 %v10104
    %v10230 = vunpack.c.l.b16 %v10105
    %v10231 = vunpack.c.l.b16 %v10106
    %v10232 = vunpack.c.l.b16 %v10107
    %v10233 = vunpack.c.l.b16 %v10108
    %v10234 = vunpack.c.l.b16 %v10109
    %v10235 = vunpack.c.l.b16 %v10110
    %v10236 = vunpack.c.l.b16 %v10111
    %v10237 = vunpack.c.l.b16 %v10112
    %v10238 = vunpack.c.l.b16 %v10113
    %v10239 = vunpack.c.l.b16 %v10114
    %v10240 = vunpack.c.l.b16 %v10115
    %v10241 = vunpack.c.l.b16 %v10116
    %v10242 = vunpack.c.l.b16 %v10117
    %v10243 = vunpack.c.l.b16 %v10118
    %v10244 = vunpack.c.l.b16 %v10119
    %v10245 = vunpack.c.l.b16 %v10120
    %v10246 = vunpack.c.l.b16 %v10121
    %v10247 = vunpack.c.l.b16 %v10122
    %v10248 = vunpack.c.l.b16 %v10123
    %v10249 = vunpack.c.l.b16 %v10124
    %v10250 = vunpack.c.l.b16 %v10125
    %v10251 = vunpack.c.l.b16 %v10126
    %v10252 = vunpack.c.l.b16 %v10127
    %v10253 = vpack.c.b16 %v10198, %v10197
    %v10254 = vpack.c.b16 %v10200, %v10199
    %v10255 = vpack.c.b16 %v10202, %v10201
    %v10256 = vpack.c.b16 %v10204, %v10203
    %v10257 = vpack.c.b16 %v10206, %v10205
    %v10258 = vpack.c.b16 %v10208, %v10207
    %v10259 = vpack.c.b16 %v10210, %v10209
    %v10260 = vpack.c.b16 %v10212, %v10211
    %v10261 = vpack.c.b16 %v10214, %v10213
    %v10262 = vpack.c.b16 %v10216, %v10215
    %v10263 = vpack.c.b16 %v10218, %v10217
    %v10264 = vpack.c.b16 %v10220, %v10219
    %v10265 = vpack.c.b16 %v10222, %v10221
    %v10266 = vpack.c.b16 %v10224, %v10223
    %v10267 = vpack.c.b16 %v10226, %v10225
    %v10268 = vpack.c.b16 %v10228, %v10227
    %v10269 = vpack.c.b16 %v10230, %v10229
    %v10270 = vpack.c.b16 %v10232, %v10231
    %v10271 = vpack.c.b16 %v10234, %v10233
    %v10272 = vpack.c.b16 %v10236, %v10235
    %v10273 = vpack.c.b16 %v10238, %v10237
    %v10274 = vpack.c.b16 %v10240, %v10239
    %v10275 = vpack.c.b16 %v10242, %v10241
    %v10276 = vpack.c.b16 %v10244, %v10243
    %v10277 = vpack.c.b16 %v10246, %v10245
    %v10278 = vpack.c.b16 %v10248, %v10247
    %v10279 = vpack.c.b16 %v10250, %v10249
    %v10280 = vpack.c.b16 %v10252, %v10251
    %v10310 = vsel %vm1415, %v10137, 0
    %10312 = vmatprep.subr.bf16.mxu0 0
    %10313 = vmatpush1.bf16.msra.mxu0 %v10253
    %10314 = vmatprep.subr.bf16.mxu0 0
    %10315 = vmatpush1.bf16.msra.mxu0 %v10254
    %10316 = vmatprep.subr.bf16.mxu0 0
    %10317 = vmatpush1.bf16.msra.mxu0 %v10255
    %10318 = vmatprep.subr.bf16.mxu0 0
    %10319 = vmatpush1.bf16.msra.mxu0 %v10256
    %10320 = vmatprep.subr.bf16.mxu0 0
    %10321 = vmatpush1.bf16.msra.mxu0 %v10257
    %10322 = vmatprep.subr.bf16.mxu0 0
    %10323 = vmatpush1.bf16.msra.mxu0 %v10258
    %10324 = vmatprep.subr.bf16.mxu0 0
    %10325 = vmatpush1.bf16.msra.mxu0 %v10259
    %10326 = vmatprep.subr.bf16.mxu0 0
    %10327 = vmatpush1.bf16.msra.mxu0 %v10260
    %10328 = vmatprep.subr.bf16.mxu0 0
    %10329 = vmatpush1.bf16.msra.mxu0 %v10261
    %10330 = vmatprep.subr.bf16.mxu0 0
    %10331 = vmatpush1.bf16.msra.mxu0 %v10262
    %10332 = vmatprep.subr.bf16.mxu0 0
    %10333 = vmatpush1.bf16.msra.mxu0 %v10263
    %10334 = vmatprep.subr.bf16.mxu0 0
    %10335 = vmatpush1.bf16.msra.mxu0 %v10264
    %10336 = vmatprep.subr.bf16.mxu0 0
    %10337 = vmatpush1.bf16.msra.mxu0 %v10265
    %10338 = vmatprep.subr.bf16.mxu0 0
    %10339 = vmatpush1.bf16.msra.mxu0 %v10266
    %10340 = vmatprep.subr.bf16.mxu0 0
    %10341 = vmatpush1.bf16.msra.mxu0 %v10267
    %10342 = vmatprep.subr.bf16.mxu0 0
    %10343 = vmatpush1.bf16.msra.mxu0 %v10268
    %10344 = vmatprep.mubr.bf16.mxu0 %v10135
    %10345 = vmatmul.mubr.bf16.gmra.mrb[0].mxu0 %v10134
    %v10346 = vpop.f32.mrb[0].mxu0
    %v10347 = vadd.f32 0.0, %v10346
    %v10348 = vpop.f32.mrb[0].mxu0
    %v10349 = vpop.f32.mrb[0].mxu0
    %v10350 = vpop.f32.mrb[0].mxu0
    %10351 = vdwg.mxu0
    %10352 = vmatprep.subr.bf16.mxu0 0
    %10353 = vmatpush1.bf16.msra.mxu0 %v10269
    %10354 = vmatprep.subr.bf16.mxu0 0
    %10355 = vmatpush1.bf16.msra.mxu0 %v10270
    %10356 = vmatprep.subr.bf16.mxu0 0
    %10357 = vmatpush1.bf16.msra.mxu0 %v10271
    %10358 = vmatprep.subr.bf16.mxu0 0
    %10359 = vmatpush1.bf16.msra.mxu0 %v10272
    %10360 = vmatprep.subr.bf16.mxu0 0
    %10361 = vmatpush1.bf16.msra.mxu0 %v10273
    %10362 = vmatprep.subr.bf16.mxu0 0
    %10363 = vmatpush1.bf16.msra.mxu0 %v10274
    %10364 = vmatprep.subr.bf16.mxu0 0
    %10365 = vmatpush1.bf16.msra.mxu0 %v10275
    %10366 = vmatprep.subr.bf16.mxu0 0
    %10367 = vmatpush1.bf16.msra.mxu0 %v10276
    %10368 = vmatprep.subr.bf16.mxu0 0
    %10369 = vmatpush1.bf16.msra.mxu0 %v10277
    %10370 = vmatprep.subr.bf16.mxu0 0
    %10371 = vmatpush1.bf16.msra.mxu0 %v10278
    %10372 = vmatprep.subr.bf16.mxu0 0
    %10373 = vmatpush1.bf16.msra.mxu0 %v10279
    %10374 = vmatprep.subr.bf16.mxu0 0
    %10375 = vmatpush1.bf16.msra.mxu0 %v10280
    %10376 = vmatprep.subr.bf16.mxu0 0
    %10377 = vmatpush1.bf16.msra.mxu0 0
    %10378 = vmatprep.subr.bf16.mxu0 0
    %10379 = vmatpush1.bf16.msra.mxu0 0
    %10380 = vmatprep.subr.bf16.mxu0 0
    %10381 = vmatpush1.bf16.msra.mxu0 0
    %10382 = vmatprep.subr.bf16.mxu0 0
    %10383 = vmatpush1.bf16.msra.mxu0 0
    %10384 = vmatprep.mubr.bf16.mxu0 %v10310
    %10385 = vmatmul.mubr.bf16.gmra.mrb[0].mxu0 %v10136
    %v10386 = vpop.f32.mrb[0].mxu0
    %v10387 = vadd.f32 %v10347, %v10386
    %v10388 = vpop.f32.mrb[0].mxu0
    %v10389 = vpop.f32.mrb[0].mxu0
    %v10390 = vpop.f32.mrb[0].mxu0
    %10391 = vdwg.mxu0
    %v10392 = vadd.f32 %v10068, %v10387
    %v10393 = vld [vmem:[#allocation4 + $0x10] sm:$0x22]
    %v10394 = vld [vmem:[#allocation4 + $0x18] sm:$0x22]
    %s10395 = scalar_lea.vmem [#allocation13], 1120
    %v10396 = vld [vmem:[%s10395] sm:$0xf]
    %v10397 = vld [vmem:[%s10395 + $0x4] sm:$0xf]
    %v10398 = vld [vmem:[%s10395 + $0x8] sm:$0xf]
    %v10399 = vld [vmem:[%s10395 + $0xc] sm:$0xf]
    %v10400 = vld [vmem:[%s10395 + $0x10] sm:$0xf]
    %v10401 = vld [vmem:[%s10395 + $0x14] sm:$0xf]
    %v10402 = vld [vmem:[%s10395 + $0x18] sm:$0xf]
    %v10403 = vld [vmem:[%s10395 + $0x1c] sm:$0xf]
    %v10404 = vld [vmem:[%s10395 + $0x20] sm:$0xf]
    %v10405 = vld [vmem:[%s10395 + $0x24] sm:$0xf]
    %v10406 = vld [vmem:[%s10395 + $0x28] sm:$0xf]
    %v10407 = vld [vmem:[%s10395 + $0x2c] sm:$0xf]
    %v10408 = vld [vmem:[%s10395 + $0x30] sm:$0xf]
    %v10409 = vld [vmem:[%s10395 + $0x34] sm:$0xf]
    %v10410 = vld [vmem:[%s10395 + $0x38] sm:$0xf]
    %v10411 = vld [vmem:[%s10395 + $0x3c] sm:$0xf]
    %v10412 = vld [vmem:[%s10395 + $0x40] sm:$0xf]
    %v10413 = vld [vmem:[%s10395 + $0x44] sm:$0xf]
    %v10414 = vld [vmem:[%s10395 + $0x48] sm:$0xf]
    %v10415 = vld [vmem:[%s10395 + $0x4c] sm:$0xf]
    %v10416 = vld [vmem:[%s10395 + $0x50] sm:$0xf]
    %v10417 = vld [vmem:[%s10395 + $0x54] sm:$0xf]
    %v10418 = vld [vmem:[%s10395 + $0x58] sm:$0xf]
    %v10419 = vld [vmem:[%s10395 + $0x5c] sm:$0xf]
    %v10420 = vld [vmem:[%s10395 + $0x60] sm:$0xf]
    %v10421 = vld [vmem:[%s10395 + $0x64] sm:$0xf]
    %v10422 = vld [vmem:[%s10395 + $0x68] sm:$0xf]
    %v10423 = vld [vmem:[%s10395 + $0x6c] sm:$0xf]
    %v10424 = vld [vmem:[%s10395 + $0x70] sm:$0xf]
    %v10425 = vld [vmem:[%s10395 + $0x74] sm:$0xf]
    %v10426 = vld [vmem:[%s10395 + $0x78] sm:$0xf]
    %v10427 = vld [vmem:[%s10395 + $0x7c] sm:$0xf]
    %v10428 = vld [vmem:[%s10395 + $0x80] sm:$0xf]
    %v10429 = vld [vmem:[%s10395 + $0x84] sm:$0xf]
    %v10430 = vld [vmem:[%s10395 + $0x88] sm:$0xf]
    %v10431 = vld [vmem:[%s10395 + $0x8c] sm:$0xf]
    %v10432 = vld [vmem:[%s10395 + $0x90] sm:$0xf]
    %v10433 = vld [vmem:[%s10395 + $0x94] sm:$0xf]
    %v10434 = vld [vmem:[%s10395 + $0x98] sm:$0xf]
    %v10435 = vld [vmem:[%s10395 + $0x9c] sm:$0xf]
    %v10436 = vld [vmem:[%s10395 + $0xa0] sm:$0xf]
    %v10437 = vld [vmem:[%s10395 + $0xa4] sm:$0xf]
    %v10438 = vld [vmem:[%s10395 + $0xa8] sm:$0xf]
    %v10439 = vld [vmem:[%s10395 + $0xac] sm:$0xf]
    %v10440 = vld [vmem:[%s10395 + $0xb0] sm:$0xf]
    %v10441 = vld [vmem:[%s10395 + $0xb4] sm:$0xf]
    %v10442 = vld [vmem:[%s10395 + $0xb8] sm:$0xf]
    %v10443 = vld [vmem:[%s10395 + $0xbc] sm:$0xf]
    %v10444 = vld [vmem:[%s10395 + $0xc0] sm:$0xf]
    %v10445 = vld [vmem:[%s10395 + $0xc4] sm:$0xf]
    %v10446 = vld [vmem:[%s10395 + $0xc8] sm:$0xf]
    %v10447 = vld [vmem:[%s10395 + $0xcc] sm:$0xf]
    %v10448 = vld [vmem:[%s10395 + $0xd0] sm:$0xf]
    %v10449 = vld [vmem:[%s10395 + $0xd4] sm:$0xf]
    %v10450 = vld [vmem:[%s10395 + $0xd8] sm:$0xf]
    %v10451 = vld [vmem:[%s10395 + $0xdc] sm:$0xf]
    %v10454 = vunpack.c.l.b16 %v10393
    %v10455 = vunpack.c.h.b16 %v10393
    %v10456 = vunpack.c.l.b16 %v10394
    %v10457 = vunpack.c.h.b16 %v10394
    %v10458 = vpack.c.b16 %v10454, %v10454
    %v10459 = vpack.c.b16 %v10455, %v10455
    %v10460 = vpack.c.b16 %v10456, %v10456
    %v10461 = vpack.c.b16 %v10457, %v10457
    %v10462 = vrot.slane %v10458, 1
    %v10463 = vrot.slane %v10459, 1
    %v10464 = vrot.slane %v10460, 1
    %v10465 = vrot.slane %v10461, 1
    %v10525 = vunpack.c.l.b16 %v10396
    %v10526 = vunpack.c.l.b16 %v10397
    %v10527 = vunpack.c.l.b16 %v10398
    %v10528 = vunpack.c.l.b16 %v10399
    %v10529 = vunpack.c.l.b16 %v10400
    %v10530 = vunpack.c.l.b16 %v10401
    %v10531 = vunpack.c.l.b16 %v10402
    %v10532 = vunpack.c.l.b16 %v10403
    %v10533 = vunpack.c.l.b16 %v10404
    %v10534 = vunpack.c.l.b16 %v10405
    %v10535 = vunpack.c.l.b16 %v10406
    %v10536 = vunpack.c.l.b16 %v10407
    %v10537 = vunpack.c.l.b16 %v10408
    %v10538 = vunpack.c.l.b16 %v10409
    %v10539 = vunpack.c.l.b16 %v10410
    %v10540 = vunpack.c.l.b16 %v10411
    %v10541 = vunpack.c.l.b16 %v10412
    %v10542 = vunpack.c.l.b16 %v10413
    %v10543 = vunpack.c.l.b16 %v10414
    %v10544 = vunpack.c.l.b16 %v10415
    %v10545 = vunpack.c.l.b16 %v10416
    %v10546 = vunpack.c.l.b16 %v10417
    %v10547 = vunpack.c.l.b16 %v10418
    %v10548 = vunpack.c.l.b16 %v10419
    %v10549 = vunpack.c.l.b16 %v10420
    %v10550 = vunpack.c.l.b16 %v10421
    %v10551 = vunpack.c.l.b16 %v10422
    %v10552 = vunpack.c.l.b16 %v10423
    %v10553 = vunpack.c.l.b16 %v10424
    %v10554 = vunpack.c.l.b16 %v10425
    %v10555 = vunpack.c.l.b16 %v10426
    %v10556 = vunpack.c.l.b16 %v10427
    %v10557 = vunpack.c.l.b16 %v10428
    %v10558 = vunpack.c.l.b16 %v10429
    %v10559 = vunpack.c.l.b16 %v10430
    %v10560 = vunpack.c.l.b16 %v10431
    %v10561 = vunpack.c.l.b16 %v10432
    %v10562 = vunpack.c.l.b16 %v10433
    %v10563 = vunpack.c.l.b16 %v10434
    %v10564 = vunpack.c.l.b16 %v10435
    %v10565 = vunpack.c.l.b16 %v10436
    %v10566 = vunpack.c.l.b16 %v10437
    %v10567 = vunpack.c.l.b16 %v10438
    %v10568 = vunpack.c.l.b16 %v10439
    %v10569 = vunpack.c.l.b16 %v10440
    %v10570 = vunpack.c.l.b16 %v10441
    %v10571 = vunpack.c.l.b16 %v10442
    %v10572 = vunpack.c.l.b16 %v10443
    %v10573 = vunpack.c.l.b16 %v10444
    %v10574 = vunpack.c.l.b16 %v10445
    %v10575 = vunpack.c.l.b16 %v10446
    %v10576 = vunpack.c.l.b16 %v10447
    %v10577 = vunpack.c.l.b16 %v10448
    %v10578 = vunpack.c.l.b16 %v10449
    %v10579 = vunpack.c.l.b16 %v10450
    %v10580 = vunpack.c.l.b16 %v10451
    %v10581 = vpack.c.b16 %v10526, %v10525
    %v10582 = vpack.c.b16 %v10528, %v10527
    %v10583 = vpack.c.b16 %v10530, %v10529
    %v10584 = vpack.c.b16 %v10532, %v10531
    %v10585 = vpack.c.b16 %v10534, %v10533
    %v10586 = vpack.c.b16 %v10536, %v10535
    %v10587 = vpack.c.b16 %v10538, %v10537
    %v10588 = vpack.c.b16 %v10540, %v10539
    %v10589 = vpack.c.b16 %v10542, %v10541
    %v10590 = vpack.c.b16 %v10544, %v10543
    %v10591 = vpack.c.b16 %v10546, %v10545
    %v10592 = vpack.c.b16 %v10548, %v10547
    %v10593 = vpack.c.b16 %v10550, %v10549
    %v10594 = vpack.c.b16 %v10552, %v10551
    %v10595 = vpack.c.b16 %v10554, %v10553
    %v10596 = vpack.c.b16 %v10556, %v10555
    %v10597 = vpack.c.b16 %v10558, %v10557
    %v10598 = vpack.c.b16 %v10560, %v10559
    %v10599 = vpack.c.b16 %v10562, %v10561
    %v10600 = vpack.c.b16 %v10564, %v10563
    %v10601 = vpack.c.b16 %v10566, %v10565
    %v10602 = vpack.c.b16 %v10568, %v10567
    %v10603 = vpack.c.b16 %v10570, %v10569
    %v10604 = vpack.c.b16 %v10572, %v10571
    %v10605 = vpack.c.b16 %v10574, %v10573
    %v10606 = vpack.c.b16 %v10576, %v10575
    %v10607 = vpack.c.b16 %v10578, %v10577
    %v10608 = vpack.c.b16 %v10580, %v10579
    %v10638 = vsel %vm1415, %v10465, 0
    %10640 = vmatprep.subr.bf16.mxu0 0
    %10641 = vmatpush1.bf16.msra.mxu0 %v10581
    %10642 = vmatprep.subr.bf16.mxu0 0
    %10643 = vmatpush1.bf16.msra.mxu0 %v10582
    %10644 = vmatprep.subr.bf16.mxu0 0
    %10645 = vmatpush1.bf16.msra.mxu0 %v10583
    %10646 = vmatprep.subr.bf16.mxu0 0
    %10647 = vmatpush1.bf16.msra.mxu0 %v10584
    %10648 = vmatprep.subr.bf16.mxu0 0
    %10649 = vmatpush1.bf16.msra.mxu0 %v10585
    %10650 = vmatprep.subr.bf16.mxu0 0
    %10651 = vmatpush1.bf16.msra.mxu0 %v10586
    %10652 = vmatprep.subr.bf16.mxu0 0
    %10653 = vmatpush1.bf16.msra.mxu0 %v10587
    %10654 = vmatprep.subr.bf16.mxu0 0
    %10655 = vmatpush1.bf16.msra.mxu0 %v10588
    %10656 = vmatprep.subr.bf16.mxu0 0
    %10657 = vmatpush1.bf16.msra.mxu0 %v10589
    %10658 = vmatprep.subr.bf16.mxu0 0
    %10659 = vmatpush1.bf16.msra.mxu0 %v10590
    %10660 = vmatprep.subr.bf16.mxu0 0
    %10661 = vmatpush1.bf16.msra.mxu0 %v10591
    %10662 = vmatprep.subr.bf16.mxu0 0
    %10663 = vmatpush1.bf16.msra.mxu0 %v10592
    %10664 = vmatprep.subr.bf16.mxu0 0
    %10665 = vmatpush1.bf16.msra.mxu0 %v10593
    %10666 = vmatprep.subr.bf16.mxu0 0
    %10667 = vmatpush1.bf16.msra.mxu0 %v10594
    %10668 = vmatprep.subr.bf16.mxu0 0
    %10669 = vmatpush1.bf16.msra.mxu0 %v10595
    %10670 = vmatprep.subr.bf16.mxu0 0
    %10671 = vmatpush1.bf16.msra.mxu0 %v10596
    %10672 = vmatprep.mubr.bf16.mxu0 %v10463
    %10673 = vmatmul.mubr.bf16.gmra.mrb[0].mxu0 %v10462
    %v10674 = vpop.f32.mrb[0].mxu0
    %v10675 = vadd.f32 0.0, %v10674
    %v10676 = vpop.f32.mrb[0].mxu0
    %v10677 = vpop.f32.mrb[0].mxu0
    %v10678 = vpop.f32.mrb[0].mxu0
    %10679 = vdwg.mxu0
    %10680 = vmatprep.subr.bf16.mxu0 0
    %10681 = vmatpush1.bf16.msra.mxu0 %v10597
    %10682 = vmatprep.subr.bf16.mxu0 0
    %10683 = vmatpush1.bf16.msra.mxu0 %v10598
    %10684 = vmatprep.subr.bf16.mxu0 0
    %10685 = vmatpush1.bf16.msra.mxu0 %v10599
    %10686 = vmatprep.subr.bf16.mxu0 0
    %10687 = vmatpush1.bf16.msra.mxu0 %v10600
    %10688 = vmatprep.subr.bf16.mxu0 0
    %10689 = vmatpush1.bf16.msra.mxu0 %v10601
    %10690 = vmatprep.subr.bf16.mxu0 0
    %10691 = vmatpush1.bf16.msra.mxu0 %v10602
    %10692 = vmatprep.subr.bf16.mxu0 0
    %10693 = vmatpush1.bf16.msra.mxu0 %v10603
    %10694 = vmatprep.subr.bf16.mxu0 0
    %10695 = vmatpush1.bf16.msra.mxu0 %v10604
    %10696 = vmatprep.subr.bf16.mxu0 0
    %10697 = vmatpush1.bf16.msra.mxu0 %v10605
    %10698 = vmatprep.subr.bf16.mxu0 0
    %10699 = vmatpush1.bf16.msra.mxu0 %v10606
    %10700 = vmatprep.subr.bf16.mxu0 0
    %10701 = vmatpush1.bf16.msra.mxu0 %v10607
    %10702 = vmatprep.subr.bf16.mxu0 0
    %10703 = vmatpush1.bf16.msra.mxu0 %v10608
    %10704 = vmatprep.subr.bf16.mxu0 0
    %10705 = vmatpush1.bf16.msra.mxu0 0
    %10706 = vmatprep.subr.bf16.mxu0 0
    %10707 = vmatpush1.bf16.msra.mxu0 0
    %10708 = vmatprep.subr.bf16.mxu0 0
    %10709 = vmatpush1.bf16.msra.mxu0 0
    %10710 = vmatprep.subr.bf16.mxu0 0
    %10711 = vmatpush1.bf16.msra.mxu0 0
    %10712 = vmatprep.mubr.bf16.mxu0 %v10638
    %10713 = vmatmul.mubr.bf16.gmra.mrb[0].mxu0 %v10464
    %v10714 = vpop.f32.mrb[0].mxu0
    %v10715 = vadd.f32 %v10675, %v10714
    %v10716 = vpop.f32.mrb[0].mxu0
    %v10717 = vpop.f32.mrb[0].mxu0
    %v10718 = vpop.f32.mrb[0].mxu0
    %10719 = vdwg.mxu0
    %v10720 = vadd.f32 %v10392, %v10715
    %v10721 = vld [vmem:[#allocation4 + $0x10] sm:$0x44]
    %v10722 = vld [vmem:[#allocation4 + $0x18] sm:$0x44]
    %s10723 = scalar_lea.vmem [#allocation13], 1344
    %v10724 = vld [vmem:[%s10723] sm:$0xf]
    %v10725 = vld [vmem:[%s10723 + $0x4] sm:$0xf]
    %v10726 = vld [vmem:[%s10723 + $0x8] sm:$0xf]
    %v10727 = vld [vmem:[%s10723 + $0xc] sm:$0xf]
    %v10728 = vld [vmem:[%s10723 + $0x10] sm:$0xf]
    %v10729 = vld [vmem:[%s10723 + $0x14] sm:$0xf]
    %v10730 = vld [vmem:[%s10723 + $0x18] sm:$0xf]
    %v10731 = vld [vmem:[%s10723 + $0x1c] sm:$0xf]
    %v10732 = vld [vmem:[%s10723 + $0x20] sm:$0xf]
    %v10733 = vld [vmem:[%s10723 + $0x24] sm:$0xf]
    %v10734 = vld [vmem:[%s10723 + $0x28] sm:$0xf]
    %v10735 = vld [vmem:[%s10723 + $0x2c] sm:$0xf]
    %v10736 = vld [vmem:[%s10723 + $0x30] sm:$0xf]
    %v10737 = vld [vmem:[%s10723 + $0x34] sm:$0xf]
    %v10738 = vld [vmem:[%s10723 + $0x38] sm:$0xf]
    %v10739 = vld [vmem:[%s10723 + $0x3c] sm:$0xf]
    %v10740 = vld [vmem:[%s10723 + $0x40] sm:$0xf]
    %v10741 = vld [vmem:[%s10723 + $0x44] sm:$0xf]
    %v10742 = vld [vmem:[%s10723 + $0x48] sm:$0xf]
    %v10743 = vld [vmem:[%s10723 + $0x4c] sm:$0xf]
    %v10744 = vld [vmem:[%s10723 + $0x50] sm:$0xf]
    %v10745 = vld [vmem:[%s10723 + $0x54] sm:$0xf]
    %v10746 = vld [vmem:[%s10723 + $0x58] sm:$0xf]
    %v10747 = vld [vmem:[%s10723 + $0x5c] sm:$0xf]
    %v10748 = vld [vmem:[%s10723 + $0x60] sm:$0xf]
    %v10749 = vld [vmem:[%s10723 + $0x64] sm:$0xf]
    %v10750 = vld [vmem:[%s10723 + $0x68] sm:$0xf]
    %v10751 = vld [vmem:[%s10723 + $0x6c] sm:$0xf]
    %v10752 = vld [vmem:[%s10723 + $0x70] sm:$0xf]
    %v10753 = vld [vmem:[%s10723 + $0x74] sm:$0xf]
    %v10754 = vld [vmem:[%s10723 + $0x78] sm:$0xf]
    %v10755 = vld [vmem:[%s10723 + $0x7c] sm:$0xf]
    %v10756 = vld [vmem:[%s10723 + $0x80] sm:$0xf]
    %v10757 = vld [vmem:[%s10723 + $0x84] sm:$0xf]
    %v10758 = vld [vmem:[%s10723 + $0x88] sm:$0xf]
    %v10759 = vld [vmem:[%s10723 + $0x8c] sm:$0xf]
    %v10760 = vld [vmem:[%s10723 + $0x90] sm:$0xf]
    %v10761 = vld [vmem:[%s10723 + $0x94] sm:$0xf]
    %v10762 = vld [vmem:[%s10723 + $0x98] sm:$0xf]
    %v10763 = vld [vmem:[%s10723 + $0x9c] sm:$0xf]
    %v10764 = vld [vmem:[%s10723 + $0xa0] sm:$0xf]
    %v10765 = vld [vmem:[%s10723 + $0xa4] sm:$0xf]
    %v10766 = vld [vmem:[%s10723 + $0xa8] sm:$0xf]
    %v10767 = vld [vmem:[%s10723 + $0xac] sm:$0xf]
    %v10768 = vld [vmem:[%s10723 + $0xb0] sm:$0xf]
    %v10769 = vld [vmem:[%s10723 + $0xb4] sm:$0xf]
    %v10770 = vld [vmem:[%s10723 + $0xb8] sm:$0xf]
    %v10771 = vld [vmem:[%s10723 + $0xbc] sm:$0xf]
    %v10772 = vld [vmem:[%s10723 + $0xc0] sm:$0xf]
    %v10773 = vld [vmem:[%s10723 + $0xc4] sm:$0xf]
    %v10774 = vld [vmem:[%s10723 + $0xc8] sm:$0xf]
    %v10775 = vld [vmem:[%s10723 + $0xcc] sm:$0xf]
    %v10776 = vld [vmem:[%s10723 + $0xd0] sm:$0xf]
    %v10777 = vld [vmem:[%s10723 + $0xd4] sm:$0xf]
    %v10778 = vld [vmem:[%s10723 + $0xd8] sm:$0xf]
    %v10779 = vld [vmem:[%s10723 + $0xdc] sm:$0xf]
    %v10782 = vunpack.c.l.b16 %v10721
    %v10783 = vunpack.c.h.b16 %v10721
    %v10784 = vunpack.c.l.b16 %v10722
    %v10785 = vunpack.c.h.b16 %v10722
    %v10786 = vpack.c.b16 %v10782, %v10782
    %v10787 = vpack.c.b16 %v10783, %v10783
    %v10788 = vpack.c.b16 %v10784, %v10784
    %v10789 = vpack.c.b16 %v10785, %v10785
    %v10790 = vrot.slane %v10786, 2
    %v10791 = vrot.slane %v10787, 2
    %v10792 = vrot.slane %v10788, 2
    %v10793 = vrot.slane %v10789, 2
    %v10853 = vunpack.c.l.b16 %v10724
    %v10854 = vunpack.c.l.b16 %v10725
    %v10855 = vunpack.c.l.b16 %v10726
    %v10856 = vunpack.c.l.b16 %v10727
    %v10857 = vunpack.c.l.b16 %v10728
    %v10858 = vunpack.c.l.b16 %v10729
    %v10859 = vunpack.c.l.b16 %v10730
    %v10860 = vunpack.c.l.b16 %v10731
    %v10861 = vunpack.c.l.b16 %v10732
    %v10862 = vunpack.c.l.b16 %v10733
    %v10863 = vunpack.c.l.b16 %v10734
    %v10864 = vunpack.c.l.b16 %v10735
    %v10865 = vunpack.c.l.b16 %v10736
    %v10866 = vunpack.c.l.b16 %v10737
    %v10867 = vunpack.c.l.b16 %v10738
    %v10868 = vunpack.c.l.b16 %v10739
    %v10869 = vunpack.c.l.b16 %v10740
    %v10870 = vunpack.c.l.b16 %v10741
    %v10871 = vunpack.c.l.b16 %v10742
    %v10872 = vunpack.c.l.b16 %v10743
    %v10873 = vunpack.c.l.b16 %v10744
    %v10874 = vunpack.c.l.b16 %v10745
    %v10875 = vunpack.c.l.b16 %v10746
    %v10876 = vunpack.c.l.b16 %v10747
    %v10877 = vunpack.c.l.b16 %v10748
    %v10878 = vunpack.c.l.b16 %v10749
    %v10879 = vunpack.c.l.b16 %v10750
    %v10880 = vunpack.c.l.b16 %v10751
    %v10881 = vunpack.c.l.b16 %v10752
    %v10882 = vunpack.c.l.b16 %v10753
    %v10883 = vunpack.c.l.b16 %v10754
    %v10884 = vunpack.c.l.b16 %v10755
    %v10885 = vunpack.c.l.b16 %v10756
    %v10886 = vunpack.c.l.b16 %v10757
    %v10887 = vunpack.c.l.b16 %v10758
    %v10888 = vunpack.c.l.b16 %v10759
    %v10889 = vunpack.c.l.b16 %v10760
    %v10890 = vunpack.c.l.b16 %v10761
    %v10891 = vunpack.c.l.b16 %v10762
    %v10892 = vunpack.c.l.b16 %v10763
    %v10893 = vunpack.c.l.b16 %v10764
    %v10894 = vunpack.c.l.b16 %v10765
    %v10895 = vunpack.c.l.b16 %v10766
    %v10896 = vunpack.c.l.b16 %v10767
    %v10897 = vunpack.c.l.b16 %v10768
    %v10898 = vunpack.c.l.b16 %v10769
    %v10899 = vunpack.c.l.b16 %v10770
    %v10900 = vunpack.c.l.b16 %v10771
    %v10901 = vunpack.c.l.b16 %v10772
    %v10902 = vunpack.c.l.b16 %v10773
    %v10903 = vunpack.c.l.b16 %v10774
    %v10904 = vunpack.c.l.b16 %v10775
    %v10905 = vunpack.c.l.b16 %v10776
    %v10906 = vunpack.c.l.b16 %v10777
    %v10907 = vunpack.c.l.b16 %v10778
    %v10908 = vunpack.c.l.b16 %v10779
    %v10909 = vpack.c.b16 %v10854, %v10853
    %v10910 = vpack.c.b16 %v10856, %v10855
    %v10911 = vpack.c.b16 %v10858, %v10857
    %v10912 = vpack.c.b16 %v10860, %v10859
    %v10913 = vpack.c.b16 %v10862, %v10861
    %v10914 = vpack.c.b16 %v10864, %v10863
    %v10915 = vpack.c.b16 %v10866, %v10865
    %v10916 = vpack.c.b16 %v10868, %v10867
    %v10917 = vpack.c.b16 %v10870, %v10869
    %v10918 = vpack.c.b16 %v10872, %v10871
    %v10919 = vpack.c.b16 %v10874, %v10873
    %v10920 = vpack.c.b16 %v10876, %v10875
    %v10921 = vpack.c.b16 %v10878, %v10877
    %v10922 = vpack.c.b16 %v10880, %v10879
    %v10923 = vpack.c.b16 %v10882, %v10881
    %v10924 = vpack.c.b16 %v10884, %v10883
    %v10925 = vpack.c.b16 %v10886, %v10885
    %v10926 = vpack.c.b16 %v10888, %v10887
    %v10927 = vpack.c.b16 %v10890, %v10889
    %v10928 = vpack.c.b16 %v10892, %v10891
    %v10929 = vpack.c.b16 %v10894, %v10893
    %v10930 = vpack.c.b16 %v10896, %v10895
    %v10931 = vpack.c.b16 %v10898, %v10897
    %v10932 = vpack.c.b16 %v10900, %v10899
    %v10933 = vpack.c.b16 %v10902, %v10901
    %v10934 = vpack.c.b16 %v10904, %v10903
    %v10935 = vpack.c.b16 %v10906, %v10905
    %v10936 = vpack.c.b16 %v10908, %v10907
    %v10966 = vsel %vm1415, %v10793, 0
    %10968 = vmatprep.subr.bf16.mxu0 0
    %10969 = vmatpush1.bf16.msra.mxu0 %v10909
    %10970 = vmatprep.subr.bf16.mxu0 0
    %10971 = vmatpush1.bf16.msra.mxu0 %v10910
    %10972 = vmatprep.subr.bf16.mxu0 0
    %10973 = vmatpush1.bf16.msra.mxu0 %v10911
    %10974 = vmatprep.subr.bf16.mxu0 0
    %10975 = vmatpush1.bf16.msra.mxu0 %v10912
    %10976 = vmatprep.subr.bf16.mxu0 0
    %10977 = vmatpush1.bf16.msra.mxu0 %v10913
    %10978 = vmatprep.subr.bf16.mxu0 0
    %10979 = vmatpush1.bf16.msra.mxu0 %v10914
    %10980 = vmatprep.subr.bf16.mxu0 0
    %10981 = vmatpush1.bf16.msra.mxu0 %v10915
    %10982 = vmatprep.subr.bf16.mxu0 0
    %10983 = vmatpush1.bf16.msra.mxu0 %v10916
    %10984 = vmatprep.subr.bf16.mxu0 0
    %10985 = vmatpush1.bf16.msra.mxu0 %v10917
    %10986 = vmatprep.subr.bf16.mxu0 0
    %10987 = vmatpush1.bf16.msra.mxu0 %v10918
    %10988 = vmatprep.subr.bf16.mxu0 0
    %10989 = vmatpush1.bf16.msra.mxu0 %v10919
    %10990 = vmatprep.subr.bf16.mxu0 0
    %10991 = vmatpush1.bf16.msra.mxu0 %v10920
    %10992 = vmatprep.subr.bf16.mxu0 0
    %10993 = vmatpush1.bf16.msra.mxu0 %v10921
    %10994 = vmatprep.subr.bf16.mxu0 0
    %10995 = vmatpush1.bf16.msra.mxu0 %v10922
    %10996 = vmatprep.subr.bf16.mxu0 0
    %10997 = vmatpush1.bf16.msra.mxu0 %v10923
    %10998 = vmatprep.subr.bf16.mxu0 0
    %10999 = vmatpush1.bf16.msra.mxu0 %v10924
    %11000 = vmatprep.mubr.bf16.mxu0 %v10791
    %11001 = vmatmul.mubr.bf16.gmra.mrb[0].mxu0 %v10790
    %v11002 = vpop.f32.mrb[0].mxu0
    %v11003 = vadd.f32 0.0, %v11002
    %v11004 = vpop.f32.mrb[0].mxu0
    %v11005 = vpop.f32.mrb[0].mxu0
    %v11006 = vpop.f32.mrb[0].mxu0
    %11007 = vdwg.mxu0
    %11008 = vmatprep.subr.bf16.mxu0 0
    %11009 = vmatpush1.bf16.msra.mxu0 %v10925
    %11010 = vmatprep.subr.bf16.mxu0 0
    %11011 = vmatpush1.bf16.msra.mxu0 %v10926
    %11012 = vmatprep.subr.bf16.mxu0 0
    %11013 = vmatpush1.bf16.msra.mxu0 %v10927
    %11014 = vmatprep.subr.bf16.mxu0 0
    %11015 = vmatpush1.bf16.msra.mxu0 %v10928
    %11016 = vmatprep.subr.bf16.mxu0 0
    %11017 = vmatpush1.bf16.msra.mxu0 %v10929
    %11018 = vmatprep.subr.bf16.mxu0 0
    %11019 = vmatpush1.bf16.msra.mxu0 %v10930
    %11020 = vmatprep.subr.bf16.mxu0 0
    %11021 = vmatpush1.bf16.msra.mxu0 %v10931
    %11022 = vmatprep.subr.bf16.mxu0 0
    %11023 = vmatpush1.bf16.msra.mxu0 %v10932
    %11024 = vmatprep.subr.bf16.mxu0 0
    %11025 = vmatpush1.bf16.msra.mxu0 %v10933
    %11026 = vmatprep.subr.bf16.mxu0 0
    %11027 = vmatpush1.bf16.msra.mxu0 %v10934
    %11028 = vmatprep.subr.bf16.mxu0 0
    %11029 = vmatpush1.bf16.msra.mxu0 %v10935
    %11030 = vmatprep.subr.bf16.mxu0 0
    %11031 = vmatpush1.bf16.msra.mxu0 %v10936
    %11032 = vmatprep.subr.bf16.mxu0 0
    %11033 = vmatpush1.bf16.msra.mxu0 0
    %11034 = vmatprep.subr.bf16.mxu0 0
    %11035 = vmatpush1.bf16.msra.mxu0 0
    %11036 = vmatprep.subr.bf16.mxu0 0
    %11037 = vmatpush1.bf16.msra.mxu0 0
    %11038 = vmatprep.subr.bf16.mxu0 0
    %11039 = vmatpush1.bf16.msra.mxu0 0
    %11040 = vmatprep.mubr.bf16.mxu0 %v10966
    %11041 = vmatmul.mubr.bf16.gmra.mrb[0].mxu0 %v10792
    %v11042 = vpop.f32.mrb[0].mxu0
    %v11043 = vadd.f32 %v11003, %v11042
    %v11044 = vpop.f32.mrb[0].mxu0
    %v11045 = vpop.f32.mrb[0].mxu0
    %v11046 = vpop.f32.mrb[0].mxu0
    %11047 = vdwg.mxu0
    %v11048 = vadd.f32 %v10720, %v11043
    %v11049 = vld [vmem:[#allocation14] sm:$0x1]
    %v11051 = vlaneseq
    %v11052 = vshrl.u32 %v11051, 7
    %v11053 = vsub.s32 0, %v11052
    %v11054 = vrot.slane %v11049, %v11053
    %v11056 = vadd.f32 %v11048, %v11054
    %v11057 = vmax.f32 %v11056, 0.0
    %v11058 = vpack.c.bf16 %v11057, %v11057
    %v11059 = vld [vmem:[#allocation16] sm:$0xf]
    %v11060 = vld [vmem:[#allocation16 + $0x4] sm:$0xf]
    %v11061 = vld [vmem:[#allocation16 + $0x8] sm:$0xf]
    %v11062 = vld [vmem:[#allocation16 + $0xc] sm:$0xf]
    %v11063 = vld [vmem:[#allocation16 + $0x10] sm:$0xf]
    %v11064 = vld [vmem:[#allocation16 + $0x14] sm:$0xf]
    %v11065 = vld [vmem:[#allocation16 + $0x18] sm:$0xf]
    %v11066 = vld [vmem:[#allocation16 + $0x1c] sm:$0xf]
    %v11067 = vld [vmem:[#allocation16 + $0x20] sm:$0xf]
    %v11068 = vld [vmem:[#allocation16 + $0x24] sm:$0xf]
    %v11069 = vld [vmem:[#allocation16 + $0x28] sm:$0xf]
    %v11070 = vld [vmem:[#allocation16 + $0x2c] sm:$0xf]
    %v11071 = vld [vmem:[#allocation16 + $0x30] sm:$0xf]
    %v11072 = vld [vmem:[#allocation16 + $0x34] sm:$0xf]
    %v11073 = vld [vmem:[#allocation16 + $0x38] sm:$0xf]
    %v11074 = vld [vmem:[#allocation16 + $0x3c] sm:$0xf]
    %v11075 = vld [vmem:[#allocation17] sm:$0x1]
    %v11077 = vlaneseq
    %v11078 = vshrl.u32 %v11077, 7
    %v11079 = vsub.s32 0, %v11078
    %v11080 = vrot.slane %v11075, %v11079
    %v11098 = vunpack.c.l.b16 %v11059
    %v11099 = vunpack.c.l.b16 %v11060
    %v11100 = vunpack.c.l.b16 %v11061
    %v11101 = vunpack.c.l.b16 %v11062
    %v11102 = vunpack.c.l.b16 %v11063
    %v11103 = vunpack.c.l.b16 %v11064
    %v11104 = vunpack.c.l.b16 %v11065
    %v11105 = vunpack.c.l.b16 %v11066
    %v11106 = vunpack.c.l.b16 %v11067
    %v11107 = vunpack.c.l.b16 %v11068
    %v11108 = vunpack.c.l.b16 %v11069
    %v11109 = vunpack.c.l.b16 %v11070
    %v11110 = vunpack.c.l.b16 %v11071
    %v11111 = vunpack.c.l.b16 %v11072
    %v11112 = vunpack.c.l.b16 %v11073
    %v11113 = vunpack.c.l.b16 %v11074
    %v11114 = vpack.c.b16 %v11099, %v11098
    %v11115 = vpack.c.b16 %v11101, %v11100
    %v11116 = vpack.c.b16 %v11103, %v11102
    %v11117 = vpack.c.b16 %v11105, %v11104
    %v11118 = vpack.c.b16 %v11107, %v11106
    %v11119 = vpack.c.b16 %v11109, %v11108
    %v11120 = vpack.c.b16 %v11111, %v11110
    %v11121 = vpack.c.b16 %v11113, %v11112
    %11130 = vmatprep.subr.bf16.mxu0 0
    %11131 = vmatpush1.bf16.msra.mxu0 %v11114
    %11132 = vmatprep.subr.bf16.mxu0 0
    %11133 = vmatpush1.bf16.msra.mxu0 %v11115
    %11134 = vmatprep.subr.bf16.mxu0 0
    %11135 = vmatpush1.bf16.msra.mxu0 %v11116
    %11136 = vmatprep.subr.bf16.mxu0 0
    %11137 = vmatpush1.bf16.msra.mxu0 %v11117
    %11138 = vmatprep.subr.bf16.mxu0 0
    %11139 = vmatpush1.bf16.msra.mxu0 %v11118
    %11140 = vmatprep.subr.bf16.mxu0 0
    %11141 = vmatpush1.bf16.msra.mxu0 %v11119
    %11142 = vmatprep.subr.bf16.mxu0 0
    %11143 = vmatpush1.bf16.msra.mxu0 %v11120
    %11144 = vmatprep.subr.bf16.mxu0 0
    %11145 = vmatpush1.bf16.msra.mxu0 %v11121
    %11146 = vmatprep.subr.bf16.mxu0 0
    %11147 = vmatpush1.bf16.msra.mxu0 0
    %11148 = vmatprep.subr.bf16.mxu0 0
    %11149 = vmatpush1.bf16.msra.mxu0 0
    %11150 = vmatprep.subr.bf16.mxu0 0
    %11151 = vmatpush1.bf16.msra.mxu0 0
    %11152 = vmatprep.subr.bf16.mxu0 0
    %11153 = vmatpush1.bf16.msra.mxu0 0
    %11154 = vmatprep.subr.bf16.mxu0 0
    %11155 = vmatpush1.bf16.msra.mxu0 0
    %11156 = vmatprep.subr.bf16.mxu0 0
    %11157 = vmatpush1.bf16.msra.mxu0 0
    %11158 = vmatprep.subr.bf16.mxu0 0
    %11159 = vmatpush1.bf16.msra.mxu0 0
    %11160 = vmatprep.subr.bf16.mxu0 0
    %11161 = vmatpush1.bf16.msra.mxu0 0
    %11162 = vmatprep.mubr.bf16.mxu0 0
    %11163 = vmatmul.mubr.bf16.gmra.mrb[0].mxu0 %v11058
    %v11164 = vpop.f32.mrb[0].mxu0
    %v11165 = vadd.f32 %v11080, %v11164
    %v11166 = vpop.f32.mrb[0].mxu0
    %v11167 = vpop.f32.mrb[0].mxu0
    %v11168 = vpop.f32.mrb[0].mxu0
    %11169 = vdwg.mxu0
    %11170 = vst [vmem:[#allocation19] sm:$0x3] %v11165
    // Predicated region
    $region70: #{cnn_forward.1} parent=1 // pred_check
      _
    $region71: #{cnn_forward.1} parent=1 // pred_check_branch
      %11172 = sbr.rel (0) target = $region73
    $region72: #{cnn_forward.1} parent=1 // pred_region
      %s11174 = ssub.s32 32, 32
      %11175 = vsyncadd [#allocation7], %s11174
      %s11177 = sshll.u32 [#allocation19], 4
      %s11178 = int_to_ptr.vmem [resolvable:$true] %s11177
      %11180 = dma.vmem_to_hbm [thread:$0]  %s11178, 32, %s9, [#allocation7]
    $region73: #{cnn_forward.1} parent=1 // pred_fallthru
      _
    // Predicated region
    $region74: #{cnn_forward.1} parent=1 // pred_check
      _
    $region75: #{cnn_forward.1} parent=1 // pred_check_branch
      %11182 = sbr.rel (0) target = $region77
    $region76: #{cnn_forward.1} parent=1 // pred_region
      %11183 = dma.done [#allocation7], 32
    $region77: #{cnn_forward.1} parent=1 // pred_fallthru
      _
    %11184 = vsyncpa [#allocation6], 1
    %11185 = vsyncpa [#allocation9], 1
    %11186 = vsyncpa [#allocation12], 1
    %11187 = vsyncpa [#allocation15], 1
    %11188 = vsyncpa [#allocation18], 1
    %11189 = vsyncpa [#allocation7], 1

</llo_original>
